<compile_context>
chip_gen: v6e
topology: v6e:2x2x1
jax: 0.10.0
libtpu: 0.0.40
codegen_flags: <defaults>
</compile_context>

<pallas_src>
import functools

import numpy as np

import jax
import jax.numpy as jnp
from jax.experimental import pallas as pl
from jax.experimental.pallas import tpu as pltpu


# ----------------------------- in-kernel helpers -----------------------------

def _pixelnorm(y):
    # x * rsqrt(mean(x**2, channels) + 1e-8); channels are the last (lane) axis.
    return y * jax.lax.rsqrt(jnp.mean(y * y, axis=-1, keepdims=True) + 1e-8)


def _lrelu(y):
    return jnp.where(y > 0, y, 0.2 * y)


def _apply_mode(y, mode):
    if mode == "pn_lrelu":     # ConvBlock: PixelNorm then LeakyReLU
        return _lrelu(_pixelnorm(y))
    if mode == "lrelu_pn":     # embed WSConv2d: LeakyReLU then PixelNorm
        return _pixelnorm(_lrelu(y))
    return y                   # "none": to-RGB


def _conv3x3_flat(flat, w_ref, b_ref, wp, mode, mask=None):
    """3x3 conv (stride 1, pad 1) as one implicit GEMM on the flat padded image.

    flat: ((res+2)*(res+2), Cin) f32, zero ring, row stride wp = res+2.
    w_ref: (9*Cin, Cout) bf16 (WS scale folded), b_ref: (1, Cout) f32.
    Returns ((res+2)^2, Cout) f32 in the same layout; ring re-zeroed iff mask
    (an (L,1) interior mask) is given.
    """
    L, cin = flat.shape
    zpad = jnp.zeros((wp + 1, cin), jnp.bfloat16)
    # single bf16 cast of the activation tile, then 9 shifted row-slices
    ext = jnp.concatenate([zpad, flat.astype(jnp.bfloat16), zpad], axis=0)
    taps = [ext[kh * wp + kw: kh * wp + kw + L, :]
            for kh in range(3) for kw in range(3)]
    patches = jnp.concatenate(taps, axis=-1)                 # (L, 9*Cin)
    y = jnp.dot(patches, w_ref[...], preferred_element_type=jnp.float32)
    y = _apply_mode(y + b_ref[...], mode)
    if mask is not None:
        y = y * mask                                         # restore zero ring
    return y


def _up2x_flat(u_ref, flat):
    """2x bilinear upsample (align_corners=False) as one MXU matmul.

    u_ref: (L_big, L_small) bf16 resident constant; input/output are the flat
    zero-ring padded layouts (ring columns of U are zero, ring rows of the
    output are zero by construction).
    """
    return jnp.dot(u_ref[...], flat.astype(jnp.bfloat16),
                   preferred_element_type=jnp.float32)


# ------------------------------ the fused kernel ------------------------------

def _generator_kernel(p, res_list, *refs):
    """One grid step == one batch image; the entire Generator forward in VMEM.

    refs layout:
      x, embed_scatter, ct_w, ct_b, embed_w, embed_b, mask4,
      [per stage i: U_i, w1_i, b1_i, w2_i, b2_i, mask_i]  (6*p refs),
      then to-RGB refs (p==0: ow, ob ; p>0: ow_lo, ob_lo, ow_hi, ob_hi, alpha),
      then out_ref.
    """
    (x_ref, scat_ref, ct_w_ref, ct_b_ref,
     embed_w_ref, embed_b_ref, mask4_ref) = refs[:7]
    rest = refs[7:]
    stage_refs = rest[:6 * p]
    tail = rest[6 * p:-1]
    out_ref = rest[-1]

    # --- embed: WSConvTranspose2d(latent -> dim, 4x4 from 1x1) + PixelNorm + LeakyReLU
    # One GEMM: block-one-hot scatter matrix * tiled latent gives the (36, 16*latent)
    # LHS, so the 16 spatial taps land directly in the flat padded 6x6 layout.
    xl = x_ref[0]                                            # (1, latent) bf16
    xt = jnp.concatenate([xl] * 16, axis=1)                  # (1, 16*latent) bf16
    lhs = scat_ref[...] * xt                                 # (36, 16*latent) bf16
    h = jnp.dot(lhs, ct_w_ref[...], preferred_element_type=jnp.float32) + ct_b_ref[...]
    h = _lrelu(_pixelnorm(h)) * mask4_ref[...]               # zero ring -> canonical

    # --- embed: WSConv2d(dim, dim, 3, 1, 1) + LeakyReLU + PixelNorm
    cur = _conv3x3_flat(h, embed_w_ref, embed_b_ref, 6, "lrelu_pn", mask4_ref[...])

    # --- progressive stages: upsample 2x + ConvBlock (conv+PN+LReLU twice)
    lower = cur
    for i in range(p):
        u_ref, w1_ref, b1_ref, w2_ref, b2_ref, m_ref = stage_refs[6 * i: 6 * (i + 1)]
        wp = res_list[i + 1] + 2
        lower = cur                                          # pre-upsample activation
        cur = _up2x_flat(u_ref, cur)
        cur = _conv3x3_flat(cur, w1_ref, b1_ref, wp, "pn_lrelu", m_ref[...])
        cur = _conv3x3_flat(cur, w2_ref, b2_ref, wp, "pn_lrelu", m_ref[...])

    # --- to-RGB (+ fade) + tanh, on the real channel count (no lane padding)
    if p == 0:
        ow_ref, ob_ref = tail
        final = jnp.tanh(_conv3x3_flat(cur, ow_ref, ob_ref, 6, "none"))
        wp_f, res_f = 6, res_list[0]
    else:
        ow_lo, ob_lo, ow_hi, ob_hi, alpha_ref = tail
        wp_lo = res_list[p - 1] + 2
        wp_f, res_f = res_list[p] + 2, res_list[p]
        rgb_lo = _conv3x3_flat(lower, ow_lo, ob_lo, wp_lo, "none")
        rgb_lo = _up2x_flat(stage_refs[6 * (p - 1)], rgb_lo)   # reuse last-stage U
        rgb_hi = _conv3x3_flat(cur, ow_hi, ob_hi, wp_f, "none")
        a = alpha_ref[0, 0]                                    # SMEM scalar
        final = jnp.tanh(a * rgb_hi + (1.0 - a) * rgb_lo)

    # extract the interior pixels of the padded layout -> (res*res, channel_size)
    rows = [final[(i + 1) * wp_f + 1: (i + 1) * wp_f + 1 + res_f, :]
            for i in range(res_f)]
    out_ref[0] = jnp.concatenate(rows, axis=0)


# --------------------------- host-side constant tables -------------------------

@functools.lru_cache(maxsize=None)
def _interior_mask(res):
    """(L, 1) f32, 1 on the interior of the (res+2)x(res+2) padded grid, 0 on the ring."""
    hp = res + 2
    m = np.zeros((hp, hp), np.float32)
    m[1:-1, 1:-1] = 1.0
    return jnp.asarray(m.reshape(hp * hp, 1))


@functools.lru_cache(maxsize=None)
def _embed_scatter(latent):
    """(36, 16*latent) bf16 block-one-hot matrix: spatial tap s -> padded flat row."""
    e = np.zeros((36, 16 * latent), np.float32)
    for i in range(4):
        for j in range(4):
            s = i * 4 + j
            r = (i + 1) * 6 + (j + 1)
            e[r, s * latent:(s + 1) * latent] = 1.0
    return jnp.asarray(e, jnp.bfloat16)


@functools.lru_cache(maxsize=None)
def _upsample_matrix(res):
    """Bilinear 2x (align_corners=False, edge-clamped) upsample as a flat linear map.

    Maps the padded-flat layout at `res` to the padded-flat layout at `2*res`;
    ring rows are zero, ring columns unused.  Weights are multiples of 1/16 ->
    exact in bf16.
    """
    hs, hb = res, 2 * res
    ls, lb = (hs + 2) ** 2, (hb + 2) ** 2
    u = np.zeros((lb, ls), np.float32)

    def taps(o):
        pos = o / 2.0 - 0.25                 # (o + 0.5)/2 - 0.5
        i0 = int(np.floor(pos))
        w1 = pos - i0
        i0c = min(max(i0, 0), hs - 1)
        i1c = min(max(i0 + 1, 0), hs - 1)
        return [(i0c, 1.0 - w1), (i1c, w1)]

    for oi in range(hb):
        for oj in range(hb):
            r = (oi + 1) * (hb + 2) + (oj + 1)
            for ii, wi in taps(oi):
                for jj, wj in taps(oj):
                    c = (ii + 1) * (hs + 2) + (jj + 1)
                    u[r, c] += wi * wj
    return jnp.asarray(u, jnp.bfloat16)


# ------------------------------ parameter setup -------------------------------

def init_params(key, args, dim_mults=(1, 1, 1, 1, 2, 4, 4)):
    hidden = [int(args.dim / m) for m in dim_mults]
    keys = iter(jax.random.split(key, 64))
    normal = lambda k, s: jax.random.normal(k, s, jnp.float32)   # nn.init.normal_
    params = {"dim": args.dim, "latent": args.latent,
              "channel_size": args.channel_size, "hidden": hidden}

    # embed[0]: WSConvTranspose2d(latent, dim, 4, 1, 0); torch weight (Cin, Cout, 4, 4)
    w = normal(next(keys), (args.latent, args.dim, 4, 4))
    scale = (2.0 / (args.latent * 4 * 4)) ** 0.5
    params["ct_w"] = (jnp.transpose(w, (2, 3, 0, 1))
                      .reshape(16 * args.latent, args.dim) * scale).astype(jnp.bfloat16)
    params["ct_b"] = jnp.zeros((1, args.dim), jnp.float32)

    def conv_w(k, cin, cout):
        # torch weight (Cout, Cin, 3, 3) -> (9*Cin, Cout) GEMM layout, WS scale folded
        wt = normal(k, (cout, cin, 3, 3))
        s = (2.0 / (cin * 9)) ** 0.5
        return (jnp.transpose(wt, (2, 3, 1, 0)).reshape(9 * cin, cout) * s).astype(jnp.bfloat16)

    # embed[3]: WSConv2d(dim, dim, 3, 1, 1)
    params["embed_w"] = conv_w(next(keys), args.dim, args.dim)
    params["embed_b"] = jnp.zeros((1, args.dim), jnp.float32)

    blocks = []
    for cin, cout in zip(hidden[:-1], hidden[1:]):
        blocks.append(dict(
            w1=conv_w(next(keys), cin, cout), b1=jnp.zeros((1, cout), jnp.float32),
            w2=conv_w(next(keys), cout, cout), b2=jnp.zeros((1, cout), jnp.float32)))
    params["blocks"] = blocks

    outs = []
    for cin in hidden:
        outs.append(dict(w=conv_w(next(keys), cin, args.channel_size),
                         b=jnp.zeros((1, args.channel_size), jnp.float32)))
    params["out"] = outs
    return params


# --------------------------------- forward ------------------------------------

def _resident_spec(arr):
    """Whole-array VMEM block with a constant index_map (fetched once, resident)."""
    zeros = (0,) * arr.ndim
    return pl.BlockSpec(arr.shape, lambda n, _z=zeros: _z)


def generator_forward(params, x, p, alpha):
    """x: (N, latent, 1, 1) (PyTorch NCHW latent).  p: python int, alpha: scalar.

    Returns the generated image in NHWC layout: (N, res, res, channel_size)
    (== PyTorch output transposed).
    """
    N, latent = x.shape[0], x.shape[1]
    csize = params["channel_size"]
    res_list = tuple(4 * (2 ** i) for i in range(p + 1))
    res_f = res_list[-1]

    x3 = x.reshape(N, 1, latent).astype(jnp.bfloat16)

    inputs = [x3, _embed_scatter(latent), params["ct_w"], params["ct_b"],
              params["embed_w"], params["embed_b"], _interior_mask(4)]
    in_specs = [pl.BlockSpec((1, 1, latent), lambda n: (n, 0, 0))]
    in_specs += [_resident_spec(a) for a in inputs[1:]]

    for i in range(p):
        blk = params["blocks"][i]
        extra = [_upsample_matrix(res_list[i]), blk["w1"], blk["b1"],
                 blk["w2"], blk["b2"], _interior_mask(res_list[i + 1])]
        inputs += extra
        in_specs += [_resident_spec(a) for a in extra]

    if p == 0:
        extra = [params["out"][0]["w"], params["out"][0]["b"]]
        inputs += extra
        in_specs += [_resident_spec(a) for a in extra]
    else:
        extra = [params["out"][p - 1]["w"], params["out"][p - 1]["b"],
                 params["out"][p]["w"], params["out"][p]["b"]]
        inputs += extra
        in_specs += [_resident_spec(a) for a in extra]
        # alpha as an SMEM scalar (no VMEM tile / DMA / vector broadcast needed)
        inputs.append(jnp.asarray(alpha, jnp.float32).reshape(1, 1))
        in_specs.append(pl.BlockSpec(memory_space=pltpu.MemorySpace.SMEM))

    out = pl.pallas_call(
        functools.partial(_generator_kernel, p, res_list),
        grid=(N,),
        in_specs=in_specs,
        out_specs=pl.BlockSpec((1, res_f * res_f, csize), lambda n: (n, 0, 0)),
        out_shape=jax.ShapeDtypeStruct((N, res_f * res_f, csize), jnp.float32),
        compiler_params=pltpu.CompilerParams(
            # TODO(synk): add a second "parallel" axis (row tiles) so both v7x
            # TensorCores stay busy when N == 1 / N is odd.
            dimension_semantics=("parallel",),
            vmem_limit_bytes=32 * 1024 * 1024),
    )(*inputs)
    return out.reshape(N, res_f, res_f, csize)     # free row-major reshape, NHWC


# ----------------------------------- main --------------------------------------

if __name__ == "__main__":
    class Args:
        latent = 16
        dim = 32
        channel_size = 3

    args = Args()
    kp, kx = jax.random.split(jax.random.PRNGKey(0))
    params = init_params(kp, args)

    N = 2
    x = jax.random.normal(kx, (N, args.latent, 1, 1), jnp.float32)

    # p > 0: exercises upsample, ConvBlocks and the fused to-RGB + fade + tanh path.
    p, alpha = 2, 0.7
    out = jax.block_until_ready(generator_forward(params, x, p, alpha))
    res = 4 * (2 ** p)
    assert out.shape == (N, res, res, args.channel_size), out.shape
    assert bool(jnp.all(jnp.isfinite(out)))
    assert bool(jnp.max(jnp.abs(out)) <= 1.0)            # tanh-bounded

    # p == 1: fade path where "lower" is the embed output.
    out1 = jax.block_until_ready(generator_forward(params, x, 1, 0.3))
    assert out1.shape == (N, 8, 8, args.channel_size), out1.shape
    assert bool(jnp.all(jnp.isfinite(out1)))

    # p == 0: to-RGB conv with fused tanh only.
    out0 = jax.block_until_ready(generator_forward(params, x, 0, alpha))
    assert out0.shape == (N, 4, 4, args.channel_size), out0.shape
    assert bool(jnp.all(jnp.isfinite(out0)))

    print("KERNEL_OK")
</pallas_src>

<mosaic_0001>
module attributes {stable_mosaic.version = 11 : i64} {
  func.func @_generator_kernel(%arg0: i32, %arg1: memref<1x1x16xbf16, #tpu.memory_space<vmem>>, %arg2: memref<36x256xbf16, #tpu.memory_space<vmem>>, %arg3: memref<256x32xbf16, #tpu.memory_space<vmem>>, %arg4: memref<1x32xf32, #tpu.memory_space<vmem>>, %arg5: memref<288x32xbf16, #tpu.memory_space<vmem>>, %arg6: memref<1x32xf32, #tpu.memory_space<vmem>>, %arg7: memref<36x1xf32, #tpu.memory_space<vmem>>, %arg8: memref<100x36xbf16, #tpu.memory_space<vmem>>, %arg9: memref<288x32xbf16, #tpu.memory_space<vmem>>, %arg10: memref<1x32xf32, #tpu.memory_space<vmem>>, %arg11: memref<288x32xbf16, #tpu.memory_space<vmem>>, %arg12: memref<1x32xf32, #tpu.memory_space<vmem>>, %arg13: memref<100x1xf32, #tpu.memory_space<vmem>>, %arg14: memref<324x100xbf16, #tpu.memory_space<vmem>>, %arg15: memref<288x32xbf16, #tpu.memory_space<vmem>>, %arg16: memref<1x32xf32, #tpu.memory_space<vmem>>, %arg17: memref<288x32xbf16, #tpu.memory_space<vmem>>, %arg18: memref<1x32xf32, #tpu.memory_space<vmem>>, %arg19: memref<324x1xf32, #tpu.memory_space<vmem>>, %arg20: memref<288x3xbf16, #tpu.memory_space<vmem>>, %arg21: memref<1x3xf32, #tpu.memory_space<vmem>>, %arg22: memref<288x3xbf16, #tpu.memory_space<vmem>>, %arg23: memref<1x3xf32, #tpu.memory_space<vmem>>, %arg24: memref<1x1xf32, #tpu.memory_space<smem>>, %arg25: memref<1x256x3xf32, #tpu.memory_space<vmem>>) attributes {dimension_semantics = [#tpu.dimension_semantics<parallel>], iteration_bounds = array<i64: 2>, scalar_prefetch = 0 : i64, scratch_operands = 0 : i64, tpu.core_type = #tpu.core_type<tc>, window_params = [{transform_indices = @transform_0, window_bounds = array<i64: 1, 1, 16>}, {pipeline_mode = #tpu.pipeline_mode<synchronous>, transform_indices = @transform_1, window_bounds = array<i64: 36, 256>}, {pipeline_mode = #tpu.pipeline_mode<synchronous>, transform_indices = @transform_2, window_bounds = array<i64: 256, 32>}, {pipeline_mode = #tpu.pipeline_mode<synchronous>, transform_indices = @transform_3, window_bounds = array<i64: 1, 32>}, {pipeline_mode = #tpu.pipeline_mode<synchronous>, transform_indices = @transform_4, window_bounds = array<i64: 288, 32>}, {pipeline_mode = #tpu.pipeline_mode<synchronous>, transform_indices = @transform_5, window_bounds = array<i64: 1, 32>}, {pipeline_mode = #tpu.pipeline_mode<synchronous>, transform_indices = @transform_6, window_bounds = array<i64: 36, 1>}, {pipeline_mode = #tpu.pipeline_mode<synchronous>, transform_indices = @transform_7, window_bounds = array<i64: 100, 36>}, {pipeline_mode = #tpu.pipeline_mode<synchronous>, transform_indices = @transform_8, window_bounds = array<i64: 288, 32>}, {pipeline_mode = #tpu.pipeline_mode<synchronous>, transform_indices = @transform_9, window_bounds = array<i64: 1, 32>}, {pipeline_mode = #tpu.pipeline_mode<synchronous>, transform_indices = @transform_10, window_bounds = array<i64: 288, 32>}, {pipeline_mode = #tpu.pipeline_mode<synchronous>, transform_indices = @transform_11, window_bounds = array<i64: 1, 32>}, {pipeline_mode = #tpu.pipeline_mode<synchronous>, transform_indices = @transform_12, window_bounds = array<i64: 100, 1>}, {pipeline_mode = #tpu.pipeline_mode<synchronous>, transform_indices = @transform_13, window_bounds = array<i64: 324, 100>}, {pipeline_mode = #tpu.pipeline_mode<synchronous>, transform_indices = @transform_14, window_bounds = array<i64: 288, 32>}, {pipeline_mode = #tpu.pipeline_mode<synchronous>, transform_indices = @transform_15, window_bounds = array<i64: 1, 32>}, {pipeline_mode = #tpu.pipeline_mode<synchronous>, transform_indices = @transform_16, window_bounds = array<i64: 288, 32>}, {pipeline_mode = #tpu.pipeline_mode<synchronous>, transform_indices = @transform_17, window_bounds = array<i64: 1, 32>}, {pipeline_mode = #tpu.pipeline_mode<synchronous>, transform_indices = @transform_18, window_bounds = array<i64: 324, 1>}, {pipeline_mode = #tpu.pipeline_mode<synchronous>, transform_indices = @transform_19, window_bounds = array<i64: 288, 3>}, {pipeline_mode = #tpu.pipeline_mode<synchronous>, transform_indices = @transform_20, window_bounds = array<i64: 1, 3>}, {pipeline_mode = #tpu.pipeline_mode<synchronous>, transform_indices = @transform_21, window_bounds = array<i64: 288, 3>}, {pipeline_mode = #tpu.pipeline_mode<synchronous>, transform_indices = @transform_22, window_bounds = array<i64: 1, 3>}, {transform_indices = @transform_23, window_bounds = array<i64: 1, 1>}, {transform_indices = @transform_24, window_bounds = array<i64: 1, 256, 3>}]} {
    %c0 = arith.constant 0 : index
    %c0_0 = arith.constant 0 : index
    %c0_1 = arith.constant 0 : index
    %0 = vector.load %arg1[%c0, %c0_0, %c0_1] : memref<1x1x16xbf16, #tpu.memory_space<vmem>>, vector<1x1x16xbf16>
    %1 = vector.shape_cast %0 : vector<1x1x16xbf16> to vector<1x16xbf16>
    %2 = tpu.concatenate %1, %1, %1, %1, %1, %1, %1, %1, %1, %1, %1, %1, %1, %1, %1, %1 in 1 : vector<1x16xbf16>, vector<1x16xbf16>, vector<1x16xbf16>, vector<1x16xbf16>, vector<1x16xbf16>, vector<1x16xbf16>, vector<1x16xbf16>, vector<1x16xbf16>, vector<1x16xbf16>, vector<1x16xbf16>, vector<1x16xbf16>, vector<1x16xbf16>, vector<1x16xbf16>, vector<1x16xbf16>, vector<1x16xbf16>, vector<1x16xbf16> -> vector<1x256xbf16>
    %c0_2 = arith.constant 0 : index
    %c0_3 = arith.constant 0 : index
    %3 = vector.load %arg2[%c0_2, %c0_3] : memref<36x256xbf16, #tpu.memory_space<vmem>>, vector<36x256xbf16>
    %4 = vector.broadcast %2 : vector<1x256xbf16> to vector<36x256xbf16>
    %5 = arith.mulf %3, %4 : vector<36x256xbf16>
    %c0_4 = arith.constant 0 : index
    %c0_5 = arith.constant 0 : index
    %6 = vector.load %arg3[%c0_4, %c0_5] : memref<256x32xbf16, #tpu.memory_space<vmem>>, vector<256x32xbf16>
    %cst = arith.constant dense<0.000000e+00> : vector<36x32xf32>
    %7 = tpu.matmul %5, %6, %cst {dimension_numbers = #tpu.dot_dimension_numbers<[1], [0], [0], [1], [0, 0, 1, 1], [], []>} : vector<36x256xbf16>, vector<256x32xbf16>, vector<36x32xf32> -> vector<36x32xf32>
    %c0_6 = arith.constant 0 : index
    %c0_7 = arith.constant 0 : index
    %8 = vector.load %arg4[%c0_6, %c0_7] : memref<1x32xf32, #tpu.memory_space<vmem>>, vector<1x32xf32>
    %9 = vector.broadcast %8 : vector<1x32xf32> to vector<36x32xf32>
    %10 = arith.addf %7, %9 : vector<36x32xf32>
    %11 = arith.mulf %10, %10 : vector<36x32xf32>
    %cst_8 = arith.constant dense<0.000000e+00> : vector<36xf32>
    %12 = vector.multi_reduction <add>, %11, %cst_8 [1] : vector<36x32xf32> to vector<36xf32>
    %13 = vector.shape_cast %12 : vector<36xf32> to vector<36x1xf32>
    %cst_9 = arith.constant 3.200000e+01 : f32
    %14 = vector.broadcast %cst_9 : f32 to vector<36x1xf32>
    %15 = arith.divf %13, %14 : vector<36x1xf32>
    %cst_10 = arith.constant 9.99999993E-9 : f32
    %16 = vector.broadcast %cst_10 : f32 to vector<36x1xf32>
    %17 = arith.addf %15, %16 : vector<36x1xf32>
    %18 = math.rsqrt %17 : vector<36x1xf32>
    %19 = vector.broadcast %18 : vector<36x1xf32> to vector<36x32xf32>
    %20 = arith.mulf %10, %19 : vector<36x32xf32>
    %cst_11 = arith.constant 0.000000e+00 : f32
    %21 = vector.broadcast %cst_11 : f32 to vector<36x32xf32>
    %22 = arith.cmpf ogt, %20, %21 : vector<36x32xf32>
    %cst_12 = arith.constant 2.000000e-01 : f32
    %23 = vector.broadcast %cst_12 : f32 to vector<36x32xf32>
    %24 = arith.mulf %23, %20 : vector<36x32xf32>
    %25 = arith.select %22, %20, %24 : vector<36x32xi1>, vector<36x32xf32>
    %c0_13 = arith.constant 0 : index
    %c0_14 = arith.constant 0 : index
    %26 = vector.load %arg7[%c0_13, %c0_14] : memref<36x1xf32, #tpu.memory_space<vmem>>, vector<36x1xf32>
    %27 = vector.broadcast %26 : vector<36x1xf32> to vector<36x32xf32>
    %28 = arith.mulf %25, %27 : vector<36x32xf32>
    %c0_15 = arith.constant 0 : index
    %c0_16 = arith.constant 0 : index
    %29 = vector.load %arg7[%c0_15, %c0_16] : memref<36x1xf32, #tpu.memory_space<vmem>>, vector<36x1xf32>
    %cst_17 = arith.constant 0.000000e+00 : bf16
    %30 = vector.broadcast %cst_17 : bf16 to vector<7x32xbf16>
    %31 = arith.truncf %28 : vector<36x32xf32> to vector<36x32xbf16>
    %32 = tpu.concatenate %30, %31, %30 in 0 : vector<7x32xbf16>, vector<36x32xbf16>, vector<7x32xbf16> -> vector<50x32xbf16>
    %33 = vector.extract_strided_slice %32 {offsets = [0, 0], sizes = [36, 32], strides = [1, 1]} : vector<50x32xbf16> to vector<36x32xbf16>
    %34 = vector.extract_strided_slice %32 {offsets = [1, 0], sizes = [36, 32], strides = [1, 1]} : vector<50x32xbf16> to vector<36x32xbf16>
    %35 = vector.extract_strided_slice %32 {offsets = [2, 0], sizes = [36, 32], strides = [1, 1]} : vector<50x32xbf16> to vector<36x32xbf16>
    %36 = vector.extract_strided_slice %32 {offsets = [6, 0], sizes = [36, 32], strides = [1, 1]} : vector<50x32xbf16> to vector<36x32xbf16>
    %37 = vector.extract_strided_slice %32 {offsets = [7, 0], sizes = [36, 32], strides = [1, 1]} : vector<50x32xbf16> to vector<36x32xbf16>
    %38 = vector.extract_strided_slice %32 {offsets = [8, 0], sizes = [36, 32], strides = [1, 1]} : vector<50x32xbf16> to vector<36x32xbf16>
    %39 = vector.extract_strided_slice %32 {offsets = [12, 0], sizes = [36, 32], strides = [1, 1]} : vector<50x32xbf16> to vector<36x32xbf16>
    %40 = vector.extract_strided_slice %32 {offsets = [13, 0], sizes = [36, 32], strides = [1, 1]} : vector<50x32xbf16> to vector<36x32xbf16>
    %41 = vector.extract_strided_slice %32 {offsets = [14, 0], sizes = [36, 32], strides = [1, 1]} : vector<50x32xbf16> to vector<36x32xbf16>
    %42 = tpu.concatenate %33, %34, %35, %36, %37, %38, %39, %40, %41 in 1 : vector<36x32xbf16>, vector<36x32xbf16>, vector<36x32xbf16>, vector<36x32xbf16>, vector<36x32xbf16>, vector<36x32xbf16>, vector<36x32xbf16>, vector<36x32xbf16>, vector<36x32xbf16> -> vector<36x288xbf16>
    %c0_18 = arith.constant 0 : index
    %c0_19 = arith.constant 0 : index
    %43 = vector.load %arg5[%c0_18, %c0_19] : memref<288x32xbf16, #tpu.memory_space<vmem>>, vector<288x32xbf16>
    %cst_20 = arith.constant dense<0.000000e+00> : vector<36x32xf32>
    %44 = tpu.matmul %42, %43, %cst_20 {dimension_numbers = #tpu.dot_dimension_numbers<[1], [0], [0], [1], [0, 0, 1, 1], [], []>} : vector<36x288xbf16>, vector<288x32xbf16>, vector<36x32xf32> -> vector<36x32xf32>
    %c0_21 = arith.constant 0 : index
    %c0_22 = arith.constant 0 : index
    %45 = vector.load %arg6[%c0_21, %c0_22] : memref<1x32xf32, #tpu.memory_space<vmem>>, vector<1x32xf32>
    %46 = vector.broadcast %45 : vector<1x32xf32> to vector<36x32xf32>
    %47 = arith.addf %44, %46 : vector<36x32xf32>
    %cst_23 = arith.constant 0.000000e+00 : f32
    %48 = vector.broadcast %cst_23 : f32 to vector<36x32xf32>
    %49 = arith.cmpf ogt, %47, %48 : vector<36x32xf32>
    %cst_24 = arith.constant 2.000000e-01 : f32
    %50 = vector.broadcast %cst_24 : f32 to vector<36x32xf32>
    %51 = arith.mulf %50, %47 : vector<36x32xf32>
    %52 = arith.select %49, %47, %51 : vector<36x32xi1>, vector<36x32xf32>
    %53 = arith.mulf %52, %52 : vector<36x32xf32>
    %cst_25 = arith.constant dense<0.000000e+00> : vector<36xf32>
    %54 = vector.multi_reduction <add>, %53, %cst_25 [1] : vector<36x32xf32> to vector<36xf32>
    %55 = vector.shape_cast %54 : vector<36xf32> to vector<36x1xf32>
    %cst_26 = arith.constant 3.200000e+01 : f32
    %56 = vector.broadcast %cst_26 : f32 to vector<36x1xf32>
    %57 = arith.divf %55, %56 : vector<36x1xf32>
    %cst_27 = arith.constant 9.99999993E-9 : f32
    %58 = vector.broadcast %cst_27 : f32 to vector<36x1xf32>
    %59 = arith.addf %57, %58 : vector<36x1xf32>
    %60 = math.rsqrt %59 : vector<36x1xf32>
    %61 = vector.broadcast %60 : vector<36x1xf32> to vector<36x32xf32>
    %62 = arith.mulf %52, %61 : vector<36x32xf32>
    %63 = vector.broadcast %29 : vector<36x1xf32> to vector<36x32xf32>
    %64 = arith.mulf %62, %63 : vector<36x32xf32>
    %c0_28 = arith.constant 0 : index
    %c0_29 = arith.constant 0 : index
    %65 = vector.load %arg8[%c0_28, %c0_29] : memref<100x36xbf16, #tpu.memory_space<vmem>>, vector<100x36xbf16>
    %66 = arith.truncf %64 : vector<36x32xf32> to vector<36x32xbf16>
    %cst_30 = arith.constant dense<0.000000e+00> : vector<100x32xf32>
    %67 = tpu.matmul %65, %66, %cst_30 {dimension_numbers = #tpu.dot_dimension_numbers<[1], [0], [0], [1], [0, 0, 1, 1], [], []>} : vector<100x36xbf16>, vector<36x32xbf16>, vector<100x32xf32> -> vector<100x32xf32>
    %c0_31 = arith.constant 0 : index
    %c0_32 = arith.constant 0 : index
    %68 = vector.load %arg13[%c0_31, %c0_32] : memref<100x1xf32, #tpu.memory_space<vmem>>, vector<100x1xf32>
    %cst_33 = arith.constant 0.000000e+00 : bf16
    %69 = vector.broadcast %cst_33 : bf16 to vector<11x32xbf16>
    %70 = arith.truncf %67 : vector<100x32xf32> to vector<100x32xbf16>
    %71 = tpu.concatenate %69, %70, %69 in 0 : vector<11x32xbf16>, vector<100x32xbf16>, vector<11x32xbf16> -> vector<122x32xbf16>
    %72 = vector.extract_strided_slice %71 {offsets = [0, 0], sizes = [100, 32], strides = [1, 1]} : vector<122x32xbf16> to vector<100x32xbf16>
    %73 = vector.extract_strided_slice %71 {offsets = [1, 0], sizes = [100, 32], strides = [1, 1]} : vector<122x32xbf16> to vector<100x32xbf16>
    %74 = vector.extract_strided_slice %71 {offsets = [2, 0], sizes = [100, 32], strides = [1, 1]} : vector<122x32xbf16> to vector<100x32xbf16>
    %75 = vector.extract_strided_slice %71 {offsets = [10, 0], sizes = [100, 32], strides = [1, 1]} : vector<122x32xbf16> to vector<100x32xbf16>
    %76 = vector.extract_strided_slice %71 {offsets = [11, 0], sizes = [100, 32], strides = [1, 1]} : vector<122x32xbf16> to vector<100x32xbf16>
    %77 = vector.extract_strided_slice %71 {offsets = [12, 0], sizes = [100, 32], strides = [1, 1]} : vector<122x32xbf16> to vector<100x32xbf16>
    %78 = vector.extract_strided_slice %71 {offsets = [20, 0], sizes = [100, 32], strides = [1, 1]} : vector<122x32xbf16> to vector<100x32xbf16>
    %79 = vector.extract_strided_slice %71 {offsets = [21, 0], sizes = [100, 32], strides = [1, 1]} : vector<122x32xbf16> to vector<100x32xbf16>
    %80 = vector.extract_strided_slice %71 {offsets = [22, 0], sizes = [100, 32], strides = [1, 1]} : vector<122x32xbf16> to vector<100x32xbf16>
    %81 = tpu.concatenate %72, %73, %74, %75, %76, %77, %78, %79, %80 in 1 : vector<100x32xbf16>, vector<100x32xbf16>, vector<100x32xbf16>, vector<100x32xbf16>, vector<100x32xbf16>, vector<100x32xbf16>, vector<100x32xbf16>, vector<100x32xbf16>, vector<100x32xbf16> -> vector<100x288xbf16>
    %c0_34 = arith.constant 0 : index
    %c0_35 = arith.constant 0 : index
    %82 = vector.load %arg9[%c0_34, %c0_35] : memref<288x32xbf16, #tpu.memory_space<vmem>>, vector<288x32xbf16>
    %cst_36 = arith.constant dense<0.000000e+00> : vector<100x32xf32>
    %83 = tpu.matmul %81, %82, %cst_36 {dimension_numbers = #tpu.dot_dimension_numbers<[1], [0], [0], [1], [0, 0, 1, 1], [], []>} : vector<100x288xbf16>, vector<288x32xbf16>, vector<100x32xf32> -> vector<100x32xf32>
    %c0_37 = arith.constant 0 : index
    %c0_38 = arith.constant 0 : index
    %84 = vector.load %arg10[%c0_37, %c0_38] : memref<1x32xf32, #tpu.memory_space<vmem>>, vector<1x32xf32>
    %85 = vector.broadcast %84 : vector<1x32xf32> to vector<100x32xf32>
    %86 = arith.addf %83, %85 : vector<100x32xf32>
    %87 = arith.mulf %86, %86 : vector<100x32xf32>
    %cst_39 = arith.constant dense<0.000000e+00> : vector<100xf32>
    %88 = vector.multi_reduction <add>, %87, %cst_39 [1] : vector<100x32xf32> to vector<100xf32>
    %89 = vector.shape_cast %88 : vector<100xf32> to vector<100x1xf32>
    %cst_40 = arith.constant 3.200000e+01 : f32
    %90 = vector.broadcast %cst_40 : f32 to vector<100x1xf32>
    %91 = arith.divf %89, %90 : vector<100x1xf32>
    %cst_41 = arith.constant 9.99999993E-9 : f32
    %92 = vector.broadcast %cst_41 : f32 to vector<100x1xf32>
    %93 = arith.addf %91, %92 : vector<100x1xf32>
    %94 = math.rsqrt %93 : vector<100x1xf32>
    %95 = vector.broadcast %94 : vector<100x1xf32> to vector<100x32xf32>
    %96 = arith.mulf %86, %95 : vector<100x32xf32>
    %cst_42 = arith.constant 0.000000e+00 : f32
    %97 = vector.broadcast %cst_42 : f32 to vector<100x32xf32>
    %98 = arith.cmpf ogt, %96, %97 : vector<100x32xf32>
    %cst_43 = arith.constant 2.000000e-01 : f32
    %99 = vector.broadcast %cst_43 : f32 to vector<100x32xf32>
    %100 = arith.mulf %99, %96 : vector<100x32xf32>
    %101 = arith.select %98, %96, %100 : vector<100x32xi1>, vector<100x32xf32>
    %102 = vector.broadcast %68 : vector<100x1xf32> to vector<100x32xf32>
    %103 = arith.mulf %101, %102 : vector<100x32xf32>
    %c0_44 = arith.constant 0 : index
    %c0_45 = arith.constant 0 : index
    %104 = vector.load %arg13[%c0_44, %c0_45] : memref<100x1xf32, #tpu.memory_space<vmem>>, vector<100x1xf32>
    %cst_46 = arith.constant 0.000000e+00 : bf16
    %105 = vector.broadcast %cst_46 : bf16 to vector<11x32xbf16>
    %106 = arith.truncf %103 : vector<100x32xf32> to vector<100x32xbf16>
    %107 = tpu.concatenate %105, %106, %105 in 0 : vector<11x32xbf16>, vector<100x32xbf16>, vector<11x32xbf16> -> vector<122x32xbf16>
    %108 = vector.extract_strided_slice %107 {offsets = [0, 0], sizes = [100, 32], strides = [1, 1]} : vector<122x32xbf16> to vector<100x32xbf16>
    %109 = vector.extract_strided_slice %107 {offsets = [1, 0], sizes = [100, 32], strides = [1, 1]} : vector<122x32xbf16> to vector<100x32xbf16>
    %110 = vector.extract_strided_slice %107 {offsets = [2, 0], sizes = [100, 32], strides = [1, 1]} : vector<122x32xbf16> to vector<100x32xbf16>
    %111 = vector.extract_strided_slice %107 {offsets = [10, 0], sizes = [100, 32], strides = [1, 1]} : vector<122x32xbf16> to vector<100x32xbf16>
    %112 = vector.extract_strided_slice %107 {offsets = [11, 0], sizes = [100, 32], strides = [1, 1]} : vector<122x32xbf16> to vector<100x32xbf16>
    %113 = vector.extract_strided_slice %107 {offsets = [12, 0], sizes = [100, 32], strides = [1, 1]} : vector<122x32xbf16> to vector<100x32xbf16>
    %114 = vector.extract_strided_slice %107 {offsets = [20, 0], sizes = [100, 32], strides = [1, 1]} : vector<122x32xbf16> to vector<100x32xbf16>
    %115 = vector.extract_strided_slice %107 {offsets = [21, 0], sizes = [100, 32], strides = [1, 1]} : vector<122x32xbf16> to vector<100x32xbf16>
    %116 = vector.extract_strided_slice %107 {offsets = [22, 0], sizes = [100, 32], strides = [1, 1]} : vector<122x32xbf16> to vector<100x32xbf16>
    %117 = tpu.concatenate %108, %109, %110, %111, %112, %113, %114, %115, %116 in 1 : vector<100x32xbf16>, vector<100x32xbf16>, vector<100x32xbf16>, vector<100x32xbf16>, vector<100x32xbf16>, vector<100x32xbf16>, vector<100x32xbf16>, vector<100x32xbf16>, vector<100x32xbf16> -> vector<100x288xbf16>
    %c0_47 = arith.constant 0 : index
    %c0_48 = arith.constant 0 : index
    %118 = vector.load %arg11[%c0_47, %c0_48] : memref<288x32xbf16, #tpu.memory_space<vmem>>, vector<288x32xbf16>
    %cst_49 = arith.constant dense<0.000000e+00> : vector<100x32xf32>
    %119 = tpu.matmul %117, %118, %cst_49 {dimension_numbers = #tpu.dot_dimension_numbers<[1], [0], [0], [1], [0, 0, 1, 1], [], []>} : vector<100x288xbf16>, vector<288x32xbf16>, vector<100x32xf32> -> vector<100x32xf32>
    %c0_50 = arith.constant 0 : index
    %c0_51 = arith.constant 0 : index
    %120 = vector.load %arg12[%c0_50, %c0_51] : memref<1x32xf32, #tpu.memory_space<vmem>>, vector<1x32xf32>
    %121 = vector.broadcast %120 : vector<1x32xf32> to vector<100x32xf32>
    %122 = arith.addf %119, %121 : vector<100x32xf32>
    %123 = arith.mulf %122, %122 : vector<100x32xf32>
    %cst_52 = arith.constant dense<0.000000e+00> : vector<100xf32>
    %124 = vector.multi_reduction <add>, %123, %cst_52 [1] : vector<100x32xf32> to vector<100xf32>
    %125 = vector.shape_cast %124 : vector<100xf32> to vector<100x1xf32>
    %cst_53 = arith.constant 3.200000e+01 : f32
    %126 = vector.broadcast %cst_53 : f32 to vector<100x1xf32>
    %127 = arith.divf %125, %126 : vector<100x1xf32>
    %cst_54 = arith.constant 9.99999993E-9 : f32
    %128 = vector.broadcast %cst_54 : f32 to vector<100x1xf32>
    %129 = arith.addf %127, %128 : vector<100x1xf32>
    %130 = math.rsqrt %129 : vector<100x1xf32>
    %131 = vector.broadcast %130 : vector<100x1xf32> to vector<100x32xf32>
    %132 = arith.mulf %122, %131 : vector<100x32xf32>
    %cst_55 = arith.constant 0.000000e+00 : f32
    %133 = vector.broadcast %cst_55 : f32 to vector<100x32xf32>
    %134 = arith.cmpf ogt, %132, %133 : vector<100x32xf32>
    %cst_56 = arith.constant 2.000000e-01 : f32
    %135 = vector.broadcast %cst_56 : f32 to vector<100x32xf32>
    %136 = arith.mulf %135, %132 : vector<100x32xf32>
    %137 = arith.select %134, %132, %136 : vector<100x32xi1>, vector<100x32xf32>
    %138 = vector.broadcast %104 : vector<100x1xf32> to vector<100x32xf32>
    %139 = arith.mulf %137, %138 : vector<100x32xf32>
    %c0_57 = arith.constant 0 : index
    %c0_58 = arith.constant 0 : index
    %140 = vector.load %arg14[%c0_57, %c0_58] : memref<324x100xbf16, #tpu.memory_space<vmem>>, vector<324x100xbf16>
    %141 = arith.truncf %139 : vector<100x32xf32> to vector<100x32xbf16>
    %cst_59 = arith.constant dense<0.000000e+00> : vector<324x32xf32>
    %142 = tpu.matmul %140, %141, %cst_59 {dimension_numbers = #tpu.dot_dimension_numbers<[1], [0], [0], [1], [0, 0, 1, 1], [], []>} : vector<324x100xbf16>, vector<100x32xbf16>, vector<324x32xf32> -> vector<324x32xf32>
    %c0_60 = arith.constant 0 : index
    %c0_61 = arith.constant 0 : index
    %143 = vector.load %arg19[%c0_60, %c0_61] : memref<324x1xf32, #tpu.memory_space<vmem>>, vector<324x1xf32>
    %cst_62 = arith.constant 0.000000e+00 : bf16
    %144 = vector.broadcast %cst_62 : bf16 to vector<19x32xbf16>
    %145 = arith.truncf %142 : vector<324x32xf32> to vector<324x32xbf16>
    %146 = tpu.concatenate %144, %145, %144 in 0 : vector<19x32xbf16>, vector<324x32xbf16>, vector<19x32xbf16> -> vector<362x32xbf16>
    %147 = vector.extract_strided_slice %146 {offsets = [0, 0], sizes = [324, 32], strides = [1, 1]} : vector<362x32xbf16> to vector<324x32xbf16>
    %148 = vector.extract_strided_slice %146 {offsets = [1, 0], sizes = [324, 32], strides = [1, 1]} : vector<362x32xbf16> to vector<324x32xbf16>
    %149 = vector.extract_strided_slice %146 {offsets = [2, 0], sizes = [324, 32], strides = [1, 1]} : vector<362x32xbf16> to vector<324x32xbf16>
    %150 = vector.extract_strided_slice %146 {offsets = [18, 0], sizes = [324, 32], strides = [1, 1]} : vector<362x32xbf16> to vector<324x32xbf16>
    %151 = vector.extract_strided_slice %146 {offsets = [19, 0], sizes = [324, 32], strides = [1, 1]} : vector<362x32xbf16> to vector<324x32xbf16>
    %152 = vector.extract_strided_slice %146 {offsets = [20, 0], sizes = [324, 32], strides = [1, 1]} : vector<362x32xbf16> to vector<324x32xbf16>
    %153 = vector.extract_strided_slice %146 {offsets = [36, 0], sizes = [324, 32], strides = [1, 1]} : vector<362x32xbf16> to vector<324x32xbf16>
    %154 = vector.extract_strided_slice %146 {offsets = [37, 0], sizes = [324, 32], strides = [1, 1]} : vector<362x32xbf16> to vector<324x32xbf16>
    %155 = vector.extract_strided_slice %146 {offsets = [38, 0], sizes = [324, 32], strides = [1, 1]} : vector<362x32xbf16> to vector<324x32xbf16>
    %156 = tpu.concatenate %147, %148, %149, %150, %151, %152, %153, %154, %155 in 1 : vector<324x32xbf16>, vector<324x32xbf16>, vector<324x32xbf16>, vector<324x32xbf16>, vector<324x32xbf16>, vector<324x32xbf16>, vector<324x32xbf16>, vector<324x32xbf16>, vector<324x32xbf16> -> vector<324x288xbf16>
    %c0_63 = arith.constant 0 : index
    %c0_64 = arith.constant 0 : index
    %157 = vector.load %arg15[%c0_63, %c0_64] : memref<288x32xbf16, #tpu.memory_space<vmem>>, vector<288x32xbf16>
    %cst_65 = arith.constant dense<0.000000e+00> : vector<324x32xf32>
    %158 = tpu.matmul %156, %157, %cst_65 {dimension_numbers = #tpu.dot_dimension_numbers<[1], [0], [0], [1], [0, 0, 1, 1], [], []>} : vector<324x288xbf16>, vector<288x32xbf16>, vector<324x32xf32> -> vector<324x32xf32>
    %c0_66 = arith.constant 0 : index
    %c0_67 = arith.constant 0 : index
    %159 = vector.load %arg16[%c0_66, %c0_67] : memref<1x32xf32, #tpu.memory_space<vmem>>, vector<1x32xf32>
    %160 = vector.broadcast %159 : vector<1x32xf32> to vector<324x32xf32>
    %161 = arith.addf %158, %160 : vector<324x32xf32>
    %162 = arith.mulf %161, %161 : vector<324x32xf32>
    %cst_68 = arith.constant dense<0.000000e+00> : vector<324xf32>
    %163 = vector.multi_reduction <add>, %162, %cst_68 [1] : vector<324x32xf32> to vector<324xf32>
    %164 = vector.shape_cast %163 : vector<324xf32> to vector<324x1xf32>
    %cst_69 = arith.constant 3.200000e+01 : f32
    %165 = vector.broadcast %cst_69 : f32 to vector<324x1xf32>
    %166 = arith.divf %164, %165 : vector<324x1xf32>
    %cst_70 = arith.constant 9.99999993E-9 : f32
    %167 = vector.broadcast %cst_70 : f32 to vector<324x1xf32>
    %168 = arith.addf %166, %167 : vector<324x1xf32>
    %169 = math.rsqrt %168 : vector<324x1xf32>
    %170 = vector.broadcast %169 : vector<324x1xf32> to vector<324x32xf32>
    %171 = arith.mulf %161, %170 : vector<324x32xf32>
    %cst_71 = arith.constant 0.000000e+00 : f32
    %172 = vector.broadcast %cst_71 : f32 to vector<324x32xf32>
    %173 = arith.cmpf ogt, %171, %172 : vector<324x32xf32>
    %cst_72 = arith.constant 2.000000e-01 : f32
    %174 = vector.broadcast %cst_72 : f32 to vector<324x32xf32>
    %175 = arith.mulf %174, %171 : vector<324x32xf32>
    %176 = arith.select %173, %171, %175 : vector<324x32xi1>, vector<324x32xf32>
    %177 = vector.broadcast %143 : vector<324x1xf32> to vector<324x32xf32>
    %178 = arith.mulf %176, %177 : vector<324x32xf32>
    %c0_73 = arith.constant 0 : index
    %c0_74 = arith.constant 0 : index
    %179 = vector.load %arg19[%c0_73, %c0_74] : memref<324x1xf32, #tpu.memory_space<vmem>>, vector<324x1xf32>
    %cst_75 = arith.constant 0.000000e+00 : bf16
    %180 = vector.broadcast %cst_75 : bf16 to vector<19x32xbf16>
    %181 = arith.truncf %178 : vector<324x32xf32> to vector<324x32xbf16>
    %182 = tpu.concatenate %180, %181, %180 in 0 : vector<19x32xbf16>, vector<324x32xbf16>, vector<19x32xbf16> -> vector<362x32xbf16>
    %183 = vector.extract_strided_slice %182 {offsets = [0, 0], sizes = [324, 32], strides = [1, 1]} : vector<362x32xbf16> to vector<324x32xbf16>
    %184 = vector.extract_strided_slice %182 {offsets = [1, 0], sizes = [324, 32], strides = [1, 1]} : vector<362x32xbf16> to vector<324x32xbf16>
    %185 = vector.extract_strided_slice %182 {offsets = [2, 0], sizes = [324, 32], strides = [1, 1]} : vector<362x32xbf16> to vector<324x32xbf16>
    %186 = vector.extract_strided_slice %182 {offsets = [18, 0], sizes = [324, 32], strides = [1, 1]} : vector<362x32xbf16> to vector<324x32xbf16>
    %187 = vector.extract_strided_slice %182 {offsets = [19, 0], sizes = [324, 32], strides = [1, 1]} : vector<362x32xbf16> to vector<324x32xbf16>
    %188 = vector.extract_strided_slice %182 {offsets = [20, 0], sizes = [324, 32], strides = [1, 1]} : vector<362x32xbf16> to vector<324x32xbf16>
    %189 = vector.extract_strided_slice %182 {offsets = [36, 0], sizes = [324, 32], strides = [1, 1]} : vector<362x32xbf16> to vector<324x32xbf16>
    %190 = vector.extract_strided_slice %182 {offsets = [37, 0], sizes = [324, 32], strides = [1, 1]} : vector<362x32xbf16> to vector<324x32xbf16>
    %191 = vector.extract_strided_slice %182 {offsets = [38, 0], sizes = [324, 32], strides = [1, 1]} : vector<362x32xbf16> to vector<324x32xbf16>
    %192 = tpu.concatenate %183, %184, %185, %186, %187, %188, %189, %190, %191 in 1 : vector<324x32xbf16>, vector<324x32xbf16>, vector<324x32xbf16>, vector<324x32xbf16>, vector<324x32xbf16>, vector<324x32xbf16>, vector<324x32xbf16>, vector<324x32xbf16>, vector<324x32xbf16> -> vector<324x288xbf16>
    %c0_76 = arith.constant 0 : index
    %c0_77 = arith.constant 0 : index
    %193 = vector.load %arg17[%c0_76, %c0_77] : memref<288x32xbf16, #tpu.memory_space<vmem>>, vector<288x32xbf16>
    %cst_78 = arith.constant dense<0.000000e+00> : vector<324x32xf32>
    %194 = tpu.matmul %192, %193, %cst_78 {dimension_numbers = #tpu.dot_dimension_numbers<[1], [0], [0], [1], [0, 0, 1, 1], [], []>} : vector<324x288xbf16>, vector<288x32xbf16>, vector<324x32xf32> -> vector<324x32xf32>
    %c0_79 = arith.constant 0 : index
    %c0_80 = arith.constant 0 : index
    %195 = vector.load %arg18[%c0_79, %c0_80] : memref<1x32xf32, #tpu.memory_space<vmem>>, vector<1x32xf32>
    %196 = vector.broadcast %195 : vector<1x32xf32> to vector<324x32xf32>
    %197 = arith.addf %194, %196 : vector<324x32xf32>
    %198 = arith.mulf %197, %197 : vector<324x32xf32>
    %cst_81 = arith.constant dense<0.000000e+00> : vector<324xf32>
    %199 = vector.multi_reduction <add>, %198, %cst_81 [1] : vector<324x32xf32> to vector<324xf32>
    %200 = vector.shape_cast %199 : vector<324xf32> to vector<324x1xf32>
    %cst_82 = arith.constant 3.200000e+01 : f32
    %201 = vector.broadcast %cst_82 : f32 to vector<324x1xf32>
    %202 = arith.divf %200, %201 : vector<324x1xf32>
    %cst_83 = arith.constant 9.99999993E-9 : f32
    %203 = vector.broadcast %cst_83 : f32 to vector<324x1xf32>
    %204 = arith.addf %202, %203 : vector<324x1xf32>
    %205 = math.rsqrt %204 : vector<324x1xf32>
    %206 = vector.broadcast %205 : vector<324x1xf32> to vector<324x32xf32>
    %207 = arith.mulf %197, %206 : vector<324x32xf32>
    %cst_84 = arith.constant 0.000000e+00 : f32
    %208 = vector.broadcast %cst_84 : f32 to vector<324x32xf32>
    %209 = arith.cmpf ogt, %207, %208 : vector<324x32xf32>
    %cst_85 = arith.constant 2.000000e-01 : f32
    %210 = vector.broadcast %cst_85 : f32 to vector<324x32xf32>
    %211 = arith.mulf %210, %207 : vector<324x32xf32>
    %212 = arith.select %209, %207, %211 : vector<324x32xi1>, vector<324x32xf32>
    %213 = vector.broadcast %179 : vector<324x1xf32> to vector<324x32xf32>
    %214 = arith.mulf %212, %213 : vector<324x32xf32>
    %cst_86 = arith.constant 0.000000e+00 : bf16
    %215 = vector.broadcast %cst_86 : bf16 to vector<11x32xbf16>
    %216 = arith.truncf %139 : vector<100x32xf32> to vector<100x32xbf16>
    %217 = tpu.concatenate %215, %216, %215 in 0 : vector<11x32xbf16>, vector<100x32xbf16>, vector<11x32xbf16> -> vector<122x32xbf16>
    %218 = vector.extract_strided_slice %217 {offsets = [0, 0], sizes = [100, 32], strides = [1, 1]} : vector<122x32xbf16> to vector<100x32xbf16>
    %219 = vector.extract_strided_slice %217 {offsets = [1, 0], sizes = [100, 32], strides = [1, 1]} : vector<122x32xbf16> to vector<100x32xbf16>
    %220 = vector.extract_strided_slice %217 {offsets = [2, 0], sizes = [100, 32], strides = [1, 1]} : vector<122x32xbf16> to vector<100x32xbf16>
    %221 = vector.extract_strided_slice %217 {offsets = [10, 0], sizes = [100, 32], strides = [1, 1]} : vector<122x32xbf16> to vector<100x32xbf16>
    %222 = vector.extract_strided_slice %217 {offsets = [11, 0], sizes = [100, 32], strides = [1, 1]} : vector<122x32xbf16> to vector<100x32xbf16>
    %223 = vector.extract_strided_slice %217 {offsets = [12, 0], sizes = [100, 32], strides = [1, 1]} : vector<122x32xbf16> to vector<100x32xbf16>
    %224 = vector.extract_strided_slice %217 {offsets = [20, 0], sizes = [100, 32], strides = [1, 1]} : vector<122x32xbf16> to vector<100x32xbf16>
    %225 = vector.extract_strided_slice %217 {offsets = [21, 0], sizes = [100, 32], strides = [1, 1]} : vector<122x32xbf16> to vector<100x32xbf16>
    %226 = vector.extract_strided_slice %217 {offsets = [22, 0], sizes = [100, 32], strides = [1, 1]} : vector<122x32xbf16> to vector<100x32xbf16>
    %227 = tpu.concatenate %218, %219, %220, %221, %222, %223, %224, %225, %226 in 1 : vector<100x32xbf16>, vector<100x32xbf16>, vector<100x32xbf16>, vector<100x32xbf16>, vector<100x32xbf16>, vector<100x32xbf16>, vector<100x32xbf16>, vector<100x32xbf16>, vector<100x32xbf16> -> vector<100x288xbf16>
    %c0_87 = arith.constant 0 : index
    %c0_88 = arith.constant 0 : index
    %228 = vector.load %arg20[%c0_87, %c0_88] : memref<288x3xbf16, #tpu.memory_space<vmem>>, vector<288x3xbf16>
    %cst_89 = arith.constant dense<0.000000e+00> : vector<100x3xf32>
    %229 = tpu.matmul %227, %228, %cst_89 {dimension_numbers = #tpu.dot_dimension_numbers<[1], [0], [0], [1], [0, 0, 1, 1], [], []>} : vector<100x288xbf16>, vector<288x3xbf16>, vector<100x3xf32> -> vector<100x3xf32>
    %c0_90 = arith.constant 0 : index
    %c0_91 = arith.constant 0 : index
    %230 = vector.load %arg21[%c0_90, %c0_91] : memref<1x3xf32, #tpu.memory_space<vmem>>, vector<1x3xf32>
    %231 = vector.broadcast %230 : vector<1x3xf32> to vector<100x3xf32>
    %232 = arith.addf %229, %231 : vector<100x3xf32>
    %c0_92 = arith.constant 0 : index
    %c0_93 = arith.constant 0 : index
    %233 = vector.load %arg14[%c0_92, %c0_93] : memref<324x100xbf16, #tpu.memory_space<vmem>>, vector<324x100xbf16>
    %234 = arith.truncf %232 : vector<100x3xf32> to vector<100x3xbf16>
    %cst_94 = arith.constant dense<0.000000e+00> : vector<324x3xf32>
    %235 = tpu.matmul %233, %234, %cst_94 {dimension_numbers = #tpu.dot_dimension_numbers<[1], [0], [0], [1], [0, 0, 1, 1], [], []>} : vector<324x100xbf16>, vector<100x3xbf16>, vector<324x3xf32> -> vector<324x3xf32>
    %cst_95 = arith.constant 0.000000e+00 : bf16
    %236 = vector.broadcast %cst_95 : bf16 to vector<19x32xbf16>
    %237 = arith.truncf %214 : vector<324x32xf32> to vector<324x32xbf16>
    %238 = tpu.concatenate %236, %237, %236 in 0 : vector<19x32xbf16>, vector<324x32xbf16>, vector<19x32xbf16> -> vector<362x32xbf16>
    %239 = vector.extract_strided_slice %238 {offsets = [0, 0], sizes = [324, 32], strides = [1, 1]} : vector<362x32xbf16> to vector<324x32xbf16>
    %240 = vector.extract_strided_slice %238 {offsets = [1, 0], sizes = [324, 32], strides = [1, 1]} : vector<362x32xbf16> to vector<324x32xbf16>
    %241 = vector.extract_strided_slice %238 {offsets = [2, 0], sizes = [324, 32], strides = [1, 1]} : vector<362x32xbf16> to vector<324x32xbf16>
    %242 = vector.extract_strided_slice %238 {offsets = [18, 0], sizes = [324, 32], strides = [1, 1]} : vector<362x32xbf16> to vector<324x32xbf16>
    %243 = vector.extract_strided_slice %238 {offsets = [19, 0], sizes = [324, 32], strides = [1, 1]} : vector<362x32xbf16> to vector<324x32xbf16>
    %244 = vector.extract_strided_slice %238 {offsets = [20, 0], sizes = [324, 32], strides = [1, 1]} : vector<362x32xbf16> to vector<324x32xbf16>
    %245 = vector.extract_strided_slice %238 {offsets = [36, 0], sizes = [324, 32], strides = [1, 1]} : vector<362x32xbf16> to vector<324x32xbf16>
    %246 = vector.extract_strided_slice %238 {offsets = [37, 0], sizes = [324, 32], strides = [1, 1]} : vector<362x32xbf16> to vector<324x32xbf16>
    %247 = vector.extract_strided_slice %238 {offsets = [38, 0], sizes = [324, 32], strides = [1, 1]} : vector<362x32xbf16> to vector<324x32xbf16>
    %248 = tpu.concatenate %239, %240, %241, %242, %243, %244, %245, %246, %247 in 1 : vector<324x32xbf16>, vector<324x32xbf16>, vector<324x32xbf16>, vector<324x32xbf16>, vector<324x32xbf16>, vector<324x32xbf16>, vector<324x32xbf16>, vector<324x32xbf16>, vector<324x32xbf16> -> vector<324x288xbf16>
    %c0_96 = arith.constant 0 : index
    %c0_97 = arith.constant 0 : index
    %249 = vector.load %arg22[%c0_96, %c0_97] : memref<288x3xbf16, #tpu.memory_space<vmem>>, vector<288x3xbf16>
    %cst_98 = arith.constant dense<0.000000e+00> : vector<324x3xf32>
    %250 = tpu.matmul %248, %249, %cst_98 {dimension_numbers = #tpu.dot_dimension_numbers<[1], [0], [0], [1], [0, 0, 1, 1], [], []>} : vector<324x288xbf16>, vector<288x3xbf16>, vector<324x3xf32> -> vector<324x3xf32>
    %c0_99 = arith.constant 0 : index
    %c0_100 = arith.constant 0 : index
    %251 = vector.load %arg23[%c0_99, %c0_100] : memref<1x3xf32, #tpu.memory_space<vmem>>, vector<1x3xf32>
    %252 = vector.broadcast %251 : vector<1x3xf32> to vector<324x3xf32>
    %253 = arith.addf %250, %252 : vector<324x3xf32>
    %c0_101 = arith.constant 0 : index
    %c0_102 = arith.constant 0 : index
    %254 = memref.load %arg24[%c0_101, %c0_102] : memref<1x1xf32, #tpu.memory_space<smem>>
    %255 = vector.broadcast %254 : f32 to vector<324x3xf32>
    %256 = arith.mulf %255, %253 : vector<324x3xf32>
    %cst_103 = arith.constant 1.000000e+00 : f32
    %257 = arith.subf %cst_103, %254 : f32
    %258 = vector.broadcast %257 : f32 to vector<324x3xf32>
    %259 = arith.mulf %258, %235 : vector<324x3xf32>
    %260 = arith.addf %256, %259 : vector<324x3xf32>
    %261 = math.tanh %260 : vector<324x3xf32>
    %262 = vector.extract_strided_slice %261 {offsets = [19, 0], sizes = [16, 3], strides = [1, 1]} : vector<324x3xf32> to vector<16x3xf32>
    %263 = vector.extract_strided_slice %261 {offsets = [37, 0], sizes = [16, 3], strides = [1, 1]} : vector<324x3xf32> to vector<16x3xf32>
    %264 = vector.extract_strided_slice %261 {offsets = [55, 0], sizes = [16, 3], strides = [1, 1]} : vector<324x3xf32> to vector<16x3xf32>
    %265 = vector.extract_strided_slice %261 {offsets = [73, 0], sizes = [16, 3], strides = [1, 1]} : vector<324x3xf32> to vector<16x3xf32>
    %266 = vector.extract_strided_slice %261 {offsets = [91, 0], sizes = [16, 3], strides = [1, 1]} : vector<324x3xf32> to vector<16x3xf32>
    %267 = vector.extract_strided_slice %261 {offsets = [109, 0], sizes = [16, 3], strides = [1, 1]} : vector<324x3xf32> to vector<16x3xf32>
    %268 = vector.extract_strided_slice %261 {offsets = [127, 0], sizes = [16, 3], strides = [1, 1]} : vector<324x3xf32> to vector<16x3xf32>
    %269 = vector.extract_strided_slice %261 {offsets = [145, 0], sizes = [16, 3], strides = [1, 1]} : vector<324x3xf32> to vector<16x3xf32>
    %270 = vector.extract_strided_slice %261 {offsets = [163, 0], sizes = [16, 3], strides = [1, 1]} : vector<324x3xf32> to vector<16x3xf32>
    %271 = vector.extract_strided_slice %261 {offsets = [181, 0], sizes = [16, 3], strides = [1, 1]} : vector<324x3xf32> to vector<16x3xf32>
    %272 = vector.extract_strided_slice %261 {offsets = [199, 0], sizes = [16, 3], strides = [1, 1]} : vector<324x3xf32> to vector<16x3xf32>
    %273 = vector.extract_strided_slice %261 {offsets = [217, 0], sizes = [16, 3], strides = [1, 1]} : vector<324x3xf32> to vector<16x3xf32>
    %274 = vector.extract_strided_slice %261 {offsets = [235, 0], sizes = [16, 3], strides = [1, 1]} : vector<324x3xf32> to vector<16x3xf32>
    %275 = vector.extract_strided_slice %261 {offsets = [253, 0], sizes = [16, 3], strides = [1, 1]} : vector<324x3xf32> to vector<16x3xf32>
    %276 = vector.extract_strided_slice %261 {offsets = [271, 0], sizes = [16, 3], strides = [1, 1]} : vector<324x3xf32> to vector<16x3xf32>
    %277 = vector.extract_strided_slice %261 {offsets = [289, 0], sizes = [16, 3], strides = [1, 1]} : vector<324x3xf32> to vector<16x3xf32>
    %278 = tpu.concatenate %262, %263, %264, %265, %266, %267, %268, %269, %270, %271, %272, %273, %274, %275, %276, %277 in 0 : vector<16x3xf32>, vector<16x3xf32>, vector<16x3xf32>, vector<16x3xf32>, vector<16x3xf32>, vector<16x3xf32>, vector<16x3xf32>, vector<16x3xf32>, vector<16x3xf32>, vector<16x3xf32>, vector<16x3xf32>, vector<16x3xf32>, vector<16x3xf32>, vector<16x3xf32>, vector<16x3xf32>, vector<16x3xf32> -> vector<256x3xf32>
    %c0_104 = arith.constant 0 : index
    %c0_105 = arith.constant 0 : index
    %c0_106 = arith.constant 0 : index
    %279 = vector.load %arg25[%c0_104, %c0_105, %c0_106] : memref<1x256x3xf32, #tpu.memory_space<vmem>>, vector<1x256x3xf32>
    %280 = vector.shape_cast %279 : vector<1x256x3xf32> to vector<256x3xf32>
    %281 = vector.shape_cast %278 : vector<256x3xf32> to vector<1x256x3xf32>
    tpu.vector_store %arg25[%c0_104, %c0_105, %c0_106], %281 {strides = array<i32>} : memref<1x256x3xf32, #tpu.memory_space<vmem>>, vector<1x256x3xf32>,
    return
  }
  func.func @transform_0(%arg0: i32) -> (i32, i32, i32) {
    %c0_i32 = arith.constant 0 : i32
    %c0_i32_0 = arith.constant 0 : i32
    %c0_i32_1 = arith.constant 0 : i32
    return %arg0, %c0_i32, %c0_i32_0 : i32, i32, i32
  }
  func.func @transform_1(%arg0: i32) -> (i32, i32) {
    %c0_i32 = arith.constant 0 : i32
    %c0_i32_0 = arith.constant 0 : i32
    %c0_i32_1 = arith.constant 0 : i32
    return %c0_i32, %c0_i32_0 : i32, i32
  }
  func.func @transform_2(%arg0: i32) -> (i32, i32) {
    %c0_i32 = arith.constant 0 : i32
    %c0_i32_0 = arith.constant 0 : i32
    %c0_i32_1 = arith.constant 0 : i32
    return %c0_i32, %c0_i32_0 : i32, i32
  }
  func.func @transform_3(%arg0: i32) -> (i32, i32) {
    %c0_i32 = arith.constant 0 : i32
    %c0_i32_0 = arith.constant 0 : i32
    %c0_i32_1 = arith.constant 0 : i32
    return %c0_i32, %c0_i32_0 : i32, i32
  }
  func.func @transform_4(%arg0: i32) -> (i32, i32) {
    %c0_i32 = arith.constant 0 : i32
    %c0_i32_0 = arith.constant 0 : i32
    %c0_i32_1 = arith.constant 0 : i32
    return %c0_i32, %c0_i32_0 : i32, i32
  }
  func.func @transform_5(%arg0: i32) -> (i32, i32) {
    %c0_i32 = arith.constant 0 : i32
    %c0_i32_0 = arith.constant 0 : i32
    %c0_i32_1 = arith.constant 0 : i32
    return %c0_i32, %c0_i32_0 : i32, i32
  }
  func.func @transform_6(%arg0: i32) -> (i32, i32) {
    %c0_i32 = arith.constant 0 : i32
    %c0_i32_0 = arith.constant 0 : i32
    %c0_i32_1 = arith.constant 0 : i32
    return %c0_i32, %c0_i32_0 : i32, i32
  }
  func.func @transform_7(%arg0: i32) -> (i32, i32) {
    %c0_i32 = arith.constant 0 : i32
    %c0_i32_0 = arith.constant 0 : i32
    %c0_i32_1 = arith.constant 0 : i32
    return %c0_i32, %c0_i32_0 : i32, i32
  }
  func.func @transform_8(%arg0: i32) -> (i32, i32) {
    %c0_i32 = arith.constant 0 : i32
    %c0_i32_0 = arith.constant 0 : i32
    %c0_i32_1 = arith.constant 0 : i32
    return %c0_i32, %c0_i32_0 : i32, i32
  }
  func.func @transform_9(%arg0: i32) -> (i32, i32) {
    %c0_i32 = arith.constant 0 : i32
    %c0_i32_0 = arith.constant 0 : i32
    %c0_i32_1 = arith.constant 0 : i32
    return %c0_i32, %c0_i32_0 : i32, i32
  }
  func.func @transform_10(%arg0: i32) -> (i32, i32) {
    %c0_i32 = arith.constant 0 : i32
    %c0_i32_0 = arith.constant 0 : i32
    %c0_i32_1 = arith.constant 0 : i32
    return %c0_i32, %c0_i32_0 : i32, i32
  }
  func.func @transform_11(%arg0: i32) -> (i32, i32) {
    %c0_i32 = arith.constant 0 : i32
    %c0_i32_0 = arith.constant 0 : i32
    %c0_i32_1 = arith.constant 0 : i32
    return %c0_i32, %c0_i32_0 : i32, i32
  }
  func.func @transform_12(%arg0: i32) -> (i32, i32) {
    %c0_i32 = arith.constant 0 : i32
    %c0_i32_0 = arith.constant 0 : i32
    %c0_i32_1 = arith.constant 0 : i32
    return %c0_i32, %c0_i32_0 : i32, i32
  }
  func.func @transform_13(%arg0: i32) -> (i32, i32) {
    %c0_i32 = arith.constant 0 : i32
    %c0_i32_0 = arith.constant 0 : i32
    %c0_i32_1 = arith.constant 0 : i32
    return %c0_i32, %c0_i32_0 : i32, i32
  }
  func.func @transform_14(%arg0: i32) -> (i32, i32) {
    %c0_i32 = arith.constant 0 : i32
    %c0_i32_0 = arith.constant 0 : i32
    %c0_i32_1 = arith.constant 0 : i32
    return %c0_i32, %c0_i32_0 : i32, i32
  }
  func.func @transform_15(%arg0: i32) -> (i32, i32) {
    %c0_i32 = arith.constant 0 : i32
    %c0_i32_0 = arith.constant 0 : i32
    %c0_i32_1 = arith.constant 0 : i32
    return %c0_i32, %c0_i32_0 : i32, i32
  }
  func.func @transform_16(%arg0: i32) -> (i32, i32) {
    %c0_i32 = arith.constant 0 : i32
    %c0_i32_0 = arith.constant 0 : i32
    %c0_i32_1 = arith.constant 0 : i32
    return %c0_i32, %c0_i32_0 : i32, i32
  }
  func.func @transform_17(%arg0: i32) -> (i32, i32) {
    %c0_i32 = arith.constant 0 : i32
    %c0_i32_0 = arith.constant 0 : i32
    %c0_i32_1 = arith.constant 0 : i32
    return %c0_i32, %c0_i32_0 : i32, i32
  }
  func.func @transform_18(%arg0: i32) -> (i32, i32) {
    %c0_i32 = arith.constant 0 : i32
    %c0_i32_0 = arith.constant 0 : i32
    %c0_i32_1 = arith.constant 0 : i32
    return %c0_i32, %c0_i32_0 : i32, i32
  }
  func.func @transform_19(%arg0: i32) -> (i32, i32) {
    %c0_i32 = arith.constant 0 : i32
    %c0_i32_0 = arith.constant 0 : i32
    %c0_i32_1 = arith.constant 0 : i32
    return %c0_i32, %c0_i32_0 : i32, i32
  }
  func.func @transform_20(%arg0: i32) -> (i32, i32) {
    %c0_i32 = arith.constant 0 : i32
    %c0_i32_0 = arith.constant 0 : i32
    %c0_i32_1 = arith.constant 0 : i32
    return %c0_i32, %c0_i32_0 : i32, i32
  }
  func.func @transform_21(%arg0: i32) -> (i32, i32) {
    %c0_i32 = arith.constant 0 : i32
    %c0_i32_0 = arith.constant 0 : i32
    %c0_i32_1 = arith.constant 0 : i32
    return %c0_i32, %c0_i32_0 : i32, i32
  }
  func.func @transform_22(%arg0: i32) -> (i32, i32) {
    %c0_i32 = arith.constant 0 : i32
    %c0_i32_0 = arith.constant 0 : i32
    %c0_i32_1 = arith.constant 0 : i32
    return %c0_i32, %c0_i32_0 : i32, i32
  }
  func.func @transform_23(%arg0: i32) -> (i32, i32) {
    %c0_i32 = arith.constant 0 : i32
    %c0_i32_0 = arith.constant 0 : i32
    %c0_i32_1 = arith.constant 0 : i32
    return %c0_i32, %c0_i32_0 : i32, i32
  }
  func.func @transform_24(%arg0: i32) -> (i32, i32, i32) {
    %c0_i32 = arith.constant 0 : i32
    %c0_i32_0 = arith.constant 0 : i32
    %c0_i32_1 = arith.constant 0 : i32
    return %arg0, %c0_i32, %c0_i32_0 : i32, i32, i32
  }
}

</mosaic_0001>

<llo_original>
// kernel: tpu_custom_call.1
$region0: #{tpu_custom_call.1}
  #allocation0 [shape = 'u32[]', space=smem, size = 0x4, offset = 0x4, fixed_abs, tag = 'smem constant byte address 0x4 - core index']
  #allocation1 [shape = 'u32[144,128]{1,0:T(1,128)}', space=vmem, size = 0x12000, scoped, tag = 'internal scratch']
  #allocation2 [shape = 'f32[1,1]{1,0:T(1,128)S(6)}', space=smem, size = 0x200, scoped, tag = 'scoped memory for tpu_custom_call.1']
  %s0 = inlined_call_operand.vmem [shape: bf16[2,1,16], index: 0, kind: input, shape index: {}]
  %s1 = inlined_call_operand.vmem [shape: bf16[36,256], index: 1, kind: input, shape index: {}]
  %s2 = inlined_call_operand.vmem [shape: bf16[256,32], index: 2, kind: input, shape index: {}]
  %s3 = inlined_call_operand.vmem [shape: f32[1,32], index: 3, kind: input, shape index: {}]
  %s4 = inlined_call_operand.vmem [shape: bf16[288,32], index: 4, kind: input, shape index: {}]
  %s5 = inlined_call_operand.vmem [shape: f32[1,32], index: 5, kind: input, shape index: {}]
  %s6 = inlined_call_operand.vmem [shape: f32[36,1], index: 6, kind: input, shape index: {}]
  %s7 = inlined_call_operand.vmem [shape: bf16[100,36], index: 7, kind: input, shape index: {}]
  %s8 = inlined_call_operand.vmem [shape: bf16[288,32], index: 8, kind: input, shape index: {}]
  %s9 = inlined_call_operand.vmem [shape: f32[1,32], index: 9, kind: input, shape index: {}]
  %s10 = inlined_call_operand.vmem [shape: bf16[288,32], index: 10, kind: input, shape index: {}]
  %s11 = inlined_call_operand.vmem [shape: f32[1,32], index: 11, kind: input, shape index: {}]
  %s12 = inlined_call_operand.vmem [shape: f32[100,1], index: 12, kind: input, shape index: {}]
  %s13 = inlined_call_operand.vmem [shape: bf16[324,100], index: 13, kind: input, shape index: {}]
  %s14 = inlined_call_operand.vmem [shape: bf16[288,32], index: 14, kind: input, shape index: {}]
  %s15 = inlined_call_operand.vmem [shape: f32[1,32], index: 15, kind: input, shape index: {}]
  %s16 = inlined_call_operand.vmem [shape: bf16[288,32], index: 16, kind: input, shape index: {}]
  %s17 = inlined_call_operand.vmem [shape: f32[1,32], index: 17, kind: input, shape index: {}]
  %s18 = inlined_call_operand.vmem [shape: f32[324,1], index: 18, kind: input, shape index: {}]
  %s19 = inlined_call_operand.vmem [shape: bf16[288,3], index: 19, kind: input, shape index: {}]
  %s20 = inlined_call_operand.vmem [shape: f32[1,3], index: 20, kind: input, shape index: {}]
  %s21 = inlined_call_operand.vmem [shape: bf16[288,3], index: 21, kind: input, shape index: {}]
  %s22 = inlined_call_operand.vmem [shape: f32[1,3], index: 22, kind: input, shape index: {}]
  %s23 = inlined_call_operand.<no memory space> [shape: f32[1,1], index: 23, kind: input, shape index: {}]
  %s24 = inlined_call_operand.vmem [shape: f32[2,256,3], index: 24, kind: output, shape index: {}]
  %s25 = sld [smem:[#allocation0]]
  $region129: #{tpu_custom_call.1} parent=0
    _
  %s27 = ssub.s32 1, %s25
  %s28 = scalar_select 0, %s27, %s25
  %29 = sst [smem:[#allocation2]] %s23
  loop: start=0, step=1, limit=4
  $region2: #{tpu_custom_call.1} parent=0 // loop_pre_header
    _
  $region3: #{tpu_custom_call.1} parent=0 // loop_header
    %s31 = sphi 0, %s35
    %p32 = scmp.ge.s32.totalorder %s31, 4
    %s41 = sphi 0, %s43
    %s44 = sphi 0, %s41
    %s45 = sphi 0, %s44
    %s61 = sphi 0, %s45
    %s65 = sphi 0, %s65
    %s67 = sphi 0, %s65
    %s68 = sphi 0, %s67
    %s82 = sphi 0, %s68
    %s86 = sphi 0, %s86
    %s88 = sphi 0, %s86
    %s89 = sphi 0, %s88
    %s103 = sphi 0, %s89
    %s107 = sphi 0, %s107
    %s109 = sphi 0, %s107
    %s110 = sphi 0, %s109
    %s124 = sphi 0, %s110
    %s128 = sphi 0, %s128
    %s130 = sphi 0, %s128
    %s131 = sphi 0, %s130
    %s145 = sphi 0, %s131
    %s149 = sphi 0, %s149
    %s151 = sphi 0, %s149
    %s152 = sphi 0, %s151
    %s166 = sphi 0, %s152
    %s170 = sphi 0, %s170
    %s172 = sphi 0, %s170
    %s173 = sphi 0, %s172
    %s187 = sphi 0, %s173
    %s191 = sphi 0, %s191
    %s193 = sphi 0, %s191
    %s194 = sphi 0, %s193
    %s208 = sphi 0, %s194
    %s212 = sphi 0, %s212
    %s214 = sphi 0, %s212
    %s215 = sphi 0, %s214
    %s229 = sphi 0, %s215
    %s233 = sphi 0, %s233
    %s235 = sphi 0, %s233
    %s236 = sphi 0, %s235
    %s250 = sphi 0, %s236
    %s254 = sphi 0, %s254
    %s256 = sphi 0, %s254
    %s257 = sphi 0, %s256
    %s271 = sphi 0, %s257
    %s275 = sphi 0, %s275
    %s277 = sphi 0, %s275
    %s278 = sphi 0, %s277
    %s292 = sphi 0, %s278
    %s296 = sphi 0, %s296
    %s298 = sphi 0, %s296
    %s299 = sphi 0, %s298
    %s313 = sphi 0, %s299
    %s317 = sphi 0, %s317
    %s319 = sphi 0, %s317
    %s320 = sphi 0, %s319
    %s334 = sphi 0, %s320
    %s338 = sphi 0, %s338
    %s340 = sphi 0, %s338
    %s341 = sphi 0, %s340
    %s355 = sphi 0, %s341
    %s359 = sphi 0, %s359
    %s361 = sphi 0, %s359
    %s362 = sphi 0, %s361
    %s376 = sphi 0, %s362
    %s380 = sphi 0, %s380
    %s382 = sphi 0, %s380
    %s383 = sphi 0, %s382
    %s397 = sphi 0, %s383
    %s401 = sphi 0, %s401
    %s403 = sphi 0, %s401
    %s404 = sphi 0, %s403
    %s418 = sphi 0, %s404
    %s422 = sphi 0, %s422
    %s424 = sphi 0, %s422
    %s425 = sphi 0, %s424
    %s439 = sphi 0, %s425
    %s443 = sphi 0, %s443
    %s445 = sphi 0, %s443
    %s446 = sphi 0, %s445
    %s460 = sphi 0, %s446
    %s464 = sphi 0, %s464
    %s466 = sphi 0, %s464
    %s467 = sphi 0, %s466
    %s481 = sphi 0, %s467
    %s485 = sphi 0, %s485
    %s487 = sphi 0, %s485
    %s488 = sphi 0, %s487
    %s502 = sphi 0, %s488
    %s506 = sphi 0, %s506
    %s508 = sphi 0, %s506
    %s509 = sphi 0, %s508
    %s523 = sphi 0, %s509
    %s527 = sphi 0, %s527
    %s529 = sphi 0, %s527
    %s530 = sphi 0, %s529
    %s544 = sphi 0, %s530
    %s550 = sphi 0, %s552
    %s553 = sphi 0, %s550
    %s554 = sphi 0, %s553
    %s570 = sphi 0, %s554
  $region4: #{tpu_custom_call.1} parent=0 // loop_header_branch
    %34 = sbr.rel (%p32) target = $region8
  $region5: #{tpu_custom_call.1} parent=0 // loop_body
    %s36 = ssub.s32 %s31, 1
    %s37 = ssub.s32 %s31, 2
    %s38 = sadd.s32 %s31, 1
    %s39 = ssub.s32 %s31, %s38
    %p40 = scmp.eq.s32.totalorder %s39, 0
    %s42 = sadd.s32 %s41, 1
    %s43 = scalar_select %p40, %s41, %s42
    %p46 = pneg %p40
    %p47 = scmp.eq.s32.totalorder %s31, 1
    %p48 = por %p46, %p47
    %p49 = scmp.ne.s32.totalorder %s41, %s44
    %p50 = scmp.eq.s32.totalorder %s31, 0
    %p51 = por %p49, %p50
    %p52 = scmp.ne.s32.totalorder %s41, %s44
    %p53 = scmp.eq.s32.totalorder %s36, 1
    %p54 = por %p52, %p53
    %p55 = scmp.ne.s32.totalorder %s44, %s45
    %p56 = scmp.eq.s32.totalorder %s36, 0
    %p57 = por %p55, %p56
    %p58 = scmp.ne.s32.totalorder %s44, %s45
    %p59 = scmp.eq.s32.totalorder %s37, 1
    %p60 = por %p58, %p59
    %p62 = scmp.ne.s32.totalorder %s45, %s61
    %p63 = scmp.eq.s32.totalorder %s37, 0
    %p64 = por %p62, %p63
    %s66 = sadd.s32 %s65, 1
    %p69 = scmp.eq.s32.totalorder %s31, 1
    %p70 = scmp.ne.s32.totalorder %s65, %s67
    %p71 = scmp.eq.s32.totalorder %s31, 0
    %p72 = por %p70, %p71
    %p73 = scmp.ne.s32.totalorder %s65, %s67
    %p74 = scmp.eq.s32.totalorder %s36, 1
    %p75 = por %p73, %p74
    %p76 = scmp.ne.s32.totalorder %s67, %s68
    %p77 = scmp.eq.s32.totalorder %s36, 0
    %p78 = por %p76, %p77
    %p79 = scmp.ne.s32.totalorder %s67, %s68
    %p80 = scmp.eq.s32.totalorder %s37, 1
    %p81 = por %p79, %p80
    %p83 = scmp.ne.s32.totalorder %s68, %s82
    %p84 = scmp.eq.s32.totalorder %s37, 0
    %p85 = por %p83, %p84
    %s87 = sadd.s32 %s86, 1
    %p90 = scmp.eq.s32.totalorder %s31, 1
    %p91 = scmp.ne.s32.totalorder %s86, %s88
    %p92 = scmp.eq.s32.totalorder %s31, 0
    %p93 = por %p91, %p92
    %p94 = scmp.ne.s32.totalorder %s86, %s88
    %p95 = scmp.eq.s32.totalorder %s36, 1
    %p96 = por %p94, %p95
    %p97 = scmp.ne.s32.totalorder %s88, %s89
    %p98 = scmp.eq.s32.totalorder %s36, 0
    %p99 = por %p97, %p98
    %p100 = scmp.ne.s32.totalorder %s88, %s89
    %p101 = scmp.eq.s32.totalorder %s37, 1
    %p102 = por %p100, %p101
    %p104 = scmp.ne.s32.totalorder %s89, %s103
    %p105 = scmp.eq.s32.totalorder %s37, 0
    %p106 = por %p104, %p105
    %s108 = sadd.s32 %s107, 1
    %p111 = scmp.eq.s32.totalorder %s31, 1
    %p112 = scmp.ne.s32.totalorder %s107, %s109
    %p113 = scmp.eq.s32.totalorder %s31, 0
    %p114 = por %p112, %p113
    %p115 = scmp.ne.s32.totalorder %s107, %s109
    %p116 = scmp.eq.s32.totalorder %s36, 1
    %p117 = por %p115, %p116
    %p118 = scmp.ne.s32.totalorder %s109, %s110
    %p119 = scmp.eq.s32.totalorder %s36, 0
    %p120 = por %p118, %p119
    %p121 = scmp.ne.s32.totalorder %s109, %s110
    %p122 = scmp.eq.s32.totalorder %s37, 1
    %p123 = por %p121, %p122
    %p125 = scmp.ne.s32.totalorder %s110, %s124
    %p126 = scmp.eq.s32.totalorder %s37, 0
    %p127 = por %p125, %p126
    %s129 = sadd.s32 %s128, 1
    %p132 = scmp.eq.s32.totalorder %s31, 1
    %p133 = scmp.ne.s32.totalorder %s128, %s130
    %p134 = scmp.eq.s32.totalorder %s31, 0
    %p135 = por %p133, %p134
    %p136 = scmp.ne.s32.totalorder %s128, %s130
    %p137 = scmp.eq.s32.totalorder %s36, 1
    %p138 = por %p136, %p137
    %p139 = scmp.ne.s32.totalorder %s130, %s131
    %p140 = scmp.eq.s32.totalorder %s36, 0
    %p141 = por %p139, %p140
    %p142 = scmp.ne.s32.totalorder %s130, %s131
    %p143 = scmp.eq.s32.totalorder %s37, 1
    %p144 = por %p142, %p143
    %p146 = scmp.ne.s32.totalorder %s131, %s145
    %p147 = scmp.eq.s32.totalorder %s37, 0
    %p148 = por %p146, %p147
    %s150 = sadd.s32 %s149, 1
    %p153 = scmp.eq.s32.totalorder %s31, 1
    %p154 = scmp.ne.s32.totalorder %s149, %s151
    %p155 = scmp.eq.s32.totalorder %s31, 0
    %p156 = por %p154, %p155
    %p157 = scmp.ne.s32.totalorder %s149, %s151
    %p158 = scmp.eq.s32.totalorder %s36, 1
    %p159 = por %p157, %p158
    %p160 = scmp.ne.s32.totalorder %s151, %s152
    %p161 = scmp.eq.s32.totalorder %s36, 0
    %p162 = por %p160, %p161
    %p163 = scmp.ne.s32.totalorder %s151, %s152
    %p164 = scmp.eq.s32.totalorder %s37, 1
    %p165 = por %p163, %p164
    %p167 = scmp.ne.s32.totalorder %s152, %s166
    %p168 = scmp.eq.s32.totalorder %s37, 0
    %p169 = por %p167, %p168
    %s171 = sadd.s32 %s170, 1
    %p174 = scmp.eq.s32.totalorder %s31, 1
    %p175 = scmp.ne.s32.totalorder %s170, %s172
    %p176 = scmp.eq.s32.totalorder %s31, 0
    %p177 = por %p175, %p176
    %p178 = scmp.ne.s32.totalorder %s170, %s172
    %p179 = scmp.eq.s32.totalorder %s36, 1
    %p180 = por %p178, %p179
    %p181 = scmp.ne.s32.totalorder %s172, %s173
    %p182 = scmp.eq.s32.totalorder %s36, 0
    %p183 = por %p181, %p182
    %p184 = scmp.ne.s32.totalorder %s172, %s173
    %p185 = scmp.eq.s32.totalorder %s37, 1
    %p186 = por %p184, %p185
    %p188 = scmp.ne.s32.totalorder %s173, %s187
    %p189 = scmp.eq.s32.totalorder %s37, 0
    %p190 = por %p188, %p189
    %s192 = sadd.s32 %s191, 1
    %p195 = scmp.eq.s32.totalorder %s31, 1
    %p196 = scmp.ne.s32.totalorder %s191, %s193
    %p197 = scmp.eq.s32.totalorder %s31, 0
    %p198 = por %p196, %p197
    %p199 = scmp.ne.s32.totalorder %s191, %s193
    %p200 = scmp.eq.s32.totalorder %s36, 1
    %p201 = por %p199, %p200
    %p202 = scmp.ne.s32.totalorder %s193, %s194
    %p203 = scmp.eq.s32.totalorder %s36, 0
    %p204 = por %p202, %p203
    %p205 = scmp.ne.s32.totalorder %s193, %s194
    %p206 = scmp.eq.s32.totalorder %s37, 1
    %p207 = por %p205, %p206
    %p209 = scmp.ne.s32.totalorder %s194, %s208
    %p210 = scmp.eq.s32.totalorder %s37, 0
    %p211 = por %p209, %p210
    %s213 = sadd.s32 %s212, 1
    %p216 = scmp.eq.s32.totalorder %s31, 1
    %p217 = scmp.ne.s32.totalorder %s212, %s214
    %p218 = scmp.eq.s32.totalorder %s31, 0
    %p219 = por %p217, %p218
    %p220 = scmp.ne.s32.totalorder %s212, %s214
    %p221 = scmp.eq.s32.totalorder %s36, 1
    %p222 = por %p220, %p221
    %p223 = scmp.ne.s32.totalorder %s214, %s215
    %p224 = scmp.eq.s32.totalorder %s36, 0
    %p225 = por %p223, %p224
    %p226 = scmp.ne.s32.totalorder %s214, %s215
    %p227 = scmp.eq.s32.totalorder %s37, 1
    %p228 = por %p226, %p227
    %p230 = scmp.ne.s32.totalorder %s215, %s229
    %p231 = scmp.eq.s32.totalorder %s37, 0
    %p232 = por %p230, %p231
    %s234 = sadd.s32 %s233, 1
    %p237 = scmp.eq.s32.totalorder %s31, 1
    %p238 = scmp.ne.s32.totalorder %s233, %s235
    %p239 = scmp.eq.s32.totalorder %s31, 0
    %p240 = por %p238, %p239
    %p241 = scmp.ne.s32.totalorder %s233, %s235
    %p242 = scmp.eq.s32.totalorder %s36, 1
    %p243 = por %p241, %p242
    %p244 = scmp.ne.s32.totalorder %s235, %s236
    %p245 = scmp.eq.s32.totalorder %s36, 0
    %p246 = por %p244, %p245
    %p247 = scmp.ne.s32.totalorder %s235, %s236
    %p248 = scmp.eq.s32.totalorder %s37, 1
    %p249 = por %p247, %p248
    %p251 = scmp.ne.s32.totalorder %s236, %s250
    %p252 = scmp.eq.s32.totalorder %s37, 0
    %p253 = por %p251, %p252
    %s255 = sadd.s32 %s254, 1
    %p258 = scmp.eq.s32.totalorder %s31, 1
    %p259 = scmp.ne.s32.totalorder %s254, %s256
    %p260 = scmp.eq.s32.totalorder %s31, 0
    %p261 = por %p259, %p260
    %p262 = scmp.ne.s32.totalorder %s254, %s256
    %p263 = scmp.eq.s32.totalorder %s36, 1
    %p264 = por %p262, %p263
    %p265 = scmp.ne.s32.totalorder %s256, %s257
    %p266 = scmp.eq.s32.totalorder %s36, 0
    %p267 = por %p265, %p266
    %p268 = scmp.ne.s32.totalorder %s256, %s257
    %p269 = scmp.eq.s32.totalorder %s37, 1
    %p270 = por %p268, %p269
    %p272 = scmp.ne.s32.totalorder %s257, %s271
    %p273 = scmp.eq.s32.totalorder %s37, 0
    %p274 = por %p272, %p273
    %s276 = sadd.s32 %s275, 1
    %p279 = scmp.eq.s32.totalorder %s31, 1
    %p280 = scmp.ne.s32.totalorder %s275, %s277
    %p281 = scmp.eq.s32.totalorder %s31, 0
    %p282 = por %p280, %p281
    %p283 = scmp.ne.s32.totalorder %s275, %s277
    %p284 = scmp.eq.s32.totalorder %s36, 1
    %p285 = por %p283, %p284
    %p286 = scmp.ne.s32.totalorder %s277, %s278
    %p287 = scmp.eq.s32.totalorder %s36, 0
    %p288 = por %p286, %p287
    %p289 = scmp.ne.s32.totalorder %s277, %s278
    %p290 = scmp.eq.s32.totalorder %s37, 1
    %p291 = por %p289, %p290
    %p293 = scmp.ne.s32.totalorder %s278, %s292
    %p294 = scmp.eq.s32.totalorder %s37, 0
    %p295 = por %p293, %p294
    %s297 = sadd.s32 %s296, 1
    %p300 = scmp.eq.s32.totalorder %s31, 1
    %p301 = scmp.ne.s32.totalorder %s296, %s298
    %p302 = scmp.eq.s32.totalorder %s31, 0
    %p303 = por %p301, %p302
    %p304 = scmp.ne.s32.totalorder %s296, %s298
    %p305 = scmp.eq.s32.totalorder %s36, 1
    %p306 = por %p304, %p305
    %p307 = scmp.ne.s32.totalorder %s298, %s299
    %p308 = scmp.eq.s32.totalorder %s36, 0
    %p309 = por %p307, %p308
    %p310 = scmp.ne.s32.totalorder %s298, %s299
    %p311 = scmp.eq.s32.totalorder %s37, 1
    %p312 = por %p310, %p311
    %p314 = scmp.ne.s32.totalorder %s299, %s313
    %p315 = scmp.eq.s32.totalorder %s37, 0
    %p316 = por %p314, %p315
    %s318 = sadd.s32 %s317, 1
    %p321 = scmp.eq.s32.totalorder %s31, 1
    %p322 = scmp.ne.s32.totalorder %s317, %s319
    %p323 = scmp.eq.s32.totalorder %s31, 0
    %p324 = por %p322, %p323
    %p325 = scmp.ne.s32.totalorder %s317, %s319
    %p326 = scmp.eq.s32.totalorder %s36, 1
    %p327 = por %p325, %p326
    %p328 = scmp.ne.s32.totalorder %s319, %s320
    %p329 = scmp.eq.s32.totalorder %s36, 0
    %p330 = por %p328, %p329
    %p331 = scmp.ne.s32.totalorder %s319, %s320
    %p332 = scmp.eq.s32.totalorder %s37, 1
    %p333 = por %p331, %p332
    %p335 = scmp.ne.s32.totalorder %s320, %s334
    %p336 = scmp.eq.s32.totalorder %s37, 0
    %p337 = por %p335, %p336
    %s339 = sadd.s32 %s338, 1
    %p342 = scmp.eq.s32.totalorder %s31, 1
    %p343 = scmp.ne.s32.totalorder %s338, %s340
    %p344 = scmp.eq.s32.totalorder %s31, 0
    %p345 = por %p343, %p344
    %p346 = scmp.ne.s32.totalorder %s338, %s340
    %p347 = scmp.eq.s32.totalorder %s36, 1
    %p348 = por %p346, %p347
    %p349 = scmp.ne.s32.totalorder %s340, %s341
    %p350 = scmp.eq.s32.totalorder %s36, 0
    %p351 = por %p349, %p350
    %p352 = scmp.ne.s32.totalorder %s340, %s341
    %p353 = scmp.eq.s32.totalorder %s37, 1
    %p354 = por %p352, %p353
    %p356 = scmp.ne.s32.totalorder %s341, %s355
    %p357 = scmp.eq.s32.totalorder %s37, 0
    %p358 = por %p356, %p357
    %s360 = sadd.s32 %s359, 1
    %p363 = scmp.eq.s32.totalorder %s31, 1
    %p364 = scmp.ne.s32.totalorder %s359, %s361
    %p365 = scmp.eq.s32.totalorder %s31, 0
    %p366 = por %p364, %p365
    %p367 = scmp.ne.s32.totalorder %s359, %s361
    %p368 = scmp.eq.s32.totalorder %s36, 1
    %p369 = por %p367, %p368
    %p370 = scmp.ne.s32.totalorder %s361, %s362
    %p371 = scmp.eq.s32.totalorder %s36, 0
    %p372 = por %p370, %p371
    %p373 = scmp.ne.s32.totalorder %s361, %s362
    %p374 = scmp.eq.s32.totalorder %s37, 1
    %p375 = por %p373, %p374
    %p377 = scmp.ne.s32.totalorder %s362, %s376
    %p378 = scmp.eq.s32.totalorder %s37, 0
    %p379 = por %p377, %p378
    %s381 = sadd.s32 %s380, 1
    %p384 = scmp.eq.s32.totalorder %s31, 1
    %p385 = scmp.ne.s32.totalorder %s380, %s382
    %p386 = scmp.eq.s32.totalorder %s31, 0
    %p387 = por %p385, %p386
    %p388 = scmp.ne.s32.totalorder %s380, %s382
    %p389 = scmp.eq.s32.totalorder %s36, 1
    %p390 = por %p388, %p389
    %p391 = scmp.ne.s32.totalorder %s382, %s383
    %p392 = scmp.eq.s32.totalorder %s36, 0
    %p393 = por %p391, %p392
    %p394 = scmp.ne.s32.totalorder %s382, %s383
    %p395 = scmp.eq.s32.totalorder %s37, 1
    %p396 = por %p394, %p395
    %p398 = scmp.ne.s32.totalorder %s383, %s397
    %p399 = scmp.eq.s32.totalorder %s37, 0
    %p400 = por %p398, %p399
    %s402 = sadd.s32 %s401, 1
    %p405 = scmp.eq.s32.totalorder %s31, 1
    %p406 = scmp.ne.s32.totalorder %s401, %s403
    %p407 = scmp.eq.s32.totalorder %s31, 0
    %p408 = por %p406, %p407
    %p409 = scmp.ne.s32.totalorder %s401, %s403
    %p410 = scmp.eq.s32.totalorder %s36, 1
    %p411 = por %p409, %p410
    %p412 = scmp.ne.s32.totalorder %s403, %s404
    %p413 = scmp.eq.s32.totalorder %s36, 0
    %p414 = por %p412, %p413
    %p415 = scmp.ne.s32.totalorder %s403, %s404
    %p416 = scmp.eq.s32.totalorder %s37, 1
    %p417 = por %p415, %p416
    %p419 = scmp.ne.s32.totalorder %s404, %s418
    %p420 = scmp.eq.s32.totalorder %s37, 0
    %p421 = por %p419, %p420
    %s423 = sadd.s32 %s422, 1
    %p426 = scmp.eq.s32.totalorder %s31, 1
    %p427 = scmp.ne.s32.totalorder %s422, %s424
    %p428 = scmp.eq.s32.totalorder %s31, 0
    %p429 = por %p427, %p428
    %p430 = scmp.ne.s32.totalorder %s422, %s424
    %p431 = scmp.eq.s32.totalorder %s36, 1
    %p432 = por %p430, %p431
    %p433 = scmp.ne.s32.totalorder %s424, %s425
    %p434 = scmp.eq.s32.totalorder %s36, 0
    %p435 = por %p433, %p434
    %p436 = scmp.ne.s32.totalorder %s424, %s425
    %p437 = scmp.eq.s32.totalorder %s37, 1
    %p438 = por %p436, %p437
    %p440 = scmp.ne.s32.totalorder %s425, %s439
    %p441 = scmp.eq.s32.totalorder %s37, 0
    %p442 = por %p440, %p441
    %s444 = sadd.s32 %s443, 1
    %p447 = scmp.eq.s32.totalorder %s31, 1
    %p448 = scmp.ne.s32.totalorder %s443, %s445
    %p449 = scmp.eq.s32.totalorder %s31, 0
    %p450 = por %p448, %p449
    %p451 = scmp.ne.s32.totalorder %s443, %s445
    %p452 = scmp.eq.s32.totalorder %s36, 1
    %p453 = por %p451, %p452
    %p454 = scmp.ne.s32.totalorder %s445, %s446
    %p455 = scmp.eq.s32.totalorder %s36, 0
    %p456 = por %p454, %p455
    %p457 = scmp.ne.s32.totalorder %s445, %s446
    %p458 = scmp.eq.s32.totalorder %s37, 1
    %p459 = por %p457, %p458
    %p461 = scmp.ne.s32.totalorder %s446, %s460
    %p462 = scmp.eq.s32.totalorder %s37, 0
    %p463 = por %p461, %p462
    %s465 = sadd.s32 %s464, 1
    %p468 = scmp.eq.s32.totalorder %s31, 1
    %p469 = scmp.ne.s32.totalorder %s464, %s466
    %p470 = scmp.eq.s32.totalorder %s31, 0
    %p471 = por %p469, %p470
    %p472 = scmp.ne.s32.totalorder %s464, %s466
    %p473 = scmp.eq.s32.totalorder %s36, 1
    %p474 = por %p472, %p473
    %p475 = scmp.ne.s32.totalorder %s466, %s467
    %p476 = scmp.eq.s32.totalorder %s36, 0
    %p477 = por %p475, %p476
    %p478 = scmp.ne.s32.totalorder %s466, %s467
    %p479 = scmp.eq.s32.totalorder %s37, 1
    %p480 = por %p478, %p479
    %p482 = scmp.ne.s32.totalorder %s467, %s481
    %p483 = scmp.eq.s32.totalorder %s37, 0
    %p484 = por %p482, %p483
    %s486 = sadd.s32 %s485, 1
    %p489 = scmp.eq.s32.totalorder %s31, 1
    %p490 = scmp.ne.s32.totalorder %s485, %s487
    %p491 = scmp.eq.s32.totalorder %s31, 0
    %p492 = por %p490, %p491
    %p493 = scmp.ne.s32.totalorder %s485, %s487
    %p494 = scmp.eq.s32.totalorder %s36, 1
    %p495 = por %p493, %p494
    %p496 = scmp.ne.s32.totalorder %s487, %s488
    %p497 = scmp.eq.s32.totalorder %s36, 0
    %p498 = por %p496, %p497
    %p499 = scmp.ne.s32.totalorder %s487, %s488
    %p500 = scmp.eq.s32.totalorder %s37, 1
    %p501 = por %p499, %p500
    %p503 = scmp.ne.s32.totalorder %s488, %s502
    %p504 = scmp.eq.s32.totalorder %s37, 0
    %p505 = por %p503, %p504
    %s507 = sadd.s32 %s506, 1
    %p510 = scmp.eq.s32.totalorder %s31, 1
    %p511 = scmp.ne.s32.totalorder %s506, %s508
    %p512 = scmp.eq.s32.totalorder %s31, 0
    %p513 = por %p511, %p512
    %p514 = scmp.ne.s32.totalorder %s506, %s508
    %p515 = scmp.eq.s32.totalorder %s36, 1
    %p516 = por %p514, %p515
    %p517 = scmp.ne.s32.totalorder %s508, %s509
    %p518 = scmp.eq.s32.totalorder %s36, 0
    %p519 = por %p517, %p518
    %p520 = scmp.ne.s32.totalorder %s508, %s509
    %p521 = scmp.eq.s32.totalorder %s37, 1
    %p522 = por %p520, %p521
    %p524 = scmp.ne.s32.totalorder %s509, %s523
    %p525 = scmp.eq.s32.totalorder %s37, 0
    %p526 = por %p524, %p525
    %s528 = sadd.s32 %s527, 1
    %p531 = scmp.eq.s32.totalorder %s31, 1
    %p532 = scmp.ne.s32.totalorder %s527, %s529
    %p533 = scmp.eq.s32.totalorder %s31, 0
    %p534 = por %p532, %p533
    %p535 = scmp.ne.s32.totalorder %s527, %s529
    %p536 = scmp.eq.s32.totalorder %s36, 1
    %p537 = por %p535, %p536
    %p538 = scmp.ne.s32.totalorder %s529, %s530
    %p539 = scmp.eq.s32.totalorder %s36, 0
    %p540 = por %p538, %p539
    %p541 = scmp.ne.s32.totalorder %s529, %s530
    %p542 = scmp.eq.s32.totalorder %s37, 1
    %p543 = por %p541, %p542
    %p545 = scmp.ne.s32.totalorder %s530, %s544
    %p546 = scmp.eq.s32.totalorder %s37, 0
    %p547 = por %p545, %p546
    %s548 = ssub.s32 %s31, %s38
    %p549 = scmp.eq.s32.totalorder %s548, 0
    %s551 = sadd.s32 %s550, 1
    %s552 = scalar_select %p549, %s550, %s551
    %p555 = pneg %p549
    %p556 = scmp.eq.s32.totalorder %s31, 1
    %p557 = por %p555, %p556
    %p558 = scmp.ne.s32.totalorder %s550, %s553
    %p559 = scmp.eq.s32.totalorder %s31, 0
    %p560 = por %p558, %p559
    %p561 = scmp.ne.s32.totalorder %s550, %s553
    %p562 = scmp.eq.s32.totalorder %s36, 1
    %p563 = por %p561, %p562
    %p564 = scmp.ne.s32.totalorder %s553, %s554
    %p565 = scmp.eq.s32.totalorder %s36, 0
    %p566 = por %p564, %p565
    %p567 = scmp.ne.s32.totalorder %s553, %s554
    %p568 = scmp.eq.s32.totalorder %s37, 1
    %p569 = por %p567, %p568
    %p571 = scmp.ne.s32.totalorder %s554, %s570
    %p572 = scmp.eq.s32.totalorder %s37, 0
    %p573 = por %p571, %p572
    %p574 = scmp.le.s32.totalorder 1, %s31
    %p575 = scmp.lt.s32.totalorder %s31, 3
    %p576 = pnand %p574, %p575
    %p577 = pneg %p576
    // Predicated region
    $region9: #{tpu_custom_call.1} parent=5 // pred_check
      _
    $region10: #{tpu_custom_call.1} parent=5 // pred_check_branch
      %579 = sbr.rel (%p576) target = $region12
    $region11: #{tpu_custom_call.1} parent=5 // pred_region
      %s580 = ssub.s32 %s31, 1
      // Predicated region
      $region13: #{tpu_custom_call.1} parent=11 // pred_check
        %p581 = pneg %p78
      $region14: #{tpu_custom_call.1} parent=11 // pred_check_branch
        %583 = sbr.rel (%p581) target = $region16
      $region15: #{tpu_custom_call.1} parent=11 // pred_region
        _
      $region16: #{tpu_custom_call.1} parent=11 // pred_fallthru
        _
      // Predicated region
      $region17: #{tpu_custom_call.1} parent=11 // pred_check
        %p584 = pneg %p99
      $region18: #{tpu_custom_call.1} parent=11 // pred_check_branch
        %586 = sbr.rel (%p584) target = $region20
      $region19: #{tpu_custom_call.1} parent=11 // pred_region
        _
      $region20: #{tpu_custom_call.1} parent=11 // pred_fallthru
        _
      // Predicated region
      $region21: #{tpu_custom_call.1} parent=11 // pred_check
        %p587 = pneg %p120
      $region22: #{tpu_custom_call.1} parent=11 // pred_check_branch
        %589 = sbr.rel (%p587) target = $region24
      $region23: #{tpu_custom_call.1} parent=11 // pred_region
        _
      $region24: #{tpu_custom_call.1} parent=11 // pred_fallthru
        _
      // Predicated region
      $region25: #{tpu_custom_call.1} parent=11 // pred_check
        %p590 = pneg %p141
      $region26: #{tpu_custom_call.1} parent=11 // pred_check_branch
        %592 = sbr.rel (%p590) target = $region28
      $region27: #{tpu_custom_call.1} parent=11 // pred_region
        _
      $region28: #{tpu_custom_call.1} parent=11 // pred_fallthru
        _
      // Predicated region
      $region29: #{tpu_custom_call.1} parent=11 // pred_check
        %p593 = pneg %p162
      $region30: #{tpu_custom_call.1} parent=11 // pred_check_branch
        %595 = sbr.rel (%p593) target = $region32
      $region31: #{tpu_custom_call.1} parent=11 // pred_region
        _
      $region32: #{tpu_custom_call.1} parent=11 // pred_fallthru
        _
      // Predicated region
      $region33: #{tpu_custom_call.1} parent=11 // pred_check
        %p596 = pneg %p183
      $region34: #{tpu_custom_call.1} parent=11 // pred_check_branch
        %598 = sbr.rel (%p596) target = $region36
      $region35: #{tpu_custom_call.1} parent=11 // pred_region
        _
      $region36: #{tpu_custom_call.1} parent=11 // pred_fallthru
        _
      // Predicated region
      $region37: #{tpu_custom_call.1} parent=11 // pred_check
        %p599 = pneg %p204
      $region38: #{tpu_custom_call.1} parent=11 // pred_check_branch
        %601 = sbr.rel (%p599) target = $region40
      $region39: #{tpu_custom_call.1} parent=11 // pred_region
        _
      $region40: #{tpu_custom_call.1} parent=11 // pred_fallthru
        _
      // Predicated region
      $region41: #{tpu_custom_call.1} parent=11 // pred_check
        %p602 = pneg %p225
      $region42: #{tpu_custom_call.1} parent=11 // pred_check_branch
        %604 = sbr.rel (%p602) target = $region44
      $region43: #{tpu_custom_call.1} parent=11 // pred_region
        _
      $region44: #{tpu_custom_call.1} parent=11 // pred_fallthru
        _
      // Predicated region
      $region45: #{tpu_custom_call.1} parent=11 // pred_check
        %p605 = pneg %p246
      $region46: #{tpu_custom_call.1} parent=11 // pred_check_branch
        %607 = sbr.rel (%p605) target = $region48
      $region47: #{tpu_custom_call.1} parent=11 // pred_region
        _
      $region48: #{tpu_custom_call.1} parent=11 // pred_fallthru
        _
      // Predicated region
      $region49: #{tpu_custom_call.1} parent=11 // pred_check
        %p608 = pneg %p267
      $region50: #{tpu_custom_call.1} parent=11 // pred_check_branch
        %610 = sbr.rel (%p608) target = $region52
      $region51: #{tpu_custom_call.1} parent=11 // pred_region
        _
      $region52: #{tpu_custom_call.1} parent=11 // pred_fallthru
        _
      // Predicated region
      $region53: #{tpu_custom_call.1} parent=11 // pred_check
        %p611 = pneg %p288
      $region54: #{tpu_custom_call.1} parent=11 // pred_check_branch
        %613 = sbr.rel (%p611) target = $region56
      $region55: #{tpu_custom_call.1} parent=11 // pred_region
        _
      $region56: #{tpu_custom_call.1} parent=11 // pred_fallthru
        _
      // Predicated region
      $region57: #{tpu_custom_call.1} parent=11 // pred_check
        %p614 = pneg %p309
      $region58: #{tpu_custom_call.1} parent=11 // pred_check_branch
        %616 = sbr.rel (%p614) target = $region60
      $region59: #{tpu_custom_call.1} parent=11 // pred_region
        _
      $region60: #{tpu_custom_call.1} parent=11 // pred_fallthru
        _
      // Predicated region
      $region61: #{tpu_custom_call.1} parent=11 // pred_check
        %p617 = pneg %p330
      $region62: #{tpu_custom_call.1} parent=11 // pred_check_branch
        %619 = sbr.rel (%p617) target = $region64
      $region63: #{tpu_custom_call.1} parent=11 // pred_region
        _
      $region64: #{tpu_custom_call.1} parent=11 // pred_fallthru
        _
      // Predicated region
      $region65: #{tpu_custom_call.1} parent=11 // pred_check
        %p620 = pneg %p351
      $region66: #{tpu_custom_call.1} parent=11 // pred_check_branch
        %622 = sbr.rel (%p620) target = $region68
      $region67: #{tpu_custom_call.1} parent=11 // pred_region
        _
      $region68: #{tpu_custom_call.1} parent=11 // pred_fallthru
        _
      // Predicated region
      $region69: #{tpu_custom_call.1} parent=11 // pred_check
        %p623 = pneg %p372
      $region70: #{tpu_custom_call.1} parent=11 // pred_check_branch
        %625 = sbr.rel (%p623) target = $region72
      $region71: #{tpu_custom_call.1} parent=11 // pred_region
        _
      $region72: #{tpu_custom_call.1} parent=11 // pred_fallthru
        _
      // Predicated region
      $region73: #{tpu_custom_call.1} parent=11 // pred_check
        %p626 = pneg %p393
      $region74: #{tpu_custom_call.1} parent=11 // pred_check_branch
        %628 = sbr.rel (%p626) target = $region76
      $region75: #{tpu_custom_call.1} parent=11 // pred_region
        _
      $region76: #{tpu_custom_call.1} parent=11 // pred_fallthru
        _
      // Predicated region
      $region77: #{tpu_custom_call.1} parent=11 // pred_check
        %p629 = pneg %p414
      $region78: #{tpu_custom_call.1} parent=11 // pred_check_branch
        %631 = sbr.rel (%p629) target = $region80
      $region79: #{tpu_custom_call.1} parent=11 // pred_region
        _
      $region80: #{tpu_custom_call.1} parent=11 // pred_fallthru
        _
      // Predicated region
      $region81: #{tpu_custom_call.1} parent=11 // pred_check
        %p632 = pneg %p435
      $region82: #{tpu_custom_call.1} parent=11 // pred_check_branch
        %634 = sbr.rel (%p632) target = $region84
      $region83: #{tpu_custom_call.1} parent=11 // pred_region
        _
      $region84: #{tpu_custom_call.1} parent=11 // pred_fallthru
        _
      // Predicated region
      $region85: #{tpu_custom_call.1} parent=11 // pred_check
        %p635 = pneg %p456
      $region86: #{tpu_custom_call.1} parent=11 // pred_check_branch
        %637 = sbr.rel (%p635) target = $region88
      $region87: #{tpu_custom_call.1} parent=11 // pred_region
        _
      $region88: #{tpu_custom_call.1} parent=11 // pred_fallthru
        _
      // Predicated region
      $region89: #{tpu_custom_call.1} parent=11 // pred_check
        %p638 = pneg %p477
      $region90: #{tpu_custom_call.1} parent=11 // pred_check_branch
        %640 = sbr.rel (%p638) target = $region92
      $region91: #{tpu_custom_call.1} parent=11 // pred_region
        _
      $region92: #{tpu_custom_call.1} parent=11 // pred_fallthru
        _
      // Predicated region
      $region93: #{tpu_custom_call.1} parent=11 // pred_check
        %p641 = pneg %p498
      $region94: #{tpu_custom_call.1} parent=11 // pred_check_branch
        %643 = sbr.rel (%p641) target = $region96
      $region95: #{tpu_custom_call.1} parent=11 // pred_region
        _
      $region96: #{tpu_custom_call.1} parent=11 // pred_fallthru
        _
      // Predicated region
      $region97: #{tpu_custom_call.1} parent=11 // pred_check
        %p644 = pneg %p519
      $region98: #{tpu_custom_call.1} parent=11 // pred_check_branch
        %646 = sbr.rel (%p644) target = $region100
      $region99: #{tpu_custom_call.1} parent=11 // pred_region
        _
      $region100: #{tpu_custom_call.1} parent=11 // pred_fallthru
        _
      // Predicated region
      $region101: #{tpu_custom_call.1} parent=11 // pred_check
        %p647 = pneg %p540
      $region102: #{tpu_custom_call.1} parent=11 // pred_check_branch
        %649 = sbr.rel (%p647) target = $region104
      $region103: #{tpu_custom_call.1} parent=11 // pred_region
        _
      $region104: #{tpu_custom_call.1} parent=11 // pred_fallthru
        _
    $region12: #{tpu_custom_call.1} parent=5 // pred_fallthru
      _
    %p650 = scmp.lt.s32.totalorder %s31, 2
    // Predicated region
    $region105: #{tpu_custom_call.1} parent=5 // pred_check
      %p651 = pneg %p650
    $region106: #{tpu_custom_call.1} parent=5 // pred_check_branch
      %653 = sbr.rel (%p651) target = $region108
    $region107: #{tpu_custom_call.1} parent=5 // pred_region
      // Predicated region
      $region109: #{tpu_custom_call.1} parent=107 // pred_check
        %p654 = pneg %p51
      $region110: #{tpu_custom_call.1} parent=107 // pred_check_branch
        %656 = sbr.rel (%p654) target = $region112
      $region111: #{tpu_custom_call.1} parent=107 // pred_region
        %p657 = scmp.lt.s32.totalorder %s31, 1
        %s658 = scalar_select %p657, %s31, 1
        %s659 = scalar_lea.vmem %s0, %s658
      $region112: #{tpu_custom_call.1} parent=107 // pred_fallthru
        _
    $region108: #{tpu_custom_call.1} parent=5 // pred_fallthru
      _
    %p660 = scmp.le.s32.totalorder 1, %s31
    %p661 = scmp.lt.s32.totalorder %s31, 3
    %p662 = pnand %p660, %p661
    %p663 = pneg %p662
    // Predicated region
    $region113: #{tpu_custom_call.1} parent=5 // pred_check
      _
    $region114: #{tpu_custom_call.1} parent=5 // pred_check_branch
      %665 = sbr.rel (%p662) target = $region116
    $region115: #{tpu_custom_call.1} parent=5 // pred_region
      %s666 = ssub.s32 %s31, 1
      %p667 = scmp.lt.s32.totalorder %s36, 1
      %s668 = scalar_select %p667, %s36, 1
      %s669 = scalar_lea.vmem %s0, %s668
      %p670 = pneg %p57
      %p671 = pneg %p54
      %p672 = pneg %p78
      %p673 = pneg %p75
      %p674 = pneg %p99
      %p675 = pneg %p96
      %p676 = pneg %p120
      %p677 = pneg %p117
      %p678 = pneg %p141
      %p679 = pneg %p138
      %p680 = pneg %p162
      %p681 = pneg %p159
      %p682 = pneg %p183
      %p683 = pneg %p180
      %p684 = pneg %p204
      %p685 = pneg %p201
      %p686 = pneg %p225
      %p687 = pneg %p222
      %p688 = pneg %p246
      %p689 = pneg %p243
      %p690 = pneg %p267
      %p691 = pneg %p264
      %p692 = pneg %p288
      %p693 = pneg %p285
      %p694 = pneg %p309
      %p695 = pneg %p306
      %p696 = pneg %p330
      %p697 = pneg %p327
      %p698 = pneg %p351
      %p699 = pneg %p348
      %p700 = pneg %p372
      %p701 = pneg %p369
      %p702 = pneg %p393
      %p703 = pneg %p390
      %p704 = pneg %p414
      %p705 = pneg %p411
      %p706 = pneg %p435
      %p707 = pneg %p432
      %p708 = pneg %p456
      %p709 = pneg %p453
      %p710 = pneg %p477
      %p711 = pneg %p474
      %p712 = pneg %p498
      %p713 = pneg %p495
      %p714 = pneg %p519
      %p715 = pneg %p516
      %p716 = pneg %p540
      %p717 = pneg %p537
      %p718 = pneg %p566
      %p719 = pneg %p563
      %p720 = scmp.lt.s32.totalorder %s36, 1
      %s721 = scalar_select %p720, %s36, 1
      %s722 = smul.addr %s721, 32
      %s723 = smul.addr %s722, 8
      %s724 = scalar_lea.vmem %s24, %s723
      %p725 = scmp.lt.s32.totalorder %s36, 1
      %s726 = scalar_select %p725, %s36, 1
      %s727 = scalar_lea.vmem %s0, %s726
      %p728 = scmp.lt.s32.totalorder %s36, 1
      %s729 = scalar_select %p728, %s36, 1
      %s730 = smul.addr %s729, 32
      %s731 = smul.addr %s730, 8
      %s732 = scalar_lea.vmem %s24, %s731
      %v734 = vld [vmem:[%s727] sm:$0x1]
      %v737 = vunpack.c.l.s4 1966171168
      %v738 = vunpack.c.0.s8 %v737
      %v739 = vlaneseq
      %v740 = vshrl.u32 %v739, 7
      %v741 = vsub.s32 %v738, %v740
      %v742 = vrot.slane %v734, %v741
      %v744 = vunpack.c.l.s4 1966171168
      %v745 = vunpack.c.0.s8 %v744
      %v746 = vlaneseq
      %v747 = vshrl.u32 %v746, 7
      %v748 = vsub.s32 %v745, %v747
      %v749 = vrot.slane %v742, %v748
      %750 = vrot.lane.b32.xlu0 %v749, 16
      %v751 = vpop.permute.xlu0 %750
      %752 = vrot.lane.b32.xlu0 %v749, 32
      %v753 = vpop.permute.xlu0 %752
      %754 = vrot.lane.b32.xlu0 %v749, 48
      %v755 = vpop.permute.xlu0 %754
      %756 = vrot.lane.b32.xlu0 %v749, 64
      %v757 = vpop.permute.xlu0 %756
      %758 = vrot.lane.b32.xlu0 %v749, 80
      %v759 = vpop.permute.xlu0 %758
      %760 = vrot.lane.b32.xlu0 %v749, 96
      %v761 = vpop.permute.xlu0 %760
      %762 = vrot.lane.b32.xlu0 %v749, 112
      %v763 = vpop.permute.xlu0 %762
      %vm764 = vcmask 130048
      %v767 = vsel %vm764, %v734, %v751
      %vm768 = vcmask 261120
      %v770 = vsel %vm768, %v767, %v753
      %vm771 = vcmask 392192
      %v773 = vsel %vm771, %v770, %v755
      %vm774 = vcmask 523264
      %v776 = vsel %vm774, %v773, %v757
      %vm777 = vcmask 654336
      %v779 = vsel %vm777, %v776, %v759
      %vm780 = vcmask 785408
      %v782 = vsel %vm780, %v779, %v761
      %vm783 = vcmask 916480
      %v785 = vsel %vm783, %v782, %v763
      %v786 = vld [vmem:[%s1] sm:$0xff]
      %v787 = vld [vmem:[%s1 + $0x8] sm:$0xff]
      %v788 = vld [vmem:[%s1 + $0x10] sm:$0xff]
      %v789 = vld [vmem:[%s1 + $0x18] sm:$0xff]
      %v790 = vld [vmem:[%s1 + $0x20] sm:$0x33]
      %v791 = vpack.i.b16 %v785, %v785
      %v793 = vlaneseq
      %v794 = vshrl.u32 %v793, 7
      %v795 = vsub.s32 0, %v794
      %v796 = vrot.slane %v791, %v795
      %v798 = vunpack.c.l.b16 %v796
      %v799 = vpack.c.b16 %v798, %v798
      %v801 = vmul.bf16 %v786, %v799
      %v802 = vmul.bf16 %v787, %v799
      %v803 = vmul.bf16 %v788, %v799
      %v804 = vmul.bf16 %v789, %v799
      %v805 = vmul.bf16 %v790, %v799
      %v806 = vld [vmem:[%s2] sm:$0xf]
      %v807 = vld [vmem:[%s2 + $0x4] sm:$0xf]
      %v808 = vld [vmem:[%s2 + $0x8] sm:$0xf]
      %v809 = vld [vmem:[%s2 + $0xc] sm:$0xf]
      %v810 = vld [vmem:[%s2 + $0x10] sm:$0xf]
      %v811 = vld [vmem:[%s2 + $0x14] sm:$0xf]
      %v812 = vld [vmem:[%s2 + $0x18] sm:$0xf]
      %v813 = vld [vmem:[%s2 + $0x1c] sm:$0xf]
      %v814 = vld [vmem:[%s2 + $0x20] sm:$0xf]
      %v815 = vld [vmem:[%s2 + $0x24] sm:$0xf]
      %v816 = vld [vmem:[%s2 + $0x28] sm:$0xf]
      %v817 = vld [vmem:[%s2 + $0x2c] sm:$0xf]
      %v818 = vld [vmem:[%s2 + $0x30] sm:$0xf]
      %v819 = vld [vmem:[%s2 + $0x34] sm:$0xf]
      %v820 = vld [vmem:[%s2 + $0x38] sm:$0xf]
      %v821 = vld [vmem:[%s2 + $0x3c] sm:$0xf]
      %v822 = vld [vmem:[%s2 + $0x40] sm:$0xf]
      %v823 = vld [vmem:[%s2 + $0x44] sm:$0xf]
      %v824 = vld [vmem:[%s2 + $0x48] sm:$0xf]
      %v825 = vld [vmem:[%s2 + $0x4c] sm:$0xf]
      %v826 = vld [vmem:[%s2 + $0x50] sm:$0xf]
      %v827 = vld [vmem:[%s2 + $0x54] sm:$0xf]
      %v828 = vld [vmem:[%s2 + $0x58] sm:$0xf]
      %v829 = vld [vmem:[%s2 + $0x5c] sm:$0xf]
      %v830 = vld [vmem:[%s2 + $0x60] sm:$0xf]
      %v831 = vld [vmem:[%s2 + $0x64] sm:$0xf]
      %v832 = vld [vmem:[%s2 + $0x68] sm:$0xf]
      %v833 = vld [vmem:[%s2 + $0x6c] sm:$0xf]
      %v834 = vld [vmem:[%s2 + $0x70] sm:$0xf]
      %v835 = vld [vmem:[%s2 + $0x74] sm:$0xf]
      %v836 = vld [vmem:[%s2 + $0x78] sm:$0xf]
      %v837 = vld [vmem:[%s2 + $0x7c] sm:$0xf]
      %v838 = vld [vmem:[%s3] sm:$0x1]
      %v840 = vlaneseq
      %v841 = vshrl.u32 %v840, 7
      %v842 = vsub.s32 0, %v841
      %v843 = vrot.slane %v838, %v842
      %v850 = vunpack.c.l.b16 %v801
      %v851 = vunpack.c.h.b16 %v801
      %v852 = vunpack.c.l.b16 %v802
      %v853 = vunpack.c.h.b16 %v802
      %v854 = vunpack.c.l.b16 %v803
      %v855 = vunpack.c.h.b16 %v803
      %v856 = vunpack.c.l.b16 %v804
      %v857 = vunpack.c.h.b16 %v804
      %v858 = vunpack.c.l.b16 %v805
      %v859 = vunpack.c.h.b16 %v805
      %v860 = vpack.c.b16 %v852, %v850
      %v861 = vpack.c.b16 %v853, %v851
      %v862 = vpack.c.b16 %v856, %v854
      %v863 = vpack.c.b16 %v857, %v855
      %v864 = vpack.c.b16 %v858, %v858
      %v865 = vpack.c.b16 %v859, %v859
      %v904 = vunpack.c.l.b16 %v806
      %v905 = vunpack.c.l.b16 %v807
      %v906 = vunpack.c.l.b16 %v808
      %v907 = vunpack.c.l.b16 %v809
      %v908 = vunpack.c.l.b16 %v810
      %v909 = vunpack.c.l.b16 %v811
      %v910 = vunpack.c.l.b16 %v812
      %v911 = vunpack.c.l.b16 %v813
      %v912 = vunpack.c.l.b16 %v814
      %v913 = vunpack.c.l.b16 %v815
      %v914 = vunpack.c.l.b16 %v816
      %v915 = vunpack.c.l.b16 %v817
      %v916 = vunpack.c.l.b16 %v818
      %v917 = vunpack.c.l.b16 %v819
      %v918 = vunpack.c.l.b16 %v820
      %v919 = vunpack.c.l.b16 %v821
      %v920 = vunpack.c.l.b16 %v822
      %v921 = vunpack.c.l.b16 %v823
      %v922 = vunpack.c.l.b16 %v824
      %v923 = vunpack.c.l.b16 %v825
      %v924 = vunpack.c.l.b16 %v826
      %v925 = vunpack.c.l.b16 %v827
      %v926 = vunpack.c.l.b16 %v828
      %v927 = vunpack.c.l.b16 %v829
      %v928 = vunpack.c.l.b16 %v830
      %v929 = vunpack.c.l.b16 %v831
      %v930 = vunpack.c.l.b16 %v832
      %v931 = vunpack.c.l.b16 %v833
      %v932 = vunpack.c.l.b16 %v834
      %v933 = vunpack.c.l.b16 %v835
      %v934 = vunpack.c.l.b16 %v836
      %v935 = vunpack.c.l.b16 %v837
      %v936 = vpack.c.b16 %v905, %v904
      %v937 = vpack.c.b16 %v907, %v906
      %v938 = vpack.c.b16 %v909, %v908
      %v939 = vpack.c.b16 %v911, %v910
      %v940 = vpack.c.b16 %v913, %v912
      %v941 = vpack.c.b16 %v915, %v914
      %v942 = vpack.c.b16 %v917, %v916
      %v943 = vpack.c.b16 %v919, %v918
      %v944 = vpack.c.b16 %v921, %v920
      %v945 = vpack.c.b16 %v923, %v922
      %v946 = vpack.c.b16 %v925, %v924
      %v947 = vpack.c.b16 %v927, %v926
      %v948 = vpack.c.b16 %v929, %v928
      %v949 = vpack.c.b16 %v931, %v930
      %v950 = vpack.c.b16 %v933, %v932
      %v951 = vpack.c.b16 %v935, %v934
      %968 = vmatprep.subr.bf16.mxu0 0
      %969 = vmatpush1.bf16.msra.mxu0 %v943
      %970 = vmatprep.subr.bf16.mxu0 0
      %971 = vmatpush1.bf16.msra.mxu0 %v942
      %972 = vmatprep.subr.bf16.mxu0 0
      %973 = vmatpush1.bf16.msra.mxu0 %v941
      %974 = vmatprep.subr.bf16.mxu0 0
      %975 = vmatpush1.bf16.msra.mxu0 %v940
      %976 = vmatprep.subr.bf16.mxu0 0
      %977 = vmatpush1.bf16.msra.mxu0 %v939
      %978 = vmatprep.subr.bf16.mxu0 0
      %979 = vmatpush1.bf16.msra.mxu0 %v938
      %980 = vmatprep.subr.bf16.mxu0 0
      %981 = vmatpush1.bf16.msra.mxu0 %v937
      %982 = vmatprep.subr.bf16.mxu0 0
      %983 = vmatpush1.bf16.msra.mxu0 %v936
      %984 = vmatprep.subr.bf16.mxu0 0
      %985 = vmatpush2.bf16.msra.mxu0 %v951
      %986 = vmatprep.subr.bf16.mxu0 0
      %987 = vmatpush2.bf16.msra.mxu0 %v950
      %988 = vmatprep.subr.bf16.mxu0 0
      %989 = vmatpush2.bf16.msra.mxu0 %v949
      %990 = vmatprep.subr.bf16.mxu0 0
      %991 = vmatpush2.bf16.msra.mxu0 %v948
      %992 = vmatprep.subr.bf16.mxu0 0
      %993 = vmatpush2.bf16.msra.mxu0 %v947
      %994 = vmatprep.subr.bf16.mxu0 0
      %995 = vmatpush2.bf16.msra.mxu0 %v946
      %996 = vmatprep.subr.bf16.mxu0 0
      %997 = vmatpush2.bf16.msra.mxu0 %v945
      %998 = vmatprep.subr.bf16.mxu0 0
      %999 = vmatpush2.bf16.msra.mxu0 %v944
      %1000 = vmatprep.mubr.bf16.mxu0 %v861
      %1001 = vmatmul.mubr.bf16.gmra.mxu0 %v860
      %v1002 = vpop.f32.mrf.mxu0
      %v1003 = vadd.f32 %v843, %v1002
      %v1004 = vpop.f32.mrf.mxu0
      %v1005 = vpop.f32.mrf.mxu0
      %v1006 = vadd.f32 %v843, %v1005
      %v1007 = vpop.f32.mrf.mxu0
      %1008 = vmatprep.mubr.bf16.mxu0 %v863
      %1009 = vmatmul.mubr.bf16.gmra.mxu0 %v862
      %v1010 = vpop.f32.mrf.mxu0
      %v1011 = vadd.f32 %v843, %v1010
      %v1012 = vpop.f32.mrf.mxu0
      %v1013 = vpop.f32.mrf.mxu0
      %v1014 = vadd.f32 %v843, %v1013
      %v1015 = vpop.f32.mrf.mxu0
      %1016 = vmatprep.mubr.bf16.mxu0 %v865
      %1017 = vmatmul.mubr.bf16.gmra.mxu0 %v864
      %v1018 = vpop.f32.mrf.mxu0
      %v1019 = vadd.f32 %v843, %v1018
      %v1020 = vpop.f32.mrf.mxu0
      %v1021 = vpop.f32.mrf.mxu0
      %v1022 = vpop.f32.mrf.mxu0
      %1023 = vdwg.mxu0
      %v1024 = vmul.f32 %v1003, %v1003
      %v1025 = vmul.f32 %v1006, %v1006
      %v1026 = vmul.f32 %v1011, %v1011
      %v1027 = vmul.f32 %v1014, %v1014
      %v1028 = vmul.f32 %v1019, %v1019
      %v1029 = vsel %vm768, %v1024, 0.0
      %1030 = vadd.xlane.f32.xlu0 %v1029
      %v1031 = vpop.xlane.xlu0 %1030
      %v1032 = vsel %vm768, %v1025, 0.0
      %1033 = vadd.xlane.f32.xlu0 %v1032
      %v1034 = vpop.xlane.xlu0 %1033
      %v1035 = vsel %vm768, %v1026, 0.0
      %1036 = vadd.xlane.f32.xlu0 %v1035
      %v1037 = vpop.xlane.xlu0 %1036
      %v1038 = vsel %vm768, %v1027, 0.0
      %1039 = vadd.xlane.f32.xlu0 %v1038
      %v1040 = vpop.xlane.xlu0 %1039
      %vm1041 = vcmask 257024
      %v1042 = vsel %vm1041, %v1028, 0.0
      %1043 = vadd.xlane.f32.xlu0 %v1042
      %v1044 = vpop.xlane.xlu0 %1043
      %v1045 = vrcp.pop 32.0
      %v1046 = vmul.f32 %v1031, %v1045
      %v1047 = vmul.f32 %v1034, %v1045
      %v1048 = vmul.f32 %v1037, %v1045
      %v1049 = vmul.f32 %v1040, %v1045
      %v1050 = vmul.f32 %v1044, %v1045
      %v1051 = vadd.f32 %v1046, 1e-08
      %v1052 = vadd.f32 %v1047, 1e-08
      %v1053 = vadd.f32 %v1048, 1e-08
      %v1054 = vadd.f32 %v1049, 1e-08
      %v1055 = vadd.f32 %v1050, 1e-08
      %v1056 = vrsqrt.pop %v1051
      %v1057 = vrsqrt.pop %v1052
      %v1058 = vrsqrt.pop %v1053
      %v1059 = vrsqrt.pop %v1054
      %v1060 = vrsqrt.pop %v1055
      %v1061 = vmul.f32 %v1003, %v1056
      %v1062 = vmul.f32 %v1006, %v1057
      %v1063 = vmul.f32 %v1011, %v1058
      %v1064 = vmul.f32 %v1014, %v1059
      %v1065 = vmul.f32 %v1019, %v1060
      %vm1066 = vcmp.gt.f32.partialorder %v1061, 0.0
      %vm1067 = vcmp.gt.f32.partialorder %v1062, 0.0
      %vm1068 = vcmp.gt.f32.partialorder %v1063, 0.0
      %vm1069 = vcmp.gt.f32.partialorder %v1064, 0.0
      %vm1070 = vcmp.gt.f32.partialorder %v1065, 0.0
      %v1071 = vmul.f32 %v1061, 0.2
      %v1072 = vmul.f32 %v1062, 0.2
      %v1073 = vmul.f32 %v1063, 0.2
      %v1074 = vmul.f32 %v1064, 0.2
      %v1075 = vmul.f32 %v1065, 0.2
      %v1076 = vsel %vm1066, %v1061, %v1071
      %v1077 = vsel %vm1067, %v1062, %v1072
      %v1078 = vsel %vm1068, %v1063, %v1073
      %v1079 = vsel %vm1069, %v1064, %v1074
      %v1080 = vsel %vm1070, %v1065, %v1075
      %v1081 = vld [vmem:[%s6] sm:$0xff]
      %v1082 = vld [vmem:[%s6 + $0x8] sm:$0xff]
      %v1083 = vld [vmem:[%s6 + $0x10] sm:$0xff]
      %v1084 = vld [vmem:[%s6 + $0x18] sm:$0xff]
      %v1085 = vld [vmem:[%s6 + $0x20] sm:$0xf]
      %1087 = vset.pattern.permute.xlu0 0
      %1088 = vperm.xlu0 %1087, %v1081
      %v1089 = vpop.permute.xlu0 %1088
      %1092 = vset.pattern.permute.xlu0 0
      %1093 = vperm.xlu0 %1092, %v1082
      %v1094 = vpop.permute.xlu0 %1093
      %1097 = vset.pattern.permute.xlu0 0
      %1098 = vperm.xlu0 %1097, %v1083
      %v1099 = vpop.permute.xlu0 %1098
      %1102 = vset.pattern.permute.xlu0 0
      %1103 = vperm.xlu0 %1102, %v1084
      %v1104 = vpop.permute.xlu0 %1103
      %1107 = vset.pattern.permute.xlu0 0
      %1108 = vperm.xlu0 %1107, %v1085
      %v1109 = vpop.permute.xlu0 %1108
      %v1111 = vmul.f32 %v1076, %v1089
      %v1112 = vmul.f32 %v1077, %v1094
      %v1113 = vmul.f32 %v1078, %v1099
      %v1114 = vmul.f32 %v1079, %v1104
      %v1115 = vmul.f32 %v1080, %v1109
      %v1116 = vpack.c.bf16 %v1112, %v1111
      %v1117 = vpack.c.bf16 %v1114, %v1113
      %v1118 = vpack.c.bf16 %v1115, %v1115
      %vm1119 = vsmask.f32 3328
      %v1121 = vshrl.u32 %v1116, 16
      %v1123 = vrot.slane %v1121, 4
      %v1124 = vshll.u32 %v1116, 16
      %v1126 = vrot.slane %v1124, 5
      %v1127 = vor.u32 %v1123, %v1126
      %v1129 = vshrl.u32 %v1117, 16
      %v1131 = vrot.slane %v1129, 4
      %v1132 = vshll.u32 %v1117, 16
      %v1134 = vrot.slane %v1132, 5
      %v1135 = vor.u32 %v1131, %v1134
      %v1136 = vsel %vm1119, %v1127, %v1135
      %v1138 = vshrl.u32 %v1118, 16
      %v1140 = vrot.slane %v1138, 4
      %v1141 = vshll.u32 %v1118, 16
      %v1143 = vrot.slane %v1141, 5
      %v1144 = vor.u32 %v1140, %v1143
      %v1145 = vsel %vm1119, %v1135, %v1144
      %vm1148 = vcmask 1043456
      %vm1149 = vmand %vm1148, %vm1119
      %v1150 = vsel %vm1149, 0, %v1127
      %vm1151 = vcmask 1045504
      %vm1152 = vsmask.f32 5376
      %vm1153 = vmand %vm1151, %vm1152
      %v1154 = vsel %vm1153, %v1145, 0
      %vm1155 = vsmask.f32 7424
      %v1157 = vshrl.u32 %v1150, 16
      %v1159 = vshll.u32 %v1150, 16
      %v1161 = vrot.slane %v1159, 1
      %v1162 = vor.u32 %v1157, %v1161
      %v1164 = vshll.u32 %v1136, 16
      %v1166 = vrot.slane %v1164, 1
      %v1167 = vsel %vm1155, %v1162, %v1166
      %v1168 = vshrl.u32 %v1136, 16
      %v1170 = vor.u32 %v1168, %v1166
      %v1172 = vshll.u32 %v1154, 16
      %v1174 = vrot.slane %v1172, 1
      %v1175 = vsel %vm1155, %v1170, %v1174
      %v1176 = vshrl.u32 %v1154, 16
      %v1178 = vor.u32 %v1176, %v1174
      %1179 = vrot.lane.b32.xlu0 %v1167, 32
      %v1180 = vpop.permute.xlu0 %1179
      %1181 = vrot.lane.b32.xlu0 %v1175, 32
      %v1182 = vpop.permute.xlu0 %1181
      %1183 = vrot.lane.b32.xlu0 %v1178, 32
      %v1184 = vpop.permute.xlu0 %1183
      %vm1187 = vcmask 1046528
      %v1188 = vrot.slane %v1150, 1
      %v1189 = vrot.slane %v1136, 1
      %v1190 = vsel %vm1187, %v1188, %v1189
      %v1191 = vrot.slane %v1154, 1
      %v1192 = vsel %vm1187, %v1189, %v1191
      %1193 = vrot.lane.b32.xlu0 %v1190, 64
      %v1194 = vpop.permute.xlu0 %1193
      %1195 = vrot.lane.b32.xlu0 %v1192, 64
      %v1196 = vpop.permute.xlu0 %1195
      %1197 = vrot.lane.b32.xlu0 %v1191, 64
      %v1198 = vpop.permute.xlu0 %1197
      %vm1199 = vcmask 1044480
      %v1200 = vrot.slane %v1150, 3
      %v1201 = vrot.slane %v1136, 3
      %v1202 = vsel %vm1199, %v1200, %v1201
      %v1203 = vrot.slane %v1154, 3
      %v1204 = vsel %vm1199, %v1201, %v1203
      %1205 = vrot.lane.b32.xlu0 %v1202, 96
      %v1206 = vpop.permute.xlu0 %1205
      %1207 = vrot.lane.b32.xlu0 %v1204, 96
      %v1208 = vpop.permute.xlu0 %1207
      %1209 = vrot.lane.b32.xlu0 %v1203, 96
      %v1210 = vpop.permute.xlu0 %1209
      %vm1211 = vsmask.f32 4352
      %v1212 = vrot.slane %v1157, 3
      %v1213 = vrot.slane %v1159, 4
      %v1214 = vor.u32 %v1212, %v1213
      %v1215 = vrot.slane %v1168, 3
      %v1216 = vrot.slane %v1164, 4
      %v1217 = vor.u32 %v1215, %v1216
      %v1218 = vsel %vm1211, %v1214, %v1217
      %v1219 = vrot.slane %v1176, 3
      %v1220 = vrot.slane %v1172, 4
      %v1221 = vor.u32 %v1219, %v1220
      %v1222 = vsel %vm1211, %v1217, %v1221
      %v1223 = vrot.slane %v1150, 4
      %v1224 = vrot.slane %v1136, 4
      %v1225 = vsel %vm1148, %v1223, %v1224
      %v1226 = vrot.slane %v1154, 4
      %v1227 = vsel %vm1148, %v1224, %v1226
      %1228 = vrot.lane.b32.xlu0 %v1225, 32
      %v1229 = vpop.permute.xlu0 %1228
      %1230 = vrot.lane.b32.xlu0 %v1227, 32
      %v1231 = vpop.permute.xlu0 %1230
      %1232 = vrot.lane.b32.xlu0 %v1226, 32
      %v1233 = vpop.permute.xlu0 %1232
      %vm1234 = vcmask 1041408
      %v1235 = vrot.slane %v1150, 6
      %v1236 = vrot.slane %v1136, 6
      %v1237 = vsel %vm1234, %v1235, %v1236
      %v1238 = vrot.slane %v1154, 6
      %v1239 = vsel %vm1234, %v1236, %v1238
      %1240 = vrot.lane.b32.xlu0 %v1237, 64
      %v1241 = vpop.permute.xlu0 %1240
      %1242 = vrot.lane.b32.xlu0 %v1239, 64
      %v1243 = vpop.permute.xlu0 %1242
      %1244 = vrot.lane.b32.xlu0 %v1238, 64
      %v1245 = vpop.permute.xlu0 %1244
      %vm1246 = vsmask.f32 1280
      %v1247 = vrot.slane %v1157, 6
      %v1248 = vrot.slane %v1159, 7
      %v1249 = vor.u32 %v1247, %v1248
      %v1250 = vrot.slane %v1168, 6
      %v1251 = vrot.slane %v1164, 7
      %v1252 = vor.u32 %v1250, %v1251
      %v1253 = vsel %vm1246, %v1249, %v1252
      %v1254 = vrot.slane %v1176, 6
      %v1255 = vrot.slane %v1172, 7
      %v1256 = vor.u32 %v1254, %v1255
      %v1257 = vsel %vm1246, %v1252, %v1256
      %v1259 = vshll.u32 0, 16
      %v1261 = vrot.slane %v1259, 7
      %v1262 = vsel %vm1246, %v1256, %v1261
      %1263 = vrot.lane.b32.xlu0 %v1253, 96
      %v1264 = vpop.permute.xlu0 %1263
      %1265 = vrot.lane.b32.xlu0 %v1257, 96
      %v1266 = vpop.permute.xlu0 %1265
      %1267 = vrot.lane.b32.xlu0 %v1262, 96
      %v1268 = vpop.permute.xlu0 %1267
      %vm1270 = vcmask 1040384
      %v1271 = vrot.slane %v1150, 7
      %v1272 = vrot.slane %v1136, 7
      %v1273 = vsel %vm1270, %v1271, %v1272
      %v1274 = vrot.slane %v1154, 7
      %v1275 = vsel %vm1270, %v1272, %v1274
      %v1276 = vrot.slane 0, 7
      %v1277 = vsel %vm1270, %v1274, %v1276
      %v1279 = vsel %vm768, %v1150, %v1180
      %v1281 = vsel %vm768, %v1136, %v1182
      %v1283 = vsel %vm768, %v1154, %v1184
      %v1285 = vsel %vm774, %v1279, %v1194
      %v1287 = vsel %vm774, %v1281, %v1196
      %v1289 = vsel %vm774, %v1283, %v1198
      %v1291 = vsel %vm780, %v1285, %v1206
      %v1294 = vsel %vm780, %v1287, %v1208
      %v1297 = vsel %vm780, %v1289, %v1210
      %v1301 = vsel %vm768, %v1218, %v1229
      %v1304 = vsel %vm768, %v1222, %v1231
      %v1307 = vsel %vm768, %v1221, %v1233
      %v1309 = vsel %vm774, %v1301, %v1241
      %v1311 = vsel %vm774, %v1304, %v1243
      %v1313 = vsel %vm774, %v1307, %v1245
      %v1315 = vsel %vm780, %v1309, %v1264
      %v1318 = vsel %vm780, %v1311, %v1266
      %v1321 = vsel %vm780, %v1313, %v1268
      %v1323 = vld [vmem:[%s4] sm:$0xf]
      %v1324 = vld [vmem:[%s4 + $0x4] sm:$0xf]
      %v1325 = vld [vmem:[%s4 + $0x8] sm:$0xf]
      %v1326 = vld [vmem:[%s4 + $0xc] sm:$0xf]
      %v1327 = vld [vmem:[%s4 + $0x10] sm:$0xf]
      %v1328 = vld [vmem:[%s4 + $0x14] sm:$0xf]
      %v1329 = vld [vmem:[%s4 + $0x18] sm:$0xf]
      %v1330 = vld [vmem:[%s4 + $0x1c] sm:$0xf]
      %v1331 = vld [vmem:[%s4 + $0x20] sm:$0xf]
      %v1332 = vld [vmem:[%s4 + $0x24] sm:$0xf]
      %v1333 = vld [vmem:[%s4 + $0x28] sm:$0xf]
      %v1334 = vld [vmem:[%s4 + $0x2c] sm:$0xf]
      %v1335 = vld [vmem:[%s4 + $0x30] sm:$0xf]
      %v1336 = vld [vmem:[%s4 + $0x34] sm:$0xf]
      %v1337 = vld [vmem:[%s4 + $0x38] sm:$0xf]
      %v1338 = vld [vmem:[%s4 + $0x3c] sm:$0xf]
      %v1339 = vld [vmem:[%s4 + $0x40] sm:$0xf]
      %v1340 = vld [vmem:[%s4 + $0x44] sm:$0xf]
      %v1341 = vld [vmem:[%s4 + $0x48] sm:$0xf]
      %v1342 = vld [vmem:[%s4 + $0x4c] sm:$0xf]
      %v1343 = vld [vmem:[%s4 + $0x50] sm:$0xf]
      %v1344 = vld [vmem:[%s4 + $0x54] sm:$0xf]
      %v1345 = vld [vmem:[%s4 + $0x58] sm:$0xf]
      %v1346 = vld [vmem:[%s4 + $0x5c] sm:$0xf]
      %v1347 = vld [vmem:[%s4 + $0x60] sm:$0xf]
      %v1348 = vld [vmem:[%s4 + $0x64] sm:$0xf]
      %v1349 = vld [vmem:[%s4 + $0x68] sm:$0xf]
      %v1350 = vld [vmem:[%s4 + $0x6c] sm:$0xf]
      %v1351 = vld [vmem:[%s4 + $0x70] sm:$0xf]
      %v1352 = vld [vmem:[%s4 + $0x74] sm:$0xf]
      %v1353 = vld [vmem:[%s4 + $0x78] sm:$0xf]
      %v1354 = vld [vmem:[%s4 + $0x7c] sm:$0xf]
      %v1355 = vld [vmem:[%s4 + $0x80] sm:$0xf]
      %v1356 = vld [vmem:[%s4 + $0x84] sm:$0xf]
      %v1357 = vld [vmem:[%s4 + $0x88] sm:$0xf]
      %v1358 = vld [vmem:[%s4 + $0x8c] sm:$0xf]
      %v1359 = vld [vmem:[%s5] sm:$0x1]
      %v1361 = vlaneseq
      %v1362 = vshrl.u32 %v1361, 7
      %v1363 = vsub.s32 0, %v1362
      %v1364 = vrot.slane %v1359, %v1363
      %v1402 = vunpack.c.l.b16 %v1323
      %v1403 = vunpack.c.l.b16 %v1324
      %v1404 = vunpack.c.l.b16 %v1325
      %v1405 = vunpack.c.l.b16 %v1326
      %v1406 = vunpack.c.l.b16 %v1327
      %v1407 = vunpack.c.l.b16 %v1328
      %v1408 = vunpack.c.l.b16 %v1329
      %v1409 = vunpack.c.l.b16 %v1330
      %v1410 = vunpack.c.l.b16 %v1331
      %v1411 = vunpack.c.l.b16 %v1332
      %v1412 = vunpack.c.l.b16 %v1333
      %v1413 = vunpack.c.l.b16 %v1334
      %v1414 = vunpack.c.l.b16 %v1335
      %v1415 = vunpack.c.l.b16 %v1336
      %v1416 = vunpack.c.l.b16 %v1337
      %v1417 = vunpack.c.l.b16 %v1338
      %v1418 = vunpack.c.l.b16 %v1339
      %v1419 = vunpack.c.l.b16 %v1340
      %v1420 = vunpack.c.l.b16 %v1341
      %v1421 = vunpack.c.l.b16 %v1342
      %v1422 = vunpack.c.l.b16 %v1343
      %v1423 = vunpack.c.l.b16 %v1344
      %v1424 = vunpack.c.l.b16 %v1345
      %v1425 = vunpack.c.l.b16 %v1346
      %v1426 = vunpack.c.l.b16 %v1347
      %v1427 = vunpack.c.l.b16 %v1348
      %v1428 = vunpack.c.l.b16 %v1349
      %v1429 = vunpack.c.l.b16 %v1350
      %v1430 = vunpack.c.l.b16 %v1351
      %v1431 = vunpack.c.l.b16 %v1352
      %v1432 = vunpack.c.l.b16 %v1353
      %v1433 = vunpack.c.l.b16 %v1354
      %v1434 = vunpack.c.l.b16 %v1355
      %v1435 = vunpack.c.l.b16 %v1356
      %v1436 = vunpack.c.l.b16 %v1357
      %v1437 = vunpack.c.l.b16 %v1358
      %v1438 = vpack.c.b16 %v1403, %v1402
      %v1439 = vpack.c.b16 %v1405, %v1404
      %v1440 = vpack.c.b16 %v1407, %v1406
      %v1441 = vpack.c.b16 %v1409, %v1408
      %v1442 = vpack.c.b16 %v1411, %v1410
      %v1443 = vpack.c.b16 %v1413, %v1412
      %v1444 = vpack.c.b16 %v1415, %v1414
      %v1445 = vpack.c.b16 %v1417, %v1416
      %v1446 = vpack.c.b16 %v1419, %v1418
      %v1447 = vpack.c.b16 %v1421, %v1420
      %v1448 = vpack.c.b16 %v1423, %v1422
      %v1449 = vpack.c.b16 %v1425, %v1424
      %v1450 = vpack.c.b16 %v1427, %v1426
      %v1451 = vpack.c.b16 %v1429, %v1428
      %v1452 = vpack.c.b16 %v1431, %v1430
      %v1453 = vpack.c.b16 %v1433, %v1432
      %v1454 = vpack.c.b16 %v1435, %v1434
      %v1455 = vpack.c.b16 %v1437, %v1436
      %v1475 = vsel %vm768, %v1273, 0
      %v1478 = vsel %vm768, %v1275, 0
      %v1481 = vsel %vm768, %v1277, 0
      %1483 = vmatprep.subr.bf16.mxu0 0
      %1484 = vmatpush1.bf16.msra.mxu0 %v1445
      %1485 = vmatprep.subr.bf16.mxu0 0
      %1486 = vmatpush1.bf16.msra.mxu0 %v1444
      %1487 = vmatprep.subr.bf16.mxu0 0
      %1488 = vmatpush1.bf16.msra.mxu0 %v1443
      %1489 = vmatprep.subr.bf16.mxu0 0
      %1490 = vmatpush1.bf16.msra.mxu0 %v1442
      %1491 = vmatprep.subr.bf16.mxu0 0
      %1492 = vmatpush1.bf16.msra.mxu0 %v1441
      %1493 = vmatprep.subr.bf16.mxu0 0
      %1494 = vmatpush1.bf16.msra.mxu0 %v1440
      %1495 = vmatprep.subr.bf16.mxu0 0
      %1496 = vmatpush1.bf16.msra.mxu0 %v1439
      %1497 = vmatprep.subr.bf16.mxu0 0
      %1498 = vmatpush1.bf16.msra.mxu0 %v1438
      %1499 = vmatprep.subr.bf16.mxu0 0
      %1500 = vmatpush2.bf16.msra.mxu0 %v1453
      %1501 = vmatprep.subr.bf16.mxu0 0
      %1502 = vmatpush2.bf16.msra.mxu0 %v1452
      %1503 = vmatprep.subr.bf16.mxu0 0
      %1504 = vmatpush2.bf16.msra.mxu0 %v1451
      %1505 = vmatprep.subr.bf16.mxu0 0
      %1506 = vmatpush2.bf16.msra.mxu0 %v1450
      %1507 = vmatprep.subr.bf16.mxu0 0
      %1508 = vmatpush2.bf16.msra.mxu0 %v1449
      %1509 = vmatprep.subr.bf16.mxu0 0
      %1510 = vmatpush2.bf16.msra.mxu0 %v1448
      %1511 = vmatprep.subr.bf16.mxu0 0
      %1512 = vmatpush2.bf16.msra.mxu0 %v1447
      %1513 = vmatprep.subr.bf16.mxu0 0
      %1514 = vmatpush2.bf16.msra.mxu0 %v1446
      %1515 = vmatprep.mubr.bf16.mxu0 %v1315
      %1516 = vmatmul.mubr.bf16.gmra.mxu0 %v1291
      %v1517 = vpop.f32.mrf.mxu0
      %v1518 = vadd.f32 %v1364, %v1517
      %v1519 = vpop.f32.mrf.mxu0
      %v1520 = vpop.f32.mrf.mxu0
      %v1521 = vadd.f32 %v1364, %v1520
      %v1522 = vpop.f32.mrf.mxu0
      %1523 = vmatprep.mubr.bf16.mxu0 %v1318
      %1524 = vmatmul.mubr.bf16.gmra.mxu0 %v1294
      %v1525 = vpop.f32.mrf.mxu0
      %v1526 = vadd.f32 %v1364, %v1525
      %v1527 = vpop.f32.mrf.mxu0
      %v1528 = vpop.f32.mrf.mxu0
      %v1529 = vadd.f32 %v1364, %v1528
      %v1530 = vpop.f32.mrf.mxu0
      %1531 = vmatprep.mubr.bf16.mxu0 %v1321
      %1532 = vmatmul.mubr.bf16.gmra.mxu0 %v1297
      %v1533 = vpop.f32.mrf.mxu0
      %v1534 = vadd.f32 %v1364, %v1533
      %v1535 = vpop.f32.mrf.mxu0
      %v1536 = vpop.f32.mrf.mxu0
      %v1537 = vpop.f32.mrf.mxu0
      %1538 = vdwg.mxu0
      %1539 = vmatprep.subr.bf16.mxu0 0
      %1540 = vmatpush1.bf16.msra.mxu0 0
      %1541 = vmatprep.subr.bf16.mxu0 0
      %1542 = vmatpush1.bf16.msra.mxu0 0
      %1543 = vmatprep.subr.bf16.mxu0 0
      %1544 = vmatpush1.bf16.msra.mxu0 0
      %1545 = vmatprep.subr.bf16.mxu0 0
      %1546 = vmatpush1.bf16.msra.mxu0 0
      %1547 = vmatprep.subr.bf16.mxu0 0
      %1548 = vmatpush1.bf16.msra.mxu0 0
      %1549 = vmatprep.subr.bf16.mxu0 0
      %1550 = vmatpush1.bf16.msra.mxu0 0
      %1551 = vmatprep.subr.bf16.mxu0 0
      %1552 = vmatpush1.bf16.msra.mxu0 %v1455
      %1553 = vmatprep.subr.bf16.mxu0 0
      %1554 = vmatpush1.bf16.msra.mxu0 %v1454
      %1555 = vmatprep.subr.bf16.mxu0 0
      %1556 = vmatpush2.bf16.msra.mxu0 0
      %1557 = vmatprep.subr.bf16.mxu0 0
      %1558 = vmatpush2.bf16.msra.mxu0 0
      %1559 = vmatprep.subr.bf16.mxu0 0
      %1560 = vmatpush2.bf16.msra.mxu0 0
      %1561 = vmatprep.subr.bf16.mxu0 0
      %1562 = vmatpush2.bf16.msra.mxu0 0
      %1563 = vmatprep.subr.bf16.mxu0 0
      %1564 = vmatpush2.bf16.msra.mxu0 0
      %1565 = vmatprep.subr.bf16.mxu0 0
      %1566 = vmatpush2.bf16.msra.mxu0 0
      %1567 = vmatprep.subr.bf16.mxu0 0
      %1568 = vmatpush2.bf16.msra.mxu0 0
      %1569 = vmatprep.subr.bf16.mxu0 0
      %1570 = vmatpush2.bf16.msra.mxu0 0
      %1571 = vmatprep.mubr.bf16.mxu0 0
      %1572 = vmatmul.mubr.bf16.gmra.mxu0 %v1475
      %v1573 = vpop.f32.mrf.mxu0
      %v1574 = vadd.f32 %v1518, %v1573
      %v1575 = vpop.f32.mrf.mxu0
      %v1576 = vpop.f32.mrf.mxu0
      %v1577 = vadd.f32 %v1521, %v1576
      %v1578 = vpop.f32.mrf.mxu0
      %1579 = vmatprep.mubr.bf16.mxu0 0
      %1580 = vmatmul.mubr.bf16.gmra.mxu0 %v1478
      %v1581 = vpop.f32.mrf.mxu0
      %v1582 = vadd.f32 %v1526, %v1581
      %v1583 = vpop.f32.mrf.mxu0
      %v1584 = vpop.f32.mrf.mxu0
      %v1585 = vadd.f32 %v1529, %v1584
      %v1586 = vpop.f32.mrf.mxu0
      %1587 = vmatprep.mubr.bf16.mxu0 0
      %1588 = vmatmul.mubr.bf16.gmra.mxu0 %v1481
      %v1589 = vpop.f32.mrf.mxu0
      %v1590 = vadd.f32 %v1534, %v1589
      %v1591 = vpop.f32.mrf.mxu0
      %v1592 = vpop.f32.mrf.mxu0
      %v1593 = vpop.f32.mrf.mxu0
      %1594 = vdwg.mxu0
      %vm1595 = vcmp.gt.f32.partialorder %v1574, 0.0
      %vm1596 = vcmp.gt.f32.partialorder %v1577, 0.0
      %vm1597 = vcmp.gt.f32.partialorder %v1582, 0.0
      %vm1598 = vcmp.gt.f32.partialorder %v1585, 0.0
      %vm1599 = vcmp.gt.f32.partialorder %v1590, 0.0
      %v1600 = vmul.f32 %v1574, 0.2
      %v1601 = vmul.f32 %v1577, 0.2
      %v1602 = vmul.f32 %v1582, 0.2
      %v1603 = vmul.f32 %v1585, 0.2
      %v1604 = vmul.f32 %v1590, 0.2
      %v1605 = vsel %vm1595, %v1574, %v1600
      %v1606 = vsel %vm1596, %v1577, %v1601
      %v1607 = vsel %vm1597, %v1582, %v1602
      %v1608 = vsel %vm1598, %v1585, %v1603
      %v1609 = vsel %vm1599, %v1590, %v1604
      %v1610 = vmul.f32 %v1605, %v1605
      %v1611 = vmul.f32 %v1606, %v1606
      %v1612 = vmul.f32 %v1607, %v1607
      %v1613 = vmul.f32 %v1608, %v1608
      %v1614 = vmul.f32 %v1609, %v1609
      %v1615 = vsel %vm768, %v1610, 0.0
      %1616 = vadd.xlane.f32.xlu0 %v1615
      %v1617 = vpop.xlane.xlu0 %1616
      %v1618 = vsel %vm768, %v1611, 0.0
      %1619 = vadd.xlane.f32.xlu0 %v1618
      %v1620 = vpop.xlane.xlu0 %1619
      %v1621 = vsel %vm768, %v1612, 0.0
      %1622 = vadd.xlane.f32.xlu0 %v1621
      %v1623 = vpop.xlane.xlu0 %1622
      %v1624 = vsel %vm768, %v1613, 0.0
      %1625 = vadd.xlane.f32.xlu0 %v1624
      %v1626 = vpop.xlane.xlu0 %1625
      %v1627 = vsel %vm1041, %v1614, 0.0
      %1628 = vadd.xlane.f32.xlu0 %v1627
      %v1629 = vpop.xlane.xlu0 %1628
      %v1630 = vmul.f32 %v1617, %v1045
      %v1631 = vmul.f32 %v1620, %v1045
      %v1632 = vmul.f32 %v1623, %v1045
      %v1633 = vmul.f32 %v1626, %v1045
      %v1634 = vmul.f32 %v1629, %v1045
      %v1635 = vadd.f32 %v1630, 1e-08
      %v1636 = vadd.f32 %v1631, 1e-08
      %v1637 = vadd.f32 %v1632, 1e-08
      %v1638 = vadd.f32 %v1633, 1e-08
      %v1639 = vadd.f32 %v1634, 1e-08
      %v1640 = vrsqrt.pop %v1635
      %v1641 = vrsqrt.pop %v1636
      %v1642 = vrsqrt.pop %v1637
      %v1643 = vrsqrt.pop %v1638
      %v1644 = vrsqrt.pop %v1639
      %v1645 = vmul.f32 %v1605, %v1640
      %v1646 = vmul.f32 %v1606, %v1641
      %v1647 = vmul.f32 %v1607, %v1642
      %v1648 = vmul.f32 %v1608, %v1643
      %v1649 = vmul.f32 %v1609, %v1644
      %v1650 = vmul.f32 %v1645, %v1089
      %v1651 = vmul.f32 %v1646, %v1094
      %v1652 = vmul.f32 %v1647, %v1099
      %v1653 = vmul.f32 %v1648, %v1104
      %v1654 = vmul.f32 %v1649, %v1109
      %v1655 = vld [vmem:[%s7] sm:$0xf]
      %v1656 = vld [vmem:[%s7 + $0x4] sm:$0xf]
      %v1657 = vld [vmem:[%s7 + $0x8] sm:$0xf]
      %v1658 = vld [vmem:[%s7 + $0xc] sm:$0xf]
      %v1659 = vld [vmem:[%s7 + $0x10] sm:$0xf]
      %v1660 = vld [vmem:[%s7 + $0x14] sm:$0xf]
      %v1661 = vld [vmem:[%s7 + $0x18] sm:$0xf]
      %v1662 = vld [vmem:[%s7 + $0x1c] sm:$0xf]
      %v1663 = vld [vmem:[%s7 + $0x20] sm:$0xf]
      %v1664 = vld [vmem:[%s7 + $0x24] sm:$0xf]
      %v1665 = vld [vmem:[%s7 + $0x28] sm:$0xf]
      %v1666 = vld [vmem:[%s7 + $0x2c] sm:$0xf]
      %v1667 = vld [vmem:[%s7 + $0x30] sm:$0x3]
      %v1668 = vpack.c.bf16 %v1651, %v1650
      %v1669 = vpack.c.bf16 %v1653, %v1652
      %v1670 = vpack.c.bf16 %v1654, %v1654
      %v1684 = vunpack.c.l.b16 %v1655
      %v1685 = vunpack.c.l.b16 %v1656
      %v1686 = vunpack.c.l.b16 %v1657
      %v1687 = vunpack.c.l.b16 %v1658
      %v1688 = vunpack.c.l.b16 %v1659
      %v1689 = vunpack.c.l.b16 %v1660
      %v1690 = vunpack.c.l.b16 %v1661
      %v1691 = vunpack.c.l.b16 %v1662
      %v1692 = vunpack.c.l.b16 %v1663
      %v1693 = vunpack.c.l.b16 %v1664
      %v1694 = vunpack.c.l.b16 %v1665
      %v1695 = vunpack.c.l.b16 %v1666
      %v1696 = vunpack.c.l.b16 %v1667
      %v1697 = vpack.c.b16 %v1685, %v1684
      %v1698 = vpack.c.b16 %v1687, %v1686
      %v1699 = vpack.c.b16 %v1689, %v1688
      %v1700 = vpack.c.b16 %v1691, %v1690
      %v1701 = vpack.c.b16 %v1693, %v1692
      %v1702 = vpack.c.b16 %v1695, %v1694
      %v1703 = vpack.c.b16 %v1696, %v1696
      %vm1704 = vcmask 293888
      %v1706 = vsel %vm1704, %v1697, 0
      %v1709 = vsel %vm1704, %v1698, 0
      %v1712 = vsel %vm1704, %v1699, 0
      %v1715 = vsel %vm1704, %v1700, 0
      %v1718 = vsel %vm1704, %v1701, 0
      %v1721 = vsel %vm1704, %v1702, 0
      %v1724 = vsel %vm1704, %v1703, 0
      %vm1726 = vcmask 1041408
      %v1728 = vsel %vm1726, %v1670, 0
      %1730 = vmatprep.subr.bf16.mxu0 0
      %1731 = vmatpush1.bf16.msra.mxu0 0
      %1732 = vmatprep.subr.bf16.mxu0 0
      %1733 = vmatpush1.bf16.msra.mxu0 0
      %1734 = vmatprep.subr.bf16.mxu0 0
      %1735 = vmatpush1.bf16.msra.mxu0 0
      %1736 = vmatprep.subr.bf16.mxu0 0
      %1737 = vmatpush1.bf16.msra.mxu0 0
      %1738 = vmatprep.subr.bf16.mxu0 0
      %1739 = vmatpush1.bf16.msra.mxu0 0
      %1740 = vmatprep.subr.bf16.mxu0 0
      %1741 = vmatpush1.bf16.msra.mxu0 %v1728
      %1742 = vmatprep.subr.bf16.mxu0 0
      %1743 = vmatpush1.bf16.msra.mxu0 %v1669
      %1744 = vmatprep.subr.bf16.mxu0 0
      %1745 = vmatpush1.bf16.msra.mxu0 %v1668
      %1746 = vmatprep.subr.bf16.mxu0 0
      %1747 = vmatpush2.bf16.msra.mxu0 0
      %1748 = vmatprep.subr.bf16.mxu0 0
      %1749 = vmatpush2.bf16.msra.mxu0 0
      %1750 = vmatprep.subr.bf16.mxu0 0
      %1751 = vmatpush2.bf16.msra.mxu0 0
      %1752 = vmatprep.subr.bf16.mxu0 0
      %1753 = vmatpush2.bf16.msra.mxu0 0
      %1754 = vmatprep.subr.bf16.mxu0 0
      %1755 = vmatpush2.bf16.msra.mxu0 0
      %1756 = vmatprep.subr.bf16.mxu0 0
      %1757 = vmatpush2.bf16.msra.mxu0 0
      %1758 = vmatprep.subr.bf16.mxu0 0
      %1759 = vmatpush2.bf16.msra.mxu0 0
      %1760 = vmatprep.subr.bf16.mxu0 0
      %1761 = vmatpush2.bf16.msra.mxu0 0
      %1762 = vmatprep.mubr.bf16.mxu0 0
      %1763 = vmatmul.mubr.bf16.gmra.mxu0 %v1706
      %v1764 = vpop.f32.mrf.mxu0
      %v1765 = vadd.f32 0.0, %v1764
      %v1766 = vpop.f32.mrf.mxu0
      %v1767 = vpop.f32.mrf.mxu0
      %v1768 = vadd.f32 0.0, %v1767
      %v1769 = vpop.f32.mrf.mxu0
      %1770 = vmatprep.mubr.bf16.mxu0 0
      %1771 = vmatmul.mubr.bf16.gmra.mxu0 %v1709
      %v1772 = vpop.f32.mrf.mxu0
      %v1773 = vadd.f32 0.0, %v1772
      %v1774 = vpop.f32.mrf.mxu0
      %v1775 = vpop.f32.mrf.mxu0
      %v1776 = vadd.f32 0.0, %v1775
      %v1777 = vpop.f32.mrf.mxu0
      %1778 = vmatprep.mubr.bf16.mxu0 0
      %1779 = vmatmul.mubr.bf16.gmra.mxu0 %v1712
      %v1780 = vpop.f32.mrf.mxu0
      %v1781 = vadd.f32 0.0, %v1780
      %v1782 = vpop.f32.mrf.mxu0
      %v1783 = vpop.f32.mrf.mxu0
      %v1784 = vadd.f32 0.0, %v1783
      %v1785 = vpop.f32.mrf.mxu0
      %1786 = vmatprep.mubr.bf16.mxu0 0
      %1787 = vmatmul.mubr.bf16.gmra.mxu0 %v1715
      %v1788 = vpop.f32.mrf.mxu0
      %v1789 = vadd.f32 0.0, %v1788
      %v1790 = vpop.f32.mrf.mxu0
      %v1791 = vpop.f32.mrf.mxu0
      %v1792 = vadd.f32 0.0, %v1791
      %v1793 = vpop.f32.mrf.mxu0
      %1794 = vmatprep.mubr.bf16.mxu0 0
      %1795 = vmatmul.mubr.bf16.gmra.mxu0 %v1718
      %v1796 = vpop.f32.mrf.mxu0
      %v1797 = vadd.f32 0.0, %v1796
      %v1798 = vpop.f32.mrf.mxu0
      %v1799 = vpop.f32.mrf.mxu0
      %v1800 = vadd.f32 0.0, %v1799
      %v1801 = vpop.f32.mrf.mxu0
      %1802 = vmatprep.mubr.bf16.mxu0 0
      %1803 = vmatmul.mubr.bf16.gmra.mxu0 %v1721
      %v1804 = vpop.f32.mrf.mxu0
      %v1805 = vadd.f32 0.0, %v1804
      %v1806 = vpop.f32.mrf.mxu0
      %v1807 = vpop.f32.mrf.mxu0
      %v1808 = vadd.f32 0.0, %v1807
      %v1809 = vpop.f32.mrf.mxu0
      %1810 = vmatprep.mubr.bf16.mxu0 0
      %1811 = vmatmul.mubr.bf16.gmra.mxu0 %v1724
      %v1812 = vpop.f32.mrf.mxu0
      %v1813 = vadd.f32 0.0, %v1812
      %v1814 = vpop.f32.mrf.mxu0
      %v1815 = vpop.f32.mrf.mxu0
      %v1816 = vpop.f32.mrf.mxu0
      %1817 = vdwg.mxu0
      %v1818 = vld [vmem:[%s12] sm:$0xff]
      %v1819 = vld [vmem:[%s12 + $0x8] sm:$0xff]
      %v1820 = vld [vmem:[%s12 + $0x10] sm:$0xff]
      %v1821 = vld [vmem:[%s12 + $0x18] sm:$0xff]
      %v1822 = vld [vmem:[%s12 + $0x20] sm:$0xff]
      %v1823 = vld [vmem:[%s12 + $0x28] sm:$0xff]
      %v1824 = vld [vmem:[%s12 + $0x30] sm:$0xff]
      %v1825 = vld [vmem:[%s12 + $0x38] sm:$0xff]
      %v1826 = vld [vmem:[%s12 + $0x40] sm:$0xff]
      %v1827 = vld [vmem:[%s12 + $0x48] sm:$0xff]
      %v1828 = vld [vmem:[%s12 + $0x50] sm:$0xff]
      %v1829 = vld [vmem:[%s12 + $0x58] sm:$0xff]
      %v1830 = vld [vmem:[%s12 + $0x60] sm:$0xf]
      %v1831 = vpack.c.bf16 %v1768, %v1765
      %v1832 = vpack.c.bf16 %v1776, %v1773
      %v1833 = vpack.c.bf16 %v1784, %v1781
      %v1834 = vpack.c.bf16 %v1792, %v1789
      %v1835 = vpack.c.bf16 %v1800, %v1797
      %v1836 = vpack.c.bf16 %v1808, %v1805
      %v1837 = vpack.c.bf16 %v1813, %v1813
      %v1839 = vshrl.u32 %v1831, 16
      %v1841 = vrot.slane %v1839, 2
      %v1842 = vshll.u32 %v1831, 16
      %v1844 = vrot.slane %v1842, 3
      %v1845 = vor.u32 %v1841, %v1844
      %v1847 = vshrl.u32 %v1832, 16
      %v1849 = vrot.slane %v1847, 2
      %v1850 = vshll.u32 %v1832, 16
      %v1852 = vrot.slane %v1850, 3
      %v1853 = vor.u32 %v1849, %v1852
      %v1854 = vsel %vm1152, %v1845, %v1853
      %v1856 = vshrl.u32 %v1833, 16
      %v1858 = vrot.slane %v1856, 2
      %v1859 = vshll.u32 %v1833, 16
      %v1861 = vrot.slane %v1859, 3
      %v1862 = vor.u32 %v1858, %v1861
      %v1863 = vsel %vm1152, %v1853, %v1862
      %v1865 = vshrl.u32 %v1834, 16
      %v1867 = vrot.slane %v1865, 2
      %v1868 = vshll.u32 %v1834, 16
      %v1870 = vrot.slane %v1868, 3
      %v1871 = vor.u32 %v1867, %v1870
      %v1872 = vsel %vm1152, %v1862, %v1871
      %v1874 = vshrl.u32 %v1835, 16
      %v1876 = vrot.slane %v1874, 2
      %v1877 = vshll.u32 %v1835, 16
      %v1879 = vrot.slane %v1877, 3
      %v1880 = vor.u32 %v1876, %v1879
      %v1881 = vsel %vm1152, %v1871, %v1880
      %v1883 = vshrl.u32 %v1836, 16
      %v1885 = vrot.slane %v1883, 2
      %v1886 = vshll.u32 %v1836, 16
      %v1888 = vrot.slane %v1886, 3
      %v1889 = vor.u32 %v1885, %v1888
      %v1890 = vsel %vm1152, %v1880, %v1889
      %v1892 = vshrl.u32 %v1837, 16
      %v1894 = vrot.slane %v1892, 2
      %v1895 = vshll.u32 %v1837, 16
      %v1897 = vrot.slane %v1895, 3
      %v1898 = vor.u32 %v1894, %v1897
      %v1899 = vsel %vm1152, %v1889, %v1898
      %v1902 = vsel %vm1153, 0, %v1845
      %vm1903 = vcmask 1047552
      %vm1904 = vmand %vm1903, %vm1155
      %v1905 = vsel %vm1904, %v1899, 0
      %v1907 = vshrl.u32 %v1902, 16
      %v1909 = vshll.u32 %v1902, 16
      %v1911 = vrot.slane %v1909, 1
      %v1912 = vor.u32 %v1907, %v1911
      %v1914 = vshll.u32 %v1854, 16
      %v1916 = vrot.slane %v1914, 1
      %v1917 = vsel %vm1155, %v1912, %v1916
      %v1918 = vshrl.u32 %v1854, 16
      %v1920 = vor.u32 %v1918, %v1916
      %v1922 = vshll.u32 %v1863, 16
      %v1924 = vrot.slane %v1922, 1
      %v1925 = vsel %vm1155, %v1920, %v1924
      %v1926 = vshrl.u32 %v1863, 16
      %v1928 = vor.u32 %v1926, %v1924
      %v1930 = vshll.u32 %v1872, 16
      %v1932 = vrot.slane %v1930, 1
      %v1933 = vsel %vm1155, %v1928, %v1932
      %v1934 = vshrl.u32 %v1872, 16
      %v1936 = vor.u32 %v1934, %v1932
      %v1938 = vshll.u32 %v1881, 16
      %v1940 = vrot.slane %v1938, 1
      %v1941 = vsel %vm1155, %v1936, %v1940
      %v1942 = vshrl.u32 %v1881, 16
      %v1944 = vor.u32 %v1942, %v1940
      %v1946 = vshll.u32 %v1890, 16
      %v1948 = vrot.slane %v1946, 1
      %v1949 = vsel %vm1155, %v1944, %v1948
      %v1950 = vshrl.u32 %v1890, 16
      %v1952 = vor.u32 %v1950, %v1948
      %v1954 = vshll.u32 %v1905, 16
      %v1956 = vrot.slane %v1954, 1
      %v1957 = vsel %vm1155, %v1952, %v1956
      %v1958 = vshrl.u32 %v1905, 16
      %v1960 = vor.u32 %v1958, %v1956
      %1961 = vrot.lane.b32.xlu0 %v1917, 32
      %v1962 = vpop.permute.xlu0 %1961
      %1963 = vrot.lane.b32.xlu0 %v1925, 32
      %v1964 = vpop.permute.xlu0 %1963
      %1965 = vrot.lane.b32.xlu0 %v1933, 32
      %v1966 = vpop.permute.xlu0 %1965
      %1967 = vrot.lane.b32.xlu0 %v1941, 32
      %v1968 = vpop.permute.xlu0 %1967
      %1969 = vrot.lane.b32.xlu0 %v1949, 32
      %v1970 = vpop.permute.xlu0 %1969
      %1971 = vrot.lane.b32.xlu0 %v1957, 32
      %v1972 = vpop.permute.xlu0 %1971
      %1973 = vrot.lane.b32.xlu0 %v1960, 32
      %v1974 = vpop.permute.xlu0 %1973
      %v1977 = vrot.slane %v1902, 1
      %v1978 = vrot.slane %v1854, 1
      %v1979 = vsel %vm1187, %v1977, %v1978
      %v1980 = vrot.slane %v1863, 1
      %v1981 = vsel %vm1187, %v1978, %v1980
      %v1982 = vrot.slane %v1872, 1
      %v1983 = vsel %vm1187, %v1980, %v1982
      %v1984 = vrot.slane %v1881, 1
      %v1985 = vsel %vm1187, %v1982, %v1984
      %v1986 = vrot.slane %v1890, 1
      %v1987 = vsel %vm1187, %v1984, %v1986
      %v1988 = vrot.slane %v1905, 1
      %v1989 = vsel %vm1187, %v1986, %v1988
      %1990 = vrot.lane.b32.xlu0 %v1979, 64
      %v1991 = vpop.permute.xlu0 %1990
      %1992 = vrot.lane.b32.xlu0 %v1981, 64
      %v1993 = vpop.permute.xlu0 %1992
      %1994 = vrot.lane.b32.xlu0 %v1983, 64
      %v1995 = vpop.permute.xlu0 %1994
      %1996 = vrot.lane.b32.xlu0 %v1985, 64
      %v1997 = vpop.permute.xlu0 %1996
      %1998 = vrot.lane.b32.xlu0 %v1987, 64
      %v1999 = vpop.permute.xlu0 %1998
      %2000 = vrot.lane.b32.xlu0 %v1989, 64
      %v2001 = vpop.permute.xlu0 %2000
      %2002 = vrot.lane.b32.xlu0 %v1988, 64
      %v2003 = vpop.permute.xlu0 %2002
      %vm2004 = vcmask 1042432
      %v2005 = vrot.slane %v1902, 5
      %v2006 = vrot.slane %v1854, 5
      %v2007 = vsel %vm2004, %v2005, %v2006
      %v2008 = vrot.slane %v1863, 5
      %v2009 = vsel %vm2004, %v2006, %v2008
      %v2010 = vrot.slane %v1872, 5
      %v2011 = vsel %vm2004, %v2008, %v2010
      %v2012 = vrot.slane %v1881, 5
      %v2013 = vsel %vm2004, %v2010, %v2012
      %v2014 = vrot.slane %v1890, 5
      %v2015 = vsel %vm2004, %v2012, %v2014
      %v2016 = vrot.slane %v1905, 5
      %v2017 = vsel %vm2004, %v2014, %v2016
      %2018 = vrot.lane.b32.xlu0 %v2007, 96
      %v2019 = vpop.permute.xlu0 %2018
      %2020 = vrot.lane.b32.xlu0 %v2009, 96
      %v2021 = vpop.permute.xlu0 %2020
      %2022 = vrot.lane.b32.xlu0 %v2011, 96
      %v2023 = vpop.permute.xlu0 %2022
      %2024 = vrot.lane.b32.xlu0 %v2013, 96
      %v2025 = vpop.permute.xlu0 %2024
      %2026 = vrot.lane.b32.xlu0 %v2015, 96
      %v2027 = vpop.permute.xlu0 %2026
      %2028 = vrot.lane.b32.xlu0 %v2017, 96
      %v2029 = vpop.permute.xlu0 %2028
      %2030 = vrot.lane.b32.xlu0 %v2016, 96
      %v2031 = vpop.permute.xlu0 %2030
      %vm2032 = vsmask.f32 2304
      %v2033 = vrot.slane %v1907, 5
      %v2034 = vrot.slane %v1909, 6
      %v2035 = vor.u32 %v2033, %v2034
      %v2036 = vrot.slane %v1918, 5
      %v2037 = vrot.slane %v1914, 6
      %v2038 = vor.u32 %v2036, %v2037
      %v2039 = vsel %vm2032, %v2035, %v2038
      %v2040 = vrot.slane %v1926, 5
      %v2041 = vrot.slane %v1922, 6
      %v2042 = vor.u32 %v2040, %v2041
      %v2043 = vsel %vm2032, %v2038, %v2042
      %v2044 = vrot.slane %v1934, 5
      %v2045 = vrot.slane %v1930, 6
      %v2046 = vor.u32 %v2044, %v2045
      %v2047 = vsel %vm2032, %v2042, %v2046
      %v2048 = vrot.slane %v1942, 5
      %v2049 = vrot.slane %v1938, 6
      %v2050 = vor.u32 %v2048, %v2049
      %v2051 = vsel %vm2032, %v2046, %v2050
      %v2052 = vrot.slane %v1950, 5
      %v2053 = vrot.slane %v1946, 6
      %v2054 = vor.u32 %v2052, %v2053
      %v2055 = vsel %vm2032, %v2050, %v2054
      %v2056 = vrot.slane %v1958, 5
      %v2057 = vrot.slane %v1954, 6
      %v2058 = vor.u32 %v2056, %v2057
      %v2059 = vsel %vm2032, %v2054, %v2058
      %v2060 = vrot.slane %v1902, 6
      %v2061 = vrot.slane %v1854, 6
      %v2062 = vsel %vm1234, %v2060, %v2061
      %v2063 = vrot.slane %v1863, 6
      %v2064 = vsel %vm1234, %v2061, %v2063
      %v2065 = vrot.slane %v1872, 6
      %v2066 = vsel %vm1234, %v2063, %v2065
      %v2067 = vrot.slane %v1881, 6
      %v2068 = vsel %vm1234, %v2065, %v2067
      %v2069 = vrot.slane %v1890, 6
      %v2070 = vsel %vm1234, %v2067, %v2069
      %v2071 = vrot.slane %v1905, 6
      %v2072 = vsel %vm1234, %v2069, %v2071
      %2073 = vrot.lane.b32.xlu0 %v2062, 32
      %v2074 = vpop.permute.xlu0 %2073
      %2075 = vrot.lane.b32.xlu0 %v2064, 32
      %v2076 = vpop.permute.xlu0 %2075
      %2077 = vrot.lane.b32.xlu0 %v2066, 32
      %v2078 = vpop.permute.xlu0 %2077
      %2079 = vrot.lane.b32.xlu0 %v2068, 32
      %v2080 = vpop.permute.xlu0 %2079
      %2081 = vrot.lane.b32.xlu0 %v2070, 32
      %v2082 = vpop.permute.xlu0 %2081
      %2083 = vrot.lane.b32.xlu0 %v2072, 32
      %v2084 = vpop.permute.xlu0 %2083
      %2085 = vrot.lane.b32.xlu0 %v2071, 32
      %v2086 = vpop.permute.xlu0 %2085
      %v2087 = vrot.slane %v1854, 2
      %v2088 = vrot.slane %v1863, 2
      %v2089 = vsel %vm1151, %v2087, %v2088
      %v2090 = vrot.slane %v1872, 2
      %v2091 = vsel %vm1151, %v2088, %v2090
      %v2092 = vrot.slane %v1881, 2
      %v2093 = vsel %vm1151, %v2090, %v2092
      %v2094 = vrot.slane %v1890, 2
      %v2095 = vsel %vm1151, %v2092, %v2094
      %v2096 = vrot.slane %v1905, 2
      %v2097 = vsel %vm1151, %v2094, %v2096
      %v2098 = vrot.slane 0, 2
      %v2099 = vsel %vm1151, %v2096, %v2098
      %2100 = vrot.lane.b32.xlu0 %v2089, 64
      %v2101 = vpop.permute.xlu0 %2100
      %2102 = vrot.lane.b32.xlu0 %v2091, 64
      %v2103 = vpop.permute.xlu0 %2102
      %2104 = vrot.lane.b32.xlu0 %v2093, 64
      %v2105 = vpop.permute.xlu0 %2104
      %2106 = vrot.lane.b32.xlu0 %v2095, 64
      %v2107 = vpop.permute.xlu0 %2106
      %2108 = vrot.lane.b32.xlu0 %v2097, 64
      %v2109 = vpop.permute.xlu0 %2108
      %2110 = vrot.lane.b32.xlu0 %v2099, 64
      %v2111 = vpop.permute.xlu0 %2110
      %2112 = vrot.lane.b32.xlu0 %v2098, 64
      %v2113 = vpop.permute.xlu0 %2112
      %v2114 = vrot.slane %v1918, 2
      %v2115 = vrot.slane %v1914, 3
      %v2116 = vor.u32 %v2114, %v2115
      %v2117 = vrot.slane %v1926, 2
      %v2118 = vrot.slane %v1922, 3
      %v2119 = vor.u32 %v2117, %v2118
      %v2120 = vsel %vm1152, %v2116, %v2119
      %v2121 = vrot.slane %v1934, 2
      %v2122 = vrot.slane %v1930, 3
      %v2123 = vor.u32 %v2121, %v2122
      %v2124 = vsel %vm1152, %v2119, %v2123
      %v2125 = vrot.slane %v1942, 2
      %v2126 = vrot.slane %v1938, 3
      %v2127 = vor.u32 %v2125, %v2126
      %v2128 = vsel %vm1152, %v2123, %v2127
      %v2129 = vrot.slane %v1950, 2
      %v2130 = vrot.slane %v1946, 3
      %v2131 = vor.u32 %v2129, %v2130
      %v2132 = vsel %vm1152, %v2127, %v2131
      %v2133 = vrot.slane %v1958, 2
      %v2134 = vrot.slane %v1954, 3
      %v2135 = vor.u32 %v2133, %v2134
      %v2136 = vsel %vm1152, %v2131, %v2135
      %v2137 = vshrl.u32 0, 16
      %v2139 = vrot.slane %v2137, 2
      %v2140 = vrot.slane %v1259, 3
      %v2141 = vor.u32 %v2139, %v2140
      %v2142 = vsel %vm1152, %v2135, %v2141
      %2143 = vrot.lane.b32.xlu0 %v2120, 96
      %v2144 = vpop.permute.xlu0 %2143
      %2145 = vrot.lane.b32.xlu0 %v2124, 96
      %v2146 = vpop.permute.xlu0 %2145
      %2147 = vrot.lane.b32.xlu0 %v2128, 96
      %v2148 = vpop.permute.xlu0 %2147
      %2149 = vrot.lane.b32.xlu0 %v2132, 96
      %v2150 = vpop.permute.xlu0 %2149
      %2151 = vrot.lane.b32.xlu0 %v2136, 96
      %v2152 = vpop.permute.xlu0 %2151
      %2153 = vrot.lane.b32.xlu0 %v2142, 96
      %v2154 = vpop.permute.xlu0 %2153
      %2155 = vrot.lane.b32.xlu0 %v2141, 96
      %v2156 = vpop.permute.xlu0 %2155
      %v2157 = vrot.slane %v1854, 3
      %v2158 = vrot.slane %v1863, 3
      %v2159 = vsel %vm1199, %v2157, %v2158
      %v2160 = vrot.slane %v1872, 3
      %v2161 = vsel %vm1199, %v2158, %v2160
      %v2162 = vrot.slane %v1881, 3
      %v2163 = vsel %vm1199, %v2160, %v2162
      %v2164 = vrot.slane %v1890, 3
      %v2165 = vsel %vm1199, %v2162, %v2164
      %v2166 = vrot.slane %v1905, 3
      %v2167 = vsel %vm1199, %v2164, %v2166
      %v2168 = vrot.slane 0, 3
      %v2169 = vsel %vm1199, %v2166, %v2168
      %v2171 = vsel %vm768, %v1902, %v1962
      %v2173 = vsel %vm768, %v1854, %v1964
      %v2175 = vsel %vm768, %v1863, %v1966
      %v2177 = vsel %vm768, %v1872, %v1968
      %v2179 = vsel %vm768, %v1881, %v1970
      %v2181 = vsel %vm768, %v1890, %v1972
      %v2183 = vsel %vm768, %v1905, %v1974
      %v2185 = vsel %vm774, %v2171, %v1991
      %v2187 = vsel %vm774, %v2173, %v1993
      %v2189 = vsel %vm774, %v2175, %v1995
      %v2191 = vsel %vm774, %v2177, %v1997
      %v2193 = vsel %vm774, %v2179, %v1999
      %v2195 = vsel %vm774, %v2181, %v2001
      %v2197 = vsel %vm774, %v2183, %v2003
      %v2199 = vsel %vm780, %v2185, %v2019
      %v2202 = vsel %vm780, %v2187, %v2021
      %v2205 = vsel %vm780, %v2189, %v2023
      %v2208 = vsel %vm780, %v2191, %v2025
      %v2211 = vsel %vm780, %v2193, %v2027
      %v2214 = vsel %vm780, %v2195, %v2029
      %v2217 = vsel %vm780, %v2197, %v2031
      %v2221 = vsel %vm768, %v2039, %v2074
      %v2224 = vsel %vm768, %v2043, %v2076
      %v2227 = vsel %vm768, %v2047, %v2078
      %v2230 = vsel %vm768, %v2051, %v2080
      %v2233 = vsel %vm768, %v2055, %v2082
      %v2236 = vsel %vm768, %v2059, %v2084
      %v2239 = vsel %vm768, %v2058, %v2086
      %v2241 = vsel %vm774, %v2221, %v2101
      %v2243 = vsel %vm774, %v2224, %v2103
      %v2245 = vsel %vm774, %v2227, %v2105
      %v2247 = vsel %vm774, %v2230, %v2107
      %v2249 = vsel %vm774, %v2233, %v2109
      %v2251 = vsel %vm774, %v2236, %v2111
      %v2253 = vsel %vm774, %v2239, %v2113
      %v2255 = vsel %vm780, %v2241, %v2144
      %v2258 = vsel %vm780, %v2243, %v2146
      %v2261 = vsel %vm780, %v2245, %v2148
      %v2264 = vsel %vm780, %v2247, %v2150
      %v2267 = vsel %vm780, %v2249, %v2152
      %v2270 = vsel %vm780, %v2251, %v2154
      %v2273 = vsel %vm780, %v2253, %v2156
      %v2275 = vld [vmem:[%s8] sm:$0xf]
      %v2276 = vld [vmem:[%s8 + $0x4] sm:$0xf]
      %v2277 = vld [vmem:[%s8 + $0x8] sm:$0xf]
      %v2278 = vld [vmem:[%s8 + $0xc] sm:$0xf]
      %v2279 = vld [vmem:[%s8 + $0x10] sm:$0xf]
      %v2280 = vld [vmem:[%s8 + $0x14] sm:$0xf]
      %v2281 = vld [vmem:[%s8 + $0x18] sm:$0xf]
      %v2282 = vld [vmem:[%s8 + $0x1c] sm:$0xf]
      %v2283 = vld [vmem:[%s8 + $0x20] sm:$0xf]
      %v2284 = vld [vmem:[%s8 + $0x24] sm:$0xf]
      %v2285 = vld [vmem:[%s8 + $0x28] sm:$0xf]
      %v2286 = vld [vmem:[%s8 + $0x2c] sm:$0xf]
      %v2287 = vld [vmem:[%s8 + $0x30] sm:$0xf]
      %v2288 = vld [vmem:[%s8 + $0x34] sm:$0xf]
      %v2289 = vld [vmem:[%s8 + $0x38] sm:$0xf]
      %v2290 = vld [vmem:[%s8 + $0x3c] sm:$0xf]
      %v2291 = vld [vmem:[%s8 + $0x40] sm:$0xf]
      %v2292 = vld [vmem:[%s8 + $0x44] sm:$0xf]
      %v2293 = vld [vmem:[%s8 + $0x48] sm:$0xf]
      %v2294 = vld [vmem:[%s8 + $0x4c] sm:$0xf]
      %v2295 = vld [vmem:[%s8 + $0x50] sm:$0xf]
      %v2296 = vld [vmem:[%s8 + $0x54] sm:$0xf]
      %v2297 = vld [vmem:[%s8 + $0x58] sm:$0xf]
      %v2298 = vld [vmem:[%s8 + $0x5c] sm:$0xf]
      %v2299 = vld [vmem:[%s8 + $0x60] sm:$0xf]
      %v2300 = vld [vmem:[%s8 + $0x64] sm:$0xf]
      %v2301 = vld [vmem:[%s8 + $0x68] sm:$0xf]
      %v2302 = vld [vmem:[%s8 + $0x6c] sm:$0xf]
      %v2303 = vld [vmem:[%s8 + $0x70] sm:$0xf]
      %v2304 = vld [vmem:[%s8 + $0x74] sm:$0xf]
      %v2305 = vld [vmem:[%s8 + $0x78] sm:$0xf]
      %v2306 = vld [vmem:[%s8 + $0x7c] sm:$0xf]
      %v2307 = vld [vmem:[%s8 + $0x80] sm:$0xf]
      %v2308 = vld [vmem:[%s8 + $0x84] sm:$0xf]
      %v2309 = vld [vmem:[%s8 + $0x88] sm:$0xf]
      %v2310 = vld [vmem:[%s8 + $0x8c] sm:$0xf]
      %v2311 = vld [vmem:[%s9] sm:$0x1]
      %v2313 = vlaneseq
      %v2314 = vshrl.u32 %v2313, 7
      %v2315 = vsub.s32 0, %v2314
      %v2316 = vrot.slane %v2311, %v2315
      %v2354 = vunpack.c.l.b16 %v2275
      %v2355 = vunpack.c.l.b16 %v2276
      %v2356 = vunpack.c.l.b16 %v2277
      %v2357 = vunpack.c.l.b16 %v2278
      %v2358 = vunpack.c.l.b16 %v2279
      %v2359 = vunpack.c.l.b16 %v2280
      %v2360 = vunpack.c.l.b16 %v2281
      %v2361 = vunpack.c.l.b16 %v2282
      %v2362 = vunpack.c.l.b16 %v2283
      %v2363 = vunpack.c.l.b16 %v2284
      %v2364 = vunpack.c.l.b16 %v2285
      %v2365 = vunpack.c.l.b16 %v2286
      %v2366 = vunpack.c.l.b16 %v2287
      %v2367 = vunpack.c.l.b16 %v2288
      %v2368 = vunpack.c.l.b16 %v2289
      %v2369 = vunpack.c.l.b16 %v2290
      %v2370 = vunpack.c.l.b16 %v2291
      %v2371 = vunpack.c.l.b16 %v2292
      %v2372 = vunpack.c.l.b16 %v2293
      %v2373 = vunpack.c.l.b16 %v2294
      %v2374 = vunpack.c.l.b16 %v2295
      %v2375 = vunpack.c.l.b16 %v2296
      %v2376 = vunpack.c.l.b16 %v2297
      %v2377 = vunpack.c.l.b16 %v2298
      %v2378 = vunpack.c.l.b16 %v2299
      %v2379 = vunpack.c.l.b16 %v2300
      %v2380 = vunpack.c.l.b16 %v2301
      %v2381 = vunpack.c.l.b16 %v2302
      %v2382 = vunpack.c.l.b16 %v2303
      %v2383 = vunpack.c.l.b16 %v2304
      %v2384 = vunpack.c.l.b16 %v2305
      %v2385 = vunpack.c.l.b16 %v2306
      %v2386 = vunpack.c.l.b16 %v2307
      %v2387 = vunpack.c.l.b16 %v2308
      %v2388 = vunpack.c.l.b16 %v2309
      %v2389 = vunpack.c.l.b16 %v2310
      %v2390 = vpack.c.b16 %v2355, %v2354
      %v2391 = vpack.c.b16 %v2357, %v2356
      %v2392 = vpack.c.b16 %v2359, %v2358
      %v2393 = vpack.c.b16 %v2361, %v2360
      %v2394 = vpack.c.b16 %v2363, %v2362
      %v2395 = vpack.c.b16 %v2365, %v2364
      %v2396 = vpack.c.b16 %v2367, %v2366
      %v2397 = vpack.c.b16 %v2369, %v2368
      %v2398 = vpack.c.b16 %v2371, %v2370
      %v2399 = vpack.c.b16 %v2373, %v2372
      %v2400 = vpack.c.b16 %v2375, %v2374
      %v2401 = vpack.c.b16 %v2377, %v2376
      %v2402 = vpack.c.b16 %v2379, %v2378
      %v2403 = vpack.c.b16 %v2381, %v2380
      %v2404 = vpack.c.b16 %v2383, %v2382
      %v2405 = vpack.c.b16 %v2385, %v2384
      %v2406 = vpack.c.b16 %v2387, %v2386
      %v2407 = vpack.c.b16 %v2389, %v2388
      %v2427 = vsel %vm768, %v2159, 0
      %v2430 = vsel %vm768, %v2161, 0
      %v2433 = vsel %vm768, %v2163, 0
      %v2436 = vsel %vm768, %v2165, 0
      %v2439 = vsel %vm768, %v2167, 0
      %v2442 = vsel %vm768, %v2169, 0
      %v2445 = vsel %vm768, %v2168, 0
      %2447 = vmatprep.subr.bf16.mxu0 0
      %2448 = vmatpush1.bf16.msra.mxu0 %v2397
      %2449 = vmatprep.subr.bf16.mxu0 0
      %2450 = vmatpush1.bf16.msra.mxu0 %v2396
      %2451 = vmatprep.subr.bf16.mxu0 0
      %2452 = vmatpush1.bf16.msra.mxu0 %v2395
      %2453 = vmatprep.subr.bf16.mxu0 0
      %2454 = vmatpush1.bf16.msra.mxu0 %v2394
      %2455 = vmatprep.subr.bf16.mxu0 0
      %2456 = vmatpush1.bf16.msra.mxu0 %v2393
      %2457 = vmatprep.subr.bf16.mxu0 0
      %2458 = vmatpush1.bf16.msra.mxu0 %v2392
      %2459 = vmatprep.subr.bf16.mxu0 0
      %2460 = vmatpush1.bf16.msra.mxu0 %v2391
      %2461 = vmatprep.subr.bf16.mxu0 0
      %2462 = vmatpush1.bf16.msra.mxu0 %v2390
      %2463 = vmatprep.subr.bf16.mxu0 0
      %2464 = vmatpush2.bf16.msra.mxu0 %v2405
      %2465 = vmatprep.subr.bf16.mxu0 0
      %2466 = vmatpush2.bf16.msra.mxu0 %v2404
      %2467 = vmatprep.subr.bf16.mxu0 0
      %2468 = vmatpush2.bf16.msra.mxu0 %v2403
      %2469 = vmatprep.subr.bf16.mxu0 0
      %2470 = vmatpush2.bf16.msra.mxu0 %v2402
      %2471 = vmatprep.subr.bf16.mxu0 0
      %2472 = vmatpush2.bf16.msra.mxu0 %v2401
      %2473 = vmatprep.subr.bf16.mxu0 0
      %2474 = vmatpush2.bf16.msra.mxu0 %v2400
      %2475 = vmatprep.subr.bf16.mxu0 0
      %2476 = vmatpush2.bf16.msra.mxu0 %v2399
      %2477 = vmatprep.subr.bf16.mxu0 0
      %2478 = vmatpush2.bf16.msra.mxu0 %v2398
      %2479 = vmatprep.mubr.bf16.mxu0 %v2255
      %2480 = vmatmul.mubr.bf16.gmra.mxu0 %v2199
      %v2481 = vpop.f32.mrf.mxu0
      %v2482 = vadd.f32 %v2316, %v2481
      %v2483 = vpop.f32.mrf.mxu0
      %v2484 = vpop.f32.mrf.mxu0
      %v2485 = vadd.f32 %v2316, %v2484
      %v2486 = vpop.f32.mrf.mxu0
      %2487 = vmatprep.mubr.bf16.mxu0 %v2258
      %2488 = vmatmul.mubr.bf16.gmra.mxu0 %v2202
      %v2489 = vpop.f32.mrf.mxu0
      %v2490 = vadd.f32 %v2316, %v2489
      %v2491 = vpop.f32.mrf.mxu0
      %v2492 = vpop.f32.mrf.mxu0
      %v2493 = vadd.f32 %v2316, %v2492
      %v2494 = vpop.f32.mrf.mxu0
      %2495 = vmatprep.mubr.bf16.mxu0 %v2261
      %2496 = vmatmul.mubr.bf16.gmra.mxu0 %v2205
      %v2497 = vpop.f32.mrf.mxu0
      %v2498 = vadd.f32 %v2316, %v2497
      %v2499 = vpop.f32.mrf.mxu0
      %v2500 = vpop.f32.mrf.mxu0
      %v2501 = vadd.f32 %v2316, %v2500
      %v2502 = vpop.f32.mrf.mxu0
      %2503 = vmatprep.mubr.bf16.mxu0 %v2264
      %2504 = vmatmul.mubr.bf16.gmra.mxu0 %v2208
      %v2505 = vpop.f32.mrf.mxu0
      %v2506 = vadd.f32 %v2316, %v2505
      %v2507 = vpop.f32.mrf.mxu0
      %v2508 = vpop.f32.mrf.mxu0
      %v2509 = vadd.f32 %v2316, %v2508
      %v2510 = vpop.f32.mrf.mxu0
      %2511 = vmatprep.mubr.bf16.mxu0 %v2267
      %2512 = vmatmul.mubr.bf16.gmra.mxu0 %v2211
      %v2513 = vpop.f32.mrf.mxu0
      %v2514 = vadd.f32 %v2316, %v2513
      %v2515 = vpop.f32.mrf.mxu0
      %v2516 = vpop.f32.mrf.mxu0
      %v2517 = vadd.f32 %v2316, %v2516
      %v2518 = vpop.f32.mrf.mxu0
      %2519 = vmatprep.mubr.bf16.mxu0 %v2270
      %2520 = vmatmul.mubr.bf16.gmra.mxu0 %v2214
      %v2521 = vpop.f32.mrf.mxu0
      %v2522 = vadd.f32 %v2316, %v2521
      %v2523 = vpop.f32.mrf.mxu0
      %v2524 = vpop.f32.mrf.mxu0
      %v2525 = vadd.f32 %v2316, %v2524
      %v2526 = vpop.f32.mrf.mxu0
      %2527 = vmatprep.mubr.bf16.mxu0 %v2273
      %2528 = vmatmul.mubr.bf16.gmra.mxu0 %v2217
      %v2529 = vpop.f32.mrf.mxu0
      %v2530 = vadd.f32 %v2316, %v2529
      %v2531 = vpop.f32.mrf.mxu0
      %v2532 = vpop.f32.mrf.mxu0
      %v2533 = vpop.f32.mrf.mxu0
      %2534 = vdwg.mxu0
      %2535 = vmatprep.subr.bf16.mxu0 0
      %2536 = vmatpush1.bf16.msra.mxu0 0
      %2537 = vmatprep.subr.bf16.mxu0 0
      %2538 = vmatpush1.bf16.msra.mxu0 0
      %2539 = vmatprep.subr.bf16.mxu0 0
      %2540 = vmatpush1.bf16.msra.mxu0 0
      %2541 = vmatprep.subr.bf16.mxu0 0
      %2542 = vmatpush1.bf16.msra.mxu0 0
      %2543 = vmatprep.subr.bf16.mxu0 0
      %2544 = vmatpush1.bf16.msra.mxu0 0
      %2545 = vmatprep.subr.bf16.mxu0 0
      %2546 = vmatpush1.bf16.msra.mxu0 0
      %2547 = vmatprep.subr.bf16.mxu0 0
      %2548 = vmatpush1.bf16.msra.mxu0 %v2407
      %2549 = vmatprep.subr.bf16.mxu0 0
      %2550 = vmatpush1.bf16.msra.mxu0 %v2406
      %2551 = vmatprep.subr.bf16.mxu0 0
      %2552 = vmatpush2.bf16.msra.mxu0 0
      %2553 = vmatprep.subr.bf16.mxu0 0
      %2554 = vmatpush2.bf16.msra.mxu0 0
      %2555 = vmatprep.subr.bf16.mxu0 0
      %2556 = vmatpush2.bf16.msra.mxu0 0
      %2557 = vmatprep.subr.bf16.mxu0 0
      %2558 = vmatpush2.bf16.msra.mxu0 0
      %2559 = vmatprep.subr.bf16.mxu0 0
      %2560 = vmatpush2.bf16.msra.mxu0 0
      %2561 = vmatprep.subr.bf16.mxu0 0
      %2562 = vmatpush2.bf16.msra.mxu0 0
      %2563 = vmatprep.subr.bf16.mxu0 0
      %2564 = vmatpush2.bf16.msra.mxu0 0
      %2565 = vmatprep.subr.bf16.mxu0 0
      %2566 = vmatpush2.bf16.msra.mxu0 0
      %2567 = vmatprep.mubr.bf16.mxu0 0
      %2568 = vmatmul.mubr.bf16.gmra.mxu0 %v2427
      %v2569 = vpop.f32.mrf.mxu0
      %v2570 = vadd.f32 %v2482, %v2569
      %v2571 = vpop.f32.mrf.mxu0
      %v2572 = vpop.f32.mrf.mxu0
      %v2573 = vadd.f32 %v2485, %v2572
      %v2574 = vpop.f32.mrf.mxu0
      %2575 = vmatprep.mubr.bf16.mxu0 0
      %2576 = vmatmul.mubr.bf16.gmra.mxu0 %v2430
      %v2577 = vpop.f32.mrf.mxu0
      %v2578 = vadd.f32 %v2490, %v2577
      %v2579 = vpop.f32.mrf.mxu0
      %v2580 = vpop.f32.mrf.mxu0
      %v2581 = vadd.f32 %v2493, %v2580
      %v2582 = vpop.f32.mrf.mxu0
      %2583 = vmatprep.mubr.bf16.mxu0 0
      %2584 = vmatmul.mubr.bf16.gmra.mxu0 %v2433
      %v2585 = vpop.f32.mrf.mxu0
      %v2586 = vadd.f32 %v2498, %v2585
      %v2587 = vpop.f32.mrf.mxu0
      %v2588 = vpop.f32.mrf.mxu0
      %v2589 = vadd.f32 %v2501, %v2588
      %v2590 = vpop.f32.mrf.mxu0
      %2591 = vmatprep.mubr.bf16.mxu0 0
      %2592 = vmatmul.mubr.bf16.gmra.mxu0 %v2436
      %v2593 = vpop.f32.mrf.mxu0
      %v2594 = vadd.f32 %v2506, %v2593
      %v2595 = vpop.f32.mrf.mxu0
      %v2596 = vpop.f32.mrf.mxu0
      %v2597 = vadd.f32 %v2509, %v2596
      %v2598 = vpop.f32.mrf.mxu0
      %2599 = vmatprep.mubr.bf16.mxu0 0
      %2600 = vmatmul.mubr.bf16.gmra.mxu0 %v2439
      %v2601 = vpop.f32.mrf.mxu0
      %v2602 = vadd.f32 %v2514, %v2601
      %v2603 = vpop.f32.mrf.mxu0
      %v2604 = vpop.f32.mrf.mxu0
      %v2605 = vadd.f32 %v2517, %v2604
      %v2606 = vpop.f32.mrf.mxu0
      %2607 = vmatprep.mubr.bf16.mxu0 0
      %2608 = vmatmul.mubr.bf16.gmra.mxu0 %v2442
      %v2609 = vpop.f32.mrf.mxu0
      %v2610 = vadd.f32 %v2522, %v2609
      %v2611 = vpop.f32.mrf.mxu0
      %v2612 = vpop.f32.mrf.mxu0
      %v2613 = vadd.f32 %v2525, %v2612
      %v2614 = vpop.f32.mrf.mxu0
      %2615 = vmatprep.mubr.bf16.mxu0 0
      %2616 = vmatmul.mubr.bf16.gmra.mxu0 %v2445
      %v2617 = vpop.f32.mrf.mxu0
      %v2618 = vadd.f32 %v2530, %v2617
      %v2619 = vpop.f32.mrf.mxu0
      %v2620 = vpop.f32.mrf.mxu0
      %v2621 = vpop.f32.mrf.mxu0
      %2622 = vdwg.mxu0
      %v2623 = vmul.f32 %v2570, %v2570
      %v2624 = vmul.f32 %v2573, %v2573
      %v2625 = vmul.f32 %v2578, %v2578
      %v2626 = vmul.f32 %v2581, %v2581
      %v2627 = vmul.f32 %v2586, %v2586
      %v2628 = vmul.f32 %v2589, %v2589
      %v2629 = vmul.f32 %v2594, %v2594
      %v2630 = vmul.f32 %v2597, %v2597
      %v2631 = vmul.f32 %v2602, %v2602
      %v2632 = vmul.f32 %v2605, %v2605
      %v2633 = vmul.f32 %v2610, %v2610
      %v2634 = vmul.f32 %v2613, %v2613
      %v2635 = vmul.f32 %v2618, %v2618
      %v2636 = vsel %vm768, %v2623, 0.0
      %2637 = vadd.xlane.f32.xlu0 %v2636
      %v2638 = vpop.xlane.xlu0 %2637
      %v2639 = vsel %vm768, %v2624, 0.0
      %2640 = vadd.xlane.f32.xlu0 %v2639
      %v2641 = vpop.xlane.xlu0 %2640
      %v2642 = vsel %vm768, %v2625, 0.0
      %2643 = vadd.xlane.f32.xlu0 %v2642
      %v2644 = vpop.xlane.xlu0 %2643
      %v2645 = vsel %vm768, %v2626, 0.0
      %2646 = vadd.xlane.f32.xlu0 %v2645
      %v2647 = vpop.xlane.xlu0 %2646
      %v2648 = vsel %vm768, %v2627, 0.0
      %2649 = vadd.xlane.f32.xlu0 %v2648
      %v2650 = vpop.xlane.xlu0 %2649
      %v2651 = vsel %vm768, %v2628, 0.0
      %2652 = vadd.xlane.f32.xlu0 %v2651
      %v2653 = vpop.xlane.xlu0 %2652
      %v2654 = vsel %vm768, %v2629, 0.0
      %2655 = vadd.xlane.f32.xlu0 %v2654
      %v2656 = vpop.xlane.xlu0 %2655
      %v2657 = vsel %vm768, %v2630, 0.0
      %2658 = vadd.xlane.f32.xlu0 %v2657
      %v2659 = vpop.xlane.xlu0 %2658
      %v2660 = vsel %vm768, %v2631, 0.0
      %2661 = vadd.xlane.f32.xlu0 %v2660
      %v2662 = vpop.xlane.xlu0 %2661
      %v2663 = vsel %vm768, %v2632, 0.0
      %2664 = vadd.xlane.f32.xlu0 %v2663
      %v2665 = vpop.xlane.xlu0 %2664
      %v2666 = vsel %vm768, %v2633, 0.0
      %2667 = vadd.xlane.f32.xlu0 %v2666
      %v2668 = vpop.xlane.xlu0 %2667
      %v2669 = vsel %vm768, %v2634, 0.0
      %2670 = vadd.xlane.f32.xlu0 %v2669
      %v2671 = vpop.xlane.xlu0 %2670
      %v2672 = vsel %vm1041, %v2635, 0.0
      %2673 = vadd.xlane.f32.xlu0 %v2672
      %v2674 = vpop.xlane.xlu0 %2673
      %v2675 = vmul.f32 %v2638, %v1045
      %v2676 = vmul.f32 %v2641, %v1045
      %v2677 = vmul.f32 %v2644, %v1045
      %v2678 = vmul.f32 %v2647, %v1045
      %v2679 = vmul.f32 %v2650, %v1045
      %v2680 = vmul.f32 %v2653, %v1045
      %v2681 = vmul.f32 %v2656, %v1045
      %v2682 = vmul.f32 %v2659, %v1045
      %v2683 = vmul.f32 %v2662, %v1045
      %v2684 = vmul.f32 %v2665, %v1045
      %v2685 = vmul.f32 %v2668, %v1045
      %v2686 = vmul.f32 %v2671, %v1045
      %v2687 = vmul.f32 %v2674, %v1045
      %v2688 = vadd.f32 %v2675, 1e-08
      %v2689 = vadd.f32 %v2676, 1e-08
      %v2690 = vadd.f32 %v2677, 1e-08
      %v2691 = vadd.f32 %v2678, 1e-08
      %v2692 = vadd.f32 %v2679, 1e-08
      %v2693 = vadd.f32 %v2680, 1e-08
      %v2694 = vadd.f32 %v2681, 1e-08
      %v2695 = vadd.f32 %v2682, 1e-08
      %v2696 = vadd.f32 %v2683, 1e-08
      %v2697 = vadd.f32 %v2684, 1e-08
      %v2698 = vadd.f32 %v2685, 1e-08
      %v2699 = vadd.f32 %v2686, 1e-08
      %v2700 = vadd.f32 %v2687, 1e-08
      %v2701 = vrsqrt.pop %v2688
      %v2702 = vrsqrt.pop %v2689
      %v2703 = vrsqrt.pop %v2690
      %v2704 = vrsqrt.pop %v2691
      %v2705 = vrsqrt.pop %v2692
      %v2706 = vrsqrt.pop %v2693
      %v2707 = vrsqrt.pop %v2694
      %v2708 = vrsqrt.pop %v2695
      %v2709 = vrsqrt.pop %v2696
      %v2710 = vrsqrt.pop %v2697
      %v2711 = vrsqrt.pop %v2698
      %v2712 = vrsqrt.pop %v2699
      %v2713 = vrsqrt.pop %v2700
      %v2714 = vmul.f32 %v2570, %v2701
      %v2715 = vmul.f32 %v2573, %v2702
      %v2716 = vmul.f32 %v2578, %v2703
      %v2717 = vmul.f32 %v2581, %v2704
      %v2718 = vmul.f32 %v2586, %v2705
      %v2719 = vmul.f32 %v2589, %v2706
      %v2720 = vmul.f32 %v2594, %v2707
      %v2721 = vmul.f32 %v2597, %v2708
      %v2722 = vmul.f32 %v2602, %v2709
      %v2723 = vmul.f32 %v2605, %v2710
      %v2724 = vmul.f32 %v2610, %v2711
      %v2725 = vmul.f32 %v2613, %v2712
      %v2726 = vmul.f32 %v2618, %v2713
      %vm2727 = vcmp.gt.f32.partialorder %v2714, 0.0
      %vm2728 = vcmp.gt.f32.partialorder %v2715, 0.0
      %vm2729 = vcmp.gt.f32.partialorder %v2716, 0.0
      %vm2730 = vcmp.gt.f32.partialorder %v2717, 0.0
      %vm2731 = vcmp.gt.f32.partialorder %v2718, 0.0
      %vm2732 = vcmp.gt.f32.partialorder %v2719, 0.0
      %vm2733 = vcmp.gt.f32.partialorder %v2720, 0.0
      %vm2734 = vcmp.gt.f32.partialorder %v2721, 0.0
      %vm2735 = vcmp.gt.f32.partialorder %v2722, 0.0
      %vm2736 = vcmp.gt.f32.partialorder %v2723, 0.0
      %vm2737 = vcmp.gt.f32.partialorder %v2724, 0.0
      %vm2738 = vcmp.gt.f32.partialorder %v2725, 0.0
      %vm2739 = vcmp.gt.f32.partialorder %v2726, 0.0
      %v2740 = vmul.f32 %v2714, 0.2
      %v2741 = vmul.f32 %v2715, 0.2
      %v2742 = vmul.f32 %v2716, 0.2
      %v2743 = vmul.f32 %v2717, 0.2
      %v2744 = vmul.f32 %v2718, 0.2
      %v2745 = vmul.f32 %v2719, 0.2
      %v2746 = vmul.f32 %v2720, 0.2
      %v2747 = vmul.f32 %v2721, 0.2
      %v2748 = vmul.f32 %v2722, 0.2
      %v2749 = vmul.f32 %v2723, 0.2
      %v2750 = vmul.f32 %v2724, 0.2
      %v2751 = vmul.f32 %v2725, 0.2
      %v2752 = vmul.f32 %v2726, 0.2
      %v2753 = vsel %vm2727, %v2714, %v2740
      %v2754 = vsel %vm2728, %v2715, %v2741
      %v2755 = vsel %vm2729, %v2716, %v2742
      %v2756 = vsel %vm2730, %v2717, %v2743
      %v2757 = vsel %vm2731, %v2718, %v2744
      %v2758 = vsel %vm2732, %v2719, %v2745
      %v2759 = vsel %vm2733, %v2720, %v2746
      %v2760 = vsel %vm2734, %v2721, %v2747
      %v2761 = vsel %vm2735, %v2722, %v2748
      %v2762 = vsel %vm2736, %v2723, %v2749
      %v2763 = vsel %vm2737, %v2724, %v2750
      %v2764 = vsel %vm2738, %v2725, %v2751
      %v2765 = vsel %vm2739, %v2726, %v2752
      %2767 = vset.pattern.permute.xlu0 0
      %2768 = vperm.xlu0 %2767, %v1818
      %v2769 = vpop.permute.xlu0 %2768
      %2772 = vset.pattern.permute.xlu0 0
      %2773 = vperm.xlu0 %2772, %v1819
      %v2774 = vpop.permute.xlu0 %2773
      %2777 = vset.pattern.permute.xlu0 0
      %2778 = vperm.xlu0 %2777, %v1820
      %v2779 = vpop.permute.xlu0 %2778
      %2782 = vset.pattern.permute.xlu0 0
      %2783 = vperm.xlu0 %2782, %v1821
      %v2784 = vpop.permute.xlu0 %2783
      %2787 = vset.pattern.permute.xlu0 0
      %2788 = vperm.xlu0 %2787, %v1822
      %v2789 = vpop.permute.xlu0 %2788
      %2792 = vset.pattern.permute.xlu0 0
      %2793 = vperm.xlu0 %2792, %v1823
      %v2794 = vpop.permute.xlu0 %2793
      %2797 = vset.pattern.permute.xlu0 0
      %2798 = vperm.xlu0 %2797, %v1824
      %v2799 = vpop.permute.xlu0 %2798
      %2802 = vset.pattern.permute.xlu0 0
      %2803 = vperm.xlu0 %2802, %v1825
      %v2804 = vpop.permute.xlu0 %2803
      %2807 = vset.pattern.permute.xlu0 0
      %2808 = vperm.xlu0 %2807, %v1826
      %v2809 = vpop.permute.xlu0 %2808
      %2812 = vset.pattern.permute.xlu0 0
      %2813 = vperm.xlu0 %2812, %v1827
      %v2814 = vpop.permute.xlu0 %2813
      %2817 = vset.pattern.permute.xlu0 0
      %2818 = vperm.xlu0 %2817, %v1828
      %v2819 = vpop.permute.xlu0 %2818
      %2822 = vset.pattern.permute.xlu0 0
      %2823 = vperm.xlu0 %2822, %v1829
      %v2824 = vpop.permute.xlu0 %2823
      %2827 = vset.pattern.permute.xlu0 0
      %2828 = vperm.xlu0 %2827, %v1830
      %v2829 = vpop.permute.xlu0 %2828
      %v2831 = vmul.f32 %v2753, %v2769
      %v2832 = vmul.f32 %v2754, %v2774
      %v2833 = vmul.f32 %v2755, %v2779
      %v2834 = vmul.f32 %v2756, %v2784
      %v2835 = vmul.f32 %v2757, %v2789
      %v2836 = vmul.f32 %v2758, %v2794
      %v2837 = vmul.f32 %v2759, %v2799
      %v2838 = vmul.f32 %v2760, %v2804
      %v2839 = vmul.f32 %v2761, %v2809
      %v2840 = vmul.f32 %v2762, %v2814
      %v2841 = vmul.f32 %v2763, %v2819
      %v2842 = vmul.f32 %v2764, %v2824
      %v2843 = vmul.f32 %v2765, %v2829
      %v2844 = vpack.c.bf16 %v2832, %v2831
      %v2845 = vpack.c.bf16 %v2834, %v2833
      %v2846 = vpack.c.bf16 %v2836, %v2835
      %v2847 = vpack.c.bf16 %v2838, %v2837
      %v2848 = vpack.c.bf16 %v2840, %v2839
      %v2849 = vpack.c.bf16 %v2842, %v2841
      %v2850 = vpack.c.bf16 %v2843, %v2843
      %v2852 = vshrl.u32 %v2844, 16
      %v2854 = vrot.slane %v2852, 2
      %v2855 = vshll.u32 %v2844, 16
      %v2857 = vrot.slane %v2855, 3
      %v2858 = vor.u32 %v2854, %v2857
      %v2860 = vshrl.u32 %v2845, 16
      %v2862 = vrot.slane %v2860, 2
      %v2863 = vshll.u32 %v2845, 16
      %v2865 = vrot.slane %v2863, 3
      %v2866 = vor.u32 %v2862, %v2865
      %v2867 = vsel %vm1152, %v2858, %v2866
      %v2869 = vshrl.u32 %v2846, 16
      %v2871 = vrot.slane %v2869, 2
      %v2872 = vshll.u32 %v2846, 16
      %v2874 = vrot.slane %v2872, 3
      %v2875 = vor.u32 %v2871, %v2874
      %v2876 = vsel %vm1152, %v2866, %v2875
      %v2878 = vshrl.u32 %v2847, 16
      %v2880 = vrot.slane %v2878, 2
      %v2881 = vshll.u32 %v2847, 16
      %v2883 = vrot.slane %v2881, 3
      %v2884 = vor.u32 %v2880, %v2883
      %v2885 = vsel %vm1152, %v2875, %v2884
      %v2887 = vshrl.u32 %v2848, 16
      %v2889 = vrot.slane %v2887, 2
      %v2890 = vshll.u32 %v2848, 16
      %v2892 = vrot.slane %v2890, 3
      %v2893 = vor.u32 %v2889, %v2892
      %v2894 = vsel %vm1152, %v2884, %v2893
      %v2896 = vshrl.u32 %v2849, 16
      %v2898 = vrot.slane %v2896, 2
      %v2899 = vshll.u32 %v2849, 16
      %v2901 = vrot.slane %v2899, 3
      %v2902 = vor.u32 %v2898, %v2901
      %v2903 = vsel %vm1152, %v2893, %v2902
      %v2905 = vshrl.u32 %v2850, 16
      %v2907 = vrot.slane %v2905, 2
      %v2908 = vshll.u32 %v2850, 16
      %v2910 = vrot.slane %v2908, 3
      %v2911 = vor.u32 %v2907, %v2910
      %v2912 = vsel %vm1152, %v2902, %v2911
      %v2915 = vsel %vm1153, 0, %v2858
      %v2916 = vsel %vm1904, %v2912, 0
      %v2918 = vshrl.u32 %v2915, 16
      %v2920 = vshll.u32 %v2915, 16
      %v2922 = vrot.slane %v2920, 1
      %v2923 = vor.u32 %v2918, %v2922
      %v2925 = vshll.u32 %v2867, 16
      %v2927 = vrot.slane %v2925, 1
      %v2928 = vsel %vm1155, %v2923, %v2927
      %v2929 = vshrl.u32 %v2867, 16
      %v2931 = vor.u32 %v2929, %v2927
      %v2933 = vshll.u32 %v2876, 16
      %v2935 = vrot.slane %v2933, 1
      %v2936 = vsel %vm1155, %v2931, %v2935
      %v2937 = vshrl.u32 %v2876, 16
      %v2939 = vor.u32 %v2937, %v2935
      %v2941 = vshll.u32 %v2885, 16
      %v2943 = vrot.slane %v2941, 1
      %v2944 = vsel %vm1155, %v2939, %v2943
      %v2945 = vshrl.u32 %v2885, 16
      %v2947 = vor.u32 %v2945, %v2943
      %v2949 = vshll.u32 %v2894, 16
      %v2951 = vrot.slane %v2949, 1
      %v2952 = vsel %vm1155, %v2947, %v2951
      %v2953 = vshrl.u32 %v2894, 16
      %v2955 = vor.u32 %v2953, %v2951
      %v2957 = vshll.u32 %v2903, 16
      %v2959 = vrot.slane %v2957, 1
      %v2960 = vsel %vm1155, %v2955, %v2959
      %v2961 = vshrl.u32 %v2903, 16
      %v2963 = vor.u32 %v2961, %v2959
      %v2965 = vshll.u32 %v2916, 16
      %v2967 = vrot.slane %v2965, 1
      %v2968 = vsel %vm1155, %v2963, %v2967
      %v2969 = vshrl.u32 %v2916, 16
      %v2971 = vor.u32 %v2969, %v2967
      %2972 = vrot.lane.b32.xlu0 %v2928, 32
      %v2973 = vpop.permute.xlu0 %2972
      %2974 = vrot.lane.b32.xlu0 %v2936, 32
      %v2975 = vpop.permute.xlu0 %2974
      %2976 = vrot.lane.b32.xlu0 %v2944, 32
      %v2977 = vpop.permute.xlu0 %2976
      %2978 = vrot.lane.b32.xlu0 %v2952, 32
      %v2979 = vpop.permute.xlu0 %2978
      %2980 = vrot.lane.b32.xlu0 %v2960, 32
      %v2981 = vpop.permute.xlu0 %2980
      %2982 = vrot.lane.b32.xlu0 %v2968, 32
      %v2983 = vpop.permute.xlu0 %2982
      %2984 = vrot.lane.b32.xlu0 %v2971, 32
      %v2985 = vpop.permute.xlu0 %2984
      %v2988 = vrot.slane %v2915, 1
      %v2989 = vrot.slane %v2867, 1
      %v2990 = vsel %vm1187, %v2988, %v2989
      %v2991 = vrot.slane %v2876, 1
      %v2992 = vsel %vm1187, %v2989, %v2991
      %v2993 = vrot.slane %v2885, 1
      %v2994 = vsel %vm1187, %v2991, %v2993
      %v2995 = vrot.slane %v2894, 1
      %v2996 = vsel %vm1187, %v2993, %v2995
      %v2997 = vrot.slane %v2903, 1
      %v2998 = vsel %vm1187, %v2995, %v2997
      %v2999 = vrot.slane %v2916, 1
      %v3000 = vsel %vm1187, %v2997, %v2999
      %3001 = vrot.lane.b32.xlu0 %v2990, 64
      %v3002 = vpop.permute.xlu0 %3001
      %3003 = vrot.lane.b32.xlu0 %v2992, 64
      %v3004 = vpop.permute.xlu0 %3003
      %3005 = vrot.lane.b32.xlu0 %v2994, 64
      %v3006 = vpop.permute.xlu0 %3005
      %3007 = vrot.lane.b32.xlu0 %v2996, 64
      %v3008 = vpop.permute.xlu0 %3007
      %3009 = vrot.lane.b32.xlu0 %v2998, 64
      %v3010 = vpop.permute.xlu0 %3009
      %3011 = vrot.lane.b32.xlu0 %v3000, 64
      %v3012 = vpop.permute.xlu0 %3011
      %3013 = vrot.lane.b32.xlu0 %v2999, 64
      %v3014 = vpop.permute.xlu0 %3013
      %v3015 = vrot.slane %v2915, 5
      %v3016 = vrot.slane %v2867, 5
      %v3017 = vsel %vm2004, %v3015, %v3016
      %v3018 = vrot.slane %v2876, 5
      %v3019 = vsel %vm2004, %v3016, %v3018
      %v3020 = vrot.slane %v2885, 5
      %v3021 = vsel %vm2004, %v3018, %v3020
      %v3022 = vrot.slane %v2894, 5
      %v3023 = vsel %vm2004, %v3020, %v3022
      %v3024 = vrot.slane %v2903, 5
      %v3025 = vsel %vm2004, %v3022, %v3024
      %v3026 = vrot.slane %v2916, 5
      %v3027 = vsel %vm2004, %v3024, %v3026
      %3028 = vrot.lane.b32.xlu0 %v3017, 96
      %v3029 = vpop.permute.xlu0 %3028
      %3030 = vrot.lane.b32.xlu0 %v3019, 96
      %v3031 = vpop.permute.xlu0 %3030
      %3032 = vrot.lane.b32.xlu0 %v3021, 96
      %v3033 = vpop.permute.xlu0 %3032
      %3034 = vrot.lane.b32.xlu0 %v3023, 96
      %v3035 = vpop.permute.xlu0 %3034
      %3036 = vrot.lane.b32.xlu0 %v3025, 96
      %v3037 = vpop.permute.xlu0 %3036
      %3038 = vrot.lane.b32.xlu0 %v3027, 96
      %v3039 = vpop.permute.xlu0 %3038
      %3040 = vrot.lane.b32.xlu0 %v3026, 96
      %v3041 = vpop.permute.xlu0 %3040
      %v3042 = vrot.slane %v2918, 5
      %v3043 = vrot.slane %v2920, 6
      %v3044 = vor.u32 %v3042, %v3043
      %v3045 = vrot.slane %v2929, 5
      %v3046 = vrot.slane %v2925, 6
      %v3047 = vor.u32 %v3045, %v3046
      %v3048 = vsel %vm2032, %v3044, %v3047
      %v3049 = vrot.slane %v2937, 5
      %v3050 = vrot.slane %v2933, 6
      %v3051 = vor.u32 %v3049, %v3050
      %v3052 = vsel %vm2032, %v3047, %v3051
      %v3053 = vrot.slane %v2945, 5
      %v3054 = vrot.slane %v2941, 6
      %v3055 = vor.u32 %v3053, %v3054
      %v3056 = vsel %vm2032, %v3051, %v3055
      %v3057 = vrot.slane %v2953, 5
      %v3058 = vrot.slane %v2949, 6
      %v3059 = vor.u32 %v3057, %v3058
      %v3060 = vsel %vm2032, %v3055, %v3059
      %v3061 = vrot.slane %v2961, 5
      %v3062 = vrot.slane %v2957, 6
      %v3063 = vor.u32 %v3061, %v3062
      %v3064 = vsel %vm2032, %v3059, %v3063
      %v3065 = vrot.slane %v2969, 5
      %v3066 = vrot.slane %v2965, 6
      %v3067 = vor.u32 %v3065, %v3066
      %v3068 = vsel %vm2032, %v3063, %v3067
      %v3069 = vrot.slane %v2915, 6
      %v3070 = vrot.slane %v2867, 6
      %v3071 = vsel %vm1234, %v3069, %v3070
      %v3072 = vrot.slane %v2876, 6
      %v3073 = vsel %vm1234, %v3070, %v3072
      %v3074 = vrot.slane %v2885, 6
      %v3075 = vsel %vm1234, %v3072, %v3074
      %v3076 = vrot.slane %v2894, 6
      %v3077 = vsel %vm1234, %v3074, %v3076
      %v3078 = vrot.slane %v2903, 6
      %v3079 = vsel %vm1234, %v3076, %v3078
      %v3080 = vrot.slane %v2916, 6
      %v3081 = vsel %vm1234, %v3078, %v3080
      %3082 = vrot.lane.b32.xlu0 %v3071, 32
      %v3083 = vpop.permute.xlu0 %3082
      %3084 = vrot.lane.b32.xlu0 %v3073, 32
      %v3085 = vpop.permute.xlu0 %3084
      %3086 = vrot.lane.b32.xlu0 %v3075, 32
      %v3087 = vpop.permute.xlu0 %3086
      %3088 = vrot.lane.b32.xlu0 %v3077, 32
      %v3089 = vpop.permute.xlu0 %3088
      %3090 = vrot.lane.b32.xlu0 %v3079, 32
      %v3091 = vpop.permute.xlu0 %3090
      %3092 = vrot.lane.b32.xlu0 %v3081, 32
      %v3093 = vpop.permute.xlu0 %3092
      %3094 = vrot.lane.b32.xlu0 %v3080, 32
      %v3095 = vpop.permute.xlu0 %3094
      %v3096 = vrot.slane %v2867, 2
      %v3097 = vrot.slane %v2876, 2
      %v3098 = vsel %vm1151, %v3096, %v3097
      %v3099 = vrot.slane %v2885, 2
      %v3100 = vsel %vm1151, %v3097, %v3099
      %v3101 = vrot.slane %v2894, 2
      %v3102 = vsel %vm1151, %v3099, %v3101
      %v3103 = vrot.slane %v2903, 2
      %v3104 = vsel %vm1151, %v3101, %v3103
      %v3105 = vrot.slane %v2916, 2
      %v3106 = vsel %vm1151, %v3103, %v3105
      %v3107 = vsel %vm1151, %v3105, %v2098
      %3108 = vrot.lane.b32.xlu0 %v3098, 64
      %v3109 = vpop.permute.xlu0 %3108
      %3110 = vrot.lane.b32.xlu0 %v3100, 64
      %v3111 = vpop.permute.xlu0 %3110
      %3112 = vrot.lane.b32.xlu0 %v3102, 64
      %v3113 = vpop.permute.xlu0 %3112
      %3114 = vrot.lane.b32.xlu0 %v3104, 64
      %v3115 = vpop.permute.xlu0 %3114
      %3116 = vrot.lane.b32.xlu0 %v3106, 64
      %v3117 = vpop.permute.xlu0 %3116
      %3118 = vrot.lane.b32.xlu0 %v3107, 64
      %v3119 = vpop.permute.xlu0 %3118
      %v3120 = vrot.slane %v2929, 2
      %v3121 = vrot.slane %v2925, 3
      %v3122 = vor.u32 %v3120, %v3121
      %v3123 = vrot.slane %v2937, 2
      %v3124 = vrot.slane %v2933, 3
      %v3125 = vor.u32 %v3123, %v3124
      %v3126 = vsel %vm1152, %v3122, %v3125
      %v3127 = vrot.slane %v2945, 2
      %v3128 = vrot.slane %v2941, 3
      %v3129 = vor.u32 %v3127, %v3128
      %v3130 = vsel %vm1152, %v3125, %v3129
      %v3131 = vrot.slane %v2953, 2
      %v3132 = vrot.slane %v2949, 3
      %v3133 = vor.u32 %v3131, %v3132
      %v3134 = vsel %vm1152, %v3129, %v3133
      %v3135 = vrot.slane %v2961, 2
      %v3136 = vrot.slane %v2957, 3
      %v3137 = vor.u32 %v3135, %v3136
      %v3138 = vsel %vm1152, %v3133, %v3137
      %v3139 = vrot.slane %v2969, 2
      %v3140 = vrot.slane %v2965, 3
      %v3141 = vor.u32 %v3139, %v3140
      %v3142 = vsel %vm1152, %v3137, %v3141
      %v3143 = vsel %vm1152, %v3141, %v2141
      %3144 = vrot.lane.b32.xlu0 %v3126, 96
      %v3145 = vpop.permute.xlu0 %3144
      %3146 = vrot.lane.b32.xlu0 %v3130, 96
      %v3147 = vpop.permute.xlu0 %3146
      %3148 = vrot.lane.b32.xlu0 %v3134, 96
      %v3149 = vpop.permute.xlu0 %3148
      %3150 = vrot.lane.b32.xlu0 %v3138, 96
      %v3151 = vpop.permute.xlu0 %3150
      %3152 = vrot.lane.b32.xlu0 %v3142, 96
      %v3153 = vpop.permute.xlu0 %3152
      %3154 = vrot.lane.b32.xlu0 %v3143, 96
      %v3155 = vpop.permute.xlu0 %3154
      %v3156 = vrot.slane %v2867, 3
      %v3157 = vrot.slane %v2876, 3
      %v3158 = vsel %vm1199, %v3156, %v3157
      %v3159 = vrot.slane %v2885, 3
      %v3160 = vsel %vm1199, %v3157, %v3159
      %v3161 = vrot.slane %v2894, 3
      %v3162 = vsel %vm1199, %v3159, %v3161
      %v3163 = vrot.slane %v2903, 3
      %v3164 = vsel %vm1199, %v3161, %v3163
      %v3165 = vrot.slane %v2916, 3
      %v3166 = vsel %vm1199, %v3163, %v3165
      %v3167 = vsel %vm1199, %v3165, %v2168
      %v3169 = vsel %vm768, %v2915, %v2973
      %v3171 = vsel %vm768, %v2867, %v2975
      %v3173 = vsel %vm768, %v2876, %v2977
      %v3175 = vsel %vm768, %v2885, %v2979
      %v3177 = vsel %vm768, %v2894, %v2981
      %v3179 = vsel %vm768, %v2903, %v2983
      %v3181 = vsel %vm768, %v2916, %v2985
      %v3183 = vsel %vm774, %v3169, %v3002
      %v3185 = vsel %vm774, %v3171, %v3004
      %v3187 = vsel %vm774, %v3173, %v3006
      %v3189 = vsel %vm774, %v3175, %v3008
      %v3191 = vsel %vm774, %v3177, %v3010
      %v3193 = vsel %vm774, %v3179, %v3012
      %v3195 = vsel %vm774, %v3181, %v3014
      %v3197 = vsel %vm780, %v3183, %v3029
      %v3200 = vsel %vm780, %v3185, %v3031
      %v3203 = vsel %vm780, %v3187, %v3033
      %v3206 = vsel %vm780, %v3189, %v3035
      %v3209 = vsel %vm780, %v3191, %v3037
      %v3212 = vsel %vm780, %v3193, %v3039
      %v3215 = vsel %vm780, %v3195, %v3041
      %v3219 = vsel %vm768, %v3048, %v3083
      %v3222 = vsel %vm768, %v3052, %v3085
      %v3225 = vsel %vm768, %v3056, %v3087
      %v3228 = vsel %vm768, %v3060, %v3089
      %v3231 = vsel %vm768, %v3064, %v3091
      %v3234 = vsel %vm768, %v3068, %v3093
      %v3237 = vsel %vm768, %v3067, %v3095
      %v3239 = vsel %vm774, %v3219, %v3109
      %v3241 = vsel %vm774, %v3222, %v3111
      %v3243 = vsel %vm774, %v3225, %v3113
      %v3245 = vsel %vm774, %v3228, %v3115
      %v3247 = vsel %vm774, %v3231, %v3117
      %v3249 = vsel %vm774, %v3234, %v3119
      %v3250 = vsel %vm774, %v3237, %v2113
      %v3252 = vsel %vm780, %v3239, %v3145
      %v3255 = vsel %vm780, %v3241, %v3147
      %v3258 = vsel %vm780, %v3243, %v3149
      %v3261 = vsel %vm780, %v3245, %v3151
      %v3264 = vsel %vm780, %v3247, %v3153
      %v3267 = vsel %vm780, %v3249, %v3155
      %v3269 = vsel %vm780, %v3250, %v2156
      %v3271 = vld [vmem:[%s10] sm:$0xf]
      %v3272 = vld [vmem:[%s10 + $0x4] sm:$0xf]
      %v3273 = vld [vmem:[%s10 + $0x8] sm:$0xf]
      %v3274 = vld [vmem:[%s10 + $0xc] sm:$0xf]
      %v3275 = vld [vmem:[%s10 + $0x10] sm:$0xf]
      %v3276 = vld [vmem:[%s10 + $0x14] sm:$0xf]
      %v3277 = vld [vmem:[%s10 + $0x18] sm:$0xf]
      %v3278 = vld [vmem:[%s10 + $0x1c] sm:$0xf]
      %v3279 = vld [vmem:[%s10 + $0x20] sm:$0xf]
      %v3280 = vld [vmem:[%s10 + $0x24] sm:$0xf]
      %v3281 = vld [vmem:[%s10 + $0x28] sm:$0xf]
      %v3282 = vld [vmem:[%s10 + $0x2c] sm:$0xf]
      %v3283 = vld [vmem:[%s10 + $0x30] sm:$0xf]
      %v3284 = vld [vmem:[%s10 + $0x34] sm:$0xf]
      %v3285 = vld [vmem:[%s10 + $0x38] sm:$0xf]
      %v3286 = vld [vmem:[%s10 + $0x3c] sm:$0xf]
      %v3287 = vld [vmem:[%s10 + $0x40] sm:$0xf]
      %v3288 = vld [vmem:[%s10 + $0x44] sm:$0xf]
      %v3289 = vld [vmem:[%s10 + $0x48] sm:$0xf]
      %v3290 = vld [vmem:[%s10 + $0x4c] sm:$0xf]
      %v3291 = vld [vmem:[%s10 + $0x50] sm:$0xf]
      %v3292 = vld [vmem:[%s10 + $0x54] sm:$0xf]
      %v3293 = vld [vmem:[%s10 + $0x58] sm:$0xf]
      %v3294 = vld [vmem:[%s10 + $0x5c] sm:$0xf]
      %v3295 = vld [vmem:[%s10 + $0x60] sm:$0xf]
      %v3296 = vld [vmem:[%s10 + $0x64] sm:$0xf]
      %v3297 = vld [vmem:[%s10 + $0x68] sm:$0xf]
      %v3298 = vld [vmem:[%s10 + $0x6c] sm:$0xf]
      %v3299 = vld [vmem:[%s10 + $0x70] sm:$0xf]
      %v3300 = vld [vmem:[%s10 + $0x74] sm:$0xf]
      %v3301 = vld [vmem:[%s10 + $0x78] sm:$0xf]
      %v3302 = vld [vmem:[%s10 + $0x7c] sm:$0xf]
      %v3303 = vld [vmem:[%s10 + $0x80] sm:$0xf]
      %v3304 = vld [vmem:[%s10 + $0x84] sm:$0xf]
      %v3305 = vld [vmem:[%s10 + $0x88] sm:$0xf]
      %v3306 = vld [vmem:[%s10 + $0x8c] sm:$0xf]
      %v3307 = vld [vmem:[%s11] sm:$0x1]
      %v3309 = vlaneseq
      %v3310 = vshrl.u32 %v3309, 7
      %v3311 = vsub.s32 0, %v3310
      %v3312 = vrot.slane %v3307, %v3311
      %v3350 = vunpack.c.l.b16 %v3271
      %v3351 = vunpack.c.l.b16 %v3272
      %v3352 = vunpack.c.l.b16 %v3273
      %v3353 = vunpack.c.l.b16 %v3274
      %v3354 = vunpack.c.l.b16 %v3275
      %v3355 = vunpack.c.l.b16 %v3276
      %v3356 = vunpack.c.l.b16 %v3277
      %v3357 = vunpack.c.l.b16 %v3278
      %v3358 = vunpack.c.l.b16 %v3279
      %v3359 = vunpack.c.l.b16 %v3280
      %v3360 = vunpack.c.l.b16 %v3281
      %v3361 = vunpack.c.l.b16 %v3282
      %v3362 = vunpack.c.l.b16 %v3283
      %v3363 = vunpack.c.l.b16 %v3284
      %v3364 = vunpack.c.l.b16 %v3285
      %v3365 = vunpack.c.l.b16 %v3286
      %v3366 = vunpack.c.l.b16 %v3287
      %v3367 = vunpack.c.l.b16 %v3288
      %v3368 = vunpack.c.l.b16 %v3289
      %v3369 = vunpack.c.l.b16 %v3290
      %v3370 = vunpack.c.l.b16 %v3291
      %v3371 = vunpack.c.l.b16 %v3292
      %v3372 = vunpack.c.l.b16 %v3293
      %v3373 = vunpack.c.l.b16 %v3294
      %v3374 = vunpack.c.l.b16 %v3295
      %v3375 = vunpack.c.l.b16 %v3296
      %v3376 = vunpack.c.l.b16 %v3297
      %v3377 = vunpack.c.l.b16 %v3298
      %v3378 = vunpack.c.l.b16 %v3299
      %v3379 = vunpack.c.l.b16 %v3300
      %v3380 = vunpack.c.l.b16 %v3301
      %v3381 = vunpack.c.l.b16 %v3302
      %v3382 = vunpack.c.l.b16 %v3303
      %v3383 = vunpack.c.l.b16 %v3304
      %v3384 = vunpack.c.l.b16 %v3305
      %v3385 = vunpack.c.l.b16 %v3306
      %v3386 = vpack.c.b16 %v3351, %v3350
      %v3387 = vpack.c.b16 %v3353, %v3352
      %v3388 = vpack.c.b16 %v3355, %v3354
      %v3389 = vpack.c.b16 %v3357, %v3356
      %v3390 = vpack.c.b16 %v3359, %v3358
      %v3391 = vpack.c.b16 %v3361, %v3360
      %v3392 = vpack.c.b16 %v3363, %v3362
      %v3393 = vpack.c.b16 %v3365, %v3364
      %v3394 = vpack.c.b16 %v3367, %v3366
      %v3395 = vpack.c.b16 %v3369, %v3368
      %v3396 = vpack.c.b16 %v3371, %v3370
      %v3397 = vpack.c.b16 %v3373, %v3372
      %v3398 = vpack.c.b16 %v3375, %v3374
      %v3399 = vpack.c.b16 %v3377, %v3376
      %v3400 = vpack.c.b16 %v3379, %v3378
      %v3401 = vpack.c.b16 %v3381, %v3380
      %v3402 = vpack.c.b16 %v3383, %v3382
      %v3403 = vpack.c.b16 %v3385, %v3384
      %v3423 = vsel %vm768, %v3158, 0
      %v3426 = vsel %vm768, %v3160, 0
      %v3429 = vsel %vm768, %v3162, 0
      %v3432 = vsel %vm768, %v3164, 0
      %v3435 = vsel %vm768, %v3166, 0
      %v3438 = vsel %vm768, %v3167, 0
      %3440 = vmatprep.subr.bf16.mxu0 0
      %3441 = vmatpush1.bf16.msra.mxu0 %v3393
      %3442 = vmatprep.subr.bf16.mxu0 0
      %3443 = vmatpush1.bf16.msra.mxu0 %v3392
      %3444 = vmatprep.subr.bf16.mxu0 0
      %3445 = vmatpush1.bf16.msra.mxu0 %v3391
      %3446 = vmatprep.subr.bf16.mxu0 0
      %3447 = vmatpush1.bf16.msra.mxu0 %v3390
      %3448 = vmatprep.subr.bf16.mxu0 0
      %3449 = vmatpush1.bf16.msra.mxu0 %v3389
      %3450 = vmatprep.subr.bf16.mxu0 0
      %3451 = vmatpush1.bf16.msra.mxu0 %v3388
      %3452 = vmatprep.subr.bf16.mxu0 0
      %3453 = vmatpush1.bf16.msra.mxu0 %v3387
      %3454 = vmatprep.subr.bf16.mxu0 0
      %3455 = vmatpush1.bf16.msra.mxu0 %v3386
      %3456 = vmatprep.subr.bf16.mxu0 0
      %3457 = vmatpush2.bf16.msra.mxu0 %v3401
      %3458 = vmatprep.subr.bf16.mxu0 0
      %3459 = vmatpush2.bf16.msra.mxu0 %v3400
      %3460 = vmatprep.subr.bf16.mxu0 0
      %3461 = vmatpush2.bf16.msra.mxu0 %v3399
      %3462 = vmatprep.subr.bf16.mxu0 0
      %3463 = vmatpush2.bf16.msra.mxu0 %v3398
      %3464 = vmatprep.subr.bf16.mxu0 0
      %3465 = vmatpush2.bf16.msra.mxu0 %v3397
      %3466 = vmatprep.subr.bf16.mxu0 0
      %3467 = vmatpush2.bf16.msra.mxu0 %v3396
      %3468 = vmatprep.subr.bf16.mxu0 0
      %3469 = vmatpush2.bf16.msra.mxu0 %v3395
      %3470 = vmatprep.subr.bf16.mxu0 0
      %3471 = vmatpush2.bf16.msra.mxu0 %v3394
      %3472 = vmatprep.mubr.bf16.mxu0 %v3252
      %3473 = vmatmul.mubr.bf16.gmra.mxu0 %v3197
      %v3474 = vpop.f32.mrf.mxu0
      %v3475 = vadd.f32 %v3312, %v3474
      %v3476 = vpop.f32.mrf.mxu0
      %v3477 = vpop.f32.mrf.mxu0
      %v3478 = vadd.f32 %v3312, %v3477
      %v3479 = vpop.f32.mrf.mxu0
      %3480 = vmatprep.mubr.bf16.mxu0 %v3255
      %3481 = vmatmul.mubr.bf16.gmra.mxu0 %v3200
      %v3482 = vpop.f32.mrf.mxu0
      %v3483 = vadd.f32 %v3312, %v3482
      %v3484 = vpop.f32.mrf.mxu0
      %v3485 = vpop.f32.mrf.mxu0
      %v3486 = vadd.f32 %v3312, %v3485
      %v3487 = vpop.f32.mrf.mxu0
      %3488 = vmatprep.mubr.bf16.mxu0 %v3258
      %3489 = vmatmul.mubr.bf16.gmra.mxu0 %v3203
      %v3490 = vpop.f32.mrf.mxu0
      %v3491 = vadd.f32 %v3312, %v3490
      %v3492 = vpop.f32.mrf.mxu0
      %v3493 = vpop.f32.mrf.mxu0
      %v3494 = vadd.f32 %v3312, %v3493
      %v3495 = vpop.f32.mrf.mxu0
      %3496 = vmatprep.mubr.bf16.mxu0 %v3261
      %3497 = vmatmul.mubr.bf16.gmra.mxu0 %v3206
      %v3498 = vpop.f32.mrf.mxu0
      %v3499 = vadd.f32 %v3312, %v3498
      %v3500 = vpop.f32.mrf.mxu0
      %v3501 = vpop.f32.mrf.mxu0
      %v3502 = vadd.f32 %v3312, %v3501
      %v3503 = vpop.f32.mrf.mxu0
      %3504 = vmatprep.mubr.bf16.mxu0 %v3264
      %3505 = vmatmul.mubr.bf16.gmra.mxu0 %v3209
      %v3506 = vpop.f32.mrf.mxu0
      %v3507 = vadd.f32 %v3312, %v3506
      %v3508 = vpop.f32.mrf.mxu0
      %v3509 = vpop.f32.mrf.mxu0
      %v3510 = vadd.f32 %v3312, %v3509
      %v3511 = vpop.f32.mrf.mxu0
      %3512 = vmatprep.mubr.bf16.mxu0 %v3267
      %3513 = vmatmul.mubr.bf16.gmra.mxu0 %v3212
      %v3514 = vpop.f32.mrf.mxu0
      %v3515 = vadd.f32 %v3312, %v3514
      %v3516 = vpop.f32.mrf.mxu0
      %v3517 = vpop.f32.mrf.mxu0
      %v3518 = vadd.f32 %v3312, %v3517
      %v3519 = vpop.f32.mrf.mxu0
      %3520 = vmatprep.mubr.bf16.mxu0 %v3269
      %3521 = vmatmul.mubr.bf16.gmra.mxu0 %v3215
      %v3522 = vpop.f32.mrf.mxu0
      %v3523 = vadd.f32 %v3312, %v3522
      %v3524 = vpop.f32.mrf.mxu0
      %v3525 = vpop.f32.mrf.mxu0
      %v3526 = vpop.f32.mrf.mxu0
      %3527 = vdwg.mxu0
      %3528 = vmatprep.subr.bf16.mxu0 0
      %3529 = vmatpush1.bf16.msra.mxu0 0
      %3530 = vmatprep.subr.bf16.mxu0 0
      %3531 = vmatpush1.bf16.msra.mxu0 0
      %3532 = vmatprep.subr.bf16.mxu0 0
      %3533 = vmatpush1.bf16.msra.mxu0 0
      %3534 = vmatprep.subr.bf16.mxu0 0
      %3535 = vmatpush1.bf16.msra.mxu0 0
      %3536 = vmatprep.subr.bf16.mxu0 0
      %3537 = vmatpush1.bf16.msra.mxu0 0
      %3538 = vmatprep.subr.bf16.mxu0 0
      %3539 = vmatpush1.bf16.msra.mxu0 0
      %3540 = vmatprep.subr.bf16.mxu0 0
      %3541 = vmatpush1.bf16.msra.mxu0 %v3403
      %3542 = vmatprep.subr.bf16.mxu0 0
      %3543 = vmatpush1.bf16.msra.mxu0 %v3402
      %3544 = vmatprep.subr.bf16.mxu0 0
      %3545 = vmatpush2.bf16.msra.mxu0 0
      %3546 = vmatprep.subr.bf16.mxu0 0
      %3547 = vmatpush2.bf16.msra.mxu0 0
      %3548 = vmatprep.subr.bf16.mxu0 0
      %3549 = vmatpush2.bf16.msra.mxu0 0
      %3550 = vmatprep.subr.bf16.mxu0 0
      %3551 = vmatpush2.bf16.msra.mxu0 0
      %3552 = vmatprep.subr.bf16.mxu0 0
      %3553 = vmatpush2.bf16.msra.mxu0 0
      %3554 = vmatprep.subr.bf16.mxu0 0
      %3555 = vmatpush2.bf16.msra.mxu0 0
      %3556 = vmatprep.subr.bf16.mxu0 0
      %3557 = vmatpush2.bf16.msra.mxu0 0
      %3558 = vmatprep.subr.bf16.mxu0 0
      %3559 = vmatpush2.bf16.msra.mxu0 0
      %3560 = vmatprep.mubr.bf16.mxu0 0
      %3561 = vmatmul.mubr.bf16.gmra.mxu0 %v3423
      %v3562 = vpop.f32.mrf.mxu0
      %v3563 = vadd.f32 %v3475, %v3562
      %v3564 = vpop.f32.mrf.mxu0
      %v3565 = vpop.f32.mrf.mxu0
      %v3566 = vadd.f32 %v3478, %v3565
      %v3567 = vpop.f32.mrf.mxu0
      %3568 = vmatprep.mubr.bf16.mxu0 0
      %3569 = vmatmul.mubr.bf16.gmra.mxu0 %v3426
      %v3570 = vpop.f32.mrf.mxu0
      %v3571 = vadd.f32 %v3483, %v3570
      %v3572 = vpop.f32.mrf.mxu0
      %v3573 = vpop.f32.mrf.mxu0
      %v3574 = vadd.f32 %v3486, %v3573
      %v3575 = vpop.f32.mrf.mxu0
      %3576 = vmatprep.mubr.bf16.mxu0 0
      %3577 = vmatmul.mubr.bf16.gmra.mxu0 %v3429
      %v3578 = vpop.f32.mrf.mxu0
      %v3579 = vadd.f32 %v3491, %v3578
      %v3580 = vpop.f32.mrf.mxu0
      %v3581 = vpop.f32.mrf.mxu0
      %v3582 = vadd.f32 %v3494, %v3581
      %v3583 = vpop.f32.mrf.mxu0
      %3584 = vmatprep.mubr.bf16.mxu0 0
      %3585 = vmatmul.mubr.bf16.gmra.mxu0 %v3432
      %v3586 = vpop.f32.mrf.mxu0
      %v3587 = vadd.f32 %v3499, %v3586
      %v3588 = vpop.f32.mrf.mxu0
      %v3589 = vpop.f32.mrf.mxu0
      %v3590 = vadd.f32 %v3502, %v3589
      %v3591 = vpop.f32.mrf.mxu0
      %3592 = vmatprep.mubr.bf16.mxu0 0
      %3593 = vmatmul.mubr.bf16.gmra.mxu0 %v3435
      %v3594 = vpop.f32.mrf.mxu0
      %v3595 = vadd.f32 %v3507, %v3594
      %v3596 = vpop.f32.mrf.mxu0
      %v3597 = vpop.f32.mrf.mxu0
      %v3598 = vadd.f32 %v3510, %v3597
      %v3599 = vpop.f32.mrf.mxu0
      %3600 = vmatprep.mubr.bf16.mxu0 0
      %3601 = vmatmul.mubr.bf16.gmra.mxu0 %v3438
      %v3602 = vpop.f32.mrf.mxu0
      %v3603 = vadd.f32 %v3515, %v3602
      %v3604 = vpop.f32.mrf.mxu0
      %v3605 = vpop.f32.mrf.mxu0
      %v3606 = vadd.f32 %v3518, %v3605
      %v3607 = vpop.f32.mrf.mxu0
      %3608 = vmatprep.mubr.bf16.mxu0 0
      %3609 = vmatmul.mubr.bf16.gmra.mxu0 %v2445
      %v3610 = vpop.f32.mrf.mxu0
      %v3611 = vadd.f32 %v3523, %v3610
      %v3612 = vpop.f32.mrf.mxu0
      %v3613 = vpop.f32.mrf.mxu0
      %v3614 = vpop.f32.mrf.mxu0
      %3615 = vdwg.mxu0
      %v3616 = vmul.f32 %v3563, %v3563
      %v3617 = vmul.f32 %v3566, %v3566
      %v3618 = vmul.f32 %v3571, %v3571
      %v3619 = vmul.f32 %v3574, %v3574
      %v3620 = vmul.f32 %v3579, %v3579
      %v3621 = vmul.f32 %v3582, %v3582
      %v3622 = vmul.f32 %v3587, %v3587
      %v3623 = vmul.f32 %v3590, %v3590
      %v3624 = vmul.f32 %v3595, %v3595
      %v3625 = vmul.f32 %v3598, %v3598
      %v3626 = vmul.f32 %v3603, %v3603
      %v3627 = vmul.f32 %v3606, %v3606
      %v3628 = vmul.f32 %v3611, %v3611
      %v3629 = vsel %vm768, %v3616, 0.0
      %3630 = vadd.xlane.f32.xlu0 %v3629
      %v3631 = vpop.xlane.xlu0 %3630
      %v3632 = vsel %vm768, %v3617, 0.0
      %3633 = vadd.xlane.f32.xlu0 %v3632
      %v3634 = vpop.xlane.xlu0 %3633
      %v3635 = vsel %vm768, %v3618, 0.0
      %3636 = vadd.xlane.f32.xlu0 %v3635
      %v3637 = vpop.xlane.xlu0 %3636
      %v3638 = vsel %vm768, %v3619, 0.0
      %3639 = vadd.xlane.f32.xlu0 %v3638
      %v3640 = vpop.xlane.xlu0 %3639
      %v3641 = vsel %vm768, %v3620, 0.0
      %3642 = vadd.xlane.f32.xlu0 %v3641
      %v3643 = vpop.xlane.xlu0 %3642
      %v3644 = vsel %vm768, %v3621, 0.0
      %3645 = vadd.xlane.f32.xlu0 %v3644
      %v3646 = vpop.xlane.xlu0 %3645
      %v3647 = vsel %vm768, %v3622, 0.0
      %3648 = vadd.xlane.f32.xlu0 %v3647
      %v3649 = vpop.xlane.xlu0 %3648
      %v3650 = vsel %vm768, %v3623, 0.0
      %3651 = vadd.xlane.f32.xlu0 %v3650
      %v3652 = vpop.xlane.xlu0 %3651
      %v3653 = vsel %vm768, %v3624, 0.0
      %3654 = vadd.xlane.f32.xlu0 %v3653
      %v3655 = vpop.xlane.xlu0 %3654
      %v3656 = vsel %vm768, %v3625, 0.0
      %3657 = vadd.xlane.f32.xlu0 %v3656
      %v3658 = vpop.xlane.xlu0 %3657
      %v3659 = vsel %vm768, %v3626, 0.0
      %3660 = vadd.xlane.f32.xlu0 %v3659
      %v3661 = vpop.xlane.xlu0 %3660
      %v3662 = vsel %vm768, %v3627, 0.0
      %3663 = vadd.xlane.f32.xlu0 %v3662
      %v3664 = vpop.xlane.xlu0 %3663
      %v3665 = vsel %vm1041, %v3628, 0.0
      %3666 = vadd.xlane.f32.xlu0 %v3665
      %v3667 = vpop.xlane.xlu0 %3666
      %v3668 = vmul.f32 %v3631, %v1045
      %v3669 = vmul.f32 %v3634, %v1045
      %v3670 = vmul.f32 %v3637, %v1045
      %v3671 = vmul.f32 %v3640, %v1045
      %v3672 = vmul.f32 %v3643, %v1045
      %v3673 = vmul.f32 %v3646, %v1045
      %v3674 = vmul.f32 %v3649, %v1045
      %v3675 = vmul.f32 %v3652, %v1045
      %v3676 = vmul.f32 %v3655, %v1045
      %v3677 = vmul.f32 %v3658, %v1045
      %v3678 = vmul.f32 %v3661, %v1045
      %v3679 = vmul.f32 %v3664, %v1045
      %v3680 = vmul.f32 %v3667, %v1045
      %v3681 = vadd.f32 %v3668, 1e-08
      %v3682 = vadd.f32 %v3669, 1e-08
      %v3683 = vadd.f32 %v3670, 1e-08
      %v3684 = vadd.f32 %v3671, 1e-08
      %v3685 = vadd.f32 %v3672, 1e-08
      %v3686 = vadd.f32 %v3673, 1e-08
      %v3687 = vadd.f32 %v3674, 1e-08
      %v3688 = vadd.f32 %v3675, 1e-08
      %v3689 = vadd.f32 %v3676, 1e-08
      %v3690 = vadd.f32 %v3677, 1e-08
      %v3691 = vadd.f32 %v3678, 1e-08
      %v3692 = vadd.f32 %v3679, 1e-08
      %v3693 = vadd.f32 %v3680, 1e-08
      %v3694 = vrsqrt.pop %v3681
      %v3695 = vrsqrt.pop %v3682
      %v3696 = vrsqrt.pop %v3683
      %v3697 = vrsqrt.pop %v3684
      %v3698 = vrsqrt.pop %v3685
      %v3699 = vrsqrt.pop %v3686
      %v3700 = vrsqrt.pop %v3687
      %v3701 = vrsqrt.pop %v3688
      %v3702 = vrsqrt.pop %v3689
      %v3703 = vrsqrt.pop %v3690
      %v3704 = vrsqrt.pop %v3691
      %v3705 = vrsqrt.pop %v3692
      %v3706 = vrsqrt.pop %v3693
      %v3707 = vmul.f32 %v3563, %v3694
      %v3708 = vmul.f32 %v3566, %v3695
      %v3709 = vmul.f32 %v3571, %v3696
      %v3710 = vmul.f32 %v3574, %v3697
      %v3711 = vmul.f32 %v3579, %v3698
      %v3712 = vmul.f32 %v3582, %v3699
      %v3713 = vmul.f32 %v3587, %v3700
      %v3714 = vmul.f32 %v3590, %v3701
      %v3715 = vmul.f32 %v3595, %v3702
      %v3716 = vmul.f32 %v3598, %v3703
      %v3717 = vmul.f32 %v3603, %v3704
      %v3718 = vmul.f32 %v3606, %v3705
      %v3719 = vmul.f32 %v3611, %v3706
      %vm3720 = vcmp.gt.f32.partialorder %v3707, 0.0
      %vm3721 = vcmp.gt.f32.partialorder %v3708, 0.0
      %vm3722 = vcmp.gt.f32.partialorder %v3709, 0.0
      %vm3723 = vcmp.gt.f32.partialorder %v3710, 0.0
      %vm3724 = vcmp.gt.f32.partialorder %v3711, 0.0
      %vm3725 = vcmp.gt.f32.partialorder %v3712, 0.0
      %vm3726 = vcmp.gt.f32.partialorder %v3713, 0.0
      %vm3727 = vcmp.gt.f32.partialorder %v3714, 0.0
      %vm3728 = vcmp.gt.f32.partialorder %v3715, 0.0
      %vm3729 = vcmp.gt.f32.partialorder %v3716, 0.0
      %vm3730 = vcmp.gt.f32.partialorder %v3717, 0.0
      %vm3731 = vcmp.gt.f32.partialorder %v3718, 0.0
      %vm3732 = vcmp.gt.f32.partialorder %v3719, 0.0
      %v3733 = vmul.f32 %v3707, 0.2
      %v3734 = vmul.f32 %v3708, 0.2
      %v3735 = vmul.f32 %v3709, 0.2
      %v3736 = vmul.f32 %v3710, 0.2
      %v3737 = vmul.f32 %v3711, 0.2
      %v3738 = vmul.f32 %v3712, 0.2
      %v3739 = vmul.f32 %v3713, 0.2
      %v3740 = vmul.f32 %v3714, 0.2
      %v3741 = vmul.f32 %v3715, 0.2
      %v3742 = vmul.f32 %v3716, 0.2
      %v3743 = vmul.f32 %v3717, 0.2
      %v3744 = vmul.f32 %v3718, 0.2
      %v3745 = vmul.f32 %v3719, 0.2
      %v3746 = vsel %vm3720, %v3707, %v3733
      %v3747 = vsel %vm3721, %v3708, %v3734
      %v3748 = vsel %vm3722, %v3709, %v3735
      %v3749 = vsel %vm3723, %v3710, %v3736
      %v3750 = vsel %vm3724, %v3711, %v3737
      %v3751 = vsel %vm3725, %v3712, %v3738
      %v3752 = vsel %vm3726, %v3713, %v3739
      %v3753 = vsel %vm3727, %v3714, %v3740
      %v3754 = vsel %vm3728, %v3715, %v3741
      %v3755 = vsel %vm3729, %v3716, %v3742
      %v3756 = vsel %vm3730, %v3717, %v3743
      %v3757 = vsel %vm3731, %v3718, %v3744
      %v3758 = vsel %vm3732, %v3719, %v3745
      %v3759 = vmul.f32 %v3746, %v2769
      %v3760 = vmul.f32 %v3747, %v2774
      %v3761 = vmul.f32 %v3748, %v2779
      %v3762 = vmul.f32 %v3749, %v2784
      %v3763 = vmul.f32 %v3750, %v2789
      %v3764 = vmul.f32 %v3751, %v2794
      %v3765 = vmul.f32 %v3752, %v2799
      %v3766 = vmul.f32 %v3753, %v2804
      %v3767 = vmul.f32 %v3754, %v2809
      %v3768 = vmul.f32 %v3755, %v2814
      %v3769 = vmul.f32 %v3756, %v2819
      %v3770 = vmul.f32 %v3757, %v2824
      %v3771 = vmul.f32 %v3758, %v2829
      %v3772 = vld [vmem:[%s13] sm:$0xf]
      %v3773 = vld [vmem:[%s13 + $0x4] sm:$0xf]
      %v3774 = vld [vmem:[%s13 + $0x8] sm:$0xf]
      %v3775 = vld [vmem:[%s13 + $0xc] sm:$0xf]
      %v3776 = vld [vmem:[%s13 + $0x10] sm:$0xf]
      %v3777 = vld [vmem:[%s13 + $0x14] sm:$0xf]
      %v3778 = vld [vmem:[%s13 + $0x18] sm:$0xf]
      %v3779 = vld [vmem:[%s13 + $0x1c] sm:$0xf]
      %v3780 = vld [vmem:[%s13 + $0x20] sm:$0xf]
      %v3781 = vld [vmem:[%s13 + $0x24] sm:$0xf]
      %v3782 = vld [vmem:[%s13 + $0x28] sm:$0xf]
      %v3783 = vld [vmem:[%s13 + $0x2c] sm:$0xf]
      %v3784 = vld [vmem:[%s13 + $0x30] sm:$0xf]
      %v3785 = vld [vmem:[%s13 + $0x34] sm:$0xf]
      %v3786 = vld [vmem:[%s13 + $0x38] sm:$0xf]
      %v3787 = vld [vmem:[%s13 + $0x3c] sm:$0xf]
      %v3788 = vld [vmem:[%s13 + $0x40] sm:$0xf]
      %v3789 = vld [vmem:[%s13 + $0x44] sm:$0xf]
      %v3790 = vld [vmem:[%s13 + $0x48] sm:$0xf]
      %v3791 = vld [vmem:[%s13 + $0x4c] sm:$0xf]
      %v3792 = vld [vmem:[%s13 + $0x50] sm:$0xf]
      %v3793 = vld [vmem:[%s13 + $0x54] sm:$0xf]
      %v3794 = vld [vmem:[%s13 + $0x58] sm:$0xf]
      %v3795 = vld [vmem:[%s13 + $0x5c] sm:$0xf]
      %v3796 = vld [vmem:[%s13 + $0x60] sm:$0xf]
      %v3797 = vld [vmem:[%s13 + $0x64] sm:$0xf]
      %v3798 = vld [vmem:[%s13 + $0x68] sm:$0xf]
      %v3799 = vld [vmem:[%s13 + $0x6c] sm:$0xf]
      %v3800 = vld [vmem:[%s13 + $0x70] sm:$0xf]
      %v3801 = vld [vmem:[%s13 + $0x74] sm:$0xf]
      %v3802 = vld [vmem:[%s13 + $0x78] sm:$0xf]
      %v3803 = vld [vmem:[%s13 + $0x7c] sm:$0xf]
      %v3804 = vld [vmem:[%s13 + $0x80] sm:$0xf]
      %v3805 = vld [vmem:[%s13 + $0x84] sm:$0xf]
      %v3806 = vld [vmem:[%s13 + $0x88] sm:$0xf]
      %v3807 = vld [vmem:[%s13 + $0x8c] sm:$0xf]
      %v3808 = vld [vmem:[%s13 + $0x90] sm:$0xf]
      %v3809 = vld [vmem:[%s13 + $0x94] sm:$0xf]
      %v3810 = vld [vmem:[%s13 + $0x98] sm:$0xf]
      %v3811 = vld [vmem:[%s13 + $0x9c] sm:$0xf]
      %v3812 = vld [vmem:[%s13 + $0xa0] sm:$0x3]
      %v3813 = vpack.c.bf16 %v3760, %v3759
      %v3814 = vpack.c.bf16 %v3762, %v3761
      %v3815 = vpack.c.bf16 %v3764, %v3763
      %v3816 = vpack.c.bf16 %v3766, %v3765
      %v3817 = vpack.c.bf16 %v3768, %v3767
      %v3818 = vpack.c.bf16 %v3770, %v3769
      %v3819 = vpack.c.bf16 %v3771, %v3771
      %v3861 = vunpack.c.l.b16 %v3772
      %v3862 = vunpack.c.l.b16 %v3773
      %v3863 = vunpack.c.l.b16 %v3774
      %v3864 = vunpack.c.l.b16 %v3775
      %v3865 = vunpack.c.l.b16 %v3776
      %v3866 = vunpack.c.l.b16 %v3777
      %v3867 = vunpack.c.l.b16 %v3778
      %v3868 = vunpack.c.l.b16 %v3779
      %v3869 = vunpack.c.l.b16 %v3780
      %v3870 = vunpack.c.l.b16 %v3781
      %v3871 = vunpack.c.l.b16 %v3782
      %v3872 = vunpack.c.l.b16 %v3783
      %v3873 = vunpack.c.l.b16 %v3784
      %v3874 = vunpack.c.l.b16 %v3785
      %v3875 = vunpack.c.l.b16 %v3786
      %v3876 = vunpack.c.l.b16 %v3787
      %v3877 = vunpack.c.l.b16 %v3788
      %v3878 = vunpack.c.l.b16 %v3789
      %v3879 = vunpack.c.l.b16 %v3790
      %v3880 = vunpack.c.l.b16 %v3791
      %v3881 = vunpack.c.l.b16 %v3792
      %v3882 = vunpack.c.l.b16 %v3793
      %v3883 = vunpack.c.l.b16 %v3794
      %v3884 = vunpack.c.l.b16 %v3795
      %v3885 = vunpack.c.l.b16 %v3796
      %v3886 = vunpack.c.l.b16 %v3797
      %v3887 = vunpack.c.l.b16 %v3798
      %v3888 = vunpack.c.l.b16 %v3799
      %v3889 = vunpack.c.l.b16 %v3800
      %v3890 = vunpack.c.l.b16 %v3801
      %v3891 = vunpack.c.l.b16 %v3802
      %v3892 = vunpack.c.l.b16 %v3803
      %v3893 = vunpack.c.l.b16 %v3804
      %v3894 = vunpack.c.l.b16 %v3805
      %v3895 = vunpack.c.l.b16 %v3806
      %v3896 = vunpack.c.l.b16 %v3807
      %v3897 = vunpack.c.l.b16 %v3808
      %v3898 = vunpack.c.l.b16 %v3809
      %v3899 = vunpack.c.l.b16 %v3810
      %v3900 = vunpack.c.l.b16 %v3811
      %v3901 = vunpack.c.l.b16 %v3812
      %v3902 = vpack.c.b16 %v3862, %v3861
      %v3903 = vpack.c.b16 %v3864, %v3863
      %v3904 = vpack.c.b16 %v3866, %v3865
      %v3905 = vpack.c.b16 %v3868, %v3867
      %v3906 = vpack.c.b16 %v3870, %v3869
      %v3907 = vpack.c.b16 %v3872, %v3871
      %v3908 = vpack.c.b16 %v3874, %v3873
      %v3909 = vpack.c.b16 %v3876, %v3875
      %v3910 = vpack.c.b16 %v3878, %v3877
      %v3911 = vpack.c.b16 %v3880, %v3879
      %v3912 = vpack.c.b16 %v3882, %v3881
      %v3913 = vpack.c.b16 %v3884, %v3883
      %v3914 = vpack.c.b16 %v3886, %v3885
      %v3915 = vpack.c.b16 %v3888, %v3887
      %v3916 = vpack.c.b16 %v3890, %v3889
      %v3917 = vpack.c.b16 %v3892, %v3891
      %v3918 = vpack.c.b16 %v3894, %v3893
      %v3919 = vpack.c.b16 %v3896, %v3895
      %v3920 = vpack.c.b16 %v3898, %v3897
      %v3921 = vpack.c.b16 %v3900, %v3899
      %v3922 = vpack.c.b16 %v3901, %v3901
      %vm3923 = vcmask 818176
      %v3925 = vsel %vm3923, %v3902, 0
      %v3928 = vsel %vm3923, %v3903, 0
      %v3931 = vsel %vm3923, %v3904, 0
      %v3934 = vsel %vm3923, %v3905, 0
      %v3937 = vsel %vm3923, %v3906, 0
      %v3940 = vsel %vm3923, %v3907, 0
      %v3943 = vsel %vm3923, %v3908, 0
      %v3946 = vsel %vm3923, %v3909, 0
      %v3949 = vsel %vm3923, %v3910, 0
      %v3952 = vsel %vm3923, %v3911, 0
      %v3955 = vsel %vm3923, %v3912, 0
      %v3958 = vsel %vm3923, %v3913, 0
      %v3961 = vsel %vm3923, %v3914, 0
      %v3964 = vsel %vm3923, %v3915, 0
      %v3967 = vsel %vm3923, %v3916, 0
      %v3970 = vsel %vm3923, %v3917, 0
      %v3973 = vsel %vm3923, %v3918, 0
      %v3976 = vsel %vm3923, %v3919, 0
      %v3979 = vsel %vm3923, %v3920, 0
      %v3982 = vsel %vm3923, %v3921, 0
      %v3985 = vsel %vm3923, %v3922, 0
      %v3988 = vsel %vm1726, %v3819, 0
      %3990 = vmatprep.subr.bf16.mxu0 0
      %3991 = vmatpush1.bf16.msra.mxu0 0
      %3992 = vmatprep.subr.bf16.mxu0 0
      %3993 = vmatpush1.bf16.msra.mxu0 %v3988
      %3994 = vmatprep.subr.bf16.mxu0 0
      %3995 = vmatpush1.bf16.msra.mxu0 %v3818
      %3996 = vmatprep.subr.bf16.mxu0 0
      %3997 = vmatpush1.bf16.msra.mxu0 %v3817
      %3998 = vmatprep.subr.bf16.mxu0 0
      %3999 = vmatpush1.bf16.msra.mxu0 %v3816
      %4000 = vmatprep.subr.bf16.mxu0 0
      %4001 = vmatpush1.bf16.msra.mxu0 %v3815
      %4002 = vmatprep.subr.bf16.mxu0 0
      %4003 = vmatpush1.bf16.msra.mxu0 %v3814
      %4004 = vmatprep.subr.bf16.mxu0 0
      %4005 = vmatpush1.bf16.msra.mxu0 %v3813
      %4006 = vmatprep.subr.bf16.mxu0 0
      %4007 = vmatpush2.bf16.msra.mxu0 0
      %4008 = vmatprep.subr.bf16.mxu0 0
      %4009 = vmatpush2.bf16.msra.mxu0 0
      %4010 = vmatprep.subr.bf16.mxu0 0
      %4011 = vmatpush2.bf16.msra.mxu0 0
      %4012 = vmatprep.subr.bf16.mxu0 0
      %4013 = vmatpush2.bf16.msra.mxu0 0
      %4014 = vmatprep.subr.bf16.mxu0 0
      %4015 = vmatpush2.bf16.msra.mxu0 0
      %4016 = vmatprep.subr.bf16.mxu0 0
      %4017 = vmatpush2.bf16.msra.mxu0 0
      %4018 = vmatprep.subr.bf16.mxu0 0
      %4019 = vmatpush2.bf16.msra.mxu0 0
      %4020 = vmatprep.subr.bf16.mxu0 0
      %4021 = vmatpush2.bf16.msra.mxu0 0
      %4022 = vmatprep.mubr.bf16.mxu0 0
      %4023 = vmatmul.mubr.bf16.gmra.mxu0 %v3925
      %v4024 = vpop.f32.mrf.mxu0
      %v4025 = vadd.f32 0.0, %v4024
      %v4026 = vpop.f32.mrf.mxu0
      %v4027 = vpop.f32.mrf.mxu0
      %v4028 = vadd.f32 0.0, %v4027
      %v4029 = vpop.f32.mrf.mxu0
      %4030 = vmatprep.mubr.bf16.mxu0 0
      %4031 = vmatmul.mubr.bf16.gmra.mxu0 %v3928
      %v4032 = vpop.f32.mrf.mxu0
      %v4033 = vadd.f32 0.0, %v4032
      %v4034 = vpop.f32.mrf.mxu0
      %v4035 = vpop.f32.mrf.mxu0
      %v4036 = vadd.f32 0.0, %v4035
      %v4037 = vpop.f32.mrf.mxu0
      %4038 = vmatprep.mubr.bf16.mxu0 0
      %4039 = vmatmul.mubr.bf16.gmra.mxu0 %v3931
      %v4040 = vpop.f32.mrf.mxu0
      %v4041 = vadd.f32 0.0, %v4040
      %v4042 = vpop.f32.mrf.mxu0
      %v4043 = vpop.f32.mrf.mxu0
      %v4044 = vadd.f32 0.0, %v4043
      %v4045 = vpop.f32.mrf.mxu0
      %4046 = vmatprep.mubr.bf16.mxu0 0
      %4047 = vmatmul.mubr.bf16.gmra.mxu0 %v3934
      %v4048 = vpop.f32.mrf.mxu0
      %v4049 = vadd.f32 0.0, %v4048
      %v4050 = vpop.f32.mrf.mxu0
      %v4051 = vpop.f32.mrf.mxu0
      %v4052 = vadd.f32 0.0, %v4051
      %v4053 = vpop.f32.mrf.mxu0
      %4054 = vmatprep.mubr.bf16.mxu0 0
      %4055 = vmatmul.mubr.bf16.gmra.mxu0 %v3937
      %v4056 = vpop.f32.mrf.mxu0
      %v4057 = vadd.f32 0.0, %v4056
      %v4058 = vpop.f32.mrf.mxu0
      %v4059 = vpop.f32.mrf.mxu0
      %v4060 = vadd.f32 0.0, %v4059
      %v4061 = vpop.f32.mrf.mxu0
      %4062 = vmatprep.mubr.bf16.mxu0 0
      %4063 = vmatmul.mubr.bf16.gmra.mxu0 %v3940
      %v4064 = vpop.f32.mrf.mxu0
      %v4065 = vadd.f32 0.0, %v4064
      %v4066 = vpop.f32.mrf.mxu0
      %v4067 = vpop.f32.mrf.mxu0
      %v4068 = vadd.f32 0.0, %v4067
      %v4069 = vpop.f32.mrf.mxu0
      %4070 = vmatprep.mubr.bf16.mxu0 0
      %4071 = vmatmul.mubr.bf16.gmra.mxu0 %v3943
      %v4072 = vpop.f32.mrf.mxu0
      %v4073 = vadd.f32 0.0, %v4072
      %v4074 = vpop.f32.mrf.mxu0
      %v4075 = vpop.f32.mrf.mxu0
      %v4076 = vadd.f32 0.0, %v4075
      %v4077 = vpop.f32.mrf.mxu0
      %4078 = vmatprep.mubr.bf16.mxu0 0
      %4079 = vmatmul.mubr.bf16.gmra.mxu0 %v3946
      %v4080 = vpop.f32.mrf.mxu0
      %v4081 = vadd.f32 0.0, %v4080
      %v4082 = vpop.f32.mrf.mxu0
      %v4083 = vpop.f32.mrf.mxu0
      %v4084 = vadd.f32 0.0, %v4083
      %v4085 = vpop.f32.mrf.mxu0
      %4086 = vmatprep.mubr.bf16.mxu0 0
      %4087 = vmatmul.mubr.bf16.gmra.mxu0 %v3949
      %v4088 = vpop.f32.mrf.mxu0
      %v4089 = vadd.f32 0.0, %v4088
      %v4090 = vpop.f32.mrf.mxu0
      %v4091 = vpop.f32.mrf.mxu0
      %v4092 = vadd.f32 0.0, %v4091
      %v4093 = vpop.f32.mrf.mxu0
      %4094 = vmatprep.mubr.bf16.mxu0 0
      %4095 = vmatmul.mubr.bf16.gmra.mxu0 %v3952
      %v4096 = vpop.f32.mrf.mxu0
      %v4097 = vadd.f32 0.0, %v4096
      %v4098 = vpop.f32.mrf.mxu0
      %v4099 = vpop.f32.mrf.mxu0
      %v4100 = vadd.f32 0.0, %v4099
      %v4101 = vpop.f32.mrf.mxu0
      %4102 = vmatprep.mubr.bf16.mxu0 0
      %4103 = vmatmul.mubr.bf16.gmra.mxu0 %v3955
      %v4104 = vpop.f32.mrf.mxu0
      %v4105 = vadd.f32 0.0, %v4104
      %v4106 = vpop.f32.mrf.mxu0
      %v4107 = vpop.f32.mrf.mxu0
      %v4108 = vadd.f32 0.0, %v4107
      %v4109 = vpop.f32.mrf.mxu0
      %4110 = vmatprep.mubr.bf16.mxu0 0
      %4111 = vmatmul.mubr.bf16.gmra.mxu0 %v3958
      %v4112 = vpop.f32.mrf.mxu0
      %v4113 = vadd.f32 0.0, %v4112
      %v4114 = vpop.f32.mrf.mxu0
      %v4115 = vpop.f32.mrf.mxu0
      %v4116 = vadd.f32 0.0, %v4115
      %v4117 = vpop.f32.mrf.mxu0
      %4118 = vmatprep.mubr.bf16.mxu0 0
      %4119 = vmatmul.mubr.bf16.gmra.mxu0 %v3961
      %v4120 = vpop.f32.mrf.mxu0
      %v4121 = vadd.f32 0.0, %v4120
      %v4122 = vpop.f32.mrf.mxu0
      %v4123 = vpop.f32.mrf.mxu0
      %v4124 = vadd.f32 0.0, %v4123
      %v4125 = vpop.f32.mrf.mxu0
      %4126 = vmatprep.mubr.bf16.mxu0 0
      %4127 = vmatmul.mubr.bf16.gmra.mxu0 %v3964
      %v4128 = vpop.f32.mrf.mxu0
      %v4129 = vadd.f32 0.0, %v4128
      %v4130 = vpop.f32.mrf.mxu0
      %v4131 = vpop.f32.mrf.mxu0
      %v4132 = vadd.f32 0.0, %v4131
      %v4133 = vpop.f32.mrf.mxu0
      %4134 = vmatprep.mubr.bf16.mxu0 0
      %4135 = vmatmul.mubr.bf16.gmra.mxu0 %v3967
      %v4136 = vpop.f32.mrf.mxu0
      %v4137 = vadd.f32 0.0, %v4136
      %v4138 = vpop.f32.mrf.mxu0
      %v4139 = vpop.f32.mrf.mxu0
      %v4140 = vadd.f32 0.0, %v4139
      %v4141 = vpop.f32.mrf.mxu0
      %4142 = vmatprep.mubr.bf16.mxu0 0
      %4143 = vmatmul.mubr.bf16.gmra.mxu0 %v3970
      %v4144 = vpop.f32.mrf.mxu0
      %v4145 = vadd.f32 0.0, %v4144
      %v4146 = vpop.f32.mrf.mxu0
      %v4147 = vpop.f32.mrf.mxu0
      %v4148 = vadd.f32 0.0, %v4147
      %v4149 = vpop.f32.mrf.mxu0
      %4150 = vmatprep.mubr.bf16.mxu0 0
      %4151 = vmatmul.mubr.bf16.gmra.mxu0 %v3973
      %v4152 = vpop.f32.mrf.mxu0
      %v4153 = vadd.f32 0.0, %v4152
      %v4154 = vpop.f32.mrf.mxu0
      %v4155 = vpop.f32.mrf.mxu0
      %v4156 = vadd.f32 0.0, %v4155
      %v4157 = vpop.f32.mrf.mxu0
      %4158 = vmatprep.mubr.bf16.mxu0 0
      %4159 = vmatmul.mubr.bf16.gmra.mxu0 %v3976
      %v4160 = vpop.f32.mrf.mxu0
      %v4161 = vadd.f32 0.0, %v4160
      %v4162 = vpop.f32.mrf.mxu0
      %v4163 = vpop.f32.mrf.mxu0
      %v4164 = vadd.f32 0.0, %v4163
      %v4165 = vpop.f32.mrf.mxu0
      %4166 = vmatprep.mubr.bf16.mxu0 0
      %4167 = vmatmul.mubr.bf16.gmra.mxu0 %v3979
      %v4168 = vpop.f32.mrf.mxu0
      %v4169 = vadd.f32 0.0, %v4168
      %v4170 = vpop.f32.mrf.mxu0
      %v4171 = vpop.f32.mrf.mxu0
      %v4172 = vadd.f32 0.0, %v4171
      %v4173 = vpop.f32.mrf.mxu0
      %4174 = vmatprep.mubr.bf16.mxu0 0
      %4175 = vmatmul.mubr.bf16.gmra.mxu0 %v3982
      %v4176 = vpop.f32.mrf.mxu0
      %v4177 = vadd.f32 0.0, %v4176
      %v4178 = vpop.f32.mrf.mxu0
      %v4179 = vpop.f32.mrf.mxu0
      %v4180 = vadd.f32 0.0, %v4179
      %v4181 = vpop.f32.mrf.mxu0
      %4182 = vmatprep.mubr.bf16.mxu0 0
      %4183 = vmatmul.mubr.bf16.gmra.mxu0 %v3985
      %v4184 = vpop.f32.mrf.mxu0
      %v4185 = vadd.f32 0.0, %v4184
      %v4186 = vpop.f32.mrf.mxu0
      %v4187 = vpop.f32.mrf.mxu0
      %v4188 = vpop.f32.mrf.mxu0
      %4189 = vdwg.mxu0
      %v4190 = vld [vmem:[%s18] sm:$0xff]
      %v4191 = vld [vmem:[%s18 + $0x8] sm:$0xff]
      %v4192 = vld [vmem:[%s18 + $0x10] sm:$0xff]
      %v4193 = vld [vmem:[%s18 + $0x18] sm:$0xff]
      %v4194 = vld [vmem:[%s18 + $0x20] sm:$0xff]
      %v4195 = vld [vmem:[%s18 + $0x28] sm:$0xff]
      %v4196 = vld [vmem:[%s18 + $0x30] sm:$0xff]
      %v4197 = vld [vmem:[%s18 + $0x38] sm:$0xff]
      %v4198 = vld [vmem:[%s18 + $0x40] sm:$0xff]
      %v4199 = vld [vmem:[%s18 + $0x48] sm:$0xff]
      %v4200 = vld [vmem:[%s18 + $0x50] sm:$0xff]
      %v4201 = vld [vmem:[%s18 + $0x58] sm:$0xff]
      %v4202 = vld [vmem:[%s18 + $0x60] sm:$0xff]
      %v4203 = vld [vmem:[%s18 + $0x68] sm:$0xff]
      %v4204 = vld [vmem:[%s18 + $0x70] sm:$0xff]
      %v4205 = vld [vmem:[%s18 + $0x78] sm:$0xff]
      %v4206 = vld [vmem:[%s18 + $0x80] sm:$0xff]
      %v4207 = vld [vmem:[%s18 + $0x88] sm:$0xff]
      %v4208 = vld [vmem:[%s18 + $0x90] sm:$0xff]
      %v4209 = vld [vmem:[%s18 + $0x98] sm:$0xff]
      %v4210 = vld [vmem:[%s18 + $0xa0] sm:$0xff]
      %v4211 = vld [vmem:[%s18 + $0xa8] sm:$0xff]
      %v4212 = vld [vmem:[%s18 + $0xb0] sm:$0xff]
      %v4213 = vld [vmem:[%s18 + $0xb8] sm:$0xff]
      %v4214 = vld [vmem:[%s18 + $0xc0] sm:$0xff]
      %v4215 = vld [vmem:[%s18 + $0xc8] sm:$0xff]
      %v4216 = vld [vmem:[%s18 + $0xd0] sm:$0xff]
      %v4217 = vld [vmem:[%s18 + $0xd8] sm:$0xff]
      %v4218 = vld [vmem:[%s18 + $0xe0] sm:$0xff]
      %v4219 = vld [vmem:[%s18 + $0xe8] sm:$0xff]
      %v4220 = vld [vmem:[%s18 + $0xf0] sm:$0xff]
      %v4221 = vld [vmem:[%s18 + $0xf8] sm:$0xff]
      %v4222 = vld [vmem:[%s18 + $0x100] sm:$0xff]
      %v4223 = vld [vmem:[%s18 + $0x108] sm:$0xff]
      %v4224 = vld [vmem:[%s18 + $0x110] sm:$0xff]
      %v4225 = vld [vmem:[%s18 + $0x118] sm:$0xff]
      %v4226 = vld [vmem:[%s18 + $0x120] sm:$0xff]
      %v4227 = vld [vmem:[%s18 + $0x128] sm:$0xff]
      %v4228 = vld [vmem:[%s18 + $0x130] sm:$0xff]
      %v4229 = vld [vmem:[%s18 + $0x138] sm:$0xff]
      %v4230 = vld [vmem:[%s18 + $0x140] sm:$0xf]
      %v4231 = vpack.c.bf16 %v4028, %v4025
      %v4232 = vpack.c.bf16 %v4036, %v4033
      %v4233 = vpack.c.bf16 %v4044, %v4041
      %v4234 = vpack.c.bf16 %v4052, %v4049
      %v4235 = vpack.c.bf16 %v4060, %v4057
      %v4236 = vpack.c.bf16 %v4068, %v4065
      %v4237 = vpack.c.bf16 %v4076, %v4073
      %v4238 = vpack.c.bf16 %v4084, %v4081
      %v4239 = vpack.c.bf16 %v4092, %v4089
      %v4240 = vpack.c.bf16 %v4100, %v4097
      %v4241 = vpack.c.bf16 %v4108, %v4105
      %v4242 = vpack.c.bf16 %v4116, %v4113
      %v4243 = vpack.c.bf16 %v4124, %v4121
      %v4244 = vpack.c.bf16 %v4132, %v4129
      %v4245 = vpack.c.bf16 %v4140, %v4137
      %v4246 = vpack.c.bf16 %v4148, %v4145
      %v4247 = vpack.c.bf16 %v4156, %v4153
      %v4248 = vpack.c.bf16 %v4164, %v4161
      %v4249 = vpack.c.bf16 %v4172, %v4169
      %v4250 = vpack.c.bf16 %v4180, %v4177
      %v4251 = vpack.c.bf16 %v4185, %v4185
      %v4253 = vshrl.u32 %v4231, 16
      %v4255 = vrot.slane %v4253, 6
      %v4256 = vshll.u32 %v4231, 16
      %v4258 = vrot.slane %v4256, 7
      %v4259 = vor.u32 %v4255, %v4258
      %v4261 = vshrl.u32 %v4232, 16
      %v4263 = vrot.slane %v4261, 6
      %v4264 = vshll.u32 %v4232, 16
      %v4266 = vrot.slane %v4264, 7
      %v4267 = vor.u32 %v4263, %v4266
      %v4268 = vsel %vm1246, %v4259, %v4267
      %v4270 = vshrl.u32 %v4233, 16
      %v4272 = vrot.slane %v4270, 6
      %v4273 = vshll.u32 %v4233, 16
      %v4275 = vrot.slane %v4273, 7
      %v4276 = vor.u32 %v4272, %v4275
      %v4277 = vsel %vm1246, %v4267, %v4276
      %v4279 = vshrl.u32 %v4234, 16
      %v4281 = vrot.slane %v4279, 6
      %v4282 = vshll.u32 %v4234, 16
      %v4284 = vrot.slane %v4282, 7
      %v4285 = vor.u32 %v4281, %v4284
      %v4286 = vsel %vm1246, %v4276, %v4285
      %v4288 = vshrl.u32 %v4235, 16
      %v4290 = vrot.slane %v4288, 6
      %v4291 = vshll.u32 %v4235, 16
      %v4293 = vrot.slane %v4291, 7
      %v4294 = vor.u32 %v4290, %v4293
      %v4295 = vsel %vm1246, %v4285, %v4294
      %v4297 = vshrl.u32 %v4236, 16
      %v4299 = vrot.slane %v4297, 6
      %v4300 = vshll.u32 %v4236, 16
      %v4302 = vrot.slane %v4300, 7
      %v4303 = vor.u32 %v4299, %v4302
      %v4304 = vsel %vm1246, %v4294, %v4303
      %v4306 = vshrl.u32 %v4237, 16
      %v4308 = vrot.slane %v4306, 6
      %v4309 = vshll.u32 %v4237, 16
      %v4311 = vrot.slane %v4309, 7
      %v4312 = vor.u32 %v4308, %v4311
      %v4313 = vsel %vm1246, %v4303, %v4312
      %v4315 = vshrl.u32 %v4238, 16
      %v4317 = vrot.slane %v4315, 6
      %v4318 = vshll.u32 %v4238, 16
      %v4320 = vrot.slane %v4318, 7
      %v4321 = vor.u32 %v4317, %v4320
      %v4322 = vsel %vm1246, %v4312, %v4321
      %v4324 = vshrl.u32 %v4239, 16
      %v4326 = vrot.slane %v4324, 6
      %v4327 = vshll.u32 %v4239, 16
      %v4329 = vrot.slane %v4327, 7
      %v4330 = vor.u32 %v4326, %v4329
      %v4331 = vsel %vm1246, %v4321, %v4330
      %v4333 = vshrl.u32 %v4240, 16
      %v4335 = vrot.slane %v4333, 6
      %v4336 = vshll.u32 %v4240, 16
      %v4338 = vrot.slane %v4336, 7
      %v4339 = vor.u32 %v4335, %v4338
      %v4340 = vsel %vm1246, %v4330, %v4339
      %v4342 = vshrl.u32 %v4241, 16
      %v4344 = vrot.slane %v4342, 6
      %v4345 = vshll.u32 %v4241, 16
      %v4347 = vrot.slane %v4345, 7
      %v4348 = vor.u32 %v4344, %v4347
      %v4349 = vsel %vm1246, %v4339, %v4348
      %v4351 = vshrl.u32 %v4242, 16
      %v4353 = vrot.slane %v4351, 6
      %v4354 = vshll.u32 %v4242, 16
      %v4356 = vrot.slane %v4354, 7
      %v4357 = vor.u32 %v4353, %v4356
      %v4358 = vsel %vm1246, %v4348, %v4357
      %v4360 = vshrl.u32 %v4243, 16
      %v4362 = vrot.slane %v4360, 6
      %v4363 = vshll.u32 %v4243, 16
      %v4365 = vrot.slane %v4363, 7
      %v4366 = vor.u32 %v4362, %v4365
      %v4367 = vsel %vm1246, %v4357, %v4366
      %v4369 = vshrl.u32 %v4244, 16
      %v4371 = vrot.slane %v4369, 6
      %v4372 = vshll.u32 %v4244, 16
      %v4374 = vrot.slane %v4372, 7
      %v4375 = vor.u32 %v4371, %v4374
      %v4376 = vsel %vm1246, %v4366, %v4375
      %v4378 = vshrl.u32 %v4245, 16
      %v4380 = vrot.slane %v4378, 6
      %v4381 = vshll.u32 %v4245, 16
      %v4383 = vrot.slane %v4381, 7
      %v4384 = vor.u32 %v4380, %v4383
      %v4385 = vsel %vm1246, %v4375, %v4384
      %v4387 = vshrl.u32 %v4246, 16
      %v4389 = vrot.slane %v4387, 6
      %v4390 = vshll.u32 %v4246, 16
      %v4392 = vrot.slane %v4390, 7
      %v4393 = vor.u32 %v4389, %v4392
      %v4394 = vsel %vm1246, %v4384, %v4393
      %v4396 = vshrl.u32 %v4247, 16
      %v4398 = vrot.slane %v4396, 6
      %v4399 = vshll.u32 %v4247, 16
      %v4401 = vrot.slane %v4399, 7
      %v4402 = vor.u32 %v4398, %v4401
      %v4403 = vsel %vm1246, %v4393, %v4402
      %v4405 = vshrl.u32 %v4248, 16
      %v4407 = vrot.slane %v4405, 6
      %v4408 = vshll.u32 %v4248, 16
      %v4410 = vrot.slane %v4408, 7
      %v4411 = vor.u32 %v4407, %v4410
      %v4412 = vsel %vm1246, %v4402, %v4411
      %v4414 = vshrl.u32 %v4249, 16
      %v4416 = vrot.slane %v4414, 6
      %v4417 = vshll.u32 %v4249, 16
      %v4419 = vrot.slane %v4417, 7
      %v4420 = vor.u32 %v4416, %v4419
      %v4421 = vsel %vm1246, %v4411, %v4420
      %v4423 = vshrl.u32 %v4250, 16
      %v4425 = vrot.slane %v4423, 6
      %v4426 = vshll.u32 %v4250, 16
      %v4428 = vrot.slane %v4426, 7
      %v4429 = vor.u32 %v4425, %v4428
      %v4430 = vsel %vm1246, %v4420, %v4429
      %v4432 = vshrl.u32 %v4251, 16
      %v4434 = vrot.slane %v4432, 6
      %v4435 = vshll.u32 %v4251, 16
      %v4437 = vrot.slane %v4435, 7
      %v4438 = vor.u32 %v4434, %v4437
      %v4439 = vsel %vm1246, %v4429, %v4438
      %vm4442 = vmand %vm1234, %vm1246
      %v4443 = vsel %vm4442, 0, %v4259
      %v4444 = vsel %vm1149, %v4439, 0
      %v4445 = vrot.slane %v1259, 1
      %v4446 = vor.u32 %v2137, %v4445
      %v4448 = vshll.u32 %v4443, 16
      %v4450 = vrot.slane %v4448, 1
      %v4451 = vsel %vm1155, %v4446, %v4450
      %v4452 = vshrl.u32 %v4443, 16
      %v4454 = vor.u32 %v4452, %v4450
      %v4456 = vshll.u32 %v4268, 16
      %v4458 = vrot.slane %v4456, 1
      %v4459 = vsel %vm1155, %v4454, %v4458
      %v4460 = vshrl.u32 %v4268, 16
      %v4462 = vor.u32 %v4460, %v4458
      %v4464 = vshll.u32 %v4277, 16
      %v4466 = vrot.slane %v4464, 1
      %v4467 = vsel %vm1155, %v4462, %v4466
      %v4468 = vshrl.u32 %v4277, 16
      %v4470 = vor.u32 %v4468, %v4466
      %v4472 = vshll.u32 %v4286, 16
      %v4474 = vrot.slane %v4472, 1
      %v4475 = vsel %vm1155, %v4470, %v4474
      %v4476 = vshrl.u32 %v4286, 16
      %v4478 = vor.u32 %v4476, %v4474
      %v4480 = vshll.u32 %v4295, 16
      %v4482 = vrot.slane %v4480, 1
      %v4483 = vsel %vm1155, %v4478, %v4482
      %v4484 = vshrl.u32 %v4295, 16
      %v4486 = vor.u32 %v4484, %v4482
      %v4488 = vshll.u32 %v4304, 16
      %v4490 = vrot.slane %v4488, 1
      %v4491 = vsel %vm1155, %v4486, %v4490
      %v4492 = vshrl.u32 %v4304, 16
      %v4494 = vor.u32 %v4492, %v4490
      %v4496 = vshll.u32 %v4313, 16
      %v4498 = vrot.slane %v4496, 1
      %v4499 = vsel %vm1155, %v4494, %v4498
      %v4500 = vshrl.u32 %v4313, 16
      %v4502 = vor.u32 %v4500, %v4498
      %v4504 = vshll.u32 %v4322, 16
      %v4506 = vrot.slane %v4504, 1
      %v4507 = vsel %vm1155, %v4502, %v4506
      %v4508 = vshrl.u32 %v4322, 16
      %v4510 = vor.u32 %v4508, %v4506
      %v4512 = vshll.u32 %v4331, 16
      %v4514 = vrot.slane %v4512, 1
      %v4515 = vsel %vm1155, %v4510, %v4514
      %v4516 = vshrl.u32 %v4331, 16
      %v4518 = vor.u32 %v4516, %v4514
      %v4520 = vshll.u32 %v4340, 16
      %v4522 = vrot.slane %v4520, 1
      %v4523 = vsel %vm1155, %v4518, %v4522
      %v4524 = vshrl.u32 %v4340, 16
      %v4526 = vor.u32 %v4524, %v4522
      %v4528 = vshll.u32 %v4349, 16
      %v4530 = vrot.slane %v4528, 1
      %v4531 = vsel %vm1155, %v4526, %v4530
      %v4532 = vshrl.u32 %v4349, 16
      %v4534 = vor.u32 %v4532, %v4530
      %v4536 = vshll.u32 %v4358, 16
      %v4538 = vrot.slane %v4536, 1
      %v4539 = vsel %vm1155, %v4534, %v4538
      %v4540 = vshrl.u32 %v4358, 16
      %v4542 = vor.u32 %v4540, %v4538
      %v4544 = vshll.u32 %v4367, 16
      %v4546 = vrot.slane %v4544, 1
      %v4547 = vsel %vm1155, %v4542, %v4546
      %v4548 = vshrl.u32 %v4367, 16
      %v4550 = vor.u32 %v4548, %v4546
      %v4552 = vshll.u32 %v4376, 16
      %v4554 = vrot.slane %v4552, 1
      %v4555 = vsel %vm1155, %v4550, %v4554
      %v4556 = vshrl.u32 %v4376, 16
      %v4558 = vor.u32 %v4556, %v4554
      %v4560 = vshll.u32 %v4385, 16
      %v4562 = vrot.slane %v4560, 1
      %v4563 = vsel %vm1155, %v4558, %v4562
      %v4564 = vshrl.u32 %v4385, 16
      %v4566 = vor.u32 %v4564, %v4562
      %v4568 = vshll.u32 %v4394, 16
      %v4570 = vrot.slane %v4568, 1
      %v4571 = vsel %vm1155, %v4566, %v4570
      %v4572 = vshrl.u32 %v4394, 16
      %v4574 = vor.u32 %v4572, %v4570
      %v4576 = vshll.u32 %v4403, 16
      %v4578 = vrot.slane %v4576, 1
      %v4579 = vsel %vm1155, %v4574, %v4578
      %v4580 = vshrl.u32 %v4403, 16
      %v4582 = vor.u32 %v4580, %v4578
      %v4584 = vshll.u32 %v4412, 16
      %v4586 = vrot.slane %v4584, 1
      %v4587 = vsel %vm1155, %v4582, %v4586
      %v4588 = vshrl.u32 %v4412, 16
      %v4590 = vor.u32 %v4588, %v4586
      %v4592 = vshll.u32 %v4421, 16
      %v4594 = vrot.slane %v4592, 1
      %v4595 = vsel %vm1155, %v4590, %v4594
      %v4596 = vshrl.u32 %v4421, 16
      %v4598 = vor.u32 %v4596, %v4594
      %v4600 = vshll.u32 %v4430, 16
      %v4602 = vrot.slane %v4600, 1
      %v4603 = vsel %vm1155, %v4598, %v4602
      %v4604 = vshrl.u32 %v4430, 16
      %v4606 = vor.u32 %v4604, %v4602
      %4607 = vrot.lane.b32.xlu0 %v4451, 32
      %v4608 = vpop.permute.xlu0 %4607
      %4609 = vrot.lane.b32.xlu0 %v4459, 32
      %v4610 = vpop.permute.xlu0 %4609
      %4611 = vrot.lane.b32.xlu0 %v4467, 32
      %v4612 = vpop.permute.xlu0 %4611
      %4613 = vrot.lane.b32.xlu0 %v4475, 32
      %v4614 = vpop.permute.xlu0 %4613
      %4615 = vrot.lane.b32.xlu0 %v4483, 32
      %v4616 = vpop.permute.xlu0 %4615
      %4617 = vrot.lane.b32.xlu0 %v4491, 32
      %v4618 = vpop.permute.xlu0 %4617
      %4619 = vrot.lane.b32.xlu0 %v4499, 32
      %v4620 = vpop.permute.xlu0 %4619
      %4621 = vrot.lane.b32.xlu0 %v4507, 32
      %v4622 = vpop.permute.xlu0 %4621
      %4623 = vrot.lane.b32.xlu0 %v4515, 32
      %v4624 = vpop.permute.xlu0 %4623
      %4625 = vrot.lane.b32.xlu0 %v4523, 32
      %v4626 = vpop.permute.xlu0 %4625
      %4627 = vrot.lane.b32.xlu0 %v4531, 32
      %v4628 = vpop.permute.xlu0 %4627
      %4629 = vrot.lane.b32.xlu0 %v4539, 32
      %v4630 = vpop.permute.xlu0 %4629
      %4631 = vrot.lane.b32.xlu0 %v4547, 32
      %v4632 = vpop.permute.xlu0 %4631
      %4633 = vrot.lane.b32.xlu0 %v4555, 32
      %v4634 = vpop.permute.xlu0 %4633
      %4635 = vrot.lane.b32.xlu0 %v4563, 32
      %v4636 = vpop.permute.xlu0 %4635
      %4637 = vrot.lane.b32.xlu0 %v4571, 32
      %v4638 = vpop.permute.xlu0 %4637
      %4639 = vrot.lane.b32.xlu0 %v4579, 32
      %v4640 = vpop.permute.xlu0 %4639
      %4641 = vrot.lane.b32.xlu0 %v4587, 32
      %v4642 = vpop.permute.xlu0 %4641
      %4643 = vrot.lane.b32.xlu0 %v4595, 32
      %v4644 = vpop.permute.xlu0 %4643
      %4645 = vrot.lane.b32.xlu0 %v4603, 32
      %v4646 = vpop.permute.xlu0 %4645
      %4647 = vrot.lane.b32.xlu0 %v4606, 32
      %v4648 = vpop.permute.xlu0 %4647
      %v4650 = vrot.slane 0, 1
      %v4651 = vrot.slane %v4443, 1
      %v4652 = vsel %vm1187, %v4650, %v4651
      %v4653 = vrot.slane %v4268, 1
      %v4654 = vsel %vm1187, %v4651, %v4653
      %v4655 = vrot.slane %v4277, 1
      %v4656 = vsel %vm1187, %v4653, %v4655
      %v4657 = vrot.slane %v4286, 1
      %v4658 = vsel %vm1187, %v4655, %v4657
      %v4659 = vrot.slane %v4295, 1
      %v4660 = vsel %vm1187, %v4657, %v4659
      %v4661 = vrot.slane %v4304, 1
      %v4662 = vsel %vm1187, %v4659, %v4661
      %v4663 = vrot.slane %v4313, 1
      %v4664 = vsel %vm1187, %v4661, %v4663
      %v4665 = vrot.slane %v4322, 1
      %v4666 = vsel %vm1187, %v4663, %v4665
      %v4667 = vrot.slane %v4331, 1
      %v4668 = vsel %vm1187, %v4665, %v4667
      %v4669 = vrot.slane %v4340, 1
      %v4670 = vsel %vm1187, %v4667, %v4669
      %v4671 = vrot.slane %v4349, 1
      %v4672 = vsel %vm1187, %v4669, %v4671
      %v4673 = vrot.slane %v4358, 1
      %v4674 = vsel %vm1187, %v4671, %v4673
      %v4675 = vrot.slane %v4367, 1
      %v4676 = vsel %vm1187, %v4673, %v4675
      %v4677 = vrot.slane %v4376, 1
      %v4678 = vsel %vm1187, %v4675, %v4677
      %v4679 = vrot.slane %v4385, 1
      %v4680 = vsel %vm1187, %v4677, %v4679
      %v4681 = vrot.slane %v4394, 1
      %v4682 = vsel %vm1187, %v4679, %v4681
      %v4683 = vrot.slane %v4403, 1
      %v4684 = vsel %vm1187, %v4681, %v4683
      %v4685 = vrot.slane %v4412, 1
      %v4686 = vsel %vm1187, %v4683, %v4685
      %v4687 = vrot.slane %v4421, 1
      %v4688 = vsel %vm1187, %v4685, %v4687
      %v4689 = vrot.slane %v4430, 1
      %v4690 = vsel %vm1187, %v4687, %v4689
      %4691 = vrot.lane.b32.xlu0 %v4652, 64
      %v4692 = vpop.permute.xlu0 %4691
      %4693 = vrot.lane.b32.xlu0 %v4654, 64
      %v4694 = vpop.permute.xlu0 %4693
      %4695 = vrot.lane.b32.xlu0 %v4656, 64
      %v4696 = vpop.permute.xlu0 %4695
      %4697 = vrot.lane.b32.xlu0 %v4658, 64
      %v4698 = vpop.permute.xlu0 %4697
      %4699 = vrot.lane.b32.xlu0 %v4660, 64
      %v4700 = vpop.permute.xlu0 %4699
      %4701 = vrot.lane.b32.xlu0 %v4662, 64
      %v4702 = vpop.permute.xlu0 %4701
      %4703 = vrot.lane.b32.xlu0 %v4664, 64
      %v4704 = vpop.permute.xlu0 %4703
      %4705 = vrot.lane.b32.xlu0 %v4666, 64
      %v4706 = vpop.permute.xlu0 %4705
      %4707 = vrot.lane.b32.xlu0 %v4668, 64
      %v4708 = vpop.permute.xlu0 %4707
      %4709 = vrot.lane.b32.xlu0 %v4670, 64
      %v4710 = vpop.permute.xlu0 %4709
      %4711 = vrot.lane.b32.xlu0 %v4672, 64
      %v4712 = vpop.permute.xlu0 %4711
      %4713 = vrot.lane.b32.xlu0 %v4674, 64
      %v4714 = vpop.permute.xlu0 %4713
      %4715 = vrot.lane.b32.xlu0 %v4676, 64
      %v4716 = vpop.permute.xlu0 %4715
      %4717 = vrot.lane.b32.xlu0 %v4678, 64
      %v4718 = vpop.permute.xlu0 %4717
      %4719 = vrot.lane.b32.xlu0 %v4680, 64
      %v4720 = vpop.permute.xlu0 %4719
      %4721 = vrot.lane.b32.xlu0 %v4682, 64
      %v4722 = vpop.permute.xlu0 %4721
      %4723 = vrot.lane.b32.xlu0 %v4684, 64
      %v4724 = vpop.permute.xlu0 %4723
      %4725 = vrot.lane.b32.xlu0 %v4686, 64
      %v4726 = vpop.permute.xlu0 %4725
      %4727 = vrot.lane.b32.xlu0 %v4688, 64
      %v4728 = vpop.permute.xlu0 %4727
      %4729 = vrot.lane.b32.xlu0 %v4690, 64
      %v4730 = vpop.permute.xlu0 %4729
      %4731 = vrot.lane.b32.xlu0 %v4689, 64
      %v4732 = vpop.permute.xlu0 %4731
      %v4734 = vrot.slane %v4444, 1
      %v4735 = vsel %vm1187, %v4689, %v4734
      %4736 = vrot.lane.b32.xlu0 %v4654, 96
      %v4737 = vpop.permute.xlu0 %4736
      %4738 = vrot.lane.b32.xlu0 %v4656, 96
      %v4739 = vpop.permute.xlu0 %4738
      %4740 = vrot.lane.b32.xlu0 %v4658, 96
      %v4741 = vpop.permute.xlu0 %4740
      %4742 = vrot.lane.b32.xlu0 %v4660, 96
      %v4743 = vpop.permute.xlu0 %4742
      %4744 = vrot.lane.b32.xlu0 %v4662, 96
      %v4745 = vpop.permute.xlu0 %4744
      %4746 = vrot.lane.b32.xlu0 %v4664, 96
      %v4747 = vpop.permute.xlu0 %4746
      %4748 = vrot.lane.b32.xlu0 %v4666, 96
      %v4749 = vpop.permute.xlu0 %4748
      %4750 = vrot.lane.b32.xlu0 %v4668, 96
      %v4751 = vpop.permute.xlu0 %4750
      %4752 = vrot.lane.b32.xlu0 %v4670, 96
      %v4753 = vpop.permute.xlu0 %4752
      %4754 = vrot.lane.b32.xlu0 %v4672, 96
      %v4755 = vpop.permute.xlu0 %4754
      %4756 = vrot.lane.b32.xlu0 %v4674, 96
      %v4757 = vpop.permute.xlu0 %4756
      %4758 = vrot.lane.b32.xlu0 %v4676, 96
      %v4759 = vpop.permute.xlu0 %4758
      %4760 = vrot.lane.b32.xlu0 %v4678, 96
      %v4761 = vpop.permute.xlu0 %4760
      %4762 = vrot.lane.b32.xlu0 %v4680, 96
      %v4763 = vpop.permute.xlu0 %4762
      %4764 = vrot.lane.b32.xlu0 %v4682, 96
      %v4765 = vpop.permute.xlu0 %4764
      %4766 = vrot.lane.b32.xlu0 %v4684, 96
      %v4767 = vpop.permute.xlu0 %4766
      %4768 = vrot.lane.b32.xlu0 %v4686, 96
      %v4769 = vpop.permute.xlu0 %4768
      %4770 = vrot.lane.b32.xlu0 %v4688, 96
      %v4771 = vpop.permute.xlu0 %4770
      %4772 = vrot.lane.b32.xlu0 %v4690, 96
      %v4773 = vpop.permute.xlu0 %4772
      %4774 = vrot.lane.b32.xlu0 %v4735, 96
      %v4775 = vpop.permute.xlu0 %4774
      %4776 = vrot.lane.b32.xlu0 %v4734, 96
      %v4777 = vpop.permute.xlu0 %4776
      %vm4778 = vsmask.f32 6400
      %v4779 = vrot.slane %v4452, 1
      %v4780 = vrot.slane %v4448, 2
      %v4781 = vor.u32 %v4779, %v4780
      %v4782 = vrot.slane %v4460, 1
      %v4783 = vrot.slane %v4456, 2
      %v4784 = vor.u32 %v4782, %v4783
      %v4785 = vsel %vm4778, %v4781, %v4784
      %v4786 = vrot.slane %v4468, 1
      %v4787 = vrot.slane %v4464, 2
      %v4788 = vor.u32 %v4786, %v4787
      %v4789 = vsel %vm4778, %v4784, %v4788
      %v4790 = vrot.slane %v4476, 1
      %v4791 = vrot.slane %v4472, 2
      %v4792 = vor.u32 %v4790, %v4791
      %v4793 = vsel %vm4778, %v4788, %v4792
      %v4794 = vrot.slane %v4484, 1
      %v4795 = vrot.slane %v4480, 2
      %v4796 = vor.u32 %v4794, %v4795
      %v4797 = vsel %vm4778, %v4792, %v4796
      %v4798 = vrot.slane %v4492, 1
      %v4799 = vrot.slane %v4488, 2
      %v4800 = vor.u32 %v4798, %v4799
      %v4801 = vsel %vm4778, %v4796, %v4800
      %v4802 = vrot.slane %v4500, 1
      %v4803 = vrot.slane %v4496, 2
      %v4804 = vor.u32 %v4802, %v4803
      %v4805 = vsel %vm4778, %v4800, %v4804
      %v4806 = vrot.slane %v4508, 1
      %v4807 = vrot.slane %v4504, 2
      %v4808 = vor.u32 %v4806, %v4807
      %v4809 = vsel %vm4778, %v4804, %v4808
      %v4810 = vrot.slane %v4516, 1
      %v4811 = vrot.slane %v4512, 2
      %v4812 = vor.u32 %v4810, %v4811
      %v4813 = vsel %vm4778, %v4808, %v4812
      %v4814 = vrot.slane %v4524, 1
      %v4815 = vrot.slane %v4520, 2
      %v4816 = vor.u32 %v4814, %v4815
      %v4817 = vsel %vm4778, %v4812, %v4816
      %v4818 = vrot.slane %v4532, 1
      %v4819 = vrot.slane %v4528, 2
      %v4820 = vor.u32 %v4818, %v4819
      %v4821 = vsel %vm4778, %v4816, %v4820
      %v4822 = vrot.slane %v4540, 1
      %v4823 = vrot.slane %v4536, 2
      %v4824 = vor.u32 %v4822, %v4823
      %v4825 = vsel %vm4778, %v4820, %v4824
      %v4826 = vrot.slane %v4548, 1
      %v4827 = vrot.slane %v4544, 2
      %v4828 = vor.u32 %v4826, %v4827
      %v4829 = vsel %vm4778, %v4824, %v4828
      %v4830 = vrot.slane %v4556, 1
      %v4831 = vrot.slane %v4552, 2
      %v4832 = vor.u32 %v4830, %v4831
      %v4833 = vsel %vm4778, %v4828, %v4832
      %v4834 = vrot.slane %v4564, 1
      %v4835 = vrot.slane %v4560, 2
      %v4836 = vor.u32 %v4834, %v4835
      %v4837 = vsel %vm4778, %v4832, %v4836
      %v4838 = vrot.slane %v4572, 1
      %v4839 = vrot.slane %v4568, 2
      %v4840 = vor.u32 %v4838, %v4839
      %v4841 = vsel %vm4778, %v4836, %v4840
      %v4842 = vrot.slane %v4580, 1
      %v4843 = vrot.slane %v4576, 2
      %v4844 = vor.u32 %v4842, %v4843
      %v4845 = vsel %vm4778, %v4840, %v4844
      %v4846 = vrot.slane %v4588, 1
      %v4847 = vrot.slane %v4584, 2
      %v4848 = vor.u32 %v4846, %v4847
      %v4849 = vsel %vm4778, %v4844, %v4848
      %v4850 = vrot.slane %v4596, 1
      %v4851 = vrot.slane %v4592, 2
      %v4852 = vor.u32 %v4850, %v4851
      %v4853 = vsel %vm4778, %v4848, %v4852
      %v4854 = vrot.slane %v4604, 1
      %v4855 = vrot.slane %v4600, 2
      %v4856 = vor.u32 %v4854, %v4855
      %v4857 = vsel %vm4778, %v4852, %v4856
      %v4859 = vshrl.u32 %v4444, 16
      %v4861 = vrot.slane %v4859, 1
      %v4862 = vshll.u32 %v4444, 16
      %v4864 = vrot.slane %v4862, 2
      %v4865 = vor.u32 %v4861, %v4864
      %v4866 = vsel %vm4778, %v4856, %v4865
      %v4867 = vrot.slane %v4443, 2
      %v4868 = vrot.slane %v4268, 2
      %v4869 = vsel %vm1151, %v4867, %v4868
      %v4870 = vrot.slane %v4277, 2
      %v4871 = vsel %vm1151, %v4868, %v4870
      %v4872 = vrot.slane %v4286, 2
      %v4873 = vsel %vm1151, %v4870, %v4872
      %v4874 = vrot.slane %v4295, 2
      %v4875 = vsel %vm1151, %v4872, %v4874
      %v4876 = vrot.slane %v4304, 2
      %v4877 = vsel %vm1151, %v4874, %v4876
      %v4878 = vrot.slane %v4313, 2
      %v4879 = vsel %vm1151, %v4876, %v4878
      %v4880 = vrot.slane %v4322, 2
      %v4881 = vsel %vm1151, %v4878, %v4880
      %v4882 = vrot.slane %v4331, 2
      %v4883 = vsel %vm1151, %v4880, %v4882
      %v4884 = vrot.slane %v4340, 2
      %v4885 = vsel %vm1151, %v4882, %v4884
      %v4886 = vrot.slane %v4349, 2
      %v4887 = vsel %vm1151, %v4884, %v4886
      %v4888 = vrot.slane %v4358, 2
      %v4889 = vsel %vm1151, %v4886, %v4888
      %v4890 = vrot.slane %v4367, 2
      %v4891 = vsel %vm1151, %v4888, %v4890
      %v4892 = vrot.slane %v4376, 2
      %v4893 = vsel %vm1151, %v4890, %v4892
      %v4894 = vrot.slane %v4385, 2
      %v4895 = vsel %vm1151, %v4892, %v4894
      %v4896 = vrot.slane %v4394, 2
      %v4897 = vsel %vm1151, %v4894, %v4896
      %v4898 = vrot.slane %v4403, 2
      %v4899 = vsel %vm1151, %v4896, %v4898
      %v4900 = vrot.slane %v4412, 2
      %v4901 = vsel %vm1151, %v4898, %v4900
      %v4902 = vrot.slane %v4421, 2
      %v4903 = vsel %vm1151, %v4900, %v4902
      %v4904 = vrot.slane %v4430, 2
      %v4905 = vsel %vm1151, %v4902, %v4904
      %v4906 = vrot.slane %v4444, 2
      %v4907 = vsel %vm1151, %v4904, %v4906
      %4908 = vrot.lane.b32.xlu0 %v4869, 32
      %v4909 = vpop.permute.xlu0 %4908
      %4910 = vrot.lane.b32.xlu0 %v4871, 32
      %v4911 = vpop.permute.xlu0 %4910
      %4912 = vrot.lane.b32.xlu0 %v4873, 32
      %v4913 = vpop.permute.xlu0 %4912
      %4914 = vrot.lane.b32.xlu0 %v4875, 32
      %v4915 = vpop.permute.xlu0 %4914
      %4916 = vrot.lane.b32.xlu0 %v4877, 32
      %v4917 = vpop.permute.xlu0 %4916
      %4918 = vrot.lane.b32.xlu0 %v4879, 32
      %v4919 = vpop.permute.xlu0 %4918
      %4920 = vrot.lane.b32.xlu0 %v4881, 32
      %v4921 = vpop.permute.xlu0 %4920
      %4922 = vrot.lane.b32.xlu0 %v4883, 32
      %v4923 = vpop.permute.xlu0 %4922
      %4924 = vrot.lane.b32.xlu0 %v4885, 32
      %v4925 = vpop.permute.xlu0 %4924
      %4926 = vrot.lane.b32.xlu0 %v4887, 32
      %v4927 = vpop.permute.xlu0 %4926
      %4928 = vrot.lane.b32.xlu0 %v4889, 32
      %v4929 = vpop.permute.xlu0 %4928
      %4930 = vrot.lane.b32.xlu0 %v4891, 32
      %v4931 = vpop.permute.xlu0 %4930
      %4932 = vrot.lane.b32.xlu0 %v4893, 32
      %v4933 = vpop.permute.xlu0 %4932
      %4934 = vrot.lane.b32.xlu0 %v4895, 32
      %v4935 = vpop.permute.xlu0 %4934
      %4936 = vrot.lane.b32.xlu0 %v4897, 32
      %v4937 = vpop.permute.xlu0 %4936
      %4938 = vrot.lane.b32.xlu0 %v4899, 32
      %v4939 = vpop.permute.xlu0 %4938
      %4940 = vrot.lane.b32.xlu0 %v4901, 32
      %v4941 = vpop.permute.xlu0 %4940
      %4942 = vrot.lane.b32.xlu0 %v4903, 32
      %v4943 = vpop.permute.xlu0 %4942
      %4944 = vrot.lane.b32.xlu0 %v4905, 32
      %v4945 = vpop.permute.xlu0 %4944
      %4946 = vrot.lane.b32.xlu0 %v4907, 32
      %v4947 = vpop.permute.xlu0 %4946
      %4948 = vrot.lane.b32.xlu0 %v4906, 32
      %v4949 = vpop.permute.xlu0 %4948
      %v4950 = vsel %vm1151, %v4906, %v2098
      %4951 = vrot.lane.b32.xlu0 %v4871, 64
      %v4952 = vpop.permute.xlu0 %4951
      %4953 = vrot.lane.b32.xlu0 %v4873, 64
      %v4954 = vpop.permute.xlu0 %4953
      %4955 = vrot.lane.b32.xlu0 %v4875, 64
      %v4956 = vpop.permute.xlu0 %4955
      %4957 = vrot.lane.b32.xlu0 %v4877, 64
      %v4958 = vpop.permute.xlu0 %4957
      %4959 = vrot.lane.b32.xlu0 %v4879, 64
      %v4960 = vpop.permute.xlu0 %4959
      %4961 = vrot.lane.b32.xlu0 %v4881, 64
      %v4962 = vpop.permute.xlu0 %4961
      %4963 = vrot.lane.b32.xlu0 %v4883, 64
      %v4964 = vpop.permute.xlu0 %4963
      %4965 = vrot.lane.b32.xlu0 %v4885, 64
      %v4966 = vpop.permute.xlu0 %4965
      %4967 = vrot.lane.b32.xlu0 %v4887, 64
      %v4968 = vpop.permute.xlu0 %4967
      %4969 = vrot.lane.b32.xlu0 %v4889, 64
      %v4970 = vpop.permute.xlu0 %4969
      %4971 = vrot.lane.b32.xlu0 %v4891, 64
      %v4972 = vpop.permute.xlu0 %4971
      %4973 = vrot.lane.b32.xlu0 %v4893, 64
      %v4974 = vpop.permute.xlu0 %4973
      %4975 = vrot.lane.b32.xlu0 %v4895, 64
      %v4976 = vpop.permute.xlu0 %4975
      %4977 = vrot.lane.b32.xlu0 %v4897, 64
      %v4978 = vpop.permute.xlu0 %4977
      %4979 = vrot.lane.b32.xlu0 %v4899, 64
      %v4980 = vpop.permute.xlu0 %4979
      %4981 = vrot.lane.b32.xlu0 %v4901, 64
      %v4982 = vpop.permute.xlu0 %4981
      %4983 = vrot.lane.b32.xlu0 %v4903, 64
      %v4984 = vpop.permute.xlu0 %4983
      %4985 = vrot.lane.b32.xlu0 %v4905, 64
      %v4986 = vpop.permute.xlu0 %4985
      %4987 = vrot.lane.b32.xlu0 %v4907, 64
      %v4988 = vpop.permute.xlu0 %4987
      %4989 = vrot.lane.b32.xlu0 %v4950, 64
      %v4990 = vpop.permute.xlu0 %4989
      %v4991 = vrot.slane %v4460, 2
      %v4992 = vrot.slane %v4456, 3
      %v4993 = vor.u32 %v4991, %v4992
      %v4994 = vrot.slane %v4468, 2
      %v4995 = vrot.slane %v4464, 3
      %v4996 = vor.u32 %v4994, %v4995
      %v4997 = vsel %vm1152, %v4993, %v4996
      %v4998 = vrot.slane %v4476, 2
      %v4999 = vrot.slane %v4472, 3
      %v5000 = vor.u32 %v4998, %v4999
      %v5001 = vsel %vm1152, %v4996, %v5000
      %v5002 = vrot.slane %v4484, 2
      %v5003 = vrot.slane %v4480, 3
      %v5004 = vor.u32 %v5002, %v5003
      %v5005 = vsel %vm1152, %v5000, %v5004
      %v5006 = vrot.slane %v4492, 2
      %v5007 = vrot.slane %v4488, 3
      %v5008 = vor.u32 %v5006, %v5007
      %v5009 = vsel %vm1152, %v5004, %v5008
      %v5010 = vrot.slane %v4500, 2
      %v5011 = vrot.slane %v4496, 3
      %v5012 = vor.u32 %v5010, %v5011
      %v5013 = vsel %vm1152, %v5008, %v5012
      %v5014 = vrot.slane %v4508, 2
      %v5015 = vrot.slane %v4504, 3
      %v5016 = vor.u32 %v5014, %v5015
      %v5017 = vsel %vm1152, %v5012, %v5016
      %v5018 = vrot.slane %v4516, 2
      %v5019 = vrot.slane %v4512, 3
      %v5020 = vor.u32 %v5018, %v5019
      %v5021 = vsel %vm1152, %v5016, %v5020
      %v5022 = vrot.slane %v4524, 2
      %v5023 = vrot.slane %v4520, 3
      %v5024 = vor.u32 %v5022, %v5023
      %v5025 = vsel %vm1152, %v5020, %v5024
      %v5026 = vrot.slane %v4532, 2
      %v5027 = vrot.slane %v4528, 3
      %v5028 = vor.u32 %v5026, %v5027
      %v5029 = vsel %vm1152, %v5024, %v5028
      %v5030 = vrot.slane %v4540, 2
      %v5031 = vrot.slane %v4536, 3
      %v5032 = vor.u32 %v5030, %v5031
      %v5033 = vsel %vm1152, %v5028, %v5032
      %v5034 = vrot.slane %v4548, 2
      %v5035 = vrot.slane %v4544, 3
      %v5036 = vor.u32 %v5034, %v5035
      %v5037 = vsel %vm1152, %v5032, %v5036
      %v5038 = vrot.slane %v4556, 2
      %v5039 = vrot.slane %v4552, 3
      %v5040 = vor.u32 %v5038, %v5039
      %v5041 = vsel %vm1152, %v5036, %v5040
      %v5042 = vrot.slane %v4564, 2
      %v5043 = vrot.slane %v4560, 3
      %v5044 = vor.u32 %v5042, %v5043
      %v5045 = vsel %vm1152, %v5040, %v5044
      %v5046 = vrot.slane %v4572, 2
      %v5047 = vrot.slane %v4568, 3
      %v5048 = vor.u32 %v5046, %v5047
      %v5049 = vsel %vm1152, %v5044, %v5048
      %v5050 = vrot.slane %v4580, 2
      %v5051 = vrot.slane %v4576, 3
      %v5052 = vor.u32 %v5050, %v5051
      %v5053 = vsel %vm1152, %v5048, %v5052
      %v5054 = vrot.slane %v4588, 2
      %v5055 = vrot.slane %v4584, 3
      %v5056 = vor.u32 %v5054, %v5055
      %v5057 = vsel %vm1152, %v5052, %v5056
      %v5058 = vrot.slane %v4596, 2
      %v5059 = vrot.slane %v4592, 3
      %v5060 = vor.u32 %v5058, %v5059
      %v5061 = vsel %vm1152, %v5056, %v5060
      %v5062 = vrot.slane %v4604, 2
      %v5063 = vrot.slane %v4600, 3
      %v5064 = vor.u32 %v5062, %v5063
      %v5065 = vsel %vm1152, %v5060, %v5064
      %v5066 = vrot.slane %v4859, 2
      %v5067 = vrot.slane %v4862, 3
      %v5068 = vor.u32 %v5066, %v5067
      %v5069 = vsel %vm1152, %v5064, %v5068
      %v5070 = vsel %vm1152, %v5068, %v2141
      %5071 = vrot.lane.b32.xlu0 %v4997, 96
      %v5072 = vpop.permute.xlu0 %5071
      %5073 = vrot.lane.b32.xlu0 %v5001, 96
      %v5074 = vpop.permute.xlu0 %5073
      %5075 = vrot.lane.b32.xlu0 %v5005, 96
      %v5076 = vpop.permute.xlu0 %5075
      %5077 = vrot.lane.b32.xlu0 %v5009, 96
      %v5078 = vpop.permute.xlu0 %5077
      %5079 = vrot.lane.b32.xlu0 %v5013, 96
      %v5080 = vpop.permute.xlu0 %5079
      %5081 = vrot.lane.b32.xlu0 %v5017, 96
      %v5082 = vpop.permute.xlu0 %5081
      %5083 = vrot.lane.b32.xlu0 %v5021, 96
      %v5084 = vpop.permute.xlu0 %5083
      %5085 = vrot.lane.b32.xlu0 %v5025, 96
      %v5086 = vpop.permute.xlu0 %5085
      %5087 = vrot.lane.b32.xlu0 %v5029, 96
      %v5088 = vpop.permute.xlu0 %5087
      %5089 = vrot.lane.b32.xlu0 %v5033, 96
      %v5090 = vpop.permute.xlu0 %5089
      %5091 = vrot.lane.b32.xlu0 %v5037, 96
      %v5092 = vpop.permute.xlu0 %5091
      %5093 = vrot.lane.b32.xlu0 %v5041, 96
      %v5094 = vpop.permute.xlu0 %5093
      %5095 = vrot.lane.b32.xlu0 %v5045, 96
      %v5096 = vpop.permute.xlu0 %5095
      %5097 = vrot.lane.b32.xlu0 %v5049, 96
      %v5098 = vpop.permute.xlu0 %5097
      %5099 = vrot.lane.b32.xlu0 %v5053, 96
      %v5100 = vpop.permute.xlu0 %5099
      %5101 = vrot.lane.b32.xlu0 %v5057, 96
      %v5102 = vpop.permute.xlu0 %5101
      %5103 = vrot.lane.b32.xlu0 %v5061, 96
      %v5104 = vpop.permute.xlu0 %5103
      %5105 = vrot.lane.b32.xlu0 %v5065, 96
      %v5106 = vpop.permute.xlu0 %5105
      %5107 = vrot.lane.b32.xlu0 %v5069, 96
      %v5108 = vpop.permute.xlu0 %5107
      %5109 = vrot.lane.b32.xlu0 %v5070, 96
      %v5110 = vpop.permute.xlu0 %5109
      %v5111 = vrot.slane %v4268, 3
      %v5112 = vrot.slane %v4277, 3
      %v5113 = vsel %vm1199, %v5111, %v5112
      %v5114 = vrot.slane %v4286, 3
      %v5115 = vsel %vm1199, %v5112, %v5114
      %v5116 = vrot.slane %v4295, 3
      %v5117 = vsel %vm1199, %v5114, %v5116
      %v5118 = vrot.slane %v4304, 3
      %v5119 = vsel %vm1199, %v5116, %v5118
      %v5120 = vrot.slane %v4313, 3
      %v5121 = vsel %vm1199, %v5118, %v5120
      %v5122 = vrot.slane %v4322, 3
      %v5123 = vsel %vm1199, %v5120, %v5122
      %v5124 = vrot.slane %v4331, 3
      %v5125 = vsel %vm1199, %v5122, %v5124
      %v5126 = vrot.slane %v4340, 3
      %v5127 = vsel %vm1199, %v5124, %v5126
      %v5128 = vrot.slane %v4349, 3
      %v5129 = vsel %vm1199, %v5126, %v5128
      %v5130 = vrot.slane %v4358, 3
      %v5131 = vsel %vm1199, %v5128, %v5130
      %v5132 = vrot.slane %v4367, 3
      %v5133 = vsel %vm1199, %v5130, %v5132
      %v5134 = vrot.slane %v4376, 3
      %v5135 = vsel %vm1199, %v5132, %v5134
      %v5136 = vrot.slane %v4385, 3
      %v5137 = vsel %vm1199, %v5134, %v5136
      %v5138 = vrot.slane %v4394, 3
      %v5139 = vsel %vm1199, %v5136, %v5138
      %v5140 = vrot.slane %v4403, 3
      %v5141 = vsel %vm1199, %v5138, %v5140
      %v5142 = vrot.slane %v4412, 3
      %v5143 = vsel %vm1199, %v5140, %v5142
      %v5144 = vrot.slane %v4421, 3
      %v5145 = vsel %vm1199, %v5142, %v5144
      %v5146 = vrot.slane %v4430, 3
      %v5147 = vsel %vm1199, %v5144, %v5146
      %v5148 = vrot.slane %v4444, 3
      %v5149 = vsel %vm1199, %v5146, %v5148
      %v5150 = vsel %vm1199, %v5148, %v2168
      %v5152 = vsel %vm768, 0, %v4608
      %v5154 = vsel %vm768, %v4443, %v4610
      %v5156 = vsel %vm768, %v4268, %v4612
      %v5158 = vsel %vm768, %v4277, %v4614
      %v5160 = vsel %vm768, %v4286, %v4616
      %v5162 = vsel %vm768, %v4295, %v4618
      %v5164 = vsel %vm768, %v4304, %v4620
      %v5166 = vsel %vm768, %v4313, %v4622
      %v5168 = vsel %vm768, %v4322, %v4624
      %v5170 = vsel %vm768, %v4331, %v4626
      %v5172 = vsel %vm768, %v4340, %v4628
      %v5174 = vsel %vm768, %v4349, %v4630
      %v5176 = vsel %vm768, %v4358, %v4632
      %v5178 = vsel %vm768, %v4367, %v4634
      %v5180 = vsel %vm768, %v4376, %v4636
      %v5182 = vsel %vm768, %v4385, %v4638
      %v5184 = vsel %vm768, %v4394, %v4640
      %v5186 = vsel %vm768, %v4403, %v4642
      %v5188 = vsel %vm768, %v4412, %v4644
      %v5190 = vsel %vm768, %v4421, %v4646
      %v5192 = vsel %vm768, %v4430, %v4648
      %v5194 = vsel %vm774, %v5152, %v4692
      %v5196 = vsel %vm774, %v5154, %v4694
      %v5198 = vsel %vm774, %v5156, %v4696
      %v5200 = vsel %vm774, %v5158, %v4698
      %v5202 = vsel %vm774, %v5160, %v4700
      %v5204 = vsel %vm774, %v5162, %v4702
      %v5206 = vsel %vm774, %v5164, %v4704
      %v5208 = vsel %vm774, %v5166, %v4706
      %v5210 = vsel %vm774, %v5168, %v4708
      %v5212 = vsel %vm774, %v5170, %v4710
      %v5214 = vsel %vm774, %v5172, %v4712
      %v5216 = vsel %vm774, %v5174, %v4714
      %v5218 = vsel %vm774, %v5176, %v4716
      %v5220 = vsel %vm774, %v5178, %v4718
      %v5222 = vsel %vm774, %v5180, %v4720
      %v5224 = vsel %vm774, %v5182, %v4722
      %v5226 = vsel %vm774, %v5184, %v4724
      %v5228 = vsel %vm774, %v5186, %v4726
      %v5230 = vsel %vm774, %v5188, %v4728
      %v5232 = vsel %vm774, %v5190, %v4730
      %v5234 = vsel %vm774, %v5192, %v4732
      %v5236 = vsel %vm780, %v5194, %v4737
      %v5239 = vsel %vm780, %v5196, %v4739
      %v5242 = vsel %vm780, %v5198, %v4741
      %v5245 = vsel %vm780, %v5200, %v4743
      %v5248 = vsel %vm780, %v5202, %v4745
      %v5251 = vsel %vm780, %v5204, %v4747
      %v5254 = vsel %vm780, %v5206, %v4749
      %v5257 = vsel %vm780, %v5208, %v4751
      %v5260 = vsel %vm780, %v5210, %v4753
      %v5263 = vsel %vm780, %v5212, %v4755
      %v5266 = vsel %vm780, %v5214, %v4757
      %v5269 = vsel %vm780, %v5216, %v4759
      %v5272 = vsel %vm780, %v5218, %v4761
      %v5275 = vsel %vm780, %v5220, %v4763
      %v5278 = vsel %vm780, %v5222, %v4765
      %v5281 = vsel %vm780, %v5224, %v4767
      %v5284 = vsel %vm780, %v5226, %v4769
      %v5287 = vsel %vm780, %v5228, %v4771
      %v5290 = vsel %vm780, %v5230, %v4773
      %v5293 = vsel %vm780, %v5232, %v4775
      %v5296 = vsel %vm780, %v5234, %v4777
      %v5300 = vsel %vm768, %v4785, %v4909
      %v5303 = vsel %vm768, %v4789, %v4911
      %v5306 = vsel %vm768, %v4793, %v4913
      %v5309 = vsel %vm768, %v4797, %v4915
      %v5312 = vsel %vm768, %v4801, %v4917
      %v5315 = vsel %vm768, %v4805, %v4919
      %v5318 = vsel %vm768, %v4809, %v4921
      %v5321 = vsel %vm768, %v4813, %v4923
      %v5324 = vsel %vm768, %v4817, %v4925
      %v5327 = vsel %vm768, %v4821, %v4927
      %v5330 = vsel %vm768, %v4825, %v4929
      %v5333 = vsel %vm768, %v4829, %v4931
      %v5336 = vsel %vm768, %v4833, %v4933
      %v5339 = vsel %vm768, %v4837, %v4935
      %v5342 = vsel %vm768, %v4841, %v4937
      %v5345 = vsel %vm768, %v4845, %v4939
      %v5348 = vsel %vm768, %v4849, %v4941
      %v5351 = vsel %vm768, %v4853, %v4943
      %v5354 = vsel %vm768, %v4857, %v4945
      %v5357 = vsel %vm768, %v4866, %v4947
      %v5360 = vsel %vm768, %v4865, %v4949
      %v5362 = vsel %vm774, %v5300, %v4952
      %v5364 = vsel %vm774, %v5303, %v4954
      %v5366 = vsel %vm774, %v5306, %v4956
      %v5368 = vsel %vm774, %v5309, %v4958
      %v5370 = vsel %vm774, %v5312, %v4960
      %v5372 = vsel %vm774, %v5315, %v4962
      %v5374 = vsel %vm774, %v5318, %v4964
      %v5376 = vsel %vm774, %v5321, %v4966
      %v5378 = vsel %vm774, %v5324, %v4968
      %v5380 = vsel %vm774, %v5327, %v4970
      %v5382 = vsel %vm774, %v5330, %v4972
      %v5384 = vsel %vm774, %v5333, %v4974
      %v5386 = vsel %vm774, %v5336, %v4976
      %v5388 = vsel %vm774, %v5339, %v4978
      %v5390 = vsel %vm774, %v5342, %v4980
      %v5392 = vsel %vm774, %v5345, %v4982
      %v5394 = vsel %vm774, %v5348, %v4984
      %v5396 = vsel %vm774, %v5351, %v4986
      %v5398 = vsel %vm774, %v5354, %v4988
      %v5400 = vsel %vm774, %v5357, %v4990
      %v5401 = vsel %vm774, %v5360, %v2113
      %v5403 = vsel %vm780, %v5362, %v5072
      %v5406 = vsel %vm780, %v5364, %v5074
      %v5409 = vsel %vm780, %v5366, %v5076
      %v5412 = vsel %vm780, %v5368, %v5078
      %v5415 = vsel %vm780, %v5370, %v5080
      %v5418 = vsel %vm780, %v5372, %v5082
      %v5421 = vsel %vm780, %v5374, %v5084
      %v5424 = vsel %vm780, %v5376, %v5086
      %v5427 = vsel %vm780, %v5378, %v5088
      %v5430 = vsel %vm780, %v5380, %v5090
      %v5433 = vsel %vm780, %v5382, %v5092
      %v5436 = vsel %vm780, %v5384, %v5094
      %v5439 = vsel %vm780, %v5386, %v5096
      %v5442 = vsel %vm780, %v5388, %v5098
      %v5445 = vsel %vm780, %v5390, %v5100
      %v5448 = vsel %vm780, %v5392, %v5102
      %v5451 = vsel %vm780, %v5394, %v5104
      %v5454 = vsel %vm780, %v5396, %v5106
      %v5457 = vsel %vm780, %v5398, %v5108
      %v5460 = vsel %vm780, %v5400, %v5110
      %v5462 = vsel %vm780, %v5401, %v2156
      %v5464 = vld [vmem:[%s14] sm:$0xf]
      %v5465 = vld [vmem:[%s14 + $0x4] sm:$0xf]
      %v5466 = vld [vmem:[%s14 + $0x8] sm:$0xf]
      %v5467 = vld [vmem:[%s14 + $0xc] sm:$0xf]
      %v5468 = vld [vmem:[%s14 + $0x10] sm:$0xf]
      %v5469 = vld [vmem:[%s14 + $0x14] sm:$0xf]
      %v5470 = vld [vmem:[%s14 + $0x18] sm:$0xf]
      %v5471 = vld [vmem:[%s14 + $0x1c] sm:$0xf]
      %v5472 = vld [vmem:[%s14 + $0x20] sm:$0xf]
      %v5473 = vld [vmem:[%s14 + $0x24] sm:$0xf]
      %v5474 = vld [vmem:[%s14 + $0x28] sm:$0xf]
      %v5475 = vld [vmem:[%s14 + $0x2c] sm:$0xf]
      %v5476 = vld [vmem:[%s14 + $0x30] sm:$0xf]
      %v5477 = vld [vmem:[%s14 + $0x34] sm:$0xf]
      %v5478 = vld [vmem:[%s14 + $0x38] sm:$0xf]
      %v5479 = vld [vmem:[%s14 + $0x3c] sm:$0xf]
      %v5480 = vld [vmem:[%s14 + $0x40] sm:$0xf]
      %v5481 = vld [vmem:[%s14 + $0x44] sm:$0xf]
      %v5482 = vld [vmem:[%s14 + $0x48] sm:$0xf]
      %v5483 = vld [vmem:[%s14 + $0x4c] sm:$0xf]
      %v5484 = vld [vmem:[%s14 + $0x50] sm:$0xf]
      %v5485 = vld [vmem:[%s14 + $0x54] sm:$0xf]
      %v5486 = vld [vmem:[%s14 + $0x58] sm:$0xf]
      %v5487 = vld [vmem:[%s14 + $0x5c] sm:$0xf]
      %v5488 = vld [vmem:[%s14 + $0x60] sm:$0xf]
      %v5489 = vld [vmem:[%s14 + $0x64] sm:$0xf]
      %v5490 = vld [vmem:[%s14 + $0x68] sm:$0xf]
      %v5491 = vld [vmem:[%s14 + $0x6c] sm:$0xf]
      %v5492 = vld [vmem:[%s14 + $0x70] sm:$0xf]
      %v5493 = vld [vmem:[%s14 + $0x74] sm:$0xf]
      %v5494 = vld [vmem:[%s14 + $0x78] sm:$0xf]
      %v5495 = vld [vmem:[%s14 + $0x7c] sm:$0xf]
      %v5496 = vld [vmem:[%s14 + $0x80] sm:$0xf]
      %v5497 = vld [vmem:[%s14 + $0x84] sm:$0xf]
      %v5498 = vld [vmem:[%s14 + $0x88] sm:$0xf]
      %v5499 = vld [vmem:[%s14 + $0x8c] sm:$0xf]
      %v5500 = vld [vmem:[%s15] sm:$0x1]
      %v5502 = vlaneseq
      %v5503 = vshrl.u32 %v5502, 7
      %v5504 = vsub.s32 0, %v5503
      %v5505 = vrot.slane %v5500, %v5504
      %v5543 = vunpack.c.l.b16 %v5464
      %v5544 = vunpack.c.l.b16 %v5465
      %v5545 = vunpack.c.l.b16 %v5466
      %v5546 = vunpack.c.l.b16 %v5467
      %v5547 = vunpack.c.l.b16 %v5468
      %v5548 = vunpack.c.l.b16 %v5469
      %v5549 = vunpack.c.l.b16 %v5470
      %v5550 = vunpack.c.l.b16 %v5471
      %v5551 = vunpack.c.l.b16 %v5472
      %v5552 = vunpack.c.l.b16 %v5473
      %v5553 = vunpack.c.l.b16 %v5474
      %v5554 = vunpack.c.l.b16 %v5475
      %v5555 = vunpack.c.l.b16 %v5476
      %v5556 = vunpack.c.l.b16 %v5477
      %v5557 = vunpack.c.l.b16 %v5478
      %v5558 = vunpack.c.l.b16 %v5479
      %v5559 = vunpack.c.l.b16 %v5480
      %v5560 = vunpack.c.l.b16 %v5481
      %v5561 = vunpack.c.l.b16 %v5482
      %v5562 = vunpack.c.l.b16 %v5483
      %v5563 = vunpack.c.l.b16 %v5484
      %v5564 = vunpack.c.l.b16 %v5485
      %v5565 = vunpack.c.l.b16 %v5486
      %v5566 = vunpack.c.l.b16 %v5487
      %v5567 = vunpack.c.l.b16 %v5488
      %v5568 = vunpack.c.l.b16 %v5489
      %v5569 = vunpack.c.l.b16 %v5490
      %v5570 = vunpack.c.l.b16 %v5491
      %v5571 = vunpack.c.l.b16 %v5492
      %v5572 = vunpack.c.l.b16 %v5493
      %v5573 = vunpack.c.l.b16 %v5494
      %v5574 = vunpack.c.l.b16 %v5495
      %v5575 = vunpack.c.l.b16 %v5496
      %v5576 = vunpack.c.l.b16 %v5497
      %v5577 = vunpack.c.l.b16 %v5498
      %v5578 = vunpack.c.l.b16 %v5499
      %v5579 = vpack.c.b16 %v5544, %v5543
      %v5580 = vpack.c.b16 %v5546, %v5545
      %v5581 = vpack.c.b16 %v5548, %v5547
      %v5582 = vpack.c.b16 %v5550, %v5549
      %v5583 = vpack.c.b16 %v5552, %v5551
      %v5584 = vpack.c.b16 %v5554, %v5553
      %v5585 = vpack.c.b16 %v5556, %v5555
      %v5586 = vpack.c.b16 %v5558, %v5557
      %v5587 = vpack.c.b16 %v5560, %v5559
      %v5588 = vpack.c.b16 %v5562, %v5561
      %v5589 = vpack.c.b16 %v5564, %v5563
      %v5590 = vpack.c.b16 %v5566, %v5565
      %v5591 = vpack.c.b16 %v5568, %v5567
      %v5592 = vpack.c.b16 %v5570, %v5569
      %v5593 = vpack.c.b16 %v5572, %v5571
      %v5594 = vpack.c.b16 %v5574, %v5573
      %v5595 = vpack.c.b16 %v5576, %v5575
      %v5596 = vpack.c.b16 %v5578, %v5577
      %v5616 = vsel %vm768, %v5113, 0
      %v5619 = vsel %vm768, %v5115, 0
      %v5622 = vsel %vm768, %v5117, 0
      %v5625 = vsel %vm768, %v5119, 0
      %v5628 = vsel %vm768, %v5121, 0
      %v5631 = vsel %vm768, %v5123, 0
      %v5634 = vsel %vm768, %v5125, 0
      %v5637 = vsel %vm768, %v5127, 0
      %v5640 = vsel %vm768, %v5129, 0
      %v5643 = vsel %vm768, %v5131, 0
      %v5646 = vsel %vm768, %v5133, 0
      %v5649 = vsel %vm768, %v5135, 0
      %v5652 = vsel %vm768, %v5137, 0
      %v5655 = vsel %vm768, %v5139, 0
      %v5658 = vsel %vm768, %v5141, 0
      %v5661 = vsel %vm768, %v5143, 0
      %v5664 = vsel %vm768, %v5145, 0
      %v5667 = vsel %vm768, %v5147, 0
      %v5670 = vsel %vm768, %v5149, 0
      %v5673 = vsel %vm768, %v5150, 0
      %5675 = vmatprep.subr.bf16.mxu0 0
      %5676 = vmatpush1.bf16.msra.mxu0 %v5586
      %5677 = vmatprep.subr.bf16.mxu0 0
      %5678 = vmatpush1.bf16.msra.mxu0 %v5585
      %5679 = vmatprep.subr.bf16.mxu0 0
      %5680 = vmatpush1.bf16.msra.mxu0 %v5584
      %5681 = vmatprep.subr.bf16.mxu0 0
      %5682 = vmatpush1.bf16.msra.mxu0 %v5583
      %5683 = vmatprep.subr.bf16.mxu0 0
      %5684 = vmatpush1.bf16.msra.mxu0 %v5582
      %5685 = vmatprep.subr.bf16.mxu0 0
      %5686 = vmatpush1.bf16.msra.mxu0 %v5581
      %5687 = vmatprep.subr.bf16.mxu0 0
      %5688 = vmatpush1.bf16.msra.mxu0 %v5580
      %5689 = vmatprep.subr.bf16.mxu0 0
      %5690 = vmatpush1.bf16.msra.mxu0 %v5579
      %5691 = vmatprep.subr.bf16.mxu0 0
      %5692 = vmatpush2.bf16.msra.mxu0 %v5594
      %5693 = vmatprep.subr.bf16.mxu0 0
      %5694 = vmatpush2.bf16.msra.mxu0 %v5593
      %5695 = vmatprep.subr.bf16.mxu0 0
      %5696 = vmatpush2.bf16.msra.mxu0 %v5592
      %5697 = vmatprep.subr.bf16.mxu0 0
      %5698 = vmatpush2.bf16.msra.mxu0 %v5591
      %5699 = vmatprep.subr.bf16.mxu0 0
      %5700 = vmatpush2.bf16.msra.mxu0 %v5590
      %5701 = vmatprep.subr.bf16.mxu0 0
      %5702 = vmatpush2.bf16.msra.mxu0 %v5589
      %5703 = vmatprep.subr.bf16.mxu0 0
      %5704 = vmatpush2.bf16.msra.mxu0 %v5588
      %5705 = vmatprep.subr.bf16.mxu0 0
      %5706 = vmatpush2.bf16.msra.mxu0 %v5587
      %5707 = vmatprep.mubr.bf16.mxu0 %v5403
      %5708 = vmatmul.mubr.bf16.gmra.mxu0 %v5236
      %v5709 = vpop.f32.mrf.mxu0
      %v5710 = vadd.f32 %v5505, %v5709
      %v5711 = vpop.f32.mrf.mxu0
      %v5712 = vpop.f32.mrf.mxu0
      %v5713 = vadd.f32 %v5505, %v5712
      %v5714 = vpop.f32.mrf.mxu0
      %5715 = vmatprep.mubr.bf16.mxu0 %v5406
      %5716 = vmatmul.mubr.bf16.gmra.mxu0 %v5239
      %v5717 = vpop.f32.mrf.mxu0
      %v5718 = vadd.f32 %v5505, %v5717
      %v5719 = vpop.f32.mrf.mxu0
      %v5720 = vpop.f32.mrf.mxu0
      %v5721 = vadd.f32 %v5505, %v5720
      %v5722 = vpop.f32.mrf.mxu0
      %5723 = vmatprep.mubr.bf16.mxu0 %v5409
      %5724 = vmatmul.mubr.bf16.gmra.mxu0 %v5242
      %v5725 = vpop.f32.mrf.mxu0
      %v5726 = vadd.f32 %v5505, %v5725
      %v5727 = vpop.f32.mrf.mxu0
      %v5728 = vpop.f32.mrf.mxu0
      %v5729 = vadd.f32 %v5505, %v5728
      %v5730 = vpop.f32.mrf.mxu0
      %5731 = vmatprep.mubr.bf16.mxu0 %v5412
      %5732 = vmatmul.mubr.bf16.gmra.mxu0 %v5245
      %v5733 = vpop.f32.mrf.mxu0
      %v5734 = vadd.f32 %v5505, %v5733
      %v5735 = vpop.f32.mrf.mxu0
      %v5736 = vpop.f32.mrf.mxu0
      %v5737 = vadd.f32 %v5505, %v5736
      %v5738 = vpop.f32.mrf.mxu0
      %5739 = vmatprep.mubr.bf16.mxu0 %v5415
      %5740 = vmatmul.mubr.bf16.gmra.mxu0 %v5248
      %v5741 = vpop.f32.mrf.mxu0
      %v5742 = vadd.f32 %v5505, %v5741
      %v5743 = vpop.f32.mrf.mxu0
      %v5744 = vpop.f32.mrf.mxu0
      %v5745 = vadd.f32 %v5505, %v5744
      %v5746 = vpop.f32.mrf.mxu0
      %5747 = vmatprep.mubr.bf16.mxu0 %v5418
      %5748 = vmatmul.mubr.bf16.gmra.mxu0 %v5251
      %v5749 = vpop.f32.mrf.mxu0
      %v5750 = vadd.f32 %v5505, %v5749
      %v5751 = vpop.f32.mrf.mxu0
      %v5752 = vpop.f32.mrf.mxu0
      %v5753 = vadd.f32 %v5505, %v5752
      %v5754 = vpop.f32.mrf.mxu0
      %5755 = vmatprep.mubr.bf16.mxu0 %v5421
      %5756 = vmatmul.mubr.bf16.gmra.mxu0 %v5254
      %v5757 = vpop.f32.mrf.mxu0
      %v5758 = vadd.f32 %v5505, %v5757
      %v5759 = vpop.f32.mrf.mxu0
      %v5760 = vpop.f32.mrf.mxu0
      %v5761 = vadd.f32 %v5505, %v5760
      %v5762 = vpop.f32.mrf.mxu0
      %5763 = vmatprep.mubr.bf16.mxu0 %v5424
      %5764 = vmatmul.mubr.bf16.gmra.mxu0 %v5257
      %v5765 = vpop.f32.mrf.mxu0
      %v5766 = vadd.f32 %v5505, %v5765
      %v5767 = vpop.f32.mrf.mxu0
      %v5768 = vpop.f32.mrf.mxu0
      %v5769 = vadd.f32 %v5505, %v5768
      %v5770 = vpop.f32.mrf.mxu0
      %5771 = vmatprep.mubr.bf16.mxu0 %v5427
      %5772 = vmatmul.mubr.bf16.gmra.mxu0 %v5260
      %v5773 = vpop.f32.mrf.mxu0
      %v5774 = vadd.f32 %v5505, %v5773
      %v5775 = vpop.f32.mrf.mxu0
      %v5776 = vpop.f32.mrf.mxu0
      %v5777 = vadd.f32 %v5505, %v5776
      %v5778 = vpop.f32.mrf.mxu0
      %5779 = vmatprep.mubr.bf16.mxu0 %v5430
      %5780 = vmatmul.mubr.bf16.gmra.mxu0 %v5263
      %v5781 = vpop.f32.mrf.mxu0
      %v5782 = vadd.f32 %v5505, %v5781
      %v5783 = vpop.f32.mrf.mxu0
      %v5784 = vpop.f32.mrf.mxu0
      %v5785 = vadd.f32 %v5505, %v5784
      %v5786 = vpop.f32.mrf.mxu0
      %5787 = vmatprep.mubr.bf16.mxu0 %v5433
      %5788 = vmatmul.mubr.bf16.gmra.mxu0 %v5266
      %v5789 = vpop.f32.mrf.mxu0
      %v5790 = vadd.f32 %v5505, %v5789
      %v5791 = vpop.f32.mrf.mxu0
      %v5792 = vpop.f32.mrf.mxu0
      %v5793 = vadd.f32 %v5505, %v5792
      %v5794 = vpop.f32.mrf.mxu0
      %5795 = vmatprep.mubr.bf16.mxu0 %v5436
      %5796 = vmatmul.mubr.bf16.gmra.mxu0 %v5269
      %v5797 = vpop.f32.mrf.mxu0
      %v5798 = vadd.f32 %v5505, %v5797
      %v5799 = vpop.f32.mrf.mxu0
      %v5800 = vpop.f32.mrf.mxu0
      %v5801 = vadd.f32 %v5505, %v5800
      %v5802 = vpop.f32.mrf.mxu0
      %5803 = vmatprep.mubr.bf16.mxu0 %v5439
      %5804 = vmatmul.mubr.bf16.gmra.mxu0 %v5272
      %v5805 = vpop.f32.mrf.mxu0
      %v5806 = vadd.f32 %v5505, %v5805
      %v5807 = vpop.f32.mrf.mxu0
      %v5808 = vpop.f32.mrf.mxu0
      %v5809 = vadd.f32 %v5505, %v5808
      %v5810 = vpop.f32.mrf.mxu0
      %5811 = vmatprep.mubr.bf16.mxu0 %v5442
      %5812 = vmatmul.mubr.bf16.gmra.mxu0 %v5275
      %v5813 = vpop.f32.mrf.mxu0
      %v5814 = vadd.f32 %v5505, %v5813
      %v5815 = vpop.f32.mrf.mxu0
      %v5816 = vpop.f32.mrf.mxu0
      %v5817 = vadd.f32 %v5505, %v5816
      %v5818 = vpop.f32.mrf.mxu0
      %5819 = vmatprep.mubr.bf16.mxu0 %v5445
      %5820 = vmatmul.mubr.bf16.gmra.mxu0 %v5278
      %v5821 = vpop.f32.mrf.mxu0
      %v5822 = vadd.f32 %v5505, %v5821
      %v5823 = vpop.f32.mrf.mxu0
      %v5824 = vpop.f32.mrf.mxu0
      %v5825 = vadd.f32 %v5505, %v5824
      %v5826 = vpop.f32.mrf.mxu0
      %5827 = vmatprep.mubr.bf16.mxu0 %v5448
      %5828 = vmatmul.mubr.bf16.gmra.mxu0 %v5281
      %v5829 = vpop.f32.mrf.mxu0
      %v5830 = vadd.f32 %v5505, %v5829
      %v5831 = vpop.f32.mrf.mxu0
      %v5832 = vpop.f32.mrf.mxu0
      %v5833 = vadd.f32 %v5505, %v5832
      %v5834 = vpop.f32.mrf.mxu0
      %5835 = vmatprep.mubr.bf16.mxu0 %v5451
      %5836 = vmatmul.mubr.bf16.gmra.mxu0 %v5284
      %v5837 = vpop.f32.mrf.mxu0
      %v5838 = vadd.f32 %v5505, %v5837
      %v5839 = vpop.f32.mrf.mxu0
      %v5840 = vpop.f32.mrf.mxu0
      %v5841 = vadd.f32 %v5505, %v5840
      %v5842 = vpop.f32.mrf.mxu0
      %5843 = vmatprep.mubr.bf16.mxu0 %v5454
      %5844 = vmatmul.mubr.bf16.gmra.mxu0 %v5287
      %v5845 = vpop.f32.mrf.mxu0
      %v5846 = vadd.f32 %v5505, %v5845
      %v5847 = vpop.f32.mrf.mxu0
      %v5848 = vpop.f32.mrf.mxu0
      %v5849 = vadd.f32 %v5505, %v5848
      %v5850 = vpop.f32.mrf.mxu0
      %5851 = vmatprep.mubr.bf16.mxu0 %v5457
      %5852 = vmatmul.mubr.bf16.gmra.mxu0 %v5290
      %v5853 = vpop.f32.mrf.mxu0
      %v5854 = vadd.f32 %v5505, %v5853
      %v5855 = vpop.f32.mrf.mxu0
      %v5856 = vpop.f32.mrf.mxu0
      %v5857 = vadd.f32 %v5505, %v5856
      %v5858 = vpop.f32.mrf.mxu0
      %5859 = vmatprep.mubr.bf16.mxu0 %v5460
      %5860 = vmatmul.mubr.bf16.gmra.mxu0 %v5293
      %v5861 = vpop.f32.mrf.mxu0
      %v5862 = vadd.f32 %v5505, %v5861
      %v5863 = vpop.f32.mrf.mxu0
      %v5864 = vpop.f32.mrf.mxu0
      %v5865 = vadd.f32 %v5505, %v5864
      %v5866 = vpop.f32.mrf.mxu0
      %5867 = vmatprep.mubr.bf16.mxu0 %v5462
      %5868 = vmatmul.mubr.bf16.gmra.mxu0 %v5296
      %v5869 = vpop.f32.mrf.mxu0
      %v5870 = vadd.f32 %v5505, %v5869
      %v5871 = vpop.f32.mrf.mxu0
      %v5872 = vpop.f32.mrf.mxu0
      %v5873 = vpop.f32.mrf.mxu0
      %5874 = vdwg.mxu0
      %5875 = vmatprep.subr.bf16.mxu0 0
      %5876 = vmatpush1.bf16.msra.mxu0 0
      %5877 = vmatprep.subr.bf16.mxu0 0
      %5878 = vmatpush1.bf16.msra.mxu0 0
      %5879 = vmatprep.subr.bf16.mxu0 0
      %5880 = vmatpush1.bf16.msra.mxu0 0
      %5881 = vmatprep.subr.bf16.mxu0 0
      %5882 = vmatpush1.bf16.msra.mxu0 0
      %5883 = vmatprep.subr.bf16.mxu0 0
      %5884 = vmatpush1.bf16.msra.mxu0 0
      %5885 = vmatprep.subr.bf16.mxu0 0
      %5886 = vmatpush1.bf16.msra.mxu0 0
      %5887 = vmatprep.subr.bf16.mxu0 0
      %5888 = vmatpush1.bf16.msra.mxu0 %v5596
      %5889 = vmatprep.subr.bf16.mxu0 0
      %5890 = vmatpush1.bf16.msra.mxu0 %v5595
      %5891 = vmatprep.subr.bf16.mxu0 0
      %5892 = vmatpush2.bf16.msra.mxu0 0
      %5893 = vmatprep.subr.bf16.mxu0 0
      %5894 = vmatpush2.bf16.msra.mxu0 0
      %5895 = vmatprep.subr.bf16.mxu0 0
      %5896 = vmatpush2.bf16.msra.mxu0 0
      %5897 = vmatprep.subr.bf16.mxu0 0
      %5898 = vmatpush2.bf16.msra.mxu0 0
      %5899 = vmatprep.subr.bf16.mxu0 0
      %5900 = vmatpush2.bf16.msra.mxu0 0
      %5901 = vmatprep.subr.bf16.mxu0 0
      %5902 = vmatpush2.bf16.msra.mxu0 0
      %5903 = vmatprep.subr.bf16.mxu0 0
      %5904 = vmatpush2.bf16.msra.mxu0 0
      %5905 = vmatprep.subr.bf16.mxu0 0
      %5906 = vmatpush2.bf16.msra.mxu0 0
      %5907 = vmatprep.mubr.bf16.mxu0 0
      %5908 = vmatmul.mubr.bf16.gmra.mxu0 %v5616
      %v5909 = vpop.f32.mrf.mxu0
      %v5910 = vadd.f32 %v5710, %v5909
      %v5911 = vpop.f32.mrf.mxu0
      %v5912 = vpop.f32.mrf.mxu0
      %v5913 = vadd.f32 %v5713, %v5912
      %v5914 = vpop.f32.mrf.mxu0
      %5915 = vmatprep.mubr.bf16.mxu0 0
      %5916 = vmatmul.mubr.bf16.gmra.mxu0 %v5619
      %v5917 = vpop.f32.mrf.mxu0
      %v5918 = vadd.f32 %v5718, %v5917
      %v5919 = vpop.f32.mrf.mxu0
      %v5920 = vpop.f32.mrf.mxu0
      %v5921 = vadd.f32 %v5721, %v5920
      %v5922 = vpop.f32.mrf.mxu0
      %5923 = vmatprep.mubr.bf16.mxu0 0
      %5924 = vmatmul.mubr.bf16.gmra.mxu0 %v5622
      %v5925 = vpop.f32.mrf.mxu0
      %v5926 = vadd.f32 %v5726, %v5925
      %v5927 = vpop.f32.mrf.mxu0
      %v5928 = vpop.f32.mrf.mxu0
      %v5929 = vadd.f32 %v5729, %v5928
      %v5930 = vpop.f32.mrf.mxu0
      %5931 = vmatprep.mubr.bf16.mxu0 0
      %5932 = vmatmul.mubr.bf16.gmra.mxu0 %v5625
      %v5933 = vpop.f32.mrf.mxu0
      %v5934 = vadd.f32 %v5734, %v5933
      %v5935 = vpop.f32.mrf.mxu0
      %v5936 = vpop.f32.mrf.mxu0
      %v5937 = vadd.f32 %v5737, %v5936
      %v5938 = vpop.f32.mrf.mxu0
      %5939 = vmatprep.mubr.bf16.mxu0 0
      %5940 = vmatmul.mubr.bf16.gmra.mxu0 %v5628
      %v5941 = vpop.f32.mrf.mxu0
      %v5942 = vadd.f32 %v5742, %v5941
      %v5943 = vpop.f32.mrf.mxu0
      %v5944 = vpop.f32.mrf.mxu0
      %v5945 = vadd.f32 %v5745, %v5944
      %v5946 = vpop.f32.mrf.mxu0
      %5947 = vmatprep.mubr.bf16.mxu0 0
      %5948 = vmatmul.mubr.bf16.gmra.mxu0 %v5631
      %v5949 = vpop.f32.mrf.mxu0
      %v5950 = vadd.f32 %v5750, %v5949
      %v5951 = vpop.f32.mrf.mxu0
      %v5952 = vpop.f32.mrf.mxu0
      %v5953 = vadd.f32 %v5753, %v5952
      %v5954 = vpop.f32.mrf.mxu0
      %5955 = vmatprep.mubr.bf16.mxu0 0
      %5956 = vmatmul.mubr.bf16.gmra.mxu0 %v5634
      %v5957 = vpop.f32.mrf.mxu0
      %v5958 = vadd.f32 %v5758, %v5957
      %v5959 = vpop.f32.mrf.mxu0
      %v5960 = vpop.f32.mrf.mxu0
      %v5961 = vadd.f32 %v5761, %v5960
      %v5962 = vpop.f32.mrf.mxu0
      %5963 = vmatprep.mubr.bf16.mxu0 0
      %5964 = vmatmul.mubr.bf16.gmra.mxu0 %v5637
      %v5965 = vpop.f32.mrf.mxu0
      %v5966 = vadd.f32 %v5766, %v5965
      %v5967 = vpop.f32.mrf.mxu0
      %v5968 = vpop.f32.mrf.mxu0
      %v5969 = vadd.f32 %v5769, %v5968
      %v5970 = vpop.f32.mrf.mxu0
      %5971 = vmatprep.mubr.bf16.mxu0 0
      %5972 = vmatmul.mubr.bf16.gmra.mxu0 %v5640
      %v5973 = vpop.f32.mrf.mxu0
      %v5974 = vadd.f32 %v5774, %v5973
      %v5975 = vpop.f32.mrf.mxu0
      %v5976 = vpop.f32.mrf.mxu0
      %v5977 = vadd.f32 %v5777, %v5976
      %v5978 = vpop.f32.mrf.mxu0
      %5979 = vmatprep.mubr.bf16.mxu0 0
      %5980 = vmatmul.mubr.bf16.gmra.mxu0 %v5643
      %v5981 = vpop.f32.mrf.mxu0
      %v5982 = vadd.f32 %v5782, %v5981
      %v5983 = vpop.f32.mrf.mxu0
      %v5984 = vpop.f32.mrf.mxu0
      %v5985 = vadd.f32 %v5785, %v5984
      %v5986 = vpop.f32.mrf.mxu0
      %5987 = vmatprep.mubr.bf16.mxu0 0
      %5988 = vmatmul.mubr.bf16.gmra.mxu0 %v5646
      %v5989 = vpop.f32.mrf.mxu0
      %v5990 = vadd.f32 %v5790, %v5989
      %v5991 = vpop.f32.mrf.mxu0
      %v5992 = vpop.f32.mrf.mxu0
      %v5993 = vadd.f32 %v5793, %v5992
      %v5994 = vpop.f32.mrf.mxu0
      %5995 = vmatprep.mubr.bf16.mxu0 0
      %5996 = vmatmul.mubr.bf16.gmra.mxu0 %v5649
      %v5997 = vpop.f32.mrf.mxu0
      %v5998 = vadd.f32 %v5798, %v5997
      %v5999 = vpop.f32.mrf.mxu0
      %v6000 = vpop.f32.mrf.mxu0
      %v6001 = vadd.f32 %v5801, %v6000
      %v6002 = vpop.f32.mrf.mxu0
      %6003 = vmatprep.mubr.bf16.mxu0 0
      %6004 = vmatmul.mubr.bf16.gmra.mxu0 %v5652
      %v6005 = vpop.f32.mrf.mxu0
      %v6006 = vadd.f32 %v5806, %v6005
      %v6007 = vpop.f32.mrf.mxu0
      %v6008 = vpop.f32.mrf.mxu0
      %v6009 = vadd.f32 %v5809, %v6008
      %v6010 = vpop.f32.mrf.mxu0
      %6011 = vmatprep.mubr.bf16.mxu0 0
      %6012 = vmatmul.mubr.bf16.gmra.mxu0 %v5655
      %v6013 = vpop.f32.mrf.mxu0
      %v6014 = vadd.f32 %v5814, %v6013
      %v6015 = vpop.f32.mrf.mxu0
      %v6016 = vpop.f32.mrf.mxu0
      %v6017 = vadd.f32 %v5817, %v6016
      %v6018 = vpop.f32.mrf.mxu0
      %6019 = vmatprep.mubr.bf16.mxu0 0
      %6020 = vmatmul.mubr.bf16.gmra.mxu0 %v5658
      %v6021 = vpop.f32.mrf.mxu0
      %v6022 = vadd.f32 %v5822, %v6021
      %v6023 = vpop.f32.mrf.mxu0
      %v6024 = vpop.f32.mrf.mxu0
      %v6025 = vadd.f32 %v5825, %v6024
      %v6026 = vpop.f32.mrf.mxu0
      %6027 = vmatprep.mubr.bf16.mxu0 0
      %6028 = vmatmul.mubr.bf16.gmra.mxu0 %v5661
      %v6029 = vpop.f32.mrf.mxu0
      %v6030 = vadd.f32 %v5830, %v6029
      %v6031 = vpop.f32.mrf.mxu0
      %v6032 = vpop.f32.mrf.mxu0
      %v6033 = vadd.f32 %v5833, %v6032
      %v6034 = vpop.f32.mrf.mxu0
      %6035 = vmatprep.mubr.bf16.mxu0 0
      %6036 = vmatmul.mubr.bf16.gmra.mxu0 %v5664
      %v6037 = vpop.f32.mrf.mxu0
      %v6038 = vadd.f32 %v5838, %v6037
      %v6039 = vpop.f32.mrf.mxu0
      %v6040 = vpop.f32.mrf.mxu0
      %v6041 = vadd.f32 %v5841, %v6040
      %v6042 = vpop.f32.mrf.mxu0
      %6043 = vmatprep.mubr.bf16.mxu0 0
      %6044 = vmatmul.mubr.bf16.gmra.mxu0 %v5667
      %v6045 = vpop.f32.mrf.mxu0
      %v6046 = vadd.f32 %v5846, %v6045
      %v6047 = vpop.f32.mrf.mxu0
      %v6048 = vpop.f32.mrf.mxu0
      %v6049 = vadd.f32 %v5849, %v6048
      %v6050 = vpop.f32.mrf.mxu0
      %6051 = vmatprep.mubr.bf16.mxu0 0
      %6052 = vmatmul.mubr.bf16.gmra.mxu0 %v5670
      %v6053 = vpop.f32.mrf.mxu0
      %v6054 = vadd.f32 %v5854, %v6053
      %v6055 = vpop.f32.mrf.mxu0
      %v6056 = vpop.f32.mrf.mxu0
      %v6057 = vadd.f32 %v5857, %v6056
      %v6058 = vpop.f32.mrf.mxu0
      %6059 = vmatprep.mubr.bf16.mxu0 0
      %6060 = vmatmul.mubr.bf16.gmra.mxu0 %v5673
      %v6061 = vpop.f32.mrf.mxu0
      %v6062 = vadd.f32 %v5862, %v6061
      %v6063 = vpop.f32.mrf.mxu0
      %v6064 = vpop.f32.mrf.mxu0
      %v6065 = vadd.f32 %v5865, %v6064
      %v6066 = vpop.f32.mrf.mxu0
      %6067 = vmatprep.mubr.bf16.mxu0 0
      %6068 = vmatmul.mubr.bf16.gmra.mxu0 %v2445
      %v6069 = vpop.f32.mrf.mxu0
      %v6070 = vadd.f32 %v5870, %v6069
      %v6071 = vpop.f32.mrf.mxu0
      %v6072 = vpop.f32.mrf.mxu0
      %v6073 = vpop.f32.mrf.mxu0
      %6074 = vdwg.mxu0
      %v6075 = vmul.f32 %v5910, %v5910
      %v6076 = vmul.f32 %v5913, %v5913
      %v6077 = vmul.f32 %v5918, %v5918
      %v6078 = vmul.f32 %v5921, %v5921
      %v6079 = vmul.f32 %v5926, %v5926
      %v6080 = vmul.f32 %v5929, %v5929
      %v6081 = vmul.f32 %v5934, %v5934
      %v6082 = vmul.f32 %v5937, %v5937
      %v6083 = vmul.f32 %v5942, %v5942
      %v6084 = vmul.f32 %v5945, %v5945
      %v6085 = vmul.f32 %v5950, %v5950
      %v6086 = vmul.f32 %v5953, %v5953
      %v6087 = vmul.f32 %v5958, %v5958
      %v6088 = vmul.f32 %v5961, %v5961
      %v6089 = vmul.f32 %v5966, %v5966
      %v6090 = vmul.f32 %v5969, %v5969
      %v6091 = vmul.f32 %v5974, %v5974
      %v6092 = vmul.f32 %v5977, %v5977
      %v6093 = vmul.f32 %v5982, %v5982
      %v6094 = vmul.f32 %v5985, %v5985
      %v6095 = vmul.f32 %v5990, %v5990
      %v6096 = vmul.f32 %v5993, %v5993
      %v6097 = vmul.f32 %v5998, %v5998
      %v6098 = vmul.f32 %v6001, %v6001
      %v6099 = vmul.f32 %v6006, %v6006
      %v6100 = vmul.f32 %v6009, %v6009
      %v6101 = vmul.f32 %v6014, %v6014
      %v6102 = vmul.f32 %v6017, %v6017
      %v6103 = vmul.f32 %v6022, %v6022
      %v6104 = vmul.f32 %v6025, %v6025
      %v6105 = vmul.f32 %v6030, %v6030
      %v6106 = vmul.f32 %v6033, %v6033
      %v6107 = vmul.f32 %v6038, %v6038
      %v6108 = vmul.f32 %v6041, %v6041
      %v6109 = vmul.f32 %v6046, %v6046
      %v6110 = vmul.f32 %v6049, %v6049
      %v6111 = vmul.f32 %v6054, %v6054
      %v6112 = vmul.f32 %v6057, %v6057
      %v6113 = vmul.f32 %v6062, %v6062
      %v6114 = vmul.f32 %v6065, %v6065
      %v6115 = vmul.f32 %v6070, %v6070
      %v6116 = vsel %vm768, %v6075, 0.0
      %6117 = vadd.xlane.f32.xlu0 %v6116
      %v6118 = vpop.xlane.xlu0 %6117
      %v6119 = vsel %vm768, %v6076, 0.0
      %6120 = vadd.xlane.f32.xlu0 %v6119
      %v6121 = vpop.xlane.xlu0 %6120
      %v6122 = vsel %vm768, %v6077, 0.0
      %6123 = vadd.xlane.f32.xlu0 %v6122
      %v6124 = vpop.xlane.xlu0 %6123
      %v6125 = vsel %vm768, %v6078, 0.0
      %6126 = vadd.xlane.f32.xlu0 %v6125
      %v6127 = vpop.xlane.xlu0 %6126
      %v6128 = vsel %vm768, %v6079, 0.0
      %6129 = vadd.xlane.f32.xlu0 %v6128
      %v6130 = vpop.xlane.xlu0 %6129
      %v6131 = vsel %vm768, %v6080, 0.0
      %6132 = vadd.xlane.f32.xlu0 %v6131
      %v6133 = vpop.xlane.xlu0 %6132
      %v6134 = vsel %vm768, %v6081, 0.0
      %6135 = vadd.xlane.f32.xlu0 %v6134
      %v6136 = vpop.xlane.xlu0 %6135
      %v6137 = vsel %vm768, %v6082, 0.0
      %6138 = vadd.xlane.f32.xlu0 %v6137
      %v6139 = vpop.xlane.xlu0 %6138
      %v6140 = vsel %vm768, %v6083, 0.0
      %6141 = vadd.xlane.f32.xlu0 %v6140
      %v6142 = vpop.xlane.xlu0 %6141
      %v6143 = vsel %vm768, %v6084, 0.0
      %6144 = vadd.xlane.f32.xlu0 %v6143
      %v6145 = vpop.xlane.xlu0 %6144
      %v6146 = vsel %vm768, %v6085, 0.0
      %6147 = vadd.xlane.f32.xlu0 %v6146
      %v6148 = vpop.xlane.xlu0 %6147
      %v6149 = vsel %vm768, %v6086, 0.0
      %6150 = vadd.xlane.f32.xlu0 %v6149
      %v6151 = vpop.xlane.xlu0 %6150
      %v6152 = vsel %vm768, %v6087, 0.0
      %6153 = vadd.xlane.f32.xlu0 %v6152
      %v6154 = vpop.xlane.xlu0 %6153
      %v6155 = vsel %vm768, %v6088, 0.0
      %6156 = vadd.xlane.f32.xlu0 %v6155
      %v6157 = vpop.xlane.xlu0 %6156
      %v6158 = vsel %vm768, %v6089, 0.0
      %6159 = vadd.xlane.f32.xlu0 %v6158
      %v6160 = vpop.xlane.xlu0 %6159
      %v6161 = vsel %vm768, %v6090, 0.0
      %6162 = vadd.xlane.f32.xlu0 %v6161
      %v6163 = vpop.xlane.xlu0 %6162
      %v6164 = vsel %vm768, %v6091, 0.0
      %6165 = vadd.xlane.f32.xlu0 %v6164
      %v6166 = vpop.xlane.xlu0 %6165
      %v6167 = vsel %vm768, %v6092, 0.0
      %6168 = vadd.xlane.f32.xlu0 %v6167
      %v6169 = vpop.xlane.xlu0 %6168
      %v6170 = vsel %vm768, %v6093, 0.0
      %6171 = vadd.xlane.f32.xlu0 %v6170
      %v6172 = vpop.xlane.xlu0 %6171
      %v6173 = vsel %vm768, %v6094, 0.0
      %6174 = vadd.xlane.f32.xlu0 %v6173
      %v6175 = vpop.xlane.xlu0 %6174
      %v6176 = vsel %vm768, %v6095, 0.0
      %6177 = vadd.xlane.f32.xlu0 %v6176
      %v6178 = vpop.xlane.xlu0 %6177
      %v6179 = vsel %vm768, %v6096, 0.0
      %6180 = vadd.xlane.f32.xlu0 %v6179
      %v6181 = vpop.xlane.xlu0 %6180
      %v6182 = vsel %vm768, %v6097, 0.0
      %6183 = vadd.xlane.f32.xlu0 %v6182
      %v6184 = vpop.xlane.xlu0 %6183
      %v6185 = vsel %vm768, %v6098, 0.0
      %6186 = vadd.xlane.f32.xlu0 %v6185
      %v6187 = vpop.xlane.xlu0 %6186
      %v6188 = vsel %vm768, %v6099, 0.0
      %6189 = vadd.xlane.f32.xlu0 %v6188
      %v6190 = vpop.xlane.xlu0 %6189
      %v6191 = vsel %vm768, %v6100, 0.0
      %6192 = vadd.xlane.f32.xlu0 %v6191
      %v6193 = vpop.xlane.xlu0 %6192
      %v6194 = vsel %vm768, %v6101, 0.0
      %6195 = vadd.xlane.f32.xlu0 %v6194
      %v6196 = vpop.xlane.xlu0 %6195
      %v6197 = vsel %vm768, %v6102, 0.0
      %6198 = vadd.xlane.f32.xlu0 %v6197
      %v6199 = vpop.xlane.xlu0 %6198
      %v6200 = vsel %vm768, %v6103, 0.0
      %6201 = vadd.xlane.f32.xlu0 %v6200
      %v6202 = vpop.xlane.xlu0 %6201
      %v6203 = vsel %vm768, %v6104, 0.0
      %6204 = vadd.xlane.f32.xlu0 %v6203
      %v6205 = vpop.xlane.xlu0 %6204
      %v6206 = vsel %vm768, %v6105, 0.0
      %6207 = vadd.xlane.f32.xlu0 %v6206
      %v6208 = vpop.xlane.xlu0 %6207
      %v6209 = vsel %vm768, %v6106, 0.0
      %6210 = vadd.xlane.f32.xlu0 %v6209
      %v6211 = vpop.xlane.xlu0 %6210
      %v6212 = vsel %vm768, %v6107, 0.0
      %6213 = vadd.xlane.f32.xlu0 %v6212
      %v6214 = vpop.xlane.xlu0 %6213
      %v6215 = vsel %vm768, %v6108, 0.0
      %6216 = vadd.xlane.f32.xlu0 %v6215
      %v6217 = vpop.xlane.xlu0 %6216
      %v6218 = vsel %vm768, %v6109, 0.0
      %6219 = vadd.xlane.f32.xlu0 %v6218
      %v6220 = vpop.xlane.xlu0 %6219
      %v6221 = vsel %vm768, %v6110, 0.0
      %6222 = vadd.xlane.f32.xlu0 %v6221
      %v6223 = vpop.xlane.xlu0 %6222
      %v6224 = vsel %vm768, %v6111, 0.0
      %6225 = vadd.xlane.f32.xlu0 %v6224
      %v6226 = vpop.xlane.xlu0 %6225
      %v6227 = vsel %vm768, %v6112, 0.0
      %6228 = vadd.xlane.f32.xlu0 %v6227
      %v6229 = vpop.xlane.xlu0 %6228
      %v6230 = vsel %vm768, %v6113, 0.0
      %6231 = vadd.xlane.f32.xlu0 %v6230
      %v6232 = vpop.xlane.xlu0 %6231
      %v6233 = vsel %vm768, %v6114, 0.0
      %6234 = vadd.xlane.f32.xlu0 %v6233
      %v6235 = vpop.xlane.xlu0 %6234
      %v6236 = vsel %vm1041, %v6115, 0.0
      %6237 = vadd.xlane.f32.xlu0 %v6236
      %v6238 = vpop.xlane.xlu0 %6237
      %v6239 = vmul.f32 %v6118, %v1045
      %v6240 = vmul.f32 %v6121, %v1045
      %v6241 = vmul.f32 %v6124, %v1045
      %v6242 = vmul.f32 %v6127, %v1045
      %v6243 = vmul.f32 %v6130, %v1045
      %v6244 = vmul.f32 %v6133, %v1045
      %v6245 = vmul.f32 %v6136, %v1045
      %v6246 = vmul.f32 %v6139, %v1045
      %v6247 = vmul.f32 %v6142, %v1045
      %v6248 = vmul.f32 %v6145, %v1045
      %v6249 = vmul.f32 %v6148, %v1045
      %v6250 = vmul.f32 %v6151, %v1045
      %v6251 = vmul.f32 %v6154, %v1045
      %v6252 = vmul.f32 %v6157, %v1045
      %v6253 = vmul.f32 %v6160, %v1045
      %v6254 = vmul.f32 %v6163, %v1045
      %v6255 = vmul.f32 %v6166, %v1045
      %v6256 = vmul.f32 %v6169, %v1045
      %v6257 = vmul.f32 %v6172, %v1045
      %v6258 = vmul.f32 %v6175, %v1045
      %v6259 = vmul.f32 %v6178, %v1045
      %v6260 = vmul.f32 %v6181, %v1045
      %v6261 = vmul.f32 %v6184, %v1045
      %v6262 = vmul.f32 %v6187, %v1045
      %v6263 = vmul.f32 %v6190, %v1045
      %v6264 = vmul.f32 %v6193, %v1045
      %v6265 = vmul.f32 %v6196, %v1045
      %v6266 = vmul.f32 %v6199, %v1045
      %v6267 = vmul.f32 %v6202, %v1045
      %v6268 = vmul.f32 %v6205, %v1045
      %v6269 = vmul.f32 %v6208, %v1045
      %v6270 = vmul.f32 %v6211, %v1045
      %v6271 = vmul.f32 %v6214, %v1045
      %v6272 = vmul.f32 %v6217, %v1045
      %v6273 = vmul.f32 %v6220, %v1045
      %v6274 = vmul.f32 %v6223, %v1045
      %v6275 = vmul.f32 %v6226, %v1045
      %v6276 = vmul.f32 %v6229, %v1045
      %v6277 = vmul.f32 %v6232, %v1045
      %v6278 = vmul.f32 %v6235, %v1045
      %v6279 = vmul.f32 %v6238, %v1045
      %v6280 = vadd.f32 %v6239, 1e-08
      %v6281 = vadd.f32 %v6240, 1e-08
      %v6282 = vadd.f32 %v6241, 1e-08
      %v6283 = vadd.f32 %v6242, 1e-08
      %v6284 = vadd.f32 %v6243, 1e-08
      %v6285 = vadd.f32 %v6244, 1e-08
      %v6286 = vadd.f32 %v6245, 1e-08
      %v6287 = vadd.f32 %v6246, 1e-08
      %v6288 = vadd.f32 %v6247, 1e-08
      %v6289 = vadd.f32 %v6248, 1e-08
      %v6290 = vadd.f32 %v6249, 1e-08
      %v6291 = vadd.f32 %v6250, 1e-08
      %v6292 = vadd.f32 %v6251, 1e-08
      %v6293 = vadd.f32 %v6252, 1e-08
      %v6294 = vadd.f32 %v6253, 1e-08
      %v6295 = vadd.f32 %v6254, 1e-08
      %v6296 = vadd.f32 %v6255, 1e-08
      %v6297 = vadd.f32 %v6256, 1e-08
      %v6298 = vadd.f32 %v6257, 1e-08
      %v6299 = vadd.f32 %v6258, 1e-08
      %v6300 = vadd.f32 %v6259, 1e-08
      %v6301 = vadd.f32 %v6260, 1e-08
      %v6302 = vadd.f32 %v6261, 1e-08
      %v6303 = vadd.f32 %v6262, 1e-08
      %v6304 = vadd.f32 %v6263, 1e-08
      %v6305 = vadd.f32 %v6264, 1e-08
      %v6306 = vadd.f32 %v6265, 1e-08
      %v6307 = vadd.f32 %v6266, 1e-08
      %v6308 = vadd.f32 %v6267, 1e-08
      %v6309 = vadd.f32 %v6268, 1e-08
      %v6310 = vadd.f32 %v6269, 1e-08
      %v6311 = vadd.f32 %v6270, 1e-08
      %v6312 = vadd.f32 %v6271, 1e-08
      %v6313 = vadd.f32 %v6272, 1e-08
      %v6314 = vadd.f32 %v6273, 1e-08
      %v6315 = vadd.f32 %v6274, 1e-08
      %v6316 = vadd.f32 %v6275, 1e-08
      %v6317 = vadd.f32 %v6276, 1e-08
      %v6318 = vadd.f32 %v6277, 1e-08
      %v6319 = vadd.f32 %v6278, 1e-08
      %v6320 = vadd.f32 %v6279, 1e-08
      %v6321 = vrsqrt.pop %v6280
      %v6322 = vrsqrt.pop %v6281
      %v6323 = vrsqrt.pop %v6282
      %v6324 = vrsqrt.pop %v6283
      %v6325 = vrsqrt.pop %v6284
      %v6326 = vrsqrt.pop %v6285
      %v6327 = vrsqrt.pop %v6286
      %v6328 = vrsqrt.pop %v6287
      %v6329 = vrsqrt.pop %v6288
      %v6330 = vrsqrt.pop %v6289
      %v6331 = vrsqrt.pop %v6290
      %v6332 = vrsqrt.pop %v6291
      %v6333 = vrsqrt.pop %v6292
      %v6334 = vrsqrt.pop %v6293
      %v6335 = vrsqrt.pop %v6294
      %v6336 = vrsqrt.pop %v6295
      %v6337 = vrsqrt.pop %v6296
      %v6338 = vrsqrt.pop %v6297
      %v6339 = vrsqrt.pop %v6298
      %v6340 = vrsqrt.pop %v6299
      %v6341 = vrsqrt.pop %v6300
      %v6342 = vrsqrt.pop %v6301
      %v6343 = vrsqrt.pop %v6302
      %v6344 = vrsqrt.pop %v6303
      %v6345 = vrsqrt.pop %v6304
      %v6346 = vrsqrt.pop %v6305
      %v6347 = vrsqrt.pop %v6306
      %v6348 = vrsqrt.pop %v6307
      %v6349 = vrsqrt.pop %v6308
      %v6350 = vrsqrt.pop %v6309
      %v6351 = vrsqrt.pop %v6310
      %v6352 = vrsqrt.pop %v6311
      %v6353 = vrsqrt.pop %v6312
      %v6354 = vrsqrt.pop %v6313
      %v6355 = vrsqrt.pop %v6314
      %v6356 = vrsqrt.pop %v6315
      %v6357 = vrsqrt.pop %v6316
      %v6358 = vrsqrt.pop %v6317
      %v6359 = vrsqrt.pop %v6318
      %v6360 = vrsqrt.pop %v6319
      %v6361 = vrsqrt.pop %v6320
      %v6362 = vmul.f32 %v5910, %v6321
      %v6363 = vmul.f32 %v5913, %v6322
      %v6364 = vmul.f32 %v5918, %v6323
      %v6365 = vmul.f32 %v5921, %v6324
      %v6366 = vmul.f32 %v5926, %v6325
      %v6367 = vmul.f32 %v5929, %v6326
      %v6368 = vmul.f32 %v5934, %v6327
      %v6369 = vmul.f32 %v5937, %v6328
      %v6370 = vmul.f32 %v5942, %v6329
      %v6371 = vmul.f32 %v5945, %v6330
      %v6372 = vmul.f32 %v5950, %v6331
      %v6373 = vmul.f32 %v5953, %v6332
      %v6374 = vmul.f32 %v5958, %v6333
      %v6375 = vmul.f32 %v5961, %v6334
      %v6376 = vmul.f32 %v5966, %v6335
      %v6377 = vmul.f32 %v5969, %v6336
      %v6378 = vmul.f32 %v5974, %v6337
      %v6379 = vmul.f32 %v5977, %v6338
      %v6380 = vmul.f32 %v5982, %v6339
      %v6381 = vmul.f32 %v5985, %v6340
      %v6382 = vmul.f32 %v5990, %v6341
      %v6383 = vmul.f32 %v5993, %v6342
      %v6384 = vmul.f32 %v5998, %v6343
      %v6385 = vmul.f32 %v6001, %v6344
      %v6386 = vmul.f32 %v6006, %v6345
      %v6387 = vmul.f32 %v6009, %v6346
      %v6388 = vmul.f32 %v6014, %v6347
      %v6389 = vmul.f32 %v6017, %v6348
      %v6390 = vmul.f32 %v6022, %v6349
      %v6391 = vmul.f32 %v6025, %v6350
      %v6392 = vmul.f32 %v6030, %v6351
      %v6393 = vmul.f32 %v6033, %v6352
      %v6394 = vmul.f32 %v6038, %v6353
      %v6395 = vmul.f32 %v6041, %v6354
      %v6396 = vmul.f32 %v6046, %v6355
      %v6397 = vmul.f32 %v6049, %v6356
      %v6398 = vmul.f32 %v6054, %v6357
      %v6399 = vmul.f32 %v6057, %v6358
      %v6400 = vmul.f32 %v6062, %v6359
      %v6401 = vmul.f32 %v6065, %v6360
      %v6402 = vmul.f32 %v6070, %v6361
      %vm6403 = vcmp.gt.f32.partialorder %v6362, 0.0
      %vm6404 = vcmp.gt.f32.partialorder %v6363, 0.0
      %vm6405 = vcmp.gt.f32.partialorder %v6364, 0.0
      %vm6406 = vcmp.gt.f32.partialorder %v6365, 0.0
      %vm6407 = vcmp.gt.f32.partialorder %v6366, 0.0
      %vm6408 = vcmp.gt.f32.partialorder %v6367, 0.0
      %vm6409 = vcmp.gt.f32.partialorder %v6368, 0.0
      %vm6410 = vcmp.gt.f32.partialorder %v6369, 0.0
      %vm6411 = vcmp.gt.f32.partialorder %v6370, 0.0
      %vm6412 = vcmp.gt.f32.partialorder %v6371, 0.0
      %vm6413 = vcmp.gt.f32.partialorder %v6372, 0.0
      %vm6414 = vcmp.gt.f32.partialorder %v6373, 0.0
      %vm6415 = vcmp.gt.f32.partialorder %v6374, 0.0
      %vm6416 = vcmp.gt.f32.partialorder %v6375, 0.0
      %vm6417 = vcmp.gt.f32.partialorder %v6376, 0.0
      %vm6418 = vcmp.gt.f32.partialorder %v6377, 0.0
      %vm6419 = vcmp.gt.f32.partialorder %v6378, 0.0
      %vm6420 = vcmp.gt.f32.partialorder %v6379, 0.0
      %vm6421 = vcmp.gt.f32.partialorder %v6380, 0.0
      %vm6422 = vcmp.gt.f32.partialorder %v6381, 0.0
      %vm6423 = vcmp.gt.f32.partialorder %v6382, 0.0
      %vm6424 = vcmp.gt.f32.partialorder %v6383, 0.0
      %vm6425 = vcmp.gt.f32.partialorder %v6384, 0.0
      %vm6426 = vcmp.gt.f32.partialorder %v6385, 0.0
      %vm6427 = vcmp.gt.f32.partialorder %v6386, 0.0
      %vm6428 = vcmp.gt.f32.partialorder %v6387, 0.0
      %vm6429 = vcmp.gt.f32.partialorder %v6388, 0.0
      %vm6430 = vcmp.gt.f32.partialorder %v6389, 0.0
      %vm6431 = vcmp.gt.f32.partialorder %v6390, 0.0
      %vm6432 = vcmp.gt.f32.partialorder %v6391, 0.0
      %vm6433 = vcmp.gt.f32.partialorder %v6392, 0.0
      %vm6434 = vcmp.gt.f32.partialorder %v6393, 0.0
      %vm6435 = vcmp.gt.f32.partialorder %v6394, 0.0
      %vm6436 = vcmp.gt.f32.partialorder %v6395, 0.0
      %vm6437 = vcmp.gt.f32.partialorder %v6396, 0.0
      %vm6438 = vcmp.gt.f32.partialorder %v6397, 0.0
      %vm6439 = vcmp.gt.f32.partialorder %v6398, 0.0
      %vm6440 = vcmp.gt.f32.partialorder %v6399, 0.0
      %vm6441 = vcmp.gt.f32.partialorder %v6400, 0.0
      %vm6442 = vcmp.gt.f32.partialorder %v6401, 0.0
      %vm6443 = vcmp.gt.f32.partialorder %v6402, 0.0
      %v6444 = vmul.f32 %v6362, 0.2
      %v6445 = vmul.f32 %v6363, 0.2
      %v6446 = vmul.f32 %v6364, 0.2
      %v6447 = vmul.f32 %v6365, 0.2
      %v6448 = vmul.f32 %v6366, 0.2
      %v6449 = vmul.f32 %v6367, 0.2
      %v6450 = vmul.f32 %v6368, 0.2
      %v6451 = vmul.f32 %v6369, 0.2
      %v6452 = vmul.f32 %v6370, 0.2
      %v6453 = vmul.f32 %v6371, 0.2
      %v6454 = vmul.f32 %v6372, 0.2
      %v6455 = vmul.f32 %v6373, 0.2
      %v6456 = vmul.f32 %v6374, 0.2
      %v6457 = vmul.f32 %v6375, 0.2
      %v6458 = vmul.f32 %v6376, 0.2
      %v6459 = vmul.f32 %v6377, 0.2
      %v6460 = vmul.f32 %v6378, 0.2
      %v6461 = vmul.f32 %v6379, 0.2
      %v6462 = vmul.f32 %v6380, 0.2
      %v6463 = vmul.f32 %v6381, 0.2
      %v6464 = vmul.f32 %v6382, 0.2
      %v6465 = vmul.f32 %v6383, 0.2
      %v6466 = vmul.f32 %v6384, 0.2
      %v6467 = vmul.f32 %v6385, 0.2
      %v6468 = vmul.f32 %v6386, 0.2
      %v6469 = vmul.f32 %v6387, 0.2
      %v6470 = vmul.f32 %v6388, 0.2
      %v6471 = vmul.f32 %v6389, 0.2
      %v6472 = vmul.f32 %v6390, 0.2
      %v6473 = vmul.f32 %v6391, 0.2
      %v6474 = vmul.f32 %v6392, 0.2
      %v6475 = vmul.f32 %v6393, 0.2
      %v6476 = vmul.f32 %v6394, 0.2
      %v6477 = vmul.f32 %v6395, 0.2
      %v6478 = vmul.f32 %v6396, 0.2
      %v6479 = vmul.f32 %v6397, 0.2
      %v6480 = vmul.f32 %v6398, 0.2
      %v6481 = vmul.f32 %v6399, 0.2
      %v6482 = vmul.f32 %v6400, 0.2
      %v6483 = vmul.f32 %v6401, 0.2
      %v6484 = vmul.f32 %v6402, 0.2
      %v6485 = vsel %vm6403, %v6362, %v6444
      %v6486 = vsel %vm6404, %v6363, %v6445
      %v6487 = vsel %vm6405, %v6364, %v6446
      %v6488 = vsel %vm6406, %v6365, %v6447
      %v6489 = vsel %vm6407, %v6366, %v6448
      %v6490 = vsel %vm6408, %v6367, %v6449
      %v6491 = vsel %vm6409, %v6368, %v6450
      %v6492 = vsel %vm6410, %v6369, %v6451
      %v6493 = vsel %vm6411, %v6370, %v6452
      %v6494 = vsel %vm6412, %v6371, %v6453
      %v6495 = vsel %vm6413, %v6372, %v6454
      %v6496 = vsel %vm6414, %v6373, %v6455
      %v6497 = vsel %vm6415, %v6374, %v6456
      %v6498 = vsel %vm6416, %v6375, %v6457
      %v6499 = vsel %vm6417, %v6376, %v6458
      %v6500 = vsel %vm6418, %v6377, %v6459
      %v6501 = vsel %vm6419, %v6378, %v6460
      %v6502 = vsel %vm6420, %v6379, %v6461
      %v6503 = vsel %vm6421, %v6380, %v6462
      %v6504 = vsel %vm6422, %v6381, %v6463
      %v6505 = vsel %vm6423, %v6382, %v6464
      %v6506 = vsel %vm6424, %v6383, %v6465
      %v6507 = vsel %vm6425, %v6384, %v6466
      %v6508 = vsel %vm6426, %v6385, %v6467
      %v6509 = vsel %vm6427, %v6386, %v6468
      %v6510 = vsel %vm6428, %v6387, %v6469
      %v6511 = vsel %vm6429, %v6388, %v6470
      %v6512 = vsel %vm6430, %v6389, %v6471
      %v6513 = vsel %vm6431, %v6390, %v6472
      %v6514 = vsel %vm6432, %v6391, %v6473
      %v6515 = vsel %vm6433, %v6392, %v6474
      %v6516 = vsel %vm6434, %v6393, %v6475
      %v6517 = vsel %vm6435, %v6394, %v6476
      %v6518 = vsel %vm6436, %v6395, %v6477
      %v6519 = vsel %vm6437, %v6396, %v6478
      %v6520 = vsel %vm6438, %v6397, %v6479
      %v6521 = vsel %vm6439, %v6398, %v6480
      %v6522 = vsel %vm6440, %v6399, %v6481
      %v6523 = vsel %vm6441, %v6400, %v6482
      %v6524 = vsel %vm6442, %v6401, %v6483
      %v6525 = vsel %vm6443, %v6402, %v6484
      %6527 = vset.pattern.permute.xlu0 0
      %6528 = vperm.xlu0 %6527, %v4190
      %v6529 = vpop.permute.xlu0 %6528
      %6532 = vset.pattern.permute.xlu0 0
      %6533 = vperm.xlu0 %6532, %v4191
      %v6534 = vpop.permute.xlu0 %6533
      %6537 = vset.pattern.permute.xlu0 0
      %6538 = vperm.xlu0 %6537, %v4192
      %v6539 = vpop.permute.xlu0 %6538
      %6542 = vset.pattern.permute.xlu0 0
      %6543 = vperm.xlu0 %6542, %v4193
      %v6544 = vpop.permute.xlu0 %6543
      %6547 = vset.pattern.permute.xlu0 0
      %6548 = vperm.xlu0 %6547, %v4194
      %v6549 = vpop.permute.xlu0 %6548
      %6552 = vset.pattern.permute.xlu0 0
      %6553 = vperm.xlu0 %6552, %v4195
      %v6554 = vpop.permute.xlu0 %6553
      %6557 = vset.pattern.permute.xlu0 0
      %6558 = vperm.xlu0 %6557, %v4196
      %v6559 = vpop.permute.xlu0 %6558
      %6562 = vset.pattern.permute.xlu0 0
      %6563 = vperm.xlu0 %6562, %v4197
      %v6564 = vpop.permute.xlu0 %6563
      %6567 = vset.pattern.permute.xlu0 0
      %6568 = vperm.xlu0 %6567, %v4198
      %v6569 = vpop.permute.xlu0 %6568
      %6572 = vset.pattern.permute.xlu0 0
      %6573 = vperm.xlu0 %6572, %v4199
      %v6574 = vpop.permute.xlu0 %6573
      %6577 = vset.pattern.permute.xlu0 0
      %6578 = vperm.xlu0 %6577, %v4200
      %v6579 = vpop.permute.xlu0 %6578
      %6582 = vset.pattern.permute.xlu0 0
      %6583 = vperm.xlu0 %6582, %v4201
      %v6584 = vpop.permute.xlu0 %6583
      %6587 = vset.pattern.permute.xlu0 0
      %6588 = vperm.xlu0 %6587, %v4202
      %v6589 = vpop.permute.xlu0 %6588
      %6592 = vset.pattern.permute.xlu0 0
      %6593 = vperm.xlu0 %6592, %v4203
      %v6594 = vpop.permute.xlu0 %6593
      %6597 = vset.pattern.permute.xlu0 0
      %6598 = vperm.xlu0 %6597, %v4204
      %v6599 = vpop.permute.xlu0 %6598
      %6602 = vset.pattern.permute.xlu0 0
      %6603 = vperm.xlu0 %6602, %v4205
      %v6604 = vpop.permute.xlu0 %6603
      %6607 = vset.pattern.permute.xlu0 0
      %6608 = vperm.xlu0 %6607, %v4206
      %v6609 = vpop.permute.xlu0 %6608
      %6612 = vset.pattern.permute.xlu0 0
      %6613 = vperm.xlu0 %6612, %v4207
      %v6614 = vpop.permute.xlu0 %6613
      %6617 = vset.pattern.permute.xlu0 0
      %6618 = vperm.xlu0 %6617, %v4208
      %v6619 = vpop.permute.xlu0 %6618
      %6622 = vset.pattern.permute.xlu0 0
      %6623 = vperm.xlu0 %6622, %v4209
      %v6624 = vpop.permute.xlu0 %6623
      %6627 = vset.pattern.permute.xlu0 0
      %6628 = vperm.xlu0 %6627, %v4210
      %v6629 = vpop.permute.xlu0 %6628
      %6632 = vset.pattern.permute.xlu0 0
      %6633 = vperm.xlu0 %6632, %v4211
      %v6634 = vpop.permute.xlu0 %6633
      %6637 = vset.pattern.permute.xlu0 0
      %6638 = vperm.xlu0 %6637, %v4212
      %v6639 = vpop.permute.xlu0 %6638
      %6642 = vset.pattern.permute.xlu0 0
      %6643 = vperm.xlu0 %6642, %v4213
      %v6644 = vpop.permute.xlu0 %6643
      %6647 = vset.pattern.permute.xlu0 0
      %6648 = vperm.xlu0 %6647, %v4214
      %v6649 = vpop.permute.xlu0 %6648
      %6652 = vset.pattern.permute.xlu0 0
      %6653 = vperm.xlu0 %6652, %v4215
      %v6654 = vpop.permute.xlu0 %6653
      %6657 = vset.pattern.permute.xlu0 0
      %6658 = vperm.xlu0 %6657, %v4216
      %v6659 = vpop.permute.xlu0 %6658
      %6662 = vset.pattern.permute.xlu0 0
      %6663 = vperm.xlu0 %6662, %v4217
      %v6664 = vpop.permute.xlu0 %6663
      %6667 = vset.pattern.permute.xlu0 0
      %6668 = vperm.xlu0 %6667, %v4218
      %v6669 = vpop.permute.xlu0 %6668
      %6672 = vset.pattern.permute.xlu0 0
      %6673 = vperm.xlu0 %6672, %v4219
      %v6674 = vpop.permute.xlu0 %6673
      %6677 = vset.pattern.permute.xlu0 0
      %6678 = vperm.xlu0 %6677, %v4220
      %v6679 = vpop.permute.xlu0 %6678
      %6682 = vset.pattern.permute.xlu0 0
      %6683 = vperm.xlu0 %6682, %v4221
      %v6684 = vpop.permute.xlu0 %6683
      %6687 = vset.pattern.permute.xlu0 0
      %6688 = vperm.xlu0 %6687, %v4222
      %v6689 = vpop.permute.xlu0 %6688
      %6692 = vset.pattern.permute.xlu0 0
      %6693 = vperm.xlu0 %6692, %v4223
      %v6694 = vpop.permute.xlu0 %6693
      %6697 = vset.pattern.permute.xlu0 0
      %6698 = vperm.xlu0 %6697, %v4224
      %v6699 = vpop.permute.xlu0 %6698
      %6702 = vset.pattern.permute.xlu0 0
      %6703 = vperm.xlu0 %6702, %v4225
      %v6704 = vpop.permute.xlu0 %6703
      %6707 = vset.pattern.permute.xlu0 0
      %6708 = vperm.xlu0 %6707, %v4226
      %v6709 = vpop.permute.xlu0 %6708
      %6712 = vset.pattern.permute.xlu0 0
      %6713 = vperm.xlu0 %6712, %v4227
      %v6714 = vpop.permute.xlu0 %6713
      %6717 = vset.pattern.permute.xlu0 0
      %6718 = vperm.xlu0 %6717, %v4228
      %v6719 = vpop.permute.xlu0 %6718
      %6722 = vset.pattern.permute.xlu0 0
      %6723 = vperm.xlu0 %6722, %v4229
      %v6724 = vpop.permute.xlu0 %6723
      %6727 = vset.pattern.permute.xlu0 0
      %6728 = vperm.xlu0 %6727, %v4230
      %v6729 = vpop.permute.xlu0 %6728
      %v6731 = vmul.f32 %v6485, %v6529
      %v6732 = vmul.f32 %v6486, %v6534
      %v6733 = vmul.f32 %v6487, %v6539
      %v6734 = vmul.f32 %v6488, %v6544
      %v6735 = vmul.f32 %v6489, %v6549
      %v6736 = vmul.f32 %v6490, %v6554
      %v6737 = vmul.f32 %v6491, %v6559
      %v6738 = vmul.f32 %v6492, %v6564
      %v6739 = vmul.f32 %v6493, %v6569
      %v6740 = vmul.f32 %v6494, %v6574
      %v6741 = vmul.f32 %v6495, %v6579
      %v6742 = vmul.f32 %v6496, %v6584
      %v6743 = vmul.f32 %v6497, %v6589
      %v6744 = vmul.f32 %v6498, %v6594
      %v6745 = vmul.f32 %v6499, %v6599
      %v6746 = vmul.f32 %v6500, %v6604
      %v6747 = vmul.f32 %v6501, %v6609
      %v6748 = vmul.f32 %v6502, %v6614
      %v6749 = vmul.f32 %v6503, %v6619
      %v6750 = vmul.f32 %v6504, %v6624
      %v6751 = vmul.f32 %v6505, %v6629
      %v6752 = vmul.f32 %v6506, %v6634
      %v6753 = vmul.f32 %v6507, %v6639
      %v6754 = vmul.f32 %v6508, %v6644
      %v6755 = vmul.f32 %v6509, %v6649
      %v6756 = vmul.f32 %v6510, %v6654
      %v6757 = vmul.f32 %v6511, %v6659
      %v6758 = vmul.f32 %v6512, %v6664
      %v6759 = vmul.f32 %v6513, %v6669
      %v6760 = vmul.f32 %v6514, %v6674
      %v6761 = vmul.f32 %v6515, %v6679
      %v6762 = vmul.f32 %v6516, %v6684
      %v6763 = vmul.f32 %v6517, %v6689
      %v6764 = vmul.f32 %v6518, %v6694
      %v6765 = vmul.f32 %v6519, %v6699
      %v6766 = vmul.f32 %v6520, %v6704
      %v6767 = vmul.f32 %v6521, %v6709
      %v6768 = vmul.f32 %v6522, %v6714
      %v6769 = vmul.f32 %v6523, %v6719
      %v6770 = vmul.f32 %v6524, %v6724
      %v6771 = vmul.f32 %v6525, %v6729
      %v6772 = vpack.c.bf16 %v6732, %v6731
      %v6773 = vpack.c.bf16 %v6734, %v6733
      %v6774 = vpack.c.bf16 %v6736, %v6735
      %v6775 = vpack.c.bf16 %v6738, %v6737
      %v6776 = vpack.c.bf16 %v6740, %v6739
      %v6777 = vpack.c.bf16 %v6742, %v6741
      %v6778 = vpack.c.bf16 %v6744, %v6743
      %v6779 = vpack.c.bf16 %v6746, %v6745
      %v6780 = vpack.c.bf16 %v6748, %v6747
      %v6781 = vpack.c.bf16 %v6750, %v6749
      %v6782 = vpack.c.bf16 %v6752, %v6751
      %v6783 = vpack.c.bf16 %v6754, %v6753
      %v6784 = vpack.c.bf16 %v6756, %v6755
      %v6785 = vpack.c.bf16 %v6758, %v6757
      %v6786 = vpack.c.bf16 %v6760, %v6759
      %v6787 = vpack.c.bf16 %v6762, %v6761
      %v6788 = vpack.c.bf16 %v6764, %v6763
      %v6789 = vpack.c.bf16 %v6766, %v6765
      %v6790 = vpack.c.bf16 %v6768, %v6767
      %v6791 = vpack.c.bf16 %v6770, %v6769
      %v6792 = vpack.c.bf16 %v6771, %v6771
      %v6794 = vshrl.u32 %v6772, 16
      %v6796 = vrot.slane %v6794, 6
      %v6797 = vshll.u32 %v6772, 16
      %v6799 = vrot.slane %v6797, 7
      %v6800 = vor.u32 %v6796, %v6799
      %v6802 = vshrl.u32 %v6773, 16
      %v6804 = vrot.slane %v6802, 6
      %v6805 = vshll.u32 %v6773, 16
      %v6807 = vrot.slane %v6805, 7
      %v6808 = vor.u32 %v6804, %v6807
      %v6809 = vsel %vm1246, %v6800, %v6808
      %v6811 = vshrl.u32 %v6774, 16
      %v6813 = vrot.slane %v6811, 6
      %v6814 = vshll.u32 %v6774, 16
      %v6816 = vrot.slane %v6814, 7
      %v6817 = vor.u32 %v6813, %v6816
      %v6818 = vsel %vm1246, %v6808, %v6817
      %v6820 = vshrl.u32 %v6775, 16
      %v6822 = vrot.slane %v6820, 6
      %v6823 = vshll.u32 %v6775, 16
      %v6825 = vrot.slane %v6823, 7
      %v6826 = vor.u32 %v6822, %v6825
      %v6827 = vsel %vm1246, %v6817, %v6826
      %v6829 = vshrl.u32 %v6776, 16
      %v6831 = vrot.slane %v6829, 6
      %v6832 = vshll.u32 %v6776, 16
      %v6834 = vrot.slane %v6832, 7
      %v6835 = vor.u32 %v6831, %v6834
      %v6836 = vsel %vm1246, %v6826, %v6835
      %v6838 = vshrl.u32 %v6777, 16
      %v6840 = vrot.slane %v6838, 6
      %v6841 = vshll.u32 %v6777, 16
      %v6843 = vrot.slane %v6841, 7
      %v6844 = vor.u32 %v6840, %v6843
      %v6845 = vsel %vm1246, %v6835, %v6844
      %v6847 = vshrl.u32 %v6778, 16
      %v6849 = vrot.slane %v6847, 6
      %v6850 = vshll.u32 %v6778, 16
      %v6852 = vrot.slane %v6850, 7
      %v6853 = vor.u32 %v6849, %v6852
      %v6854 = vsel %vm1246, %v6844, %v6853
      %v6856 = vshrl.u32 %v6779, 16
      %v6858 = vrot.slane %v6856, 6
      %v6859 = vshll.u32 %v6779, 16
      %v6861 = vrot.slane %v6859, 7
      %v6862 = vor.u32 %v6858, %v6861
      %v6863 = vsel %vm1246, %v6853, %v6862
      %v6865 = vshrl.u32 %v6780, 16
      %v6867 = vrot.slane %v6865, 6
      %v6868 = vshll.u32 %v6780, 16
      %v6870 = vrot.slane %v6868, 7
      %v6871 = vor.u32 %v6867, %v6870
      %v6872 = vsel %vm1246, %v6862, %v6871
      %v6874 = vshrl.u32 %v6781, 16
      %v6876 = vrot.slane %v6874, 6
      %v6877 = vshll.u32 %v6781, 16
      %v6879 = vrot.slane %v6877, 7
      %v6880 = vor.u32 %v6876, %v6879
      %v6881 = vsel %vm1246, %v6871, %v6880
      %v6883 = vshrl.u32 %v6782, 16
      %v6885 = vrot.slane %v6883, 6
      %v6886 = vshll.u32 %v6782, 16
      %v6888 = vrot.slane %v6886, 7
      %v6889 = vor.u32 %v6885, %v6888
      %v6890 = vsel %vm1246, %v6880, %v6889
      %v6892 = vshrl.u32 %v6783, 16
      %v6894 = vrot.slane %v6892, 6
      %v6895 = vshll.u32 %v6783, 16
      %v6897 = vrot.slane %v6895, 7
      %v6898 = vor.u32 %v6894, %v6897
      %v6899 = vsel %vm1246, %v6889, %v6898
      %v6901 = vshrl.u32 %v6784, 16
      %v6903 = vrot.slane %v6901, 6
      %v6904 = vshll.u32 %v6784, 16
      %v6906 = vrot.slane %v6904, 7
      %v6907 = vor.u32 %v6903, %v6906
      %v6908 = vsel %vm1246, %v6898, %v6907
      %v6910 = vshrl.u32 %v6785, 16
      %v6912 = vrot.slane %v6910, 6
      %v6913 = vshll.u32 %v6785, 16
      %v6915 = vrot.slane %v6913, 7
      %v6916 = vor.u32 %v6912, %v6915
      %v6917 = vsel %vm1246, %v6907, %v6916
      %v6919 = vshrl.u32 %v6786, 16
      %v6921 = vrot.slane %v6919, 6
      %v6922 = vshll.u32 %v6786, 16
      %v6924 = vrot.slane %v6922, 7
      %v6925 = vor.u32 %v6921, %v6924
      %v6926 = vsel %vm1246, %v6916, %v6925
      %v6928 = vshrl.u32 %v6787, 16
      %v6930 = vrot.slane %v6928, 6
      %v6931 = vshll.u32 %v6787, 16
      %v6933 = vrot.slane %v6931, 7
      %v6934 = vor.u32 %v6930, %v6933
      %v6935 = vsel %vm1246, %v6925, %v6934
      %v6937 = vshrl.u32 %v6788, 16
      %v6939 = vrot.slane %v6937, 6
      %v6940 = vshll.u32 %v6788, 16
      %v6942 = vrot.slane %v6940, 7
      %v6943 = vor.u32 %v6939, %v6942
      %v6944 = vsel %vm1246, %v6934, %v6943
      %v6946 = vshrl.u32 %v6789, 16
      %v6948 = vrot.slane %v6946, 6
      %v6949 = vshll.u32 %v6789, 16
      %v6951 = vrot.slane %v6949, 7
      %v6952 = vor.u32 %v6948, %v6951
      %v6953 = vsel %vm1246, %v6943, %v6952
      %v6955 = vshrl.u32 %v6790, 16
      %v6957 = vrot.slane %v6955, 6
      %v6958 = vshll.u32 %v6790, 16
      %v6960 = vrot.slane %v6958, 7
      %v6961 = vor.u32 %v6957, %v6960
      %v6962 = vsel %vm1246, %v6952, %v6961
      %v6964 = vshrl.u32 %v6791, 16
      %v6966 = vrot.slane %v6964, 6
      %v6967 = vshll.u32 %v6791, 16
      %v6969 = vrot.slane %v6967, 7
      %v6970 = vor.u32 %v6966, %v6969
      %v6971 = vsel %vm1246, %v6961, %v6970
      %v6973 = vshrl.u32 %v6792, 16
      %v6975 = vrot.slane %v6973, 6
      %v6976 = vshll.u32 %v6792, 16
      %v6978 = vrot.slane %v6976, 7
      %v6979 = vor.u32 %v6975, %v6978
      %v6980 = vsel %vm1246, %v6970, %v6979
      %v6983 = vsel %vm4442, 0, %v6800
      %v6984 = vsel %vm1149, %v6980, 0
      %v6986 = vshll.u32 %v6983, 16
      %v6988 = vrot.slane %v6986, 1
      %v6989 = vsel %vm1155, %v4446, %v6988
      %v6990 = vshrl.u32 %v6983, 16
      %v6992 = vor.u32 %v6990, %v6988
      %v6994 = vshll.u32 %v6809, 16
      %v6996 = vrot.slane %v6994, 1
      %v6997 = vsel %vm1155, %v6992, %v6996
      %v6998 = vshrl.u32 %v6809, 16
      %v7000 = vor.u32 %v6998, %v6996
      %v7002 = vshll.u32 %v6818, 16
      %v7004 = vrot.slane %v7002, 1
      %v7005 = vsel %vm1155, %v7000, %v7004
      %v7006 = vshrl.u32 %v6818, 16
      %v7008 = vor.u32 %v7006, %v7004
      %v7010 = vshll.u32 %v6827, 16
      %v7012 = vrot.slane %v7010, 1
      %v7013 = vsel %vm1155, %v7008, %v7012
      %v7014 = vshrl.u32 %v6827, 16
      %v7016 = vor.u32 %v7014, %v7012
      %v7018 = vshll.u32 %v6836, 16
      %v7020 = vrot.slane %v7018, 1
      %v7021 = vsel %vm1155, %v7016, %v7020
      %v7022 = vshrl.u32 %v6836, 16
      %v7024 = vor.u32 %v7022, %v7020
      %v7026 = vshll.u32 %v6845, 16
      %v7028 = vrot.slane %v7026, 1
      %v7029 = vsel %vm1155, %v7024, %v7028
      %v7030 = vshrl.u32 %v6845, 16
      %v7032 = vor.u32 %v7030, %v7028
      %v7034 = vshll.u32 %v6854, 16
      %v7036 = vrot.slane %v7034, 1
      %v7037 = vsel %vm1155, %v7032, %v7036
      %v7038 = vshrl.u32 %v6854, 16
      %v7040 = vor.u32 %v7038, %v7036
      %v7042 = vshll.u32 %v6863, 16
      %v7044 = vrot.slane %v7042, 1
      %v7045 = vsel %vm1155, %v7040, %v7044
      %v7046 = vshrl.u32 %v6863, 16
      %v7048 = vor.u32 %v7046, %v7044
      %v7050 = vshll.u32 %v6872, 16
      %v7052 = vrot.slane %v7050, 1
      %v7053 = vsel %vm1155, %v7048, %v7052
      %v7054 = vshrl.u32 %v6872, 16
      %v7056 = vor.u32 %v7054, %v7052
      %v7058 = vshll.u32 %v6881, 16
      %v7060 = vrot.slane %v7058, 1
      %v7061 = vsel %vm1155, %v7056, %v7060
      %v7062 = vshrl.u32 %v6881, 16
      %v7064 = vor.u32 %v7062, %v7060
      %v7066 = vshll.u32 %v6890, 16
      %v7068 = vrot.slane %v7066, 1
      %v7069 = vsel %vm1155, %v7064, %v7068
      %v7070 = vshrl.u32 %v6890, 16
      %v7072 = vor.u32 %v7070, %v7068
      %v7074 = vshll.u32 %v6899, 16
      %v7076 = vrot.slane %v7074, 1
      %v7077 = vsel %vm1155, %v7072, %v7076
      %v7078 = vshrl.u32 %v6899, 16
      %v7080 = vor.u32 %v7078, %v7076
      %v7082 = vshll.u32 %v6908, 16
      %v7084 = vrot.slane %v7082, 1
      %v7085 = vsel %vm1155, %v7080, %v7084
      %v7086 = vshrl.u32 %v6908, 16
      %v7088 = vor.u32 %v7086, %v7084
      %v7090 = vshll.u32 %v6917, 16
      %v7092 = vrot.slane %v7090, 1
      %v7093 = vsel %vm1155, %v7088, %v7092
      %v7094 = vshrl.u32 %v6917, 16
      %v7096 = vor.u32 %v7094, %v7092
      %v7098 = vshll.u32 %v6926, 16
      %v7100 = vrot.slane %v7098, 1
      %v7101 = vsel %vm1155, %v7096, %v7100
      %v7102 = vshrl.u32 %v6926, 16
      %v7104 = vor.u32 %v7102, %v7100
      %v7106 = vshll.u32 %v6935, 16
      %v7108 = vrot.slane %v7106, 1
      %v7109 = vsel %vm1155, %v7104, %v7108
      %v7110 = vshrl.u32 %v6935, 16
      %v7112 = vor.u32 %v7110, %v7108
      %v7114 = vshll.u32 %v6944, 16
      %v7116 = vrot.slane %v7114, 1
      %v7117 = vsel %vm1155, %v7112, %v7116
      %v7118 = vshrl.u32 %v6944, 16
      %v7120 = vor.u32 %v7118, %v7116
      %v7122 = vshll.u32 %v6953, 16
      %v7124 = vrot.slane %v7122, 1
      %v7125 = vsel %vm1155, %v7120, %v7124
      %v7126 = vshrl.u32 %v6953, 16
      %v7128 = vor.u32 %v7126, %v7124
      %v7130 = vshll.u32 %v6962, 16
      %v7132 = vrot.slane %v7130, 1
      %v7133 = vsel %vm1155, %v7128, %v7132
      %v7134 = vshrl.u32 %v6962, 16
      %v7136 = vor.u32 %v7134, %v7132
      %v7138 = vshll.u32 %v6971, 16
      %v7140 = vrot.slane %v7138, 1
      %v7141 = vsel %vm1155, %v7136, %v7140
      %v7142 = vshrl.u32 %v6971, 16
      %v7144 = vor.u32 %v7142, %v7140
      %7145 = vrot.lane.b32.xlu0 %v6989, 32
      %v7146 = vpop.permute.xlu0 %7145
      %7147 = vrot.lane.b32.xlu0 %v6997, 32
      %v7148 = vpop.permute.xlu0 %7147
      %7149 = vrot.lane.b32.xlu0 %v7005, 32
      %v7150 = vpop.permute.xlu0 %7149
      %7151 = vrot.lane.b32.xlu0 %v7013, 32
      %v7152 = vpop.permute.xlu0 %7151
      %7153 = vrot.lane.b32.xlu0 %v7021, 32
      %v7154 = vpop.permute.xlu0 %7153
      %7155 = vrot.lane.b32.xlu0 %v7029, 32
      %v7156 = vpop.permute.xlu0 %7155
      %7157 = vrot.lane.b32.xlu0 %v7037, 32
      %v7158 = vpop.permute.xlu0 %7157
      %7159 = vrot.lane.b32.xlu0 %v7045, 32
      %v7160 = vpop.permute.xlu0 %7159
      %7161 = vrot.lane.b32.xlu0 %v7053, 32
      %v7162 = vpop.permute.xlu0 %7161
      %7163 = vrot.lane.b32.xlu0 %v7061, 32
      %v7164 = vpop.permute.xlu0 %7163
      %7165 = vrot.lane.b32.xlu0 %v7069, 32
      %v7166 = vpop.permute.xlu0 %7165
      %7167 = vrot.lane.b32.xlu0 %v7077, 32
      %v7168 = vpop.permute.xlu0 %7167
      %7169 = vrot.lane.b32.xlu0 %v7085, 32
      %v7170 = vpop.permute.xlu0 %7169
      %7171 = vrot.lane.b32.xlu0 %v7093, 32
      %v7172 = vpop.permute.xlu0 %7171
      %7173 = vrot.lane.b32.xlu0 %v7101, 32
      %v7174 = vpop.permute.xlu0 %7173
      %7175 = vrot.lane.b32.xlu0 %v7109, 32
      %v7176 = vpop.permute.xlu0 %7175
      %7177 = vrot.lane.b32.xlu0 %v7117, 32
      %v7178 = vpop.permute.xlu0 %7177
      %7179 = vrot.lane.b32.xlu0 %v7125, 32
      %v7180 = vpop.permute.xlu0 %7179
      %7181 = vrot.lane.b32.xlu0 %v7133, 32
      %v7182 = vpop.permute.xlu0 %7181
      %7183 = vrot.lane.b32.xlu0 %v7141, 32
      %v7184 = vpop.permute.xlu0 %7183
      %7185 = vrot.lane.b32.xlu0 %v7144, 32
      %v7186 = vpop.permute.xlu0 %7185
      %v7188 = vrot.slane %v6983, 1
      %v7189 = vsel %vm1187, %v4650, %v7188
      %v7190 = vrot.slane %v6809, 1
      %v7191 = vsel %vm1187, %v7188, %v7190
      %v7192 = vrot.slane %v6818, 1
      %v7193 = vsel %vm1187, %v7190, %v7192
      %v7194 = vrot.slane %v6827, 1
      %v7195 = vsel %vm1187, %v7192, %v7194
      %v7196 = vrot.slane %v6836, 1
      %v7197 = vsel %vm1187, %v7194, %v7196
      %v7198 = vrot.slane %v6845, 1
      %v7199 = vsel %vm1187, %v7196, %v7198
      %v7200 = vrot.slane %v6854, 1
      %v7201 = vsel %vm1187, %v7198, %v7200
      %v7202 = vrot.slane %v6863, 1
      %v7203 = vsel %vm1187, %v7200, %v7202
      %v7204 = vrot.slane %v6872, 1
      %v7205 = vsel %vm1187, %v7202, %v7204
      %v7206 = vrot.slane %v6881, 1
      %v7207 = vsel %vm1187, %v7204, %v7206
      %v7208 = vrot.slane %v6890, 1
      %v7209 = vsel %vm1187, %v7206, %v7208
      %v7210 = vrot.slane %v6899, 1
      %v7211 = vsel %vm1187, %v7208, %v7210
      %v7212 = vrot.slane %v6908, 1
      %v7213 = vsel %vm1187, %v7210, %v7212
      %v7214 = vrot.slane %v6917, 1
      %v7215 = vsel %vm1187, %v7212, %v7214
      %v7216 = vrot.slane %v6926, 1
      %v7217 = vsel %vm1187, %v7214, %v7216
      %v7218 = vrot.slane %v6935, 1
      %v7219 = vsel %vm1187, %v7216, %v7218
      %v7220 = vrot.slane %v6944, 1
      %v7221 = vsel %vm1187, %v7218, %v7220
      %v7222 = vrot.slane %v6953, 1
      %v7223 = vsel %vm1187, %v7220, %v7222
      %v7224 = vrot.slane %v6962, 1
      %v7225 = vsel %vm1187, %v7222, %v7224
      %v7226 = vrot.slane %v6971, 1
      %v7227 = vsel %vm1187, %v7224, %v7226
      %7228 = vrot.lane.b32.xlu0 %v7189, 64
      %v7229 = vpop.permute.xlu0 %7228
      %7230 = vrot.lane.b32.xlu0 %v7191, 64
      %v7231 = vpop.permute.xlu0 %7230
      %7232 = vrot.lane.b32.xlu0 %v7193, 64
      %v7233 = vpop.permute.xlu0 %7232
      %7234 = vrot.lane.b32.xlu0 %v7195, 64
      %v7235 = vpop.permute.xlu0 %7234
      %7236 = vrot.lane.b32.xlu0 %v7197, 64
      %v7237 = vpop.permute.xlu0 %7236
      %7238 = vrot.lane.b32.xlu0 %v7199, 64
      %v7239 = vpop.permute.xlu0 %7238
      %7240 = vrot.lane.b32.xlu0 %v7201, 64
      %v7241 = vpop.permute.xlu0 %7240
      %7242 = vrot.lane.b32.xlu0 %v7203, 64
      %v7243 = vpop.permute.xlu0 %7242
      %7244 = vrot.lane.b32.xlu0 %v7205, 64
      %v7245 = vpop.permute.xlu0 %7244
      %7246 = vrot.lane.b32.xlu0 %v7207, 64
      %v7247 = vpop.permute.xlu0 %7246
      %7248 = vrot.lane.b32.xlu0 %v7209, 64
      %v7249 = vpop.permute.xlu0 %7248
      %7250 = vrot.lane.b32.xlu0 %v7211, 64
      %v7251 = vpop.permute.xlu0 %7250
      %7252 = vrot.lane.b32.xlu0 %v7213, 64
      %v7253 = vpop.permute.xlu0 %7252
      %7254 = vrot.lane.b32.xlu0 %v7215, 64
      %v7255 = vpop.permute.xlu0 %7254
      %7256 = vrot.lane.b32.xlu0 %v7217, 64
      %v7257 = vpop.permute.xlu0 %7256
      %7258 = vrot.lane.b32.xlu0 %v7219, 64
      %v7259 = vpop.permute.xlu0 %7258
      %7260 = vrot.lane.b32.xlu0 %v7221, 64
      %v7261 = vpop.permute.xlu0 %7260
      %7262 = vrot.lane.b32.xlu0 %v7223, 64
      %v7263 = vpop.permute.xlu0 %7262
      %7264 = vrot.lane.b32.xlu0 %v7225, 64
      %v7265 = vpop.permute.xlu0 %7264
      %7266 = vrot.lane.b32.xlu0 %v7227, 64
      %v7267 = vpop.permute.xlu0 %7266
      %7268 = vrot.lane.b32.xlu0 %v7226, 64
      %v7269 = vpop.permute.xlu0 %7268
      %v7271 = vrot.slane %v6984, 1
      %v7272 = vsel %vm1187, %v7226, %v7271
      %7273 = vrot.lane.b32.xlu0 %v7191, 96
      %v7274 = vpop.permute.xlu0 %7273
      %7275 = vrot.lane.b32.xlu0 %v7193, 96
      %v7276 = vpop.permute.xlu0 %7275
      %7277 = vrot.lane.b32.xlu0 %v7195, 96
      %v7278 = vpop.permute.xlu0 %7277
      %7279 = vrot.lane.b32.xlu0 %v7197, 96
      %v7280 = vpop.permute.xlu0 %7279
      %7281 = vrot.lane.b32.xlu0 %v7199, 96
      %v7282 = vpop.permute.xlu0 %7281
      %7283 = vrot.lane.b32.xlu0 %v7201, 96
      %v7284 = vpop.permute.xlu0 %7283
      %7285 = vrot.lane.b32.xlu0 %v7203, 96
      %v7286 = vpop.permute.xlu0 %7285
      %7287 = vrot.lane.b32.xlu0 %v7205, 96
      %v7288 = vpop.permute.xlu0 %7287
      %7289 = vrot.lane.b32.xlu0 %v7207, 96
      %v7290 = vpop.permute.xlu0 %7289
      %7291 = vrot.lane.b32.xlu0 %v7209, 96
      %v7292 = vpop.permute.xlu0 %7291
      %7293 = vrot.lane.b32.xlu0 %v7211, 96
      %v7294 = vpop.permute.xlu0 %7293
      %7295 = vrot.lane.b32.xlu0 %v7213, 96
      %v7296 = vpop.permute.xlu0 %7295
      %7297 = vrot.lane.b32.xlu0 %v7215, 96
      %v7298 = vpop.permute.xlu0 %7297
      %7299 = vrot.lane.b32.xlu0 %v7217, 96
      %v7300 = vpop.permute.xlu0 %7299
      %7301 = vrot.lane.b32.xlu0 %v7219, 96
      %v7302 = vpop.permute.xlu0 %7301
      %7303 = vrot.lane.b32.xlu0 %v7221, 96
      %v7304 = vpop.permute.xlu0 %7303
      %7305 = vrot.lane.b32.xlu0 %v7223, 96
      %v7306 = vpop.permute.xlu0 %7305
      %7307 = vrot.lane.b32.xlu0 %v7225, 96
      %v7308 = vpop.permute.xlu0 %7307
      %7309 = vrot.lane.b32.xlu0 %v7227, 96
      %v7310 = vpop.permute.xlu0 %7309
      %7311 = vrot.lane.b32.xlu0 %v7272, 96
      %v7312 = vpop.permute.xlu0 %7311
      %7313 = vrot.lane.b32.xlu0 %v7271, 96
      %v7314 = vpop.permute.xlu0 %7313
      %v7315 = vrot.slane %v6990, 1
      %v7316 = vrot.slane %v6986, 2
      %v7317 = vor.u32 %v7315, %v7316
      %v7318 = vrot.slane %v6998, 1
      %v7319 = vrot.slane %v6994, 2
      %v7320 = vor.u32 %v7318, %v7319
      %v7321 = vsel %vm4778, %v7317, %v7320
      %v7322 = vrot.slane %v7006, 1
      %v7323 = vrot.slane %v7002, 2
      %v7324 = vor.u32 %v7322, %v7323
      %v7325 = vsel %vm4778, %v7320, %v7324
      %v7326 = vrot.slane %v7014, 1
      %v7327 = vrot.slane %v7010, 2
      %v7328 = vor.u32 %v7326, %v7327
      %v7329 = vsel %vm4778, %v7324, %v7328
      %v7330 = vrot.slane %v7022, 1
      %v7331 = vrot.slane %v7018, 2
      %v7332 = vor.u32 %v7330, %v7331
      %v7333 = vsel %vm4778, %v7328, %v7332
      %v7334 = vrot.slane %v7030, 1
      %v7335 = vrot.slane %v7026, 2
      %v7336 = vor.u32 %v7334, %v7335
      %v7337 = vsel %vm4778, %v7332, %v7336
      %v7338 = vrot.slane %v7038, 1
      %v7339 = vrot.slane %v7034, 2
      %v7340 = vor.u32 %v7338, %v7339
      %v7341 = vsel %vm4778, %v7336, %v7340
      %v7342 = vrot.slane %v7046, 1
      %v7343 = vrot.slane %v7042, 2
      %v7344 = vor.u32 %v7342, %v7343
      %v7345 = vsel %vm4778, %v7340, %v7344
      %v7346 = vrot.slane %v7054, 1
      %v7347 = vrot.slane %v7050, 2
      %v7348 = vor.u32 %v7346, %v7347
      %v7349 = vsel %vm4778, %v7344, %v7348
      %v7350 = vrot.slane %v7062, 1
      %v7351 = vrot.slane %v7058, 2
      %v7352 = vor.u32 %v7350, %v7351
      %v7353 = vsel %vm4778, %v7348, %v7352
      %v7354 = vrot.slane %v7070, 1
      %v7355 = vrot.slane %v7066, 2
      %v7356 = vor.u32 %v7354, %v7355
      %v7357 = vsel %vm4778, %v7352, %v7356
      %v7358 = vrot.slane %v7078, 1
      %v7359 = vrot.slane %v7074, 2
      %v7360 = vor.u32 %v7358, %v7359
      %v7361 = vsel %vm4778, %v7356, %v7360
      %v7362 = vrot.slane %v7086, 1
      %v7363 = vrot.slane %v7082, 2
      %v7364 = vor.u32 %v7362, %v7363
      %v7365 = vsel %vm4778, %v7360, %v7364
      %v7366 = vrot.slane %v7094, 1
      %v7367 = vrot.slane %v7090, 2
      %v7368 = vor.u32 %v7366, %v7367
      %v7369 = vsel %vm4778, %v7364, %v7368
      %v7370 = vrot.slane %v7102, 1
      %v7371 = vrot.slane %v7098, 2
      %v7372 = vor.u32 %v7370, %v7371
      %v7373 = vsel %vm4778, %v7368, %v7372
      %v7374 = vrot.slane %v7110, 1
      %v7375 = vrot.slane %v7106, 2
      %v7376 = vor.u32 %v7374, %v7375
      %v7377 = vsel %vm4778, %v7372, %v7376
      %v7378 = vrot.slane %v7118, 1
      %v7379 = vrot.slane %v7114, 2
      %v7380 = vor.u32 %v7378, %v7379
      %v7381 = vsel %vm4778, %v7376, %v7380
      %v7382 = vrot.slane %v7126, 1
      %v7383 = vrot.slane %v7122, 2
      %v7384 = vor.u32 %v7382, %v7383
      %v7385 = vsel %vm4778, %v7380, %v7384
      %v7386 = vrot.slane %v7134, 1
      %v7387 = vrot.slane %v7130, 2
      %v7388 = vor.u32 %v7386, %v7387
      %v7389 = vsel %vm4778, %v7384, %v7388
      %v7390 = vrot.slane %v7142, 1
      %v7391 = vrot.slane %v7138, 2
      %v7392 = vor.u32 %v7390, %v7391
      %v7393 = vsel %vm4778, %v7388, %v7392
      %v7395 = vshrl.u32 %v6984, 16
      %v7397 = vrot.slane %v7395, 1
      %v7398 = vshll.u32 %v6984, 16
      %v7400 = vrot.slane %v7398, 2
      %v7401 = vor.u32 %v7397, %v7400
      %v7402 = vsel %vm4778, %v7392, %v7401
      %v7403 = vrot.slane %v6983, 2
      %v7404 = vrot.slane %v6809, 2
      %v7405 = vsel %vm1151, %v7403, %v7404
      %v7406 = vrot.slane %v6818, 2
      %v7407 = vsel %vm1151, %v7404, %v7406
      %v7408 = vrot.slane %v6827, 2
      %v7409 = vsel %vm1151, %v7406, %v7408
      %v7410 = vrot.slane %v6836, 2
      %v7411 = vsel %vm1151, %v7408, %v7410
      %v7412 = vrot.slane %v6845, 2
      %v7413 = vsel %vm1151, %v7410, %v7412
      %v7414 = vrot.slane %v6854, 2
      %v7415 = vsel %vm1151, %v7412, %v7414
      %v7416 = vrot.slane %v6863, 2
      %v7417 = vsel %vm1151, %v7414, %v7416
      %v7418 = vrot.slane %v6872, 2
      %v7419 = vsel %vm1151, %v7416, %v7418
      %v7420 = vrot.slane %v6881, 2
      %v7421 = vsel %vm1151, %v7418, %v7420
      %v7422 = vrot.slane %v6890, 2
      %v7423 = vsel %vm1151, %v7420, %v7422
      %v7424 = vrot.slane %v6899, 2
      %v7425 = vsel %vm1151, %v7422, %v7424
      %v7426 = vrot.slane %v6908, 2
      %v7427 = vsel %vm1151, %v7424, %v7426
      %v7428 = vrot.slane %v6917, 2
      %v7429 = vsel %vm1151, %v7426, %v7428
      %v7430 = vrot.slane %v6926, 2
      %v7431 = vsel %vm1151, %v7428, %v7430
      %v7432 = vrot.slane %v6935, 2
      %v7433 = vsel %vm1151, %v7430, %v7432
      %v7434 = vrot.slane %v6944, 2
      %v7435 = vsel %vm1151, %v7432, %v7434
      %v7436 = vrot.slane %v6953, 2
      %v7437 = vsel %vm1151, %v7434, %v7436
      %v7438 = vrot.slane %v6962, 2
      %v7439 = vsel %vm1151, %v7436, %v7438
      %v7440 = vrot.slane %v6971, 2
      %v7441 = vsel %vm1151, %v7438, %v7440
      %v7442 = vrot.slane %v6984, 2
      %v7443 = vsel %vm1151, %v7440, %v7442
      %7444 = vrot.lane.b32.xlu0 %v7405, 32
      %v7445 = vpop.permute.xlu0 %7444
      %7446 = vrot.lane.b32.xlu0 %v7407, 32
      %v7447 = vpop.permute.xlu0 %7446
      %7448 = vrot.lane.b32.xlu0 %v7409, 32
      %v7449 = vpop.permute.xlu0 %7448
      %7450 = vrot.lane.b32.xlu0 %v7411, 32
      %v7451 = vpop.permute.xlu0 %7450
      %7452 = vrot.lane.b32.xlu0 %v7413, 32
      %v7453 = vpop.permute.xlu0 %7452
      %7454 = vrot.lane.b32.xlu0 %v7415, 32
      %v7455 = vpop.permute.xlu0 %7454
      %7456 = vrot.lane.b32.xlu0 %v7417, 32
      %v7457 = vpop.permute.xlu0 %7456
      %7458 = vrot.lane.b32.xlu0 %v7419, 32
      %v7459 = vpop.permute.xlu0 %7458
      %7460 = vrot.lane.b32.xlu0 %v7421, 32
      %v7461 = vpop.permute.xlu0 %7460
      %7462 = vrot.lane.b32.xlu0 %v7423, 32
      %v7463 = vpop.permute.xlu0 %7462
      %7464 = vrot.lane.b32.xlu0 %v7425, 32
      %v7465 = vpop.permute.xlu0 %7464
      %7466 = vrot.lane.b32.xlu0 %v7427, 32
      %v7467 = vpop.permute.xlu0 %7466
      %7468 = vrot.lane.b32.xlu0 %v7429, 32
      %v7469 = vpop.permute.xlu0 %7468
      %7470 = vrot.lane.b32.xlu0 %v7431, 32
      %v7471 = vpop.permute.xlu0 %7470
      %7472 = vrot.lane.b32.xlu0 %v7433, 32
      %v7473 = vpop.permute.xlu0 %7472
      %7474 = vrot.lane.b32.xlu0 %v7435, 32
      %v7475 = vpop.permute.xlu0 %7474
      %7476 = vrot.lane.b32.xlu0 %v7437, 32
      %v7477 = vpop.permute.xlu0 %7476
      %7478 = vrot.lane.b32.xlu0 %v7439, 32
      %v7479 = vpop.permute.xlu0 %7478
      %7480 = vrot.lane.b32.xlu0 %v7441, 32
      %v7481 = vpop.permute.xlu0 %7480
      %7482 = vrot.lane.b32.xlu0 %v7443, 32
      %v7483 = vpop.permute.xlu0 %7482
      %7484 = vrot.lane.b32.xlu0 %v7442, 32
      %v7485 = vpop.permute.xlu0 %7484
      %v7486 = vsel %vm1151, %v7442, %v2098
      %7487 = vrot.lane.b32.xlu0 %v7407, 64
      %v7488 = vpop.permute.xlu0 %7487
      %7489 = vrot.lane.b32.xlu0 %v7409, 64
      %v7490 = vpop.permute.xlu0 %7489
      %7491 = vrot.lane.b32.xlu0 %v7411, 64
      %v7492 = vpop.permute.xlu0 %7491
      %7493 = vrot.lane.b32.xlu0 %v7413, 64
      %v7494 = vpop.permute.xlu0 %7493
      %7495 = vrot.lane.b32.xlu0 %v7415, 64
      %v7496 = vpop.permute.xlu0 %7495
      %7497 = vrot.lane.b32.xlu0 %v7417, 64
      %v7498 = vpop.permute.xlu0 %7497
      %7499 = vrot.lane.b32.xlu0 %v7419, 64
      %v7500 = vpop.permute.xlu0 %7499
      %7501 = vrot.lane.b32.xlu0 %v7421, 64
      %v7502 = vpop.permute.xlu0 %7501
      %7503 = vrot.lane.b32.xlu0 %v7423, 64
      %v7504 = vpop.permute.xlu0 %7503
      %7505 = vrot.lane.b32.xlu0 %v7425, 64
      %v7506 = vpop.permute.xlu0 %7505
      %7507 = vrot.lane.b32.xlu0 %v7427, 64
      %v7508 = vpop.permute.xlu0 %7507
      %7509 = vrot.lane.b32.xlu0 %v7429, 64
      %v7510 = vpop.permute.xlu0 %7509
      %7511 = vrot.lane.b32.xlu0 %v7431, 64
      %v7512 = vpop.permute.xlu0 %7511
      %7513 = vrot.lane.b32.xlu0 %v7433, 64
      %v7514 = vpop.permute.xlu0 %7513
      %7515 = vrot.lane.b32.xlu0 %v7435, 64
      %v7516 = vpop.permute.xlu0 %7515
      %7517 = vrot.lane.b32.xlu0 %v7437, 64
      %v7518 = vpop.permute.xlu0 %7517
      %7519 = vrot.lane.b32.xlu0 %v7439, 64
      %v7520 = vpop.permute.xlu0 %7519
      %7521 = vrot.lane.b32.xlu0 %v7441, 64
      %v7522 = vpop.permute.xlu0 %7521
      %7523 = vrot.lane.b32.xlu0 %v7443, 64
      %v7524 = vpop.permute.xlu0 %7523
      %7525 = vrot.lane.b32.xlu0 %v7486, 64
      %v7526 = vpop.permute.xlu0 %7525
      %v7527 = vrot.slane %v6998, 2
      %v7528 = vrot.slane %v6994, 3
      %v7529 = vor.u32 %v7527, %v7528
      %v7530 = vrot.slane %v7006, 2
      %v7531 = vrot.slane %v7002, 3
      %v7532 = vor.u32 %v7530, %v7531
      %v7533 = vsel %vm1152, %v7529, %v7532
      %v7534 = vrot.slane %v7014, 2
      %v7535 = vrot.slane %v7010, 3
      %v7536 = vor.u32 %v7534, %v7535
      %v7537 = vsel %vm1152, %v7532, %v7536
      %v7538 = vrot.slane %v7022, 2
      %v7539 = vrot.slane %v7018, 3
      %v7540 = vor.u32 %v7538, %v7539
      %v7541 = vsel %vm1152, %v7536, %v7540
      %v7542 = vrot.slane %v7030, 2
      %v7543 = vrot.slane %v7026, 3
      %v7544 = vor.u32 %v7542, %v7543
      %v7545 = vsel %vm1152, %v7540, %v7544
      %v7546 = vrot.slane %v7038, 2
      %v7547 = vrot.slane %v7034, 3
      %v7548 = vor.u32 %v7546, %v7547
      %v7549 = vsel %vm1152, %v7544, %v7548
      %v7550 = vrot.slane %v7046, 2
      %v7551 = vrot.slane %v7042, 3
      %v7552 = vor.u32 %v7550, %v7551
      %v7553 = vsel %vm1152, %v7548, %v7552
      %v7554 = vrot.slane %v7054, 2
      %v7555 = vrot.slane %v7050, 3
      %v7556 = vor.u32 %v7554, %v7555
      %v7557 = vsel %vm1152, %v7552, %v7556
      %v7558 = vrot.slane %v7062, 2
      %v7559 = vrot.slane %v7058, 3
      %v7560 = vor.u32 %v7558, %v7559
      %v7561 = vsel %vm1152, %v7556, %v7560
      %v7562 = vrot.slane %v7070, 2
      %v7563 = vrot.slane %v7066, 3
      %v7564 = vor.u32 %v7562, %v7563
      %v7565 = vsel %vm1152, %v7560, %v7564
      %v7566 = vrot.slane %v7078, 2
      %v7567 = vrot.slane %v7074, 3
      %v7568 = vor.u32 %v7566, %v7567
      %v7569 = vsel %vm1152, %v7564, %v7568
      %v7570 = vrot.slane %v7086, 2
      %v7571 = vrot.slane %v7082, 3
      %v7572 = vor.u32 %v7570, %v7571
      %v7573 = vsel %vm1152, %v7568, %v7572
      %v7574 = vrot.slane %v7094, 2
      %v7575 = vrot.slane %v7090, 3
      %v7576 = vor.u32 %v7574, %v7575
      %v7577 = vsel %vm1152, %v7572, %v7576
      %v7578 = vrot.slane %v7102, 2
      %v7579 = vrot.slane %v7098, 3
      %v7580 = vor.u32 %v7578, %v7579
      %v7581 = vsel %vm1152, %v7576, %v7580
      %v7582 = vrot.slane %v7110, 2
      %v7583 = vrot.slane %v7106, 3
      %v7584 = vor.u32 %v7582, %v7583
      %v7585 = vsel %vm1152, %v7580, %v7584
      %v7586 = vrot.slane %v7118, 2
      %v7587 = vrot.slane %v7114, 3
      %v7588 = vor.u32 %v7586, %v7587
      %v7589 = vsel %vm1152, %v7584, %v7588
      %v7590 = vrot.slane %v7126, 2
      %v7591 = vrot.slane %v7122, 3
      %v7592 = vor.u32 %v7590, %v7591
      %v7593 = vsel %vm1152, %v7588, %v7592
      %v7594 = vrot.slane %v7134, 2
      %v7595 = vrot.slane %v7130, 3
      %v7596 = vor.u32 %v7594, %v7595
      %v7597 = vsel %vm1152, %v7592, %v7596
      %v7598 = vrot.slane %v7142, 2
      %v7599 = vrot.slane %v7138, 3
      %v7600 = vor.u32 %v7598, %v7599
      %v7601 = vsel %vm1152, %v7596, %v7600
      %v7602 = vrot.slane %v7395, 2
      %v7603 = vrot.slane %v7398, 3
      %v7604 = vor.u32 %v7602, %v7603
      %v7605 = vsel %vm1152, %v7600, %v7604
      %v7606 = vsel %vm1152, %v7604, %v2141
      %7607 = vrot.lane.b32.xlu0 %v7533, 96
      %v7608 = vpop.permute.xlu0 %7607
      %7609 = vrot.lane.b32.xlu0 %v7537, 96
      %v7610 = vpop.permute.xlu0 %7609
      %7611 = vrot.lane.b32.xlu0 %v7541, 96
      %v7612 = vpop.permute.xlu0 %7611
      %7613 = vrot.lane.b32.xlu0 %v7545, 96
      %v7614 = vpop.permute.xlu0 %7613
      %7615 = vrot.lane.b32.xlu0 %v7549, 96
      %v7616 = vpop.permute.xlu0 %7615
      %7617 = vrot.lane.b32.xlu0 %v7553, 96
      %v7618 = vpop.permute.xlu0 %7617
      %7619 = vrot.lane.b32.xlu0 %v7557, 96
      %v7620 = vpop.permute.xlu0 %7619
      %7621 = vrot.lane.b32.xlu0 %v7561, 96
      %v7622 = vpop.permute.xlu0 %7621
      %7623 = vrot.lane.b32.xlu0 %v7565, 96
      %v7624 = vpop.permute.xlu0 %7623
      %7625 = vrot.lane.b32.xlu0 %v7569, 96
      %v7626 = vpop.permute.xlu0 %7625
      %7627 = vrot.lane.b32.xlu0 %v7573, 96
      %v7628 = vpop.permute.xlu0 %7627
      %7629 = vrot.lane.b32.xlu0 %v7577, 96
      %v7630 = vpop.permute.xlu0 %7629
      %7631 = vrot.lane.b32.xlu0 %v7581, 96
      %v7632 = vpop.permute.xlu0 %7631
      %7633 = vrot.lane.b32.xlu0 %v7585, 96
      %v7634 = vpop.permute.xlu0 %7633
      %7635 = vrot.lane.b32.xlu0 %v7589, 96
      %v7636 = vpop.permute.xlu0 %7635
      %7637 = vrot.lane.b32.xlu0 %v7593, 96
      %v7638 = vpop.permute.xlu0 %7637
      %7639 = vrot.lane.b32.xlu0 %v7597, 96
      %v7640 = vpop.permute.xlu0 %7639
      %7641 = vrot.lane.b32.xlu0 %v7601, 96
      %v7642 = vpop.permute.xlu0 %7641
      %7643 = vrot.lane.b32.xlu0 %v7605, 96
      %v7644 = vpop.permute.xlu0 %7643
      %7645 = vrot.lane.b32.xlu0 %v7606, 96
      %v7646 = vpop.permute.xlu0 %7645
      %v7647 = vrot.slane %v6809, 3
      %v7648 = vrot.slane %v6818, 3
      %v7649 = vsel %vm1199, %v7647, %v7648
      %v7650 = vrot.slane %v6827, 3
      %v7651 = vsel %vm1199, %v7648, %v7650
      %v7652 = vrot.slane %v6836, 3
      %v7653 = vsel %vm1199, %v7650, %v7652
      %v7654 = vrot.slane %v6845, 3
      %v7655 = vsel %vm1199, %v7652, %v7654
      %v7656 = vrot.slane %v6854, 3
      %v7657 = vsel %vm1199, %v7654, %v7656
      %v7658 = vrot.slane %v6863, 3
      %v7659 = vsel %vm1199, %v7656, %v7658
      %v7660 = vrot.slane %v6872, 3
      %v7661 = vsel %vm1199, %v7658, %v7660
      %v7662 = vrot.slane %v6881, 3
      %v7663 = vsel %vm1199, %v7660, %v7662
      %v7664 = vrot.slane %v6890, 3
      %v7665 = vsel %vm1199, %v7662, %v7664
      %v7666 = vrot.slane %v6899, 3
      %v7667 = vsel %vm1199, %v7664, %v7666
      %v7668 = vrot.slane %v6908, 3
      %v7669 = vsel %vm1199, %v7666, %v7668
      %v7670 = vrot.slane %v6917, 3
      %v7671 = vsel %vm1199, %v7668, %v7670
      %v7672 = vrot.slane %v6926, 3
      %v7673 = vsel %vm1199, %v7670, %v7672
      %v7674 = vrot.slane %v6935, 3
      %v7675 = vsel %vm1199, %v7672, %v7674
      %v7676 = vrot.slane %v6944, 3
      %v7677 = vsel %vm1199, %v7674, %v7676
      %v7678 = vrot.slane %v6953, 3
      %v7679 = vsel %vm1199, %v7676, %v7678
      %v7680 = vrot.slane %v6962, 3
      %v7681 = vsel %vm1199, %v7678, %v7680
      %v7682 = vrot.slane %v6971, 3
      %v7683 = vsel %vm1199, %v7680, %v7682
      %v7684 = vrot.slane %v6984, 3
      %v7685 = vsel %vm1199, %v7682, %v7684
      %v7686 = vsel %vm1199, %v7684, %v2168
      %v7688 = vsel %vm768, 0, %v7146
      %v7690 = vsel %vm768, %v6983, %v7148
      %v7692 = vsel %vm768, %v6809, %v7150
      %v7694 = vsel %vm768, %v6818, %v7152
      %v7696 = vsel %vm768, %v6827, %v7154
      %v7698 = vsel %vm768, %v6836, %v7156
      %v7700 = vsel %vm768, %v6845, %v7158
      %v7702 = vsel %vm768, %v6854, %v7160
      %v7704 = vsel %vm768, %v6863, %v7162
      %v7706 = vsel %vm768, %v6872, %v7164
      %v7708 = vsel %vm768, %v6881, %v7166
      %v7710 = vsel %vm768, %v6890, %v7168
      %v7712 = vsel %vm768, %v6899, %v7170
      %v7714 = vsel %vm768, %v6908, %v7172
      %v7716 = vsel %vm768, %v6917, %v7174
      %v7718 = vsel %vm768, %v6926, %v7176
      %v7720 = vsel %vm768, %v6935, %v7178
      %v7722 = vsel %vm768, %v6944, %v7180
      %v7724 = vsel %vm768, %v6953, %v7182
      %v7726 = vsel %vm768, %v6962, %v7184
      %v7728 = vsel %vm768, %v6971, %v7186
      %v7730 = vsel %vm774, %v7688, %v7229
      %v7732 = vsel %vm774, %v7690, %v7231
      %v7734 = vsel %vm774, %v7692, %v7233
      %v7736 = vsel %vm774, %v7694, %v7235
      %v7738 = vsel %vm774, %v7696, %v7237
      %v7740 = vsel %vm774, %v7698, %v7239
      %v7742 = vsel %vm774, %v7700, %v7241
      %v7744 = vsel %vm774, %v7702, %v7243
      %v7746 = vsel %vm774, %v7704, %v7245
      %v7748 = vsel %vm774, %v7706, %v7247
      %v7750 = vsel %vm774, %v7708, %v7249
      %v7752 = vsel %vm774, %v7710, %v7251
      %v7754 = vsel %vm774, %v7712, %v7253
      %v7756 = vsel %vm774, %v7714, %v7255
      %v7758 = vsel %vm774, %v7716, %v7257
      %v7760 = vsel %vm774, %v7718, %v7259
      %v7762 = vsel %vm774, %v7720, %v7261
      %v7764 = vsel %vm774, %v7722, %v7263
      %v7766 = vsel %vm774, %v7724, %v7265
      %v7768 = vsel %vm774, %v7726, %v7267
      %v7770 = vsel %vm774, %v7728, %v7269
      %v7772 = vsel %vm780, %v7730, %v7274
      %v7775 = vsel %vm780, %v7732, %v7276
      %v7778 = vsel %vm780, %v7734, %v7278
      %v7781 = vsel %vm780, %v7736, %v7280
      %v7784 = vsel %vm780, %v7738, %v7282
      %v7787 = vsel %vm780, %v7740, %v7284
      %v7790 = vsel %vm780, %v7742, %v7286
      %v7793 = vsel %vm780, %v7744, %v7288
      %v7796 = vsel %vm780, %v7746, %v7290
      %v7799 = vsel %vm780, %v7748, %v7292
      %v7802 = vsel %vm780, %v7750, %v7294
      %v7805 = vsel %vm780, %v7752, %v7296
      %v7808 = vsel %vm780, %v7754, %v7298
      %v7811 = vsel %vm780, %v7756, %v7300
      %v7814 = vsel %vm780, %v7758, %v7302
      %v7817 = vsel %vm780, %v7760, %v7304
      %v7820 = vsel %vm780, %v7762, %v7306
      %v7823 = vsel %vm780, %v7764, %v7308
      %v7826 = vsel %vm780, %v7766, %v7310
      %v7829 = vsel %vm780, %v7768, %v7312
      %v7832 = vsel %vm780, %v7770, %v7314
      %v7836 = vsel %vm768, %v7321, %v7445
      %v7839 = vsel %vm768, %v7325, %v7447
      %v7842 = vsel %vm768, %v7329, %v7449
      %v7845 = vsel %vm768, %v7333, %v7451
      %v7848 = vsel %vm768, %v7337, %v7453
      %v7851 = vsel %vm768, %v7341, %v7455
      %v7854 = vsel %vm768, %v7345, %v7457
      %v7857 = vsel %vm768, %v7349, %v7459
      %v7860 = vsel %vm768, %v7353, %v7461
      %v7863 = vsel %vm768, %v7357, %v7463
      %v7866 = vsel %vm768, %v7361, %v7465
      %v7869 = vsel %vm768, %v7365, %v7467
      %v7872 = vsel %vm768, %v7369, %v7469
      %v7875 = vsel %vm768, %v7373, %v7471
      %v7878 = vsel %vm768, %v7377, %v7473
      %v7881 = vsel %vm768, %v7381, %v7475
      %v7884 = vsel %vm768, %v7385, %v7477
      %v7887 = vsel %vm768, %v7389, %v7479
      %v7890 = vsel %vm768, %v7393, %v7481
      %v7893 = vsel %vm768, %v7402, %v7483
      %v7896 = vsel %vm768, %v7401, %v7485
      %v7898 = vsel %vm774, %v7836, %v7488
      %v7900 = vsel %vm774, %v7839, %v7490
      %v7902 = vsel %vm774, %v7842, %v7492
      %v7904 = vsel %vm774, %v7845, %v7494
      %v7906 = vsel %vm774, %v7848, %v7496
      %v7908 = vsel %vm774, %v7851, %v7498
      %v7910 = vsel %vm774, %v7854, %v7500
      %v7912 = vsel %vm774, %v7857, %v7502
      %v7914 = vsel %vm774, %v7860, %v7504
      %v7916 = vsel %vm774, %v7863, %v7506
      %v7918 = vsel %vm774, %v7866, %v7508
      %v7920 = vsel %vm774, %v7869, %v7510
      %v7922 = vsel %vm774, %v7872, %v7512
      %v7924 = vsel %vm774, %v7875, %v7514
      %v7926 = vsel %vm774, %v7878, %v7516
      %v7928 = vsel %vm774, %v7881, %v7518
      %v7930 = vsel %vm774, %v7884, %v7520
      %v7932 = vsel %vm774, %v7887, %v7522
      %v7934 = vsel %vm774, %v7890, %v7524
      %v7936 = vsel %vm774, %v7893, %v7526
      %v7937 = vsel %vm774, %v7896, %v2113
      %v7939 = vsel %vm780, %v7898, %v7608
      %v7942 = vsel %vm780, %v7900, %v7610
      %v7945 = vsel %vm780, %v7902, %v7612
      %v7948 = vsel %vm780, %v7904, %v7614
      %v7951 = vsel %vm780, %v7906, %v7616
      %v7954 = vsel %vm780, %v7908, %v7618
      %v7957 = vsel %vm780, %v7910, %v7620
      %v7960 = vsel %vm780, %v7912, %v7622
      %v7963 = vsel %vm780, %v7914, %v7624
      %v7966 = vsel %vm780, %v7916, %v7626
      %v7969 = vsel %vm780, %v7918, %v7628
      %v7972 = vsel %vm780, %v7920, %v7630
      %v7975 = vsel %vm780, %v7922, %v7632
      %v7978 = vsel %vm780, %v7924, %v7634
      %v7981 = vsel %vm780, %v7926, %v7636
      %v7984 = vsel %vm780, %v7928, %v7638
      %v7987 = vsel %vm780, %v7930, %v7640
      %v7990 = vsel %vm780, %v7932, %v7642
      %v7993 = vsel %vm780, %v7934, %v7644
      %v7996 = vsel %vm780, %v7936, %v7646
      %v7998 = vsel %vm780, %v7937, %v2156
      %v8000 = vld [vmem:[%s16] sm:$0xf]
      %v8001 = vld [vmem:[%s16 + $0x4] sm:$0xf]
      %v8002 = vld [vmem:[%s16 + $0x8] sm:$0xf]
      %v8003 = vld [vmem:[%s16 + $0xc] sm:$0xf]
      %v8004 = vld [vmem:[%s16 + $0x10] sm:$0xf]
      %v8005 = vld [vmem:[%s16 + $0x14] sm:$0xf]
      %v8006 = vld [vmem:[%s16 + $0x18] sm:$0xf]
      %v8007 = vld [vmem:[%s16 + $0x1c] sm:$0xf]
      %v8008 = vld [vmem:[%s16 + $0x20] sm:$0xf]
      %v8009 = vld [vmem:[%s16 + $0x24] sm:$0xf]
      %v8010 = vld [vmem:[%s16 + $0x28] sm:$0xf]
      %v8011 = vld [vmem:[%s16 + $0x2c] sm:$0xf]
      %v8012 = vld [vmem:[%s16 + $0x30] sm:$0xf]
      %v8013 = vld [vmem:[%s16 + $0x34] sm:$0xf]
      %v8014 = vld [vmem:[%s16 + $0x38] sm:$0xf]
      %v8015 = vld [vmem:[%s16 + $0x3c] sm:$0xf]
      %v8016 = vld [vmem:[%s16 + $0x40] sm:$0xf]
      %v8017 = vld [vmem:[%s16 + $0x44] sm:$0xf]
      %v8018 = vld [vmem:[%s16 + $0x48] sm:$0xf]
      %v8019 = vld [vmem:[%s16 + $0x4c] sm:$0xf]
      %v8020 = vld [vmem:[%s16 + $0x50] sm:$0xf]
      %v8021 = vld [vmem:[%s16 + $0x54] sm:$0xf]
      %v8022 = vld [vmem:[%s16 + $0x58] sm:$0xf]
      %v8023 = vld [vmem:[%s16 + $0x5c] sm:$0xf]
      %v8024 = vld [vmem:[%s16 + $0x60] sm:$0xf]
      %v8025 = vld [vmem:[%s16 + $0x64] sm:$0xf]
      %v8026 = vld [vmem:[%s16 + $0x68] sm:$0xf]
      %v8027 = vld [vmem:[%s16 + $0x6c] sm:$0xf]
      %v8028 = vld [vmem:[%s16 + $0x70] sm:$0xf]
      %v8029 = vld [vmem:[%s16 + $0x74] sm:$0xf]
      %v8030 = vld [vmem:[%s16 + $0x78] sm:$0xf]
      %v8031 = vld [vmem:[%s16 + $0x7c] sm:$0xf]
      %v8032 = vld [vmem:[%s16 + $0x80] sm:$0xf]
      %v8033 = vld [vmem:[%s16 + $0x84] sm:$0xf]
      %v8034 = vld [vmem:[%s16 + $0x88] sm:$0xf]
      %v8035 = vld [vmem:[%s16 + $0x8c] sm:$0xf]
      %v8036 = vld [vmem:[%s17] sm:$0x1]
      %v8038 = vlaneseq
      %v8039 = vshrl.u32 %v8038, 7
      %v8040 = vsub.s32 0, %v8039
      %v8041 = vrot.slane %v8036, %v8040
      %v8079 = vunpack.c.l.b16 %v8000
      %v8080 = vunpack.c.l.b16 %v8001
      %v8081 = vunpack.c.l.b16 %v8002
      %v8082 = vunpack.c.l.b16 %v8003
      %v8083 = vunpack.c.l.b16 %v8004
      %v8084 = vunpack.c.l.b16 %v8005
      %v8085 = vunpack.c.l.b16 %v8006
      %v8086 = vunpack.c.l.b16 %v8007
      %v8087 = vunpack.c.l.b16 %v8008
      %v8088 = vunpack.c.l.b16 %v8009
      %v8089 = vunpack.c.l.b16 %v8010
      %v8090 = vunpack.c.l.b16 %v8011
      %v8091 = vunpack.c.l.b16 %v8012
      %v8092 = vunpack.c.l.b16 %v8013
      %v8093 = vunpack.c.l.b16 %v8014
      %v8094 = vunpack.c.l.b16 %v8015
      %v8095 = vunpack.c.l.b16 %v8016
      %v8096 = vunpack.c.l.b16 %v8017
      %v8097 = vunpack.c.l.b16 %v8018
      %v8098 = vunpack.c.l.b16 %v8019
      %v8099 = vunpack.c.l.b16 %v8020
      %v8100 = vunpack.c.l.b16 %v8021
      %v8101 = vunpack.c.l.b16 %v8022
      %v8102 = vunpack.c.l.b16 %v8023
      %v8103 = vunpack.c.l.b16 %v8024
      %v8104 = vunpack.c.l.b16 %v8025
      %v8105 = vunpack.c.l.b16 %v8026
      %v8106 = vunpack.c.l.b16 %v8027
      %v8107 = vunpack.c.l.b16 %v8028
      %v8108 = vunpack.c.l.b16 %v8029
      %v8109 = vunpack.c.l.b16 %v8030
      %v8110 = vunpack.c.l.b16 %v8031
      %v8111 = vunpack.c.l.b16 %v8032
      %v8112 = vunpack.c.l.b16 %v8033
      %v8113 = vunpack.c.l.b16 %v8034
      %v8114 = vunpack.c.l.b16 %v8035
      %v8115 = vpack.c.b16 %v8080, %v8079
      %v8116 = vpack.c.b16 %v8082, %v8081
      %v8117 = vpack.c.b16 %v8084, %v8083
      %v8118 = vpack.c.b16 %v8086, %v8085
      %v8119 = vpack.c.b16 %v8088, %v8087
      %v8120 = vpack.c.b16 %v8090, %v8089
      %v8121 = vpack.c.b16 %v8092, %v8091
      %v8122 = vpack.c.b16 %v8094, %v8093
      %v8123 = vpack.c.b16 %v8096, %v8095
      %v8124 = vpack.c.b16 %v8098, %v8097
      %v8125 = vpack.c.b16 %v8100, %v8099
      %v8126 = vpack.c.b16 %v8102, %v8101
      %v8127 = vpack.c.b16 %v8104, %v8103
      %v8128 = vpack.c.b16 %v8106, %v8105
      %v8129 = vpack.c.b16 %v8108, %v8107
      %v8130 = vpack.c.b16 %v8110, %v8109
      %v8131 = vpack.c.b16 %v8112, %v8111
      %v8132 = vpack.c.b16 %v8114, %v8113
      %v8152 = vsel %vm768, %v7649, 0
      %v8155 = vsel %vm768, %v7651, 0
      %v8158 = vsel %vm768, %v7653, 0
      %v8161 = vsel %vm768, %v7655, 0
      %v8164 = vsel %vm768, %v7657, 0
      %v8167 = vsel %vm768, %v7659, 0
      %v8170 = vsel %vm768, %v7661, 0
      %v8173 = vsel %vm768, %v7663, 0
      %v8176 = vsel %vm768, %v7665, 0
      %v8179 = vsel %vm768, %v7667, 0
      %v8182 = vsel %vm768, %v7669, 0
      %v8185 = vsel %vm768, %v7671, 0
      %v8188 = vsel %vm768, %v7673, 0
      %v8191 = vsel %vm768, %v7675, 0
      %v8194 = vsel %vm768, %v7677, 0
      %v8197 = vsel %vm768, %v7679, 0
      %v8200 = vsel %vm768, %v7681, 0
      %v8203 = vsel %vm768, %v7683, 0
      %v8206 = vsel %vm768, %v7685, 0
      %v8209 = vsel %vm768, %v7686, 0
      %8211 = vmatprep.subr.bf16.mxu0 0
      %8212 = vmatpush1.bf16.msra.mxu0 %v8122
      %8213 = vmatprep.subr.bf16.mxu0 0
      %8214 = vmatpush1.bf16.msra.mxu0 %v8121
      %8215 = vmatprep.subr.bf16.mxu0 0
      %8216 = vmatpush1.bf16.msra.mxu0 %v8120
      %8217 = vmatprep.subr.bf16.mxu0 0
      %8218 = vmatpush1.bf16.msra.mxu0 %v8119
      %8219 = vmatprep.subr.bf16.mxu0 0
      %8220 = vmatpush1.bf16.msra.mxu0 %v8118
      %8221 = vmatprep.subr.bf16.mxu0 0
      %8222 = vmatpush1.bf16.msra.mxu0 %v8117
      %8223 = vmatprep.subr.bf16.mxu0 0
      %8224 = vmatpush1.bf16.msra.mxu0 %v8116
      %8225 = vmatprep.subr.bf16.mxu0 0
      %8226 = vmatpush1.bf16.msra.mxu0 %v8115
      %8227 = vmatprep.subr.bf16.mxu0 0
      %8228 = vmatpush2.bf16.msra.mxu0 %v8130
      %8229 = vmatprep.subr.bf16.mxu0 0
      %8230 = vmatpush2.bf16.msra.mxu0 %v8129
      %8231 = vmatprep.subr.bf16.mxu0 0
      %8232 = vmatpush2.bf16.msra.mxu0 %v8128
      %8233 = vmatprep.subr.bf16.mxu0 0
      %8234 = vmatpush2.bf16.msra.mxu0 %v8127
      %8235 = vmatprep.subr.bf16.mxu0 0
      %8236 = vmatpush2.bf16.msra.mxu0 %v8126
      %8237 = vmatprep.subr.bf16.mxu0 0
      %8238 = vmatpush2.bf16.msra.mxu0 %v8125
      %8239 = vmatprep.subr.bf16.mxu0 0
      %8240 = vmatpush2.bf16.msra.mxu0 %v8124
      %8241 = vmatprep.subr.bf16.mxu0 0
      %8242 = vmatpush2.bf16.msra.mxu0 %v8123
      %8243 = vmatprep.mubr.bf16.mxu0 %v7939
      %8244 = vmatmul.mubr.bf16.gmra.mxu0 %v7772
      %v8245 = vpop.f32.mrf.mxu0
      %v8246 = vadd.f32 %v8041, %v8245
      %v8247 = vpop.f32.mrf.mxu0
      %v8248 = vpop.f32.mrf.mxu0
      %v8249 = vadd.f32 %v8041, %v8248
      %v8250 = vpop.f32.mrf.mxu0
      %8251 = vmatprep.mubr.bf16.mxu0 %v7942
      %8252 = vmatmul.mubr.bf16.gmra.mxu0 %v7775
      %v8253 = vpop.f32.mrf.mxu0
      %v8254 = vadd.f32 %v8041, %v8253
      %v8255 = vpop.f32.mrf.mxu0
      %v8256 = vpop.f32.mrf.mxu0
      %v8257 = vadd.f32 %v8041, %v8256
      %v8258 = vpop.f32.mrf.mxu0
      %8259 = vmatprep.mubr.bf16.mxu0 %v7945
      %8260 = vmatmul.mubr.bf16.gmra.mxu0 %v7778
      %v8261 = vpop.f32.mrf.mxu0
      %v8262 = vadd.f32 %v8041, %v8261
      %v8263 = vpop.f32.mrf.mxu0
      %v8264 = vpop.f32.mrf.mxu0
      %v8265 = vadd.f32 %v8041, %v8264
      %v8266 = vpop.f32.mrf.mxu0
      %8267 = vmatprep.mubr.bf16.mxu0 %v7948
      %8268 = vmatmul.mubr.bf16.gmra.mxu0 %v7781
      %v8269 = vpop.f32.mrf.mxu0
      %v8270 = vadd.f32 %v8041, %v8269
      %v8271 = vpop.f32.mrf.mxu0
      %v8272 = vpop.f32.mrf.mxu0
      %v8273 = vadd.f32 %v8041, %v8272
      %v8274 = vpop.f32.mrf.mxu0
      %8275 = vmatprep.mubr.bf16.mxu0 %v7951
      %8276 = vmatmul.mubr.bf16.gmra.mxu0 %v7784
      %v8277 = vpop.f32.mrf.mxu0
      %v8278 = vadd.f32 %v8041, %v8277
      %v8279 = vpop.f32.mrf.mxu0
      %v8280 = vpop.f32.mrf.mxu0
      %v8281 = vadd.f32 %v8041, %v8280
      %v8282 = vpop.f32.mrf.mxu0
      %8283 = vmatprep.mubr.bf16.mxu0 %v7954
      %8284 = vmatmul.mubr.bf16.gmra.mxu0 %v7787
      %v8285 = vpop.f32.mrf.mxu0
      %v8286 = vadd.f32 %v8041, %v8285
      %v8287 = vpop.f32.mrf.mxu0
      %v8288 = vpop.f32.mrf.mxu0
      %v8289 = vadd.f32 %v8041, %v8288
      %v8290 = vpop.f32.mrf.mxu0
      %8291 = vmatprep.mubr.bf16.mxu0 %v7957
      %8292 = vmatmul.mubr.bf16.gmra.mxu0 %v7790
      %v8293 = vpop.f32.mrf.mxu0
      %v8294 = vadd.f32 %v8041, %v8293
      %v8295 = vpop.f32.mrf.mxu0
      %v8296 = vpop.f32.mrf.mxu0
      %v8297 = vadd.f32 %v8041, %v8296
      %v8298 = vpop.f32.mrf.mxu0
      %8299 = vmatprep.mubr.bf16.mxu0 %v7960
      %8300 = vmatmul.mubr.bf16.gmra.mxu0 %v7793
      %v8301 = vpop.f32.mrf.mxu0
      %v8302 = vadd.f32 %v8041, %v8301
      %v8303 = vpop.f32.mrf.mxu0
      %v8304 = vpop.f32.mrf.mxu0
      %v8305 = vadd.f32 %v8041, %v8304
      %v8306 = vpop.f32.mrf.mxu0
      %8307 = vmatprep.mubr.bf16.mxu0 %v7963
      %8308 = vmatmul.mubr.bf16.gmra.mxu0 %v7796
      %v8309 = vpop.f32.mrf.mxu0
      %v8310 = vadd.f32 %v8041, %v8309
      %v8311 = vpop.f32.mrf.mxu0
      %v8312 = vpop.f32.mrf.mxu0
      %v8313 = vadd.f32 %v8041, %v8312
      %v8314 = vpop.f32.mrf.mxu0
      %8315 = vmatprep.mubr.bf16.mxu0 %v7966
      %8316 = vmatmul.mubr.bf16.gmra.mxu0 %v7799
      %v8317 = vpop.f32.mrf.mxu0
      %v8318 = vadd.f32 %v8041, %v8317
      %v8319 = vpop.f32.mrf.mxu0
      %v8320 = vpop.f32.mrf.mxu0
      %v8321 = vadd.f32 %v8041, %v8320
      %v8322 = vpop.f32.mrf.mxu0
      %8323 = vmatprep.mubr.bf16.mxu0 %v7969
      %8324 = vmatmul.mubr.bf16.gmra.mxu0 %v7802
      %v8325 = vpop.f32.mrf.mxu0
      %v8326 = vadd.f32 %v8041, %v8325
      %v8327 = vpop.f32.mrf.mxu0
      %v8328 = vpop.f32.mrf.mxu0
      %v8329 = vadd.f32 %v8041, %v8328
      %v8330 = vpop.f32.mrf.mxu0
      %8331 = vmatprep.mubr.bf16.mxu0 %v7972
      %8332 = vmatmul.mubr.bf16.gmra.mxu0 %v7805
      %v8333 = vpop.f32.mrf.mxu0
      %v8334 = vadd.f32 %v8041, %v8333
      %v8335 = vpop.f32.mrf.mxu0
      %v8336 = vpop.f32.mrf.mxu0
      %v8337 = vadd.f32 %v8041, %v8336
      %v8338 = vpop.f32.mrf.mxu0
      %8339 = vmatprep.mubr.bf16.mxu0 %v7975
      %8340 = vmatmul.mubr.bf16.gmra.mxu0 %v7808
      %v8341 = vpop.f32.mrf.mxu0
      %v8342 = vadd.f32 %v8041, %v8341
      %v8343 = vpop.f32.mrf.mxu0
      %v8344 = vpop.f32.mrf.mxu0
      %v8345 = vadd.f32 %v8041, %v8344
      %v8346 = vpop.f32.mrf.mxu0
      %8347 = vmatprep.mubr.bf16.mxu0 %v7978
      %8348 = vmatmul.mubr.bf16.gmra.mxu0 %v7811
      %v8349 = vpop.f32.mrf.mxu0
      %v8350 = vadd.f32 %v8041, %v8349
      %v8351 = vpop.f32.mrf.mxu0
      %v8352 = vpop.f32.mrf.mxu0
      %v8353 = vadd.f32 %v8041, %v8352
      %v8354 = vpop.f32.mrf.mxu0
      %8355 = vmatprep.mubr.bf16.mxu0 %v7981
      %8356 = vmatmul.mubr.bf16.gmra.mxu0 %v7814
      %v8357 = vpop.f32.mrf.mxu0
      %v8358 = vadd.f32 %v8041, %v8357
      %v8359 = vpop.f32.mrf.mxu0
      %v8360 = vpop.f32.mrf.mxu0
      %v8361 = vadd.f32 %v8041, %v8360
      %v8362 = vpop.f32.mrf.mxu0
      %8363 = vmatprep.mubr.bf16.mxu0 %v7984
      %8364 = vmatmul.mubr.bf16.gmra.mxu0 %v7817
      %v8365 = vpop.f32.mrf.mxu0
      %v8366 = vadd.f32 %v8041, %v8365
      %v8367 = vpop.f32.mrf.mxu0
      %v8368 = vpop.f32.mrf.mxu0
      %v8369 = vadd.f32 %v8041, %v8368
      %v8370 = vpop.f32.mrf.mxu0
      %8371 = vmatprep.mubr.bf16.mxu0 %v7987
      %8372 = vmatmul.mubr.bf16.gmra.mxu0 %v7820
      %v8373 = vpop.f32.mrf.mxu0
      %v8374 = vadd.f32 %v8041, %v8373
      %v8375 = vpop.f32.mrf.mxu0
      %v8376 = vpop.f32.mrf.mxu0
      %v8377 = vadd.f32 %v8041, %v8376
      %v8378 = vpop.f32.mrf.mxu0
      %8379 = vmatprep.mubr.bf16.mxu0 %v7990
      %8380 = vmatmul.mubr.bf16.gmra.mxu0 %v7823
      %v8381 = vpop.f32.mrf.mxu0
      %v8382 = vadd.f32 %v8041, %v8381
      %v8383 = vpop.f32.mrf.mxu0
      %v8384 = vpop.f32.mrf.mxu0
      %v8385 = vadd.f32 %v8041, %v8384
      %v8386 = vpop.f32.mrf.mxu0
      %8387 = vmatprep.mubr.bf16.mxu0 %v7993
      %8388 = vmatmul.mubr.bf16.gmra.mxu0 %v7826
      %v8389 = vpop.f32.mrf.mxu0
      %v8390 = vadd.f32 %v8041, %v8389
      %v8391 = vpop.f32.mrf.mxu0
      %v8392 = vpop.f32.mrf.mxu0
      %v8393 = vadd.f32 %v8041, %v8392
      %v8394 = vpop.f32.mrf.mxu0
      %8395 = vmatprep.mubr.bf16.mxu0 %v7996
      %8396 = vmatmul.mubr.bf16.gmra.mxu0 %v7829
      %v8397 = vpop.f32.mrf.mxu0
      %v8398 = vadd.f32 %v8041, %v8397
      %v8399 = vpop.f32.mrf.mxu0
      %v8400 = vpop.f32.mrf.mxu0
      %v8401 = vadd.f32 %v8041, %v8400
      %v8402 = vpop.f32.mrf.mxu0
      %8403 = vmatprep.mubr.bf16.mxu0 %v7998
      %8404 = vmatmul.mubr.bf16.gmra.mxu0 %v7832
      %v8405 = vpop.f32.mrf.mxu0
      %v8406 = vadd.f32 %v8041, %v8405
      %v8407 = vpop.f32.mrf.mxu0
      %v8408 = vpop.f32.mrf.mxu0
      %v8409 = vpop.f32.mrf.mxu0
      %8410 = vdwg.mxu0
      %8411 = vmatprep.subr.bf16.mxu0 0
      %8412 = vmatpush1.bf16.msra.mxu0 0
      %8413 = vmatprep.subr.bf16.mxu0 0
      %8414 = vmatpush1.bf16.msra.mxu0 0
      %8415 = vmatprep.subr.bf16.mxu0 0
      %8416 = vmatpush1.bf16.msra.mxu0 0
      %8417 = vmatprep.subr.bf16.mxu0 0
      %8418 = vmatpush1.bf16.msra.mxu0 0
      %8419 = vmatprep.subr.bf16.mxu0 0
      %8420 = vmatpush1.bf16.msra.mxu0 0
      %8421 = vmatprep.subr.bf16.mxu0 0
      %8422 = vmatpush1.bf16.msra.mxu0 0
      %8423 = vmatprep.subr.bf16.mxu0 0
      %8424 = vmatpush1.bf16.msra.mxu0 %v8132
      %8425 = vmatprep.subr.bf16.mxu0 0
      %8426 = vmatpush1.bf16.msra.mxu0 %v8131
      %8427 = vmatprep.subr.bf16.mxu0 0
      %8428 = vmatpush2.bf16.msra.mxu0 0
      %8429 = vmatprep.subr.bf16.mxu0 0
      %8430 = vmatpush2.bf16.msra.mxu0 0
      %8431 = vmatprep.subr.bf16.mxu0 0
      %8432 = vmatpush2.bf16.msra.mxu0 0
      %8433 = vmatprep.subr.bf16.mxu0 0
      %8434 = vmatpush2.bf16.msra.mxu0 0
      %8435 = vmatprep.subr.bf16.mxu0 0
      %8436 = vmatpush2.bf16.msra.mxu0 0
      %8437 = vmatprep.subr.bf16.mxu0 0
      %8438 = vmatpush2.bf16.msra.mxu0 0
      %8439 = vmatprep.subr.bf16.mxu0 0
      %8440 = vmatpush2.bf16.msra.mxu0 0
      %8441 = vmatprep.subr.bf16.mxu0 0
      %8442 = vmatpush2.bf16.msra.mxu0 0
      %8443 = vmatprep.mubr.bf16.mxu0 0
      %8444 = vmatmul.mubr.bf16.gmra.mxu0 %v8152
      %v8445 = vpop.f32.mrf.mxu0
      %v8446 = vadd.f32 %v8246, %v8445
      %v8447 = vpop.f32.mrf.mxu0
      %v8448 = vpop.f32.mrf.mxu0
      %v8449 = vadd.f32 %v8249, %v8448
      %v8450 = vpop.f32.mrf.mxu0
      %8451 = vmatprep.mubr.bf16.mxu0 0
      %8452 = vmatmul.mubr.bf16.gmra.mxu0 %v8155
      %v8453 = vpop.f32.mrf.mxu0
      %v8454 = vadd.f32 %v8254, %v8453
      %v8455 = vpop.f32.mrf.mxu0
      %v8456 = vpop.f32.mrf.mxu0
      %v8457 = vadd.f32 %v8257, %v8456
      %v8458 = vpop.f32.mrf.mxu0
      %8459 = vmatprep.mubr.bf16.mxu0 0
      %8460 = vmatmul.mubr.bf16.gmra.mxu0 %v8158
      %v8461 = vpop.f32.mrf.mxu0
      %v8462 = vadd.f32 %v8262, %v8461
      %v8463 = vpop.f32.mrf.mxu0
      %v8464 = vpop.f32.mrf.mxu0
      %v8465 = vadd.f32 %v8265, %v8464
      %v8466 = vpop.f32.mrf.mxu0
      %8467 = vmatprep.mubr.bf16.mxu0 0
      %8468 = vmatmul.mubr.bf16.gmra.mxu0 %v8161
      %v8469 = vpop.f32.mrf.mxu0
      %v8470 = vadd.f32 %v8270, %v8469
      %v8471 = vpop.f32.mrf.mxu0
      %v8472 = vpop.f32.mrf.mxu0
      %v8473 = vadd.f32 %v8273, %v8472
      %v8474 = vpop.f32.mrf.mxu0
      %8475 = vmatprep.mubr.bf16.mxu0 0
      %8476 = vmatmul.mubr.bf16.gmra.mxu0 %v8164
      %v8477 = vpop.f32.mrf.mxu0
      %v8478 = vadd.f32 %v8278, %v8477
      %v8479 = vpop.f32.mrf.mxu0
      %v8480 = vpop.f32.mrf.mxu0
      %v8481 = vadd.f32 %v8281, %v8480
      %v8482 = vpop.f32.mrf.mxu0
      %8483 = vmatprep.mubr.bf16.mxu0 0
      %8484 = vmatmul.mubr.bf16.gmra.mxu0 %v8167
      %v8485 = vpop.f32.mrf.mxu0
      %v8486 = vadd.f32 %v8286, %v8485
      %v8487 = vpop.f32.mrf.mxu0
      %v8488 = vpop.f32.mrf.mxu0
      %v8489 = vadd.f32 %v8289, %v8488
      %v8490 = vpop.f32.mrf.mxu0
      %8491 = vmatprep.mubr.bf16.mxu0 0
      %8492 = vmatmul.mubr.bf16.gmra.mxu0 %v8170
      %v8493 = vpop.f32.mrf.mxu0
      %v8494 = vadd.f32 %v8294, %v8493
      %v8495 = vpop.f32.mrf.mxu0
      %v8496 = vpop.f32.mrf.mxu0
      %v8497 = vadd.f32 %v8297, %v8496
      %v8498 = vpop.f32.mrf.mxu0
      %8499 = vmatprep.mubr.bf16.mxu0 0
      %8500 = vmatmul.mubr.bf16.gmra.mxu0 %v8173
      %v8501 = vpop.f32.mrf.mxu0
      %v8502 = vadd.f32 %v8302, %v8501
      %v8503 = vpop.f32.mrf.mxu0
      %v8504 = vpop.f32.mrf.mxu0
      %v8505 = vadd.f32 %v8305, %v8504
      %v8506 = vpop.f32.mrf.mxu0
      %8507 = vmatprep.mubr.bf16.mxu0 0
      %8508 = vmatmul.mubr.bf16.gmra.mxu0 %v8176
      %v8509 = vpop.f32.mrf.mxu0
      %v8510 = vadd.f32 %v8310, %v8509
      %v8511 = vpop.f32.mrf.mxu0
      %v8512 = vpop.f32.mrf.mxu0
      %v8513 = vadd.f32 %v8313, %v8512
      %v8514 = vpop.f32.mrf.mxu0
      %8515 = vmatprep.mubr.bf16.mxu0 0
      %8516 = vmatmul.mubr.bf16.gmra.mxu0 %v8179
      %v8517 = vpop.f32.mrf.mxu0
      %v8518 = vadd.f32 %v8318, %v8517
      %v8519 = vpop.f32.mrf.mxu0
      %v8520 = vpop.f32.mrf.mxu0
      %v8521 = vadd.f32 %v8321, %v8520
      %v8522 = vpop.f32.mrf.mxu0
      %8523 = vmatprep.mubr.bf16.mxu0 0
      %8524 = vmatmul.mubr.bf16.gmra.mxu0 %v8182
      %v8525 = vpop.f32.mrf.mxu0
      %v8526 = vadd.f32 %v8326, %v8525
      %v8527 = vpop.f32.mrf.mxu0
      %v8528 = vpop.f32.mrf.mxu0
      %v8529 = vadd.f32 %v8329, %v8528
      %v8530 = vpop.f32.mrf.mxu0
      %8531 = vmatprep.mubr.bf16.mxu0 0
      %8532 = vmatmul.mubr.bf16.gmra.mxu0 %v8185
      %v8533 = vpop.f32.mrf.mxu0
      %v8534 = vadd.f32 %v8334, %v8533
      %v8535 = vpop.f32.mrf.mxu0
      %v8536 = vpop.f32.mrf.mxu0
      %v8537 = vadd.f32 %v8337, %v8536
      %v8538 = vpop.f32.mrf.mxu0
      %8539 = vmatprep.mubr.bf16.mxu0 0
      %8540 = vmatmul.mubr.bf16.gmra.mxu0 %v8188
      %v8541 = vpop.f32.mrf.mxu0
      %v8542 = vadd.f32 %v8342, %v8541
      %v8543 = vpop.f32.mrf.mxu0
      %v8544 = vpop.f32.mrf.mxu0
      %v8545 = vadd.f32 %v8345, %v8544
      %v8546 = vpop.f32.mrf.mxu0
      %8547 = vmatprep.mubr.bf16.mxu0 0
      %8548 = vmatmul.mubr.bf16.gmra.mxu0 %v8191
      %v8549 = vpop.f32.mrf.mxu0
      %v8550 = vadd.f32 %v8350, %v8549
      %v8551 = vpop.f32.mrf.mxu0
      %v8552 = vpop.f32.mrf.mxu0
      %v8553 = vadd.f32 %v8353, %v8552
      %v8554 = vpop.f32.mrf.mxu0
      %8555 = vmatprep.mubr.bf16.mxu0 0
      %8556 = vmatmul.mubr.bf16.gmra.mxu0 %v8194
      %v8557 = vpop.f32.mrf.mxu0
      %v8558 = vadd.f32 %v8358, %v8557
      %v8559 = vpop.f32.mrf.mxu0
      %v8560 = vpop.f32.mrf.mxu0
      %v8561 = vadd.f32 %v8361, %v8560
      %v8562 = vpop.f32.mrf.mxu0
      %8563 = vmatprep.mubr.bf16.mxu0 0
      %8564 = vmatmul.mubr.bf16.gmra.mxu0 %v8197
      %v8565 = vpop.f32.mrf.mxu0
      %v8566 = vadd.f32 %v8366, %v8565
      %v8567 = vpop.f32.mrf.mxu0
      %v8568 = vpop.f32.mrf.mxu0
      %v8569 = vadd.f32 %v8369, %v8568
      %v8570 = vpop.f32.mrf.mxu0
      %8571 = vmatprep.mubr.bf16.mxu0 0
      %8572 = vmatmul.mubr.bf16.gmra.mxu0 %v8200
      %v8573 = vpop.f32.mrf.mxu0
      %v8574 = vadd.f32 %v8374, %v8573
      %v8575 = vpop.f32.mrf.mxu0
      %v8576 = vpop.f32.mrf.mxu0
      %v8577 = vadd.f32 %v8377, %v8576
      %v8578 = vpop.f32.mrf.mxu0
      %8579 = vmatprep.mubr.bf16.mxu0 0
      %8580 = vmatmul.mubr.bf16.gmra.mxu0 %v8203
      %v8581 = vpop.f32.mrf.mxu0
      %v8582 = vadd.f32 %v8382, %v8581
      %v8583 = vpop.f32.mrf.mxu0
      %v8584 = vpop.f32.mrf.mxu0
      %v8585 = vadd.f32 %v8385, %v8584
      %v8586 = vpop.f32.mrf.mxu0
      %8587 = vmatprep.mubr.bf16.mxu0 0
      %8588 = vmatmul.mubr.bf16.gmra.mxu0 %v8206
      %v8589 = vpop.f32.mrf.mxu0
      %v8590 = vadd.f32 %v8390, %v8589
      %v8591 = vpop.f32.mrf.mxu0
      %v8592 = vpop.f32.mrf.mxu0
      %v8593 = vadd.f32 %v8393, %v8592
      %v8594 = vpop.f32.mrf.mxu0
      %8595 = vmatprep.mubr.bf16.mxu0 0
      %8596 = vmatmul.mubr.bf16.gmra.mxu0 %v8209
      %v8597 = vpop.f32.mrf.mxu0
      %v8598 = vadd.f32 %v8398, %v8597
      %v8599 = vpop.f32.mrf.mxu0
      %v8600 = vpop.f32.mrf.mxu0
      %v8601 = vadd.f32 %v8401, %v8600
      %v8602 = vpop.f32.mrf.mxu0
      %8603 = vmatprep.mubr.bf16.mxu0 0
      %8604 = vmatmul.mubr.bf16.gmra.mxu0 %v2445
      %v8605 = vpop.f32.mrf.mxu0
      %v8606 = vadd.f32 %v8406, %v8605
      %v8607 = vpop.f32.mrf.mxu0
      %v8608 = vpop.f32.mrf.mxu0
      %v8609 = vpop.f32.mrf.mxu0
      %8610 = vdwg.mxu0
      %v8611 = vmul.f32 %v8446, %v8446
      %v8612 = vmul.f32 %v8449, %v8449
      %v8613 = vmul.f32 %v8454, %v8454
      %v8614 = vmul.f32 %v8457, %v8457
      %v8615 = vmul.f32 %v8462, %v8462
      %v8616 = vmul.f32 %v8465, %v8465
      %v8617 = vmul.f32 %v8470, %v8470
      %v8618 = vmul.f32 %v8473, %v8473
      %v8619 = vmul.f32 %v8478, %v8478
      %v8620 = vmul.f32 %v8481, %v8481
      %v8621 = vmul.f32 %v8486, %v8486
      %v8622 = vmul.f32 %v8489, %v8489
      %v8623 = vmul.f32 %v8494, %v8494
      %v8624 = vmul.f32 %v8497, %v8497
      %v8625 = vmul.f32 %v8502, %v8502
      %v8626 = vmul.f32 %v8505, %v8505
      %v8627 = vmul.f32 %v8510, %v8510
      %v8628 = vmul.f32 %v8513, %v8513
      %v8629 = vmul.f32 %v8518, %v8518
      %v8630 = vmul.f32 %v8521, %v8521
      %v8631 = vmul.f32 %v8526, %v8526
      %v8632 = vmul.f32 %v8529, %v8529
      %v8633 = vmul.f32 %v8534, %v8534
      %v8634 = vmul.f32 %v8537, %v8537
      %v8635 = vmul.f32 %v8542, %v8542
      %v8636 = vmul.f32 %v8545, %v8545
      %v8637 = vmul.f32 %v8550, %v8550
      %v8638 = vmul.f32 %v8553, %v8553
      %v8639 = vmul.f32 %v8558, %v8558
      %v8640 = vmul.f32 %v8561, %v8561
      %v8641 = vmul.f32 %v8566, %v8566
      %v8642 = vmul.f32 %v8569, %v8569
      %v8643 = vmul.f32 %v8574, %v8574
      %v8644 = vmul.f32 %v8577, %v8577
      %v8645 = vmul.f32 %v8582, %v8582
      %v8646 = vmul.f32 %v8585, %v8585
      %v8647 = vmul.f32 %v8590, %v8590
      %v8648 = vmul.f32 %v8593, %v8593
      %v8649 = vmul.f32 %v8598, %v8598
      %v8650 = vmul.f32 %v8601, %v8601
      %v8651 = vmul.f32 %v8606, %v8606
      %v8652 = vsel %vm768, %v8611, 0.0
      %8653 = vadd.xlane.f32.xlu0 %v8652
      %v8654 = vpop.xlane.xlu0 %8653
      %v8655 = vsel %vm768, %v8612, 0.0
      %8656 = vadd.xlane.f32.xlu0 %v8655
      %v8657 = vpop.xlane.xlu0 %8656
      %v8658 = vsel %vm768, %v8613, 0.0
      %8659 = vadd.xlane.f32.xlu0 %v8658
      %v8660 = vpop.xlane.xlu0 %8659
      %v8661 = vsel %vm768, %v8614, 0.0
      %8662 = vadd.xlane.f32.xlu0 %v8661
      %v8663 = vpop.xlane.xlu0 %8662
      %v8664 = vsel %vm768, %v8615, 0.0
      %8665 = vadd.xlane.f32.xlu0 %v8664
      %v8666 = vpop.xlane.xlu0 %8665
      %v8667 = vsel %vm768, %v8616, 0.0
      %8668 = vadd.xlane.f32.xlu0 %v8667
      %v8669 = vpop.xlane.xlu0 %8668
      %v8670 = vsel %vm768, %v8617, 0.0
      %8671 = vadd.xlane.f32.xlu0 %v8670
      %v8672 = vpop.xlane.xlu0 %8671
      %v8673 = vsel %vm768, %v8618, 0.0
      %8674 = vadd.xlane.f32.xlu0 %v8673
      %v8675 = vpop.xlane.xlu0 %8674
      %v8676 = vsel %vm768, %v8619, 0.0
      %8677 = vadd.xlane.f32.xlu0 %v8676
      %v8678 = vpop.xlane.xlu0 %8677
      %v8679 = vsel %vm768, %v8620, 0.0
      %8680 = vadd.xlane.f32.xlu0 %v8679
      %v8681 = vpop.xlane.xlu0 %8680
      %v8682 = vsel %vm768, %v8621, 0.0
      %8683 = vadd.xlane.f32.xlu0 %v8682
      %v8684 = vpop.xlane.xlu0 %8683
      %v8685 = vsel %vm768, %v8622, 0.0
      %8686 = vadd.xlane.f32.xlu0 %v8685
      %v8687 = vpop.xlane.xlu0 %8686
      %v8688 = vsel %vm768, %v8623, 0.0
      %8689 = vadd.xlane.f32.xlu0 %v8688
      %v8690 = vpop.xlane.xlu0 %8689
      %v8691 = vsel %vm768, %v8624, 0.0
      %8692 = vadd.xlane.f32.xlu0 %v8691
      %v8693 = vpop.xlane.xlu0 %8692
      %v8694 = vsel %vm768, %v8625, 0.0
      %8695 = vadd.xlane.f32.xlu0 %v8694
      %v8696 = vpop.xlane.xlu0 %8695
      %v8697 = vsel %vm768, %v8626, 0.0
      %8698 = vadd.xlane.f32.xlu0 %v8697
      %v8699 = vpop.xlane.xlu0 %8698
      %v8700 = vsel %vm768, %v8627, 0.0
      %8701 = vadd.xlane.f32.xlu0 %v8700
      %v8702 = vpop.xlane.xlu0 %8701
      %v8703 = vsel %vm768, %v8628, 0.0
      %8704 = vadd.xlane.f32.xlu0 %v8703
      %v8705 = vpop.xlane.xlu0 %8704
      %v8706 = vsel %vm768, %v8629, 0.0
      %8707 = vadd.xlane.f32.xlu0 %v8706
      %v8708 = vpop.xlane.xlu0 %8707
      %v8709 = vsel %vm768, %v8630, 0.0
      %8710 = vadd.xlane.f32.xlu0 %v8709
      %v8711 = vpop.xlane.xlu0 %8710
      %v8712 = vsel %vm768, %v8631, 0.0
      %8713 = vadd.xlane.f32.xlu0 %v8712
      %v8714 = vpop.xlane.xlu0 %8713
      %v8715 = vsel %vm768, %v8632, 0.0
      %8716 = vadd.xlane.f32.xlu0 %v8715
      %v8717 = vpop.xlane.xlu0 %8716
      %v8718 = vsel %vm768, %v8633, 0.0
      %8719 = vadd.xlane.f32.xlu0 %v8718
      %v8720 = vpop.xlane.xlu0 %8719
      %v8721 = vsel %vm768, %v8634, 0.0
      %8722 = vadd.xlane.f32.xlu0 %v8721
      %v8723 = vpop.xlane.xlu0 %8722
      %v8724 = vsel %vm768, %v8635, 0.0
      %8725 = vadd.xlane.f32.xlu0 %v8724
      %v8726 = vpop.xlane.xlu0 %8725
      %v8727 = vsel %vm768, %v8636, 0.0
      %8728 = vadd.xlane.f32.xlu0 %v8727
      %v8729 = vpop.xlane.xlu0 %8728
      %v8730 = vsel %vm768, %v8637, 0.0
      %8731 = vadd.xlane.f32.xlu0 %v8730
      %v8732 = vpop.xlane.xlu0 %8731
      %v8733 = vsel %vm768, %v8638, 0.0
      %8734 = vadd.xlane.f32.xlu0 %v8733
      %v8735 = vpop.xlane.xlu0 %8734
      %v8736 = vsel %vm768, %v8639, 0.0
      %8737 = vadd.xlane.f32.xlu0 %v8736
      %v8738 = vpop.xlane.xlu0 %8737
      %v8739 = vsel %vm768, %v8640, 0.0
      %8740 = vadd.xlane.f32.xlu0 %v8739
      %v8741 = vpop.xlane.xlu0 %8740
      %v8742 = vsel %vm768, %v8641, 0.0
      %8743 = vadd.xlane.f32.xlu0 %v8742
      %v8744 = vpop.xlane.xlu0 %8743
      %v8745 = vsel %vm768, %v8642, 0.0
      %8746 = vadd.xlane.f32.xlu0 %v8745
      %v8747 = vpop.xlane.xlu0 %8746
      %v8748 = vsel %vm768, %v8643, 0.0
      %8749 = vadd.xlane.f32.xlu0 %v8748
      %v8750 = vpop.xlane.xlu0 %8749
      %v8751 = vsel %vm768, %v8644, 0.0
      %8752 = vadd.xlane.f32.xlu0 %v8751
      %v8753 = vpop.xlane.xlu0 %8752
      %v8754 = vsel %vm768, %v8645, 0.0
      %8755 = vadd.xlane.f32.xlu0 %v8754
      %v8756 = vpop.xlane.xlu0 %8755
      %v8757 = vsel %vm768, %v8646, 0.0
      %8758 = vadd.xlane.f32.xlu0 %v8757
      %v8759 = vpop.xlane.xlu0 %8758
      %v8760 = vsel %vm768, %v8647, 0.0
      %8761 = vadd.xlane.f32.xlu0 %v8760
      %v8762 = vpop.xlane.xlu0 %8761
      %v8763 = vsel %vm768, %v8648, 0.0
      %8764 = vadd.xlane.f32.xlu0 %v8763
      %v8765 = vpop.xlane.xlu0 %8764
      %v8766 = vsel %vm768, %v8649, 0.0
      %8767 = vadd.xlane.f32.xlu0 %v8766
      %v8768 = vpop.xlane.xlu0 %8767
      %v8769 = vsel %vm768, %v8650, 0.0
      %8770 = vadd.xlane.f32.xlu0 %v8769
      %v8771 = vpop.xlane.xlu0 %8770
      %v8772 = vsel %vm1041, %v8651, 0.0
      %8773 = vadd.xlane.f32.xlu0 %v8772
      %v8774 = vpop.xlane.xlu0 %8773
      %v8775 = vmul.f32 %v8654, %v1045
      %v8776 = vmul.f32 %v8657, %v1045
      %v8777 = vmul.f32 %v8660, %v1045
      %v8778 = vmul.f32 %v8663, %v1045
      %v8779 = vmul.f32 %v8666, %v1045
      %v8780 = vmul.f32 %v8669, %v1045
      %v8781 = vmul.f32 %v8672, %v1045
      %v8782 = vmul.f32 %v8675, %v1045
      %v8783 = vmul.f32 %v8678, %v1045
      %v8784 = vmul.f32 %v8681, %v1045
      %v8785 = vmul.f32 %v8684, %v1045
      %v8786 = vmul.f32 %v8687, %v1045
      %v8787 = vmul.f32 %v8690, %v1045
      %v8788 = vmul.f32 %v8693, %v1045
      %v8789 = vmul.f32 %v8696, %v1045
      %v8790 = vmul.f32 %v8699, %v1045
      %v8791 = vmul.f32 %v8702, %v1045
      %v8792 = vmul.f32 %v8705, %v1045
      %v8793 = vmul.f32 %v8708, %v1045
      %v8794 = vmul.f32 %v8711, %v1045
      %v8795 = vmul.f32 %v8714, %v1045
      %v8796 = vmul.f32 %v8717, %v1045
      %v8797 = vmul.f32 %v8720, %v1045
      %v8798 = vmul.f32 %v8723, %v1045
      %v8799 = vmul.f32 %v8726, %v1045
      %v8800 = vmul.f32 %v8729, %v1045
      %v8801 = vmul.f32 %v8732, %v1045
      %v8802 = vmul.f32 %v8735, %v1045
      %v8803 = vmul.f32 %v8738, %v1045
      %v8804 = vmul.f32 %v8741, %v1045
      %v8805 = vmul.f32 %v8744, %v1045
      %v8806 = vmul.f32 %v8747, %v1045
      %v8807 = vmul.f32 %v8750, %v1045
      %v8808 = vmul.f32 %v8753, %v1045
      %v8809 = vmul.f32 %v8756, %v1045
      %v8810 = vmul.f32 %v8759, %v1045
      %v8811 = vmul.f32 %v8762, %v1045
      %v8812 = vmul.f32 %v8765, %v1045
      %v8813 = vmul.f32 %v8768, %v1045
      %v8814 = vmul.f32 %v8771, %v1045
      %v8815 = vmul.f32 %v8774, %v1045
      %v8816 = vadd.f32 %v8775, 1e-08
      %v8817 = vadd.f32 %v8776, 1e-08
      %v8818 = vadd.f32 %v8777, 1e-08
      %v8819 = vadd.f32 %v8778, 1e-08
      %v8820 = vadd.f32 %v8779, 1e-08
      %v8821 = vadd.f32 %v8780, 1e-08
      %v8822 = vadd.f32 %v8781, 1e-08
      %v8823 = vadd.f32 %v8782, 1e-08
      %v8824 = vadd.f32 %v8783, 1e-08
      %v8825 = vadd.f32 %v8784, 1e-08
      %v8826 = vadd.f32 %v8785, 1e-08
      %v8827 = vadd.f32 %v8786, 1e-08
      %v8828 = vadd.f32 %v8787, 1e-08
      %v8829 = vadd.f32 %v8788, 1e-08
      %v8830 = vadd.f32 %v8789, 1e-08
      %v8831 = vadd.f32 %v8790, 1e-08
      %v8832 = vadd.f32 %v8791, 1e-08
      %v8833 = vadd.f32 %v8792, 1e-08
      %v8834 = vadd.f32 %v8793, 1e-08
      %v8835 = vadd.f32 %v8794, 1e-08
      %v8836 = vadd.f32 %v8795, 1e-08
      %v8837 = vadd.f32 %v8796, 1e-08
      %v8838 = vadd.f32 %v8797, 1e-08
      %v8839 = vadd.f32 %v8798, 1e-08
      %v8840 = vadd.f32 %v8799, 1e-08
      %v8841 = vadd.f32 %v8800, 1e-08
      %v8842 = vadd.f32 %v8801, 1e-08
      %v8843 = vadd.f32 %v8802, 1e-08
      %v8844 = vadd.f32 %v8803, 1e-08
      %v8845 = vadd.f32 %v8804, 1e-08
      %v8846 = vadd.f32 %v8805, 1e-08
      %v8847 = vadd.f32 %v8806, 1e-08
      %v8848 = vadd.f32 %v8807, 1e-08
      %v8849 = vadd.f32 %v8808, 1e-08
      %v8850 = vadd.f32 %v8809, 1e-08
      %v8851 = vadd.f32 %v8810, 1e-08
      %v8852 = vadd.f32 %v8811, 1e-08
      %v8853 = vadd.f32 %v8812, 1e-08
      %v8854 = vadd.f32 %v8813, 1e-08
      %v8855 = vadd.f32 %v8814, 1e-08
      %v8856 = vadd.f32 %v8815, 1e-08
      %v8857 = vrsqrt.pop %v8816
      %v8858 = vrsqrt.pop %v8817
      %v8859 = vrsqrt.pop %v8818
      %v8860 = vrsqrt.pop %v8819
      %v8861 = vrsqrt.pop %v8820
      %v8862 = vrsqrt.pop %v8821
      %v8863 = vrsqrt.pop %v8822
      %v8864 = vrsqrt.pop %v8823
      %v8865 = vrsqrt.pop %v8824
      %v8866 = vrsqrt.pop %v8825
      %v8867 = vrsqrt.pop %v8826
      %v8868 = vrsqrt.pop %v8827
      %v8869 = vrsqrt.pop %v8828
      %v8870 = vrsqrt.pop %v8829
      %v8871 = vrsqrt.pop %v8830
      %v8872 = vrsqrt.pop %v8831
      %v8873 = vrsqrt.pop %v8832
      %v8874 = vrsqrt.pop %v8833
      %v8875 = vrsqrt.pop %v8834
      %v8876 = vrsqrt.pop %v8835
      %v8877 = vrsqrt.pop %v8836
      %v8878 = vrsqrt.pop %v8837
      %v8879 = vrsqrt.pop %v8838
      %v8880 = vrsqrt.pop %v8839
      %v8881 = vrsqrt.pop %v8840
      %v8882 = vrsqrt.pop %v8841
      %v8883 = vrsqrt.pop %v8842
      %v8884 = vrsqrt.pop %v8843
      %v8885 = vrsqrt.pop %v8844
      %v8886 = vrsqrt.pop %v8845
      %v8887 = vrsqrt.pop %v8846
      %v8888 = vrsqrt.pop %v8847
      %v8889 = vrsqrt.pop %v8848
      %v8890 = vrsqrt.pop %v8849
      %v8891 = vrsqrt.pop %v8850
      %v8892 = vrsqrt.pop %v8851
      %v8893 = vrsqrt.pop %v8852
      %v8894 = vrsqrt.pop %v8853
      %v8895 = vrsqrt.pop %v8854
      %v8896 = vrsqrt.pop %v8855
      %v8897 = vrsqrt.pop %v8856
      %v8898 = vmul.f32 %v8446, %v8857
      %v8899 = vmul.f32 %v8449, %v8858
      %v8900 = vmul.f32 %v8454, %v8859
      %v8901 = vmul.f32 %v8457, %v8860
      %v8902 = vmul.f32 %v8462, %v8861
      %v8903 = vmul.f32 %v8465, %v8862
      %v8904 = vmul.f32 %v8470, %v8863
      %v8905 = vmul.f32 %v8473, %v8864
      %v8906 = vmul.f32 %v8478, %v8865
      %v8907 = vmul.f32 %v8481, %v8866
      %v8908 = vmul.f32 %v8486, %v8867
      %v8909 = vmul.f32 %v8489, %v8868
      %v8910 = vmul.f32 %v8494, %v8869
      %v8911 = vmul.f32 %v8497, %v8870
      %v8912 = vmul.f32 %v8502, %v8871
      %v8913 = vmul.f32 %v8505, %v8872
      %v8914 = vmul.f32 %v8510, %v8873
      %v8915 = vmul.f32 %v8513, %v8874
      %v8916 = vmul.f32 %v8518, %v8875
      %v8917 = vmul.f32 %v8521, %v8876
      %v8918 = vmul.f32 %v8526, %v8877
      %v8919 = vmul.f32 %v8529, %v8878
      %v8920 = vmul.f32 %v8534, %v8879
      %v8921 = vmul.f32 %v8537, %v8880
      %v8922 = vmul.f32 %v8542, %v8881
      %v8923 = vmul.f32 %v8545, %v8882
      %v8924 = vmul.f32 %v8550, %v8883
      %v8925 = vmul.f32 %v8553, %v8884
      %v8926 = vmul.f32 %v8558, %v8885
      %v8927 = vmul.f32 %v8561, %v8886
      %v8928 = vmul.f32 %v8566, %v8887
      %v8929 = vmul.f32 %v8569, %v8888
      %v8930 = vmul.f32 %v8574, %v8889
      %v8931 = vmul.f32 %v8577, %v8890
      %v8932 = vmul.f32 %v8582, %v8891
      %v8933 = vmul.f32 %v8585, %v8892
      %v8934 = vmul.f32 %v8590, %v8893
      %v8935 = vmul.f32 %v8593, %v8894
      %v8936 = vmul.f32 %v8598, %v8895
      %v8937 = vmul.f32 %v8601, %v8896
      %v8938 = vmul.f32 %v8606, %v8897
      %vm8939 = vcmp.gt.f32.partialorder %v8898, 0.0
      %vm8940 = vcmp.gt.f32.partialorder %v8899, 0.0
      %vm8941 = vcmp.gt.f32.partialorder %v8900, 0.0
      %vm8942 = vcmp.gt.f32.partialorder %v8901, 0.0
      %vm8943 = vcmp.gt.f32.partialorder %v8902, 0.0
      %vm8944 = vcmp.gt.f32.partialorder %v8903, 0.0
      %vm8945 = vcmp.gt.f32.partialorder %v8904, 0.0
      %vm8946 = vcmp.gt.f32.partialorder %v8905, 0.0
      %vm8947 = vcmp.gt.f32.partialorder %v8906, 0.0
      %vm8948 = vcmp.gt.f32.partialorder %v8907, 0.0
      %vm8949 = vcmp.gt.f32.partialorder %v8908, 0.0
      %vm8950 = vcmp.gt.f32.partialorder %v8909, 0.0
      %vm8951 = vcmp.gt.f32.partialorder %v8910, 0.0
      %vm8952 = vcmp.gt.f32.partialorder %v8911, 0.0
      %vm8953 = vcmp.gt.f32.partialorder %v8912, 0.0
      %vm8954 = vcmp.gt.f32.partialorder %v8913, 0.0
      %vm8955 = vcmp.gt.f32.partialorder %v8914, 0.0
      %vm8956 = vcmp.gt.f32.partialorder %v8915, 0.0
      %vm8957 = vcmp.gt.f32.partialorder %v8916, 0.0
      %vm8958 = vcmp.gt.f32.partialorder %v8917, 0.0
      %vm8959 = vcmp.gt.f32.partialorder %v8918, 0.0
      %vm8960 = vcmp.gt.f32.partialorder %v8919, 0.0
      %vm8961 = vcmp.gt.f32.partialorder %v8920, 0.0
      %vm8962 = vcmp.gt.f32.partialorder %v8921, 0.0
      %vm8963 = vcmp.gt.f32.partialorder %v8922, 0.0
      %vm8964 = vcmp.gt.f32.partialorder %v8923, 0.0
      %vm8965 = vcmp.gt.f32.partialorder %v8924, 0.0
      %vm8966 = vcmp.gt.f32.partialorder %v8925, 0.0
      %vm8967 = vcmp.gt.f32.partialorder %v8926, 0.0
      %vm8968 = vcmp.gt.f32.partialorder %v8927, 0.0
      %vm8969 = vcmp.gt.f32.partialorder %v8928, 0.0
      %vm8970 = vcmp.gt.f32.partialorder %v8929, 0.0
      %vm8971 = vcmp.gt.f32.partialorder %v8930, 0.0
      %vm8972 = vcmp.gt.f32.partialorder %v8931, 0.0
      %vm8973 = vcmp.gt.f32.partialorder %v8932, 0.0
      %vm8974 = vcmp.gt.f32.partialorder %v8933, 0.0
      %vm8975 = vcmp.gt.f32.partialorder %v8934, 0.0
      %vm8976 = vcmp.gt.f32.partialorder %v8935, 0.0
      %vm8977 = vcmp.gt.f32.partialorder %v8936, 0.0
      %vm8978 = vcmp.gt.f32.partialorder %v8937, 0.0
      %vm8979 = vcmp.gt.f32.partialorder %v8938, 0.0
      %v8980 = vmul.f32 %v8898, 0.2
      %v8981 = vmul.f32 %v8899, 0.2
      %v8982 = vmul.f32 %v8900, 0.2
      %v8983 = vmul.f32 %v8901, 0.2
      %v8984 = vmul.f32 %v8902, 0.2
      %v8985 = vmul.f32 %v8903, 0.2
      %v8986 = vmul.f32 %v8904, 0.2
      %v8987 = vmul.f32 %v8905, 0.2
      %v8988 = vmul.f32 %v8906, 0.2
      %v8989 = vmul.f32 %v8907, 0.2
      %v8990 = vmul.f32 %v8908, 0.2
      %v8991 = vmul.f32 %v8909, 0.2
      %v8992 = vmul.f32 %v8910, 0.2
      %v8993 = vmul.f32 %v8911, 0.2
      %v8994 = vmul.f32 %v8912, 0.2
      %v8995 = vmul.f32 %v8913, 0.2
      %v8996 = vmul.f32 %v8914, 0.2
      %v8997 = vmul.f32 %v8915, 0.2
      %v8998 = vmul.f32 %v8916, 0.2
      %v8999 = vmul.f32 %v8917, 0.2
      %v9000 = vmul.f32 %v8918, 0.2
      %v9001 = vmul.f32 %v8919, 0.2
      %v9002 = vmul.f32 %v8920, 0.2
      %v9003 = vmul.f32 %v8921, 0.2
      %v9004 = vmul.f32 %v8922, 0.2
      %v9005 = vmul.f32 %v8923, 0.2
      %v9006 = vmul.f32 %v8924, 0.2
      %v9007 = vmul.f32 %v8925, 0.2
      %v9008 = vmul.f32 %v8926, 0.2
      %v9009 = vmul.f32 %v8927, 0.2
      %v9010 = vmul.f32 %v8928, 0.2
      %v9011 = vmul.f32 %v8929, 0.2
      %v9012 = vmul.f32 %v8930, 0.2
      %v9013 = vmul.f32 %v8931, 0.2
      %v9014 = vmul.f32 %v8932, 0.2
      %v9015 = vmul.f32 %v8933, 0.2
      %v9016 = vmul.f32 %v8934, 0.2
      %v9017 = vmul.f32 %v8935, 0.2
      %v9018 = vmul.f32 %v8936, 0.2
      %v9019 = vmul.f32 %v8937, 0.2
      %v9020 = vmul.f32 %v8938, 0.2
      %v9021 = vsel %vm8939, %v8898, %v8980
      %v9022 = vsel %vm8940, %v8899, %v8981
      %v9023 = vsel %vm8941, %v8900, %v8982
      %v9024 = vsel %vm8942, %v8901, %v8983
      %v9025 = vsel %vm8943, %v8902, %v8984
      %v9026 = vsel %vm8944, %v8903, %v8985
      %v9027 = vsel %vm8945, %v8904, %v8986
      %v9028 = vsel %vm8946, %v8905, %v8987
      %v9029 = vsel %vm8947, %v8906, %v8988
      %v9030 = vsel %vm8948, %v8907, %v8989
      %v9031 = vsel %vm8949, %v8908, %v8990
      %v9032 = vsel %vm8950, %v8909, %v8991
      %v9033 = vsel %vm8951, %v8910, %v8992
      %v9034 = vsel %vm8952, %v8911, %v8993
      %v9035 = vsel %vm8953, %v8912, %v8994
      %v9036 = vsel %vm8954, %v8913, %v8995
      %v9037 = vsel %vm8955, %v8914, %v8996
      %v9038 = vsel %vm8956, %v8915, %v8997
      %v9039 = vsel %vm8957, %v8916, %v8998
      %v9040 = vsel %vm8958, %v8917, %v8999
      %v9041 = vsel %vm8959, %v8918, %v9000
      %v9042 = vsel %vm8960, %v8919, %v9001
      %v9043 = vsel %vm8961, %v8920, %v9002
      %v9044 = vsel %vm8962, %v8921, %v9003
      %v9045 = vsel %vm8963, %v8922, %v9004
      %v9046 = vsel %vm8964, %v8923, %v9005
      %v9047 = vsel %vm8965, %v8924, %v9006
      %v9048 = vsel %vm8966, %v8925, %v9007
      %v9049 = vsel %vm8967, %v8926, %v9008
      %v9050 = vsel %vm8968, %v8927, %v9009
      %v9051 = vsel %vm8969, %v8928, %v9010
      %v9052 = vsel %vm8970, %v8929, %v9011
      %v9053 = vsel %vm8971, %v8930, %v9012
      %v9054 = vsel %vm8972, %v8931, %v9013
      %v9055 = vsel %vm8973, %v8932, %v9014
      %v9056 = vsel %vm8974, %v8933, %v9015
      %v9057 = vsel %vm8975, %v8934, %v9016
      %v9058 = vsel %vm8976, %v8935, %v9017
      %v9059 = vsel %vm8977, %v8936, %v9018
      %v9060 = vsel %vm8978, %v8937, %v9019
      %v9061 = vsel %vm8979, %v8938, %v9020
      %v9062 = vmul.f32 %v9021, %v6529
      %v9063 = vmul.f32 %v9022, %v6534
      %v9064 = vmul.f32 %v9023, %v6539
      %v9065 = vmul.f32 %v9024, %v6544
      %v9066 = vmul.f32 %v9025, %v6549
      %v9067 = vmul.f32 %v9026, %v6554
      %v9068 = vmul.f32 %v9027, %v6559
      %v9069 = vmul.f32 %v9028, %v6564
      %v9070 = vmul.f32 %v9029, %v6569
      %v9071 = vmul.f32 %v9030, %v6574
      %v9072 = vmul.f32 %v9031, %v6579
      %v9073 = vmul.f32 %v9032, %v6584
      %v9074 = vmul.f32 %v9033, %v6589
      %v9075 = vmul.f32 %v9034, %v6594
      %v9076 = vmul.f32 %v9035, %v6599
      %v9077 = vmul.f32 %v9036, %v6604
      %v9078 = vmul.f32 %v9037, %v6609
      %v9079 = vmul.f32 %v9038, %v6614
      %v9080 = vmul.f32 %v9039, %v6619
      %v9081 = vmul.f32 %v9040, %v6624
      %v9082 = vmul.f32 %v9041, %v6629
      %v9083 = vmul.f32 %v9042, %v6634
      %v9084 = vmul.f32 %v9043, %v6639
      %v9085 = vmul.f32 %v9044, %v6644
      %v9086 = vmul.f32 %v9045, %v6649
      %v9087 = vmul.f32 %v9046, %v6654
      %v9088 = vmul.f32 %v9047, %v6659
      %v9089 = vmul.f32 %v9048, %v6664
      %v9090 = vmul.f32 %v9049, %v6669
      %v9091 = vmul.f32 %v9050, %v6674
      %v9092 = vmul.f32 %v9051, %v6679
      %v9093 = vmul.f32 %v9052, %v6684
      %v9094 = vmul.f32 %v9053, %v6689
      %v9095 = vmul.f32 %v9054, %v6694
      %v9096 = vmul.f32 %v9055, %v6699
      %v9097 = vmul.f32 %v9056, %v6704
      %v9098 = vmul.f32 %v9057, %v6709
      %v9099 = vmul.f32 %v9058, %v6714
      %v9100 = vmul.f32 %v9059, %v6719
      %v9101 = vmul.f32 %v9060, %v6724
      %v9102 = vmul.f32 %v9061, %v6729
      %v9104 = vshrl.u32 %v3813, 16
      %v9106 = vrot.slane %v9104, 2
      %v9107 = vshll.u32 %v3813, 16
      %v9109 = vrot.slane %v9107, 3
      %v9110 = vor.u32 %v9106, %v9109
      %v9112 = vshrl.u32 %v3814, 16
      %v9114 = vrot.slane %v9112, 2
      %v9115 = vshll.u32 %v3814, 16
      %v9117 = vrot.slane %v9115, 3
      %v9118 = vor.u32 %v9114, %v9117
      %v9119 = vsel %vm1152, %v9110, %v9118
      %v9121 = vshrl.u32 %v3815, 16
      %v9123 = vrot.slane %v9121, 2
      %v9124 = vshll.u32 %v3815, 16
      %v9126 = vrot.slane %v9124, 3
      %v9127 = vor.u32 %v9123, %v9126
      %v9128 = vsel %vm1152, %v9118, %v9127
      %v9130 = vshrl.u32 %v3816, 16
      %v9132 = vrot.slane %v9130, 2
      %v9133 = vshll.u32 %v3816, 16
      %v9135 = vrot.slane %v9133, 3
      %v9136 = vor.u32 %v9132, %v9135
      %v9137 = vsel %vm1152, %v9127, %v9136
      %v9139 = vshrl.u32 %v3817, 16
      %v9141 = vrot.slane %v9139, 2
      %v9142 = vshll.u32 %v3817, 16
      %v9144 = vrot.slane %v9142, 3
      %v9145 = vor.u32 %v9141, %v9144
      %v9146 = vsel %vm1152, %v9136, %v9145
      %v9148 = vshrl.u32 %v3818, 16
      %v9150 = vrot.slane %v9148, 2
      %v9151 = vshll.u32 %v3818, 16
      %v9153 = vrot.slane %v9151, 3
      %v9154 = vor.u32 %v9150, %v9153
      %v9155 = vsel %vm1152, %v9145, %v9154
      %v9156 = vshrl.u32 %v3819, 16
      %v9158 = vrot.slane %v9156, 2
      %v9159 = vshll.u32 %v3819, 16
      %v9161 = vrot.slane %v9159, 3
      %v9162 = vor.u32 %v9158, %v9161
      %v9163 = vsel %vm1152, %v9154, %v9162
      %v9166 = vsel %vm1153, 0, %v9110
      %v9167 = vsel %vm1904, %v9163, 0
      %v9169 = vshrl.u32 %v9166, 16
      %v9171 = vshll.u32 %v9166, 16
      %v9173 = vrot.slane %v9171, 1
      %v9174 = vor.u32 %v9169, %v9173
      %v9176 = vshll.u32 %v9119, 16
      %v9178 = vrot.slane %v9176, 1
      %v9179 = vsel %vm1155, %v9174, %v9178
      %v9180 = vshrl.u32 %v9119, 16
      %v9182 = vor.u32 %v9180, %v9178
      %v9184 = vshll.u32 %v9128, 16
      %v9186 = vrot.slane %v9184, 1
      %v9187 = vsel %vm1155, %v9182, %v9186
      %v9188 = vshrl.u32 %v9128, 16
      %v9190 = vor.u32 %v9188, %v9186
      %v9192 = vshll.u32 %v9137, 16
      %v9194 = vrot.slane %v9192, 1
      %v9195 = vsel %vm1155, %v9190, %v9194
      %v9196 = vshrl.u32 %v9137, 16
      %v9198 = vor.u32 %v9196, %v9194
      %v9200 = vshll.u32 %v9146, 16
      %v9202 = vrot.slane %v9200, 1
      %v9203 = vsel %vm1155, %v9198, %v9202
      %v9204 = vshrl.u32 %v9146, 16
      %v9206 = vor.u32 %v9204, %v9202
      %v9208 = vshll.u32 %v9155, 16
      %v9210 = vrot.slane %v9208, 1
      %v9211 = vsel %vm1155, %v9206, %v9210
      %v9212 = vshrl.u32 %v9155, 16
      %v9214 = vor.u32 %v9212, %v9210
      %v9216 = vshll.u32 %v9167, 16
      %v9218 = vrot.slane %v9216, 1
      %v9219 = vsel %vm1155, %v9214, %v9218
      %v9220 = vshrl.u32 %v9167, 16
      %v9222 = vor.u32 %v9220, %v9218
      %9223 = vrot.lane.b32.xlu0 %v9179, 32
      %v9224 = vpop.permute.xlu0 %9223
      %9225 = vrot.lane.b32.xlu0 %v9187, 32
      %v9226 = vpop.permute.xlu0 %9225
      %9227 = vrot.lane.b32.xlu0 %v9195, 32
      %v9228 = vpop.permute.xlu0 %9227
      %9229 = vrot.lane.b32.xlu0 %v9203, 32
      %v9230 = vpop.permute.xlu0 %9229
      %9231 = vrot.lane.b32.xlu0 %v9211, 32
      %v9232 = vpop.permute.xlu0 %9231
      %9233 = vrot.lane.b32.xlu0 %v9219, 32
      %v9234 = vpop.permute.xlu0 %9233
      %9235 = vrot.lane.b32.xlu0 %v9222, 32
      %v9236 = vpop.permute.xlu0 %9235
      %v9239 = vrot.slane %v9166, 1
      %v9240 = vrot.slane %v9119, 1
      %v9241 = vsel %vm1187, %v9239, %v9240
      %v9242 = vrot.slane %v9128, 1
      %v9243 = vsel %vm1187, %v9240, %v9242
      %v9244 = vrot.slane %v9137, 1
      %v9245 = vsel %vm1187, %v9242, %v9244
      %v9246 = vrot.slane %v9146, 1
      %v9247 = vsel %vm1187, %v9244, %v9246
      %v9248 = vrot.slane %v9155, 1
      %v9249 = vsel %vm1187, %v9246, %v9248
      %v9250 = vrot.slane %v9167, 1
      %v9251 = vsel %vm1187, %v9248, %v9250
      %9252 = vrot.lane.b32.xlu0 %v9241, 64
      %v9253 = vpop.permute.xlu0 %9252
      %9254 = vrot.lane.b32.xlu0 %v9243, 64
      %v9255 = vpop.permute.xlu0 %9254
      %9256 = vrot.lane.b32.xlu0 %v9245, 64
      %v9257 = vpop.permute.xlu0 %9256
      %9258 = vrot.lane.b32.xlu0 %v9247, 64
      %v9259 = vpop.permute.xlu0 %9258
      %9260 = vrot.lane.b32.xlu0 %v9249, 64
      %v9261 = vpop.permute.xlu0 %9260
      %9262 = vrot.lane.b32.xlu0 %v9251, 64
      %v9263 = vpop.permute.xlu0 %9262
      %9264 = vrot.lane.b32.xlu0 %v9250, 64
      %v9265 = vpop.permute.xlu0 %9264
      %v9266 = vrot.slane %v9166, 5
      %v9267 = vrot.slane %v9119, 5
      %v9268 = vsel %vm2004, %v9266, %v9267
      %v9269 = vrot.slane %v9128, 5
      %v9270 = vsel %vm2004, %v9267, %v9269
      %v9271 = vrot.slane %v9137, 5
      %v9272 = vsel %vm2004, %v9269, %v9271
      %v9273 = vrot.slane %v9146, 5
      %v9274 = vsel %vm2004, %v9271, %v9273
      %v9275 = vrot.slane %v9155, 5
      %v9276 = vsel %vm2004, %v9273, %v9275
      %v9277 = vrot.slane %v9167, 5
      %v9278 = vsel %vm2004, %v9275, %v9277
      %9279 = vrot.lane.b32.xlu0 %v9268, 96
      %v9280 = vpop.permute.xlu0 %9279
      %9281 = vrot.lane.b32.xlu0 %v9270, 96
      %v9282 = vpop.permute.xlu0 %9281
      %9283 = vrot.lane.b32.xlu0 %v9272, 96
      %v9284 = vpop.permute.xlu0 %9283
      %9285 = vrot.lane.b32.xlu0 %v9274, 96
      %v9286 = vpop.permute.xlu0 %9285
      %9287 = vrot.lane.b32.xlu0 %v9276, 96
      %v9288 = vpop.permute.xlu0 %9287
      %9289 = vrot.lane.b32.xlu0 %v9278, 96
      %v9290 = vpop.permute.xlu0 %9289
      %9291 = vrot.lane.b32.xlu0 %v9277, 96
      %v9292 = vpop.permute.xlu0 %9291
      %v9293 = vrot.slane %v9169, 5
      %v9294 = vrot.slane %v9171, 6
      %v9295 = vor.u32 %v9293, %v9294
      %v9296 = vrot.slane %v9180, 5
      %v9297 = vrot.slane %v9176, 6
      %v9298 = vor.u32 %v9296, %v9297
      %v9299 = vsel %vm2032, %v9295, %v9298
      %v9300 = vrot.slane %v9188, 5
      %v9301 = vrot.slane %v9184, 6
      %v9302 = vor.u32 %v9300, %v9301
      %v9303 = vsel %vm2032, %v9298, %v9302
      %v9304 = vrot.slane %v9196, 5
      %v9305 = vrot.slane %v9192, 6
      %v9306 = vor.u32 %v9304, %v9305
      %v9307 = vsel %vm2032, %v9302, %v9306
      %v9308 = vrot.slane %v9204, 5
      %v9309 = vrot.slane %v9200, 6
      %v9310 = vor.u32 %v9308, %v9309
      %v9311 = vsel %vm2032, %v9306, %v9310
      %v9312 = vrot.slane %v9212, 5
      %v9313 = vrot.slane %v9208, 6
      %v9314 = vor.u32 %v9312, %v9313
      %v9315 = vsel %vm2032, %v9310, %v9314
      %v9316 = vrot.slane %v9220, 5
      %v9317 = vrot.slane %v9216, 6
      %v9318 = vor.u32 %v9316, %v9317
      %v9319 = vsel %vm2032, %v9314, %v9318
      %v9320 = vrot.slane %v9166, 6
      %v9321 = vrot.slane %v9119, 6
      %v9322 = vsel %vm1234, %v9320, %v9321
      %v9323 = vrot.slane %v9128, 6
      %v9324 = vsel %vm1234, %v9321, %v9323
      %v9325 = vrot.slane %v9137, 6
      %v9326 = vsel %vm1234, %v9323, %v9325
      %v9327 = vrot.slane %v9146, 6
      %v9328 = vsel %vm1234, %v9325, %v9327
      %v9329 = vrot.slane %v9155, 6
      %v9330 = vsel %vm1234, %v9327, %v9329
      %v9331 = vrot.slane %v9167, 6
      %v9332 = vsel %vm1234, %v9329, %v9331
      %9333 = vrot.lane.b32.xlu0 %v9322, 32
      %v9334 = vpop.permute.xlu0 %9333
      %9335 = vrot.lane.b32.xlu0 %v9324, 32
      %v9336 = vpop.permute.xlu0 %9335
      %9337 = vrot.lane.b32.xlu0 %v9326, 32
      %v9338 = vpop.permute.xlu0 %9337
      %9339 = vrot.lane.b32.xlu0 %v9328, 32
      %v9340 = vpop.permute.xlu0 %9339
      %9341 = vrot.lane.b32.xlu0 %v9330, 32
      %v9342 = vpop.permute.xlu0 %9341
      %9343 = vrot.lane.b32.xlu0 %v9332, 32
      %v9344 = vpop.permute.xlu0 %9343
      %9345 = vrot.lane.b32.xlu0 %v9331, 32
      %v9346 = vpop.permute.xlu0 %9345
      %v9347 = vrot.slane %v9119, 2
      %v9348 = vrot.slane %v9128, 2
      %v9349 = vsel %vm1151, %v9347, %v9348
      %v9350 = vrot.slane %v9137, 2
      %v9351 = vsel %vm1151, %v9348, %v9350
      %v9352 = vrot.slane %v9146, 2
      %v9353 = vsel %vm1151, %v9350, %v9352
      %v9354 = vrot.slane %v9155, 2
      %v9355 = vsel %vm1151, %v9352, %v9354
      %v9356 = vrot.slane %v9167, 2
      %v9357 = vsel %vm1151, %v9354, %v9356
      %v9358 = vsel %vm1151, %v9356, %v2098
      %9359 = vrot.lane.b32.xlu0 %v9349, 64
      %v9360 = vpop.permute.xlu0 %9359
      %9361 = vrot.lane.b32.xlu0 %v9351, 64
      %v9362 = vpop.permute.xlu0 %9361
      %9363 = vrot.lane.b32.xlu0 %v9353, 64
      %v9364 = vpop.permute.xlu0 %9363
      %9365 = vrot.lane.b32.xlu0 %v9355, 64
      %v9366 = vpop.permute.xlu0 %9365
      %9367 = vrot.lane.b32.xlu0 %v9357, 64
      %v9368 = vpop.permute.xlu0 %9367
      %9369 = vrot.lane.b32.xlu0 %v9358, 64
      %v9370 = vpop.permute.xlu0 %9369
      %v9371 = vrot.slane %v9180, 2
      %v9372 = vrot.slane %v9176, 3
      %v9373 = vor.u32 %v9371, %v9372
      %v9374 = vrot.slane %v9188, 2
      %v9375 = vrot.slane %v9184, 3
      %v9376 = vor.u32 %v9374, %v9375
      %v9377 = vsel %vm1152, %v9373, %v9376
      %v9378 = vrot.slane %v9196, 2
      %v9379 = vrot.slane %v9192, 3
      %v9380 = vor.u32 %v9378, %v9379
      %v9381 = vsel %vm1152, %v9376, %v9380
      %v9382 = vrot.slane %v9204, 2
      %v9383 = vrot.slane %v9200, 3
      %v9384 = vor.u32 %v9382, %v9383
      %v9385 = vsel %vm1152, %v9380, %v9384
      %v9386 = vrot.slane %v9212, 2
      %v9387 = vrot.slane %v9208, 3
      %v9388 = vor.u32 %v9386, %v9387
      %v9389 = vsel %vm1152, %v9384, %v9388
      %v9390 = vrot.slane %v9220, 2
      %v9391 = vrot.slane %v9216, 3
      %v9392 = vor.u32 %v9390, %v9391
      %v9393 = vsel %vm1152, %v9388, %v9392
      %v9394 = vsel %vm1152, %v9392, %v2141
      %9395 = vrot.lane.b32.xlu0 %v9377, 96
      %v9396 = vpop.permute.xlu0 %9395
      %9397 = vrot.lane.b32.xlu0 %v9381, 96
      %v9398 = vpop.permute.xlu0 %9397
      %9399 = vrot.lane.b32.xlu0 %v9385, 96
      %v9400 = vpop.permute.xlu0 %9399
      %9401 = vrot.lane.b32.xlu0 %v9389, 96
      %v9402 = vpop.permute.xlu0 %9401
      %9403 = vrot.lane.b32.xlu0 %v9393, 96
      %v9404 = vpop.permute.xlu0 %9403
      %9405 = vrot.lane.b32.xlu0 %v9394, 96
      %v9406 = vpop.permute.xlu0 %9405
      %v9407 = vrot.slane %v9119, 3
      %v9408 = vrot.slane %v9128, 3
      %v9409 = vsel %vm1199, %v9407, %v9408
      %v9410 = vrot.slane %v9137, 3
      %v9411 = vsel %vm1199, %v9408, %v9410
      %v9412 = vrot.slane %v9146, 3
      %v9413 = vsel %vm1199, %v9410, %v9412
      %v9414 = vrot.slane %v9155, 3
      %v9415 = vsel %vm1199, %v9412, %v9414
      %v9416 = vrot.slane %v9167, 3
      %v9417 = vsel %vm1199, %v9414, %v9416
      %v9418 = vsel %vm1199, %v9416, %v2168
      %v9420 = vsel %vm768, %v9166, %v9224
      %v9422 = vsel %vm768, %v9119, %v9226
      %v9424 = vsel %vm768, %v9128, %v9228
      %v9426 = vsel %vm768, %v9137, %v9230
      %v9428 = vsel %vm768, %v9146, %v9232
      %v9430 = vsel %vm768, %v9155, %v9234
      %v9432 = vsel %vm768, %v9167, %v9236
      %v9434 = vsel %vm774, %v9420, %v9253
      %v9436 = vsel %vm774, %v9422, %v9255
      %v9438 = vsel %vm774, %v9424, %v9257
      %v9440 = vsel %vm774, %v9426, %v9259
      %v9442 = vsel %vm774, %v9428, %v9261
      %v9444 = vsel %vm774, %v9430, %v9263
      %v9446 = vsel %vm774, %v9432, %v9265
      %v9448 = vsel %vm780, %v9434, %v9280
      %v9451 = vsel %vm780, %v9436, %v9282
      %v9454 = vsel %vm780, %v9438, %v9284
      %v9457 = vsel %vm780, %v9440, %v9286
      %v9460 = vsel %vm780, %v9442, %v9288
      %v9463 = vsel %vm780, %v9444, %v9290
      %v9466 = vsel %vm780, %v9446, %v9292
      %v9470 = vsel %vm768, %v9299, %v9334
      %v9473 = vsel %vm768, %v9303, %v9336
      %v9476 = vsel %vm768, %v9307, %v9338
      %v9479 = vsel %vm768, %v9311, %v9340
      %v9482 = vsel %vm768, %v9315, %v9342
      %v9485 = vsel %vm768, %v9319, %v9344
      %v9488 = vsel %vm768, %v9318, %v9346
      %v9490 = vsel %vm774, %v9470, %v9360
      %v9492 = vsel %vm774, %v9473, %v9362
      %v9494 = vsel %vm774, %v9476, %v9364
      %v9496 = vsel %vm774, %v9479, %v9366
      %v9498 = vsel %vm774, %v9482, %v9368
      %v9500 = vsel %vm774, %v9485, %v9370
      %v9501 = vsel %vm774, %v9488, %v2113
      %v9503 = vsel %vm780, %v9490, %v9396
      %v9506 = vsel %vm780, %v9492, %v9398
      %v9509 = vsel %vm780, %v9494, %v9400
      %v9512 = vsel %vm780, %v9496, %v9402
      %v9515 = vsel %vm780, %v9498, %v9404
      %v9518 = vsel %vm780, %v9500, %v9406
      %v9520 = vsel %vm780, %v9501, %v2156
      %v9522 = vld [vmem:[%s19] sm:$0xf]
      %v9523 = vld [vmem:[%s19 + $0x4] sm:$0xf]
      %v9524 = vld [vmem:[%s19 + $0x8] sm:$0xf]
      %v9525 = vld [vmem:[%s19 + $0xc] sm:$0xf]
      %v9526 = vld [vmem:[%s19 + $0x10] sm:$0xf]
      %v9527 = vld [vmem:[%s19 + $0x14] sm:$0xf]
      %v9528 = vld [vmem:[%s19 + $0x18] sm:$0xf]
      %v9529 = vld [vmem:[%s19 + $0x1c] sm:$0xf]
      %v9530 = vld [vmem:[%s19 + $0x20] sm:$0xf]
      %v9531 = vld [vmem:[%s19 + $0x24] sm:$0xf]
      %v9532 = vld [vmem:[%s19 + $0x28] sm:$0xf]
      %v9533 = vld [vmem:[%s19 + $0x2c] sm:$0xf]
      %v9534 = vld [vmem:[%s19 + $0x30] sm:$0xf]
      %v9535 = vld [vmem:[%s19 + $0x34] sm:$0xf]
      %v9536 = vld [vmem:[%s19 + $0x38] sm:$0xf]
      %v9537 = vld [vmem:[%s19 + $0x3c] sm:$0xf]
      %v9538 = vld [vmem:[%s19 + $0x40] sm:$0xf]
      %v9539 = vld [vmem:[%s19 + $0x44] sm:$0xf]
      %v9540 = vld [vmem:[%s19 + $0x48] sm:$0xf]
      %v9541 = vld [vmem:[%s19 + $0x4c] sm:$0xf]
      %v9542 = vld [vmem:[%s19 + $0x50] sm:$0xf]
      %v9543 = vld [vmem:[%s19 + $0x54] sm:$0xf]
      %v9544 = vld [vmem:[%s19 + $0x58] sm:$0xf]
      %v9545 = vld [vmem:[%s19 + $0x5c] sm:$0xf]
      %v9546 = vld [vmem:[%s19 + $0x60] sm:$0xf]
      %v9547 = vld [vmem:[%s19 + $0x64] sm:$0xf]
      %v9548 = vld [vmem:[%s19 + $0x68] sm:$0xf]
      %v9549 = vld [vmem:[%s19 + $0x6c] sm:$0xf]
      %v9550 = vld [vmem:[%s19 + $0x70] sm:$0xf]
      %v9551 = vld [vmem:[%s19 + $0x74] sm:$0xf]
      %v9552 = vld [vmem:[%s19 + $0x78] sm:$0xf]
      %v9553 = vld [vmem:[%s19 + $0x7c] sm:$0xf]
      %v9554 = vld [vmem:[%s19 + $0x80] sm:$0xf]
      %v9555 = vld [vmem:[%s19 + $0x84] sm:$0xf]
      %v9556 = vld [vmem:[%s19 + $0x88] sm:$0xf]
      %v9557 = vld [vmem:[%s19 + $0x8c] sm:$0xf]
      %v9558 = vld [vmem:[%s20] sm:$0x1]
      %v9560 = vlaneseq
      %v9561 = vshrl.u32 %v9560, 7
      %v9562 = vsub.s32 0, %v9561
      %v9563 = vrot.slane %v9558, %v9562
      %v9601 = vunpack.c.l.b16 %v9522
      %v9602 = vunpack.c.l.b16 %v9523
      %v9603 = vunpack.c.l.b16 %v9524
      %v9604 = vunpack.c.l.b16 %v9525
      %v9605 = vunpack.c.l.b16 %v9526
      %v9606 = vunpack.c.l.b16 %v9527
      %v9607 = vunpack.c.l.b16 %v9528
      %v9608 = vunpack.c.l.b16 %v9529
      %v9609 = vunpack.c.l.b16 %v9530
      %v9610 = vunpack.c.l.b16 %v9531
      %v9611 = vunpack.c.l.b16 %v9532
      %v9612 = vunpack.c.l.b16 %v9533
      %v9613 = vunpack.c.l.b16 %v9534
      %v9614 = vunpack.c.l.b16 %v9535
      %v9615 = vunpack.c.l.b16 %v9536
      %v9616 = vunpack.c.l.b16 %v9537
      %v9617 = vunpack.c.l.b16 %v9538
      %v9618 = vunpack.c.l.b16 %v9539
      %v9619 = vunpack.c.l.b16 %v9540
      %v9620 = vunpack.c.l.b16 %v9541
      %v9621 = vunpack.c.l.b16 %v9542
      %v9622 = vunpack.c.l.b16 %v9543
      %v9623 = vunpack.c.l.b16 %v9544
      %v9624 = vunpack.c.l.b16 %v9545
      %v9625 = vunpack.c.l.b16 %v9546
      %v9626 = vunpack.c.l.b16 %v9547
      %v9627 = vunpack.c.l.b16 %v9548
      %v9628 = vunpack.c.l.b16 %v9549
      %v9629 = vunpack.c.l.b16 %v9550
      %v9630 = vunpack.c.l.b16 %v9551
      %v9631 = vunpack.c.l.b16 %v9552
      %v9632 = vunpack.c.l.b16 %v9553
      %v9633 = vunpack.c.l.b16 %v9554
      %v9634 = vunpack.c.l.b16 %v9555
      %v9635 = vunpack.c.l.b16 %v9556
      %v9636 = vunpack.c.l.b16 %v9557
      %v9637 = vpack.c.b16 %v9602, %v9601
      %v9638 = vpack.c.b16 %v9604, %v9603
      %v9639 = vpack.c.b16 %v9606, %v9605
      %v9640 = vpack.c.b16 %v9608, %v9607
      %v9641 = vpack.c.b16 %v9610, %v9609
      %v9642 = vpack.c.b16 %v9612, %v9611
      %v9643 = vpack.c.b16 %v9614, %v9613
      %v9644 = vpack.c.b16 %v9616, %v9615
      %v9645 = vpack.c.b16 %v9618, %v9617
      %v9646 = vpack.c.b16 %v9620, %v9619
      %v9647 = vpack.c.b16 %v9622, %v9621
      %v9648 = vpack.c.b16 %v9624, %v9623
      %v9649 = vpack.c.b16 %v9626, %v9625
      %v9650 = vpack.c.b16 %v9628, %v9627
      %v9651 = vpack.c.b16 %v9630, %v9629
      %v9652 = vpack.c.b16 %v9632, %v9631
      %v9653 = vpack.c.b16 %v9634, %v9633
      %v9654 = vpack.c.b16 %v9636, %v9635
      %v9674 = vsel %vm768, %v9409, 0
      %v9677 = vsel %vm768, %v9411, 0
      %v9680 = vsel %vm768, %v9413, 0
      %v9683 = vsel %vm768, %v9415, 0
      %v9686 = vsel %vm768, %v9417, 0
      %v9689 = vsel %vm768, %v9418, 0
      %9691 = vmatprep.subr.bf16.mxu0 0
      %9692 = vmatpush1.bf16.msra.mxu0 %v9644
      %9693 = vmatprep.subr.bf16.mxu0 0
      %9694 = vmatpush1.bf16.msra.mxu0 %v9643
      %9695 = vmatprep.subr.bf16.mxu0 0
      %9696 = vmatpush1.bf16.msra.mxu0 %v9642
      %9697 = vmatprep.subr.bf16.mxu0 0
      %9698 = vmatpush1.bf16.msra.mxu0 %v9641
      %9699 = vmatprep.subr.bf16.mxu0 0
      %9700 = vmatpush1.bf16.msra.mxu0 %v9640
      %9701 = vmatprep.subr.bf16.mxu0 0
      %9702 = vmatpush1.bf16.msra.mxu0 %v9639
      %9703 = vmatprep.subr.bf16.mxu0 0
      %9704 = vmatpush1.bf16.msra.mxu0 %v9638
      %9705 = vmatprep.subr.bf16.mxu0 0
      %9706 = vmatpush1.bf16.msra.mxu0 %v9637
      %9707 = vmatprep.subr.bf16.mxu0 0
      %9708 = vmatpush2.bf16.msra.mxu0 %v9652
      %9709 = vmatprep.subr.bf16.mxu0 0
      %9710 = vmatpush2.bf16.msra.mxu0 %v9651
      %9711 = vmatprep.subr.bf16.mxu0 0
      %9712 = vmatpush2.bf16.msra.mxu0 %v9650
      %9713 = vmatprep.subr.bf16.mxu0 0
      %9714 = vmatpush2.bf16.msra.mxu0 %v9649
      %9715 = vmatprep.subr.bf16.mxu0 0
      %9716 = vmatpush2.bf16.msra.mxu0 %v9648
      %9717 = vmatprep.subr.bf16.mxu0 0
      %9718 = vmatpush2.bf16.msra.mxu0 %v9647
      %9719 = vmatprep.subr.bf16.mxu0 0
      %9720 = vmatpush2.bf16.msra.mxu0 %v9646
      %9721 = vmatprep.subr.bf16.mxu0 0
      %9722 = vmatpush2.bf16.msra.mxu0 %v9645
      %9723 = vmatprep.mubr.bf16.mxu0 %v9503
      %9724 = vmatmul.mubr.bf16.gmra.mxu0 %v9448
      %v9725 = vpop.f32.mrf.mxu0
      %v9726 = vadd.f32 %v9563, %v9725
      %v9727 = vpop.f32.mrf.mxu0
      %v9728 = vpop.f32.mrf.mxu0
      %v9729 = vadd.f32 %v9563, %v9728
      %v9730 = vpop.f32.mrf.mxu0
      %9731 = vmatprep.mubr.bf16.mxu0 %v9506
      %9732 = vmatmul.mubr.bf16.gmra.mxu0 %v9451
      %v9733 = vpop.f32.mrf.mxu0
      %v9734 = vadd.f32 %v9563, %v9733
      %v9735 = vpop.f32.mrf.mxu0
      %v9736 = vpop.f32.mrf.mxu0
      %v9737 = vadd.f32 %v9563, %v9736
      %v9738 = vpop.f32.mrf.mxu0
      %9739 = vmatprep.mubr.bf16.mxu0 %v9509
      %9740 = vmatmul.mubr.bf16.gmra.mxu0 %v9454
      %v9741 = vpop.f32.mrf.mxu0
      %v9742 = vadd.f32 %v9563, %v9741
      %v9743 = vpop.f32.mrf.mxu0
      %v9744 = vpop.f32.mrf.mxu0
      %v9745 = vadd.f32 %v9563, %v9744
      %v9746 = vpop.f32.mrf.mxu0
      %9747 = vmatprep.mubr.bf16.mxu0 %v9512
      %9748 = vmatmul.mubr.bf16.gmra.mxu0 %v9457
      %v9749 = vpop.f32.mrf.mxu0
      %v9750 = vadd.f32 %v9563, %v9749
      %v9751 = vpop.f32.mrf.mxu0
      %v9752 = vpop.f32.mrf.mxu0
      %v9753 = vadd.f32 %v9563, %v9752
      %v9754 = vpop.f32.mrf.mxu0
      %9755 = vmatprep.mubr.bf16.mxu0 %v9515
      %9756 = vmatmul.mubr.bf16.gmra.mxu0 %v9460
      %v9757 = vpop.f32.mrf.mxu0
      %v9758 = vadd.f32 %v9563, %v9757
      %v9759 = vpop.f32.mrf.mxu0
      %v9760 = vpop.f32.mrf.mxu0
      %v9761 = vadd.f32 %v9563, %v9760
      %v9762 = vpop.f32.mrf.mxu0
      %9763 = vmatprep.mubr.bf16.mxu0 %v9518
      %9764 = vmatmul.mubr.bf16.gmra.mxu0 %v9463
      %v9765 = vpop.f32.mrf.mxu0
      %v9766 = vadd.f32 %v9563, %v9765
      %v9767 = vpop.f32.mrf.mxu0
      %v9768 = vpop.f32.mrf.mxu0
      %v9769 = vadd.f32 %v9563, %v9768
      %v9770 = vpop.f32.mrf.mxu0
      %9771 = vmatprep.mubr.bf16.mxu0 %v9520
      %9772 = vmatmul.mubr.bf16.gmra.mxu0 %v9466
      %v9773 = vpop.f32.mrf.mxu0
      %v9774 = vadd.f32 %v9563, %v9773
      %v9775 = vpop.f32.mrf.mxu0
      %v9776 = vpop.f32.mrf.mxu0
      %v9777 = vpop.f32.mrf.mxu0
      %9778 = vdwg.mxu0
      %9779 = vmatprep.subr.bf16.mxu0 0
      %9780 = vmatpush1.bf16.msra.mxu0 0
      %9781 = vmatprep.subr.bf16.mxu0 0
      %9782 = vmatpush1.bf16.msra.mxu0 0
      %9783 = vmatprep.subr.bf16.mxu0 0
      %9784 = vmatpush1.bf16.msra.mxu0 0
      %9785 = vmatprep.subr.bf16.mxu0 0
      %9786 = vmatpush1.bf16.msra.mxu0 0
      %9787 = vmatprep.subr.bf16.mxu0 0
      %9788 = vmatpush1.bf16.msra.mxu0 0
      %9789 = vmatprep.subr.bf16.mxu0 0
      %9790 = vmatpush1.bf16.msra.mxu0 0
      %9791 = vmatprep.subr.bf16.mxu0 0
      %9792 = vmatpush1.bf16.msra.mxu0 %v9654
      %9793 = vmatprep.subr.bf16.mxu0 0
      %9794 = vmatpush1.bf16.msra.mxu0 %v9653
      %9795 = vmatprep.subr.bf16.mxu0 0
      %9796 = vmatpush2.bf16.msra.mxu0 0
      %9797 = vmatprep.subr.bf16.mxu0 0
      %9798 = vmatpush2.bf16.msra.mxu0 0
      %9799 = vmatprep.subr.bf16.mxu0 0
      %9800 = vmatpush2.bf16.msra.mxu0 0
      %9801 = vmatprep.subr.bf16.mxu0 0
      %9802 = vmatpush2.bf16.msra.mxu0 0
      %9803 = vmatprep.subr.bf16.mxu0 0
      %9804 = vmatpush2.bf16.msra.mxu0 0
      %9805 = vmatprep.subr.bf16.mxu0 0
      %9806 = vmatpush2.bf16.msra.mxu0 0
      %9807 = vmatprep.subr.bf16.mxu0 0
      %9808 = vmatpush2.bf16.msra.mxu0 0
      %9809 = vmatprep.subr.bf16.mxu0 0
      %9810 = vmatpush2.bf16.msra.mxu0 0
      %9811 = vmatprep.mubr.bf16.mxu0 0
      %9812 = vmatmul.mubr.bf16.gmra.mxu0 %v9674
      %v9813 = vpop.f32.mrf.mxu0
      %v9814 = vadd.f32 %v9726, %v9813
      %v9815 = vpop.f32.mrf.mxu0
      %v9816 = vpop.f32.mrf.mxu0
      %v9817 = vadd.f32 %v9729, %v9816
      %v9818 = vpop.f32.mrf.mxu0
      %9819 = vmatprep.mubr.bf16.mxu0 0
      %9820 = vmatmul.mubr.bf16.gmra.mxu0 %v9677
      %v9821 = vpop.f32.mrf.mxu0
      %v9822 = vadd.f32 %v9734, %v9821
      %v9823 = vpop.f32.mrf.mxu0
      %v9824 = vpop.f32.mrf.mxu0
      %v9825 = vadd.f32 %v9737, %v9824
      %v9826 = vpop.f32.mrf.mxu0
      %9827 = vmatprep.mubr.bf16.mxu0 0
      %9828 = vmatmul.mubr.bf16.gmra.mxu0 %v9680
      %v9829 = vpop.f32.mrf.mxu0
      %v9830 = vadd.f32 %v9742, %v9829
      %v9831 = vpop.f32.mrf.mxu0
      %v9832 = vpop.f32.mrf.mxu0
      %v9833 = vadd.f32 %v9745, %v9832
      %v9834 = vpop.f32.mrf.mxu0
      %9835 = vmatprep.mubr.bf16.mxu0 0
      %9836 = vmatmul.mubr.bf16.gmra.mxu0 %v9683
      %v9837 = vpop.f32.mrf.mxu0
      %v9838 = vadd.f32 %v9750, %v9837
      %v9839 = vpop.f32.mrf.mxu0
      %v9840 = vpop.f32.mrf.mxu0
      %v9841 = vadd.f32 %v9753, %v9840
      %v9842 = vpop.f32.mrf.mxu0
      %9843 = vmatprep.mubr.bf16.mxu0 0
      %9844 = vmatmul.mubr.bf16.gmra.mxu0 %v9686
      %v9845 = vpop.f32.mrf.mxu0
      %v9846 = vadd.f32 %v9758, %v9845
      %v9847 = vpop.f32.mrf.mxu0
      %v9848 = vpop.f32.mrf.mxu0
      %v9849 = vadd.f32 %v9761, %v9848
      %v9850 = vpop.f32.mrf.mxu0
      %9851 = vmatprep.mubr.bf16.mxu0 0
      %9852 = vmatmul.mubr.bf16.gmra.mxu0 %v9689
      %v9853 = vpop.f32.mrf.mxu0
      %v9854 = vadd.f32 %v9766, %v9853
      %v9855 = vpop.f32.mrf.mxu0
      %v9856 = vpop.f32.mrf.mxu0
      %v9857 = vadd.f32 %v9769, %v9856
      %v9858 = vpop.f32.mrf.mxu0
      %9859 = vmatprep.mubr.bf16.mxu0 0
      %9860 = vmatmul.mubr.bf16.gmra.mxu0 %v2445
      %v9861 = vpop.f32.mrf.mxu0
      %v9862 = vadd.f32 %v9774, %v9861
      %v9863 = vpop.f32.mrf.mxu0
      %v9864 = vpop.f32.mrf.mxu0
      %v9865 = vpop.f32.mrf.mxu0
      %9866 = vdwg.mxu0
      %v9867 = vpack.c.bf16 %v9817, %v9814
      %v9868 = vpack.c.bf16 %v9825, %v9822
      %v9869 = vpack.c.bf16 %v9833, %v9830
      %v9870 = vpack.c.bf16 %v9841, %v9838
      %v9871 = vpack.c.bf16 %v9849, %v9846
      %v9872 = vpack.c.bf16 %v9857, %v9854
      %v9873 = vpack.c.bf16 %v9862, %v9862
      %v9875 = vsel %vm1726, %v9873, 0
      %9877 = vmatprep.subr.bf16.mxu0 0
      %9878 = vmatpush1.bf16.msra.mxu0 0
      %9879 = vmatprep.subr.bf16.mxu0 0
      %9880 = vmatpush1.bf16.msra.mxu0 %v9875
      %9881 = vmatprep.subr.bf16.mxu0 0
      %9882 = vmatpush1.bf16.msra.mxu0 %v9872
      %9883 = vmatprep.subr.bf16.mxu0 0
      %9884 = vmatpush1.bf16.msra.mxu0 %v9871
      %9885 = vmatprep.subr.bf16.mxu0 0
      %9886 = vmatpush1.bf16.msra.mxu0 %v9870
      %9887 = vmatprep.subr.bf16.mxu0 0
      %9888 = vmatpush1.bf16.msra.mxu0 %v9869
      %9889 = vmatprep.subr.bf16.mxu0 0
      %9890 = vmatpush1.bf16.msra.mxu0 %v9868
      %9891 = vmatprep.subr.bf16.mxu0 0
      %9892 = vmatpush1.bf16.msra.mxu0 %v9867
      %9893 = vmatprep.subr.bf16.mxu0 0
      %9894 = vmatpush2.bf16.msra.mxu0 0
      %9895 = vmatprep.subr.bf16.mxu0 0
      %9896 = vmatpush2.bf16.msra.mxu0 0
      %9897 = vmatprep.subr.bf16.mxu0 0
      %9898 = vmatpush2.bf16.msra.mxu0 0
      %9899 = vmatprep.subr.bf16.mxu0 0
      %9900 = vmatpush2.bf16.msra.mxu0 0
      %9901 = vmatprep.subr.bf16.mxu0 0
      %9902 = vmatpush2.bf16.msra.mxu0 0
      %9903 = vmatprep.subr.bf16.mxu0 0
      %9904 = vmatpush2.bf16.msra.mxu0 0
      %9905 = vmatprep.subr.bf16.mxu0 0
      %9906 = vmatpush2.bf16.msra.mxu0 0
      %9907 = vmatprep.subr.bf16.mxu0 0
      %9908 = vmatpush2.bf16.msra.mxu0 0
      %9909 = vmatprep.mubr.bf16.mxu0 0
      %9910 = vmatmul.mubr.bf16.gmra.mxu0 %v3925
      %v9911 = vpop.f32.mrf.mxu0
      %v9912 = vpop.f32.mrf.mxu0
      %v9913 = vpop.f32.mrf.mxu0
      %v9914 = vpop.f32.mrf.mxu0
      %9915 = vmatprep.mubr.bf16.mxu0 0
      %9916 = vmatmul.mubr.bf16.gmra.mxu0 %v3928
      %v9917 = vpop.f32.mrf.mxu0
      %v9918 = vadd.f32 0.0, %v9917
      %v9919 = vpop.f32.mrf.mxu0
      %v9920 = vpop.f32.mrf.mxu0
      %v9921 = vadd.f32 0.0, %v9920
      %v9922 = vpop.f32.mrf.mxu0
      %9923 = vmatprep.mubr.bf16.mxu0 0
      %9924 = vmatmul.mubr.bf16.gmra.mxu0 %v3931
      %v9925 = vpop.f32.mrf.mxu0
      %v9926 = vadd.f32 0.0, %v9925
      %v9927 = vpop.f32.mrf.mxu0
      %v9928 = vpop.f32.mrf.mxu0
      %v9929 = vadd.f32 0.0, %v9928
      %v9930 = vpop.f32.mrf.mxu0
      %9931 = vmatprep.mubr.bf16.mxu0 0
      %9932 = vmatmul.mubr.bf16.gmra.mxu0 %v3934
      %v9933 = vpop.f32.mrf.mxu0
      %v9934 = vadd.f32 0.0, %v9933
      %v9935 = vpop.f32.mrf.mxu0
      %v9936 = vpop.f32.mrf.mxu0
      %v9937 = vadd.f32 0.0, %v9936
      %v9938 = vpop.f32.mrf.mxu0
      %9939 = vmatprep.mubr.bf16.mxu0 0
      %9940 = vmatmul.mubr.bf16.gmra.mxu0 %v3937
      %v9941 = vpop.f32.mrf.mxu0
      %v9942 = vadd.f32 0.0, %v9941
      %v9943 = vpop.f32.mrf.mxu0
      %v9944 = vpop.f32.mrf.mxu0
      %v9945 = vadd.f32 0.0, %v9944
      %v9946 = vpop.f32.mrf.mxu0
      %9947 = vmatprep.mubr.bf16.mxu0 0
      %9948 = vmatmul.mubr.bf16.gmra.mxu0 %v3940
      %v9949 = vpop.f32.mrf.mxu0
      %v9950 = vadd.f32 0.0, %v9949
      %v9951 = vpop.f32.mrf.mxu0
      %v9952 = vpop.f32.mrf.mxu0
      %v9953 = vadd.f32 0.0, %v9952
      %v9954 = vpop.f32.mrf.mxu0
      %9955 = vmatprep.mubr.bf16.mxu0 0
      %9956 = vmatmul.mubr.bf16.gmra.mxu0 %v3943
      %v9957 = vpop.f32.mrf.mxu0
      %v9958 = vadd.f32 0.0, %v9957
      %v9959 = vpop.f32.mrf.mxu0
      %v9960 = vpop.f32.mrf.mxu0
      %v9961 = vadd.f32 0.0, %v9960
      %v9962 = vpop.f32.mrf.mxu0
      %9963 = vmatprep.mubr.bf16.mxu0 0
      %9964 = vmatmul.mubr.bf16.gmra.mxu0 %v3946
      %v9965 = vpop.f32.mrf.mxu0
      %v9966 = vadd.f32 0.0, %v9965
      %v9967 = vpop.f32.mrf.mxu0
      %v9968 = vpop.f32.mrf.mxu0
      %v9969 = vadd.f32 0.0, %v9968
      %v9970 = vpop.f32.mrf.mxu0
      %9971 = vmatprep.mubr.bf16.mxu0 0
      %9972 = vmatmul.mubr.bf16.gmra.mxu0 %v3949
      %v9973 = vpop.f32.mrf.mxu0
      %v9974 = vadd.f32 0.0, %v9973
      %v9975 = vpop.f32.mrf.mxu0
      %v9976 = vpop.f32.mrf.mxu0
      %v9977 = vadd.f32 0.0, %v9976
      %v9978 = vpop.f32.mrf.mxu0
      %9979 = vmatprep.mubr.bf16.mxu0 0
      %9980 = vmatmul.mubr.bf16.gmra.mxu0 %v3952
      %v9981 = vpop.f32.mrf.mxu0
      %v9982 = vadd.f32 0.0, %v9981
      %v9983 = vpop.f32.mrf.mxu0
      %v9984 = vpop.f32.mrf.mxu0
      %v9985 = vadd.f32 0.0, %v9984
      %v9986 = vpop.f32.mrf.mxu0
      %9987 = vmatprep.mubr.bf16.mxu0 0
      %9988 = vmatmul.mubr.bf16.gmra.mxu0 %v3955
      %v9989 = vpop.f32.mrf.mxu0
      %v9990 = vadd.f32 0.0, %v9989
      %v9991 = vpop.f32.mrf.mxu0
      %v9992 = vpop.f32.mrf.mxu0
      %v9993 = vadd.f32 0.0, %v9992
      %v9994 = vpop.f32.mrf.mxu0
      %9995 = vmatprep.mubr.bf16.mxu0 0
      %9996 = vmatmul.mubr.bf16.gmra.mxu0 %v3958
      %v9997 = vpop.f32.mrf.mxu0
      %v9998 = vadd.f32 0.0, %v9997
      %v9999 = vpop.f32.mrf.mxu0
      %v10000 = vpop.f32.mrf.mxu0
      %v10001 = vadd.f32 0.0, %v10000
      %v10002 = vpop.f32.mrf.mxu0
      %10003 = vmatprep.mubr.bf16.mxu0 0
      %10004 = vmatmul.mubr.bf16.gmra.mxu0 %v3961
      %v10005 = vpop.f32.mrf.mxu0
      %v10006 = vadd.f32 0.0, %v10005
      %v10007 = vpop.f32.mrf.mxu0
      %v10008 = vpop.f32.mrf.mxu0
      %v10009 = vadd.f32 0.0, %v10008
      %v10010 = vpop.f32.mrf.mxu0
      %10011 = vmatprep.mubr.bf16.mxu0 0
      %10012 = vmatmul.mubr.bf16.gmra.mxu0 %v3964
      %v10013 = vpop.f32.mrf.mxu0
      %v10014 = vadd.f32 0.0, %v10013
      %v10015 = vpop.f32.mrf.mxu0
      %v10016 = vpop.f32.mrf.mxu0
      %v10017 = vadd.f32 0.0, %v10016
      %v10018 = vpop.f32.mrf.mxu0
      %10019 = vmatprep.mubr.bf16.mxu0 0
      %10020 = vmatmul.mubr.bf16.gmra.mxu0 %v3967
      %v10021 = vpop.f32.mrf.mxu0
      %v10022 = vadd.f32 0.0, %v10021
      %v10023 = vpop.f32.mrf.mxu0
      %v10024 = vpop.f32.mrf.mxu0
      %v10025 = vadd.f32 0.0, %v10024
      %v10026 = vpop.f32.mrf.mxu0
      %10027 = vmatprep.mubr.bf16.mxu0 0
      %10028 = vmatmul.mubr.bf16.gmra.mxu0 %v3970
      %v10029 = vpop.f32.mrf.mxu0
      %v10030 = vadd.f32 0.0, %v10029
      %v10031 = vpop.f32.mrf.mxu0
      %v10032 = vpop.f32.mrf.mxu0
      %v10033 = vadd.f32 0.0, %v10032
      %v10034 = vpop.f32.mrf.mxu0
      %10035 = vmatprep.mubr.bf16.mxu0 0
      %10036 = vmatmul.mubr.bf16.gmra.mxu0 %v3973
      %v10037 = vpop.f32.mrf.mxu0
      %v10038 = vadd.f32 0.0, %v10037
      %v10039 = vpop.f32.mrf.mxu0
      %v10040 = vpop.f32.mrf.mxu0
      %v10041 = vadd.f32 0.0, %v10040
      %v10042 = vpop.f32.mrf.mxu0
      %10043 = vmatprep.mubr.bf16.mxu0 0
      %10044 = vmatmul.mubr.bf16.gmra.mxu0 %v3976
      %v10045 = vpop.f32.mrf.mxu0
      %v10046 = vadd.f32 0.0, %v10045
      %v10047 = vpop.f32.mrf.mxu0
      %v10048 = vpop.f32.mrf.mxu0
      %v10049 = vadd.f32 0.0, %v10048
      %v10050 = vpop.f32.mrf.mxu0
      %10051 = vmatprep.mubr.bf16.mxu0 0
      %10052 = vmatmul.mubr.bf16.gmra.mxu0 %v3979
      %v10053 = vpop.f32.mrf.mxu0
      %v10054 = vadd.f32 0.0, %v10053
      %v10055 = vpop.f32.mrf.mxu0
      %v10056 = vpop.f32.mrf.mxu0
      %v10057 = vadd.f32 0.0, %v10056
      %v10058 = vpop.f32.mrf.mxu0
      %10059 = vmatprep.mubr.bf16.mxu0 0
      %10060 = vmatmul.mubr.bf16.gmra.mxu0 %v3982
      %v10061 = vpop.f32.mrf.mxu0
      %v10062 = vadd.f32 0.0, %v10061
      %v10063 = vpop.f32.mrf.mxu0
      %v10064 = vpop.f32.mrf.mxu0
      %v10065 = vpop.f32.mrf.mxu0
      %10066 = vmatprep.mubr.bf16.mxu0 0
      %10067 = vmatmul.mubr.bf16.gmra.mxu0 %v3985
      %v10068 = vpop.f32.mrf.mxu0
      %v10069 = vpop.f32.mrf.mxu0
      %v10070 = vpop.f32.mrf.mxu0
      %v10071 = vpop.f32.mrf.mxu0
      %10072 = vdwg.mxu0
      %v10073 = vpack.c.bf16 %v9063, %v9062
      %v10074 = vpack.c.bf16 %v9065, %v9064
      %v10075 = vpack.c.bf16 %v9067, %v9066
      %v10076 = vpack.c.bf16 %v9069, %v9068
      %v10077 = vpack.c.bf16 %v9071, %v9070
      %v10078 = vpack.c.bf16 %v9073, %v9072
      %v10079 = vpack.c.bf16 %v9075, %v9074
      %v10080 = vpack.c.bf16 %v9077, %v9076
      %v10081 = vpack.c.bf16 %v9079, %v9078
      %v10082 = vpack.c.bf16 %v9081, %v9080
      %v10083 = vpack.c.bf16 %v9083, %v9082
      %v10084 = vpack.c.bf16 %v9085, %v9084
      %v10085 = vpack.c.bf16 %v9087, %v9086
      %v10086 = vpack.c.bf16 %v9089, %v9088
      %v10087 = vpack.c.bf16 %v9091, %v9090
      %v10088 = vpack.c.bf16 %v9093, %v9092
      %v10089 = vpack.c.bf16 %v9095, %v9094
      %v10090 = vpack.c.bf16 %v9097, %v9096
      %v10091 = vpack.c.bf16 %v9099, %v9098
      %v10092 = vpack.c.bf16 %v9101, %v9100
      %v10093 = vpack.c.bf16 %v9102, %v9102
      %v10095 = vshrl.u32 %v10073, 16
      %v10097 = vrot.slane %v10095, 6
      %v10098 = vshll.u32 %v10073, 16
      %v10100 = vrot.slane %v10098, 7
      %v10101 = vor.u32 %v10097, %v10100
      %v10103 = vshrl.u32 %v10074, 16
      %v10105 = vrot.slane %v10103, 6
      %v10106 = vshll.u32 %v10074, 16
      %v10108 = vrot.slane %v10106, 7
      %v10109 = vor.u32 %v10105, %v10108
      %v10110 = vsel %vm1246, %v10101, %v10109
      %v10112 = vshrl.u32 %v10075, 16
      %v10114 = vrot.slane %v10112, 6
      %v10115 = vshll.u32 %v10075, 16
      %v10117 = vrot.slane %v10115, 7
      %v10118 = vor.u32 %v10114, %v10117
      %v10119 = vsel %vm1246, %v10109, %v10118
      %v10121 = vshrl.u32 %v10076, 16
      %v10123 = vrot.slane %v10121, 6
      %v10124 = vshll.u32 %v10076, 16
      %v10126 = vrot.slane %v10124, 7
      %v10127 = vor.u32 %v10123, %v10126
      %v10128 = vsel %vm1246, %v10118, %v10127
      %v10130 = vshrl.u32 %v10077, 16
      %v10132 = vrot.slane %v10130, 6
      %v10133 = vshll.u32 %v10077, 16
      %v10135 = vrot.slane %v10133, 7
      %v10136 = vor.u32 %v10132, %v10135
      %v10137 = vsel %vm1246, %v10127, %v10136
      %v10139 = vshrl.u32 %v10078, 16
      %v10141 = vrot.slane %v10139, 6
      %v10142 = vshll.u32 %v10078, 16
      %v10144 = vrot.slane %v10142, 7
      %v10145 = vor.u32 %v10141, %v10144
      %v10146 = vsel %vm1246, %v10136, %v10145
      %v10148 = vshrl.u32 %v10079, 16
      %v10150 = vrot.slane %v10148, 6
      %v10151 = vshll.u32 %v10079, 16
      %v10153 = vrot.slane %v10151, 7
      %v10154 = vor.u32 %v10150, %v10153
      %v10155 = vsel %vm1246, %v10145, %v10154
      %v10157 = vshrl.u32 %v10080, 16
      %v10159 = vrot.slane %v10157, 6
      %v10160 = vshll.u32 %v10080, 16
      %v10162 = vrot.slane %v10160, 7
      %v10163 = vor.u32 %v10159, %v10162
      %v10164 = vsel %vm1246, %v10154, %v10163
      %v10166 = vshrl.u32 %v10081, 16
      %v10168 = vrot.slane %v10166, 6
      %v10169 = vshll.u32 %v10081, 16
      %v10171 = vrot.slane %v10169, 7
      %v10172 = vor.u32 %v10168, %v10171
      %v10173 = vsel %vm1246, %v10163, %v10172
      %v10175 = vshrl.u32 %v10082, 16
      %v10177 = vrot.slane %v10175, 6
      %v10178 = vshll.u32 %v10082, 16
      %v10180 = vrot.slane %v10178, 7
      %v10181 = vor.u32 %v10177, %v10180
      %v10182 = vsel %vm1246, %v10172, %v10181
      %v10184 = vshrl.u32 %v10083, 16
      %v10186 = vrot.slane %v10184, 6
      %v10187 = vshll.u32 %v10083, 16
      %v10189 = vrot.slane %v10187, 7
      %v10190 = vor.u32 %v10186, %v10189
      %v10191 = vsel %vm1246, %v10181, %v10190
      %v10193 = vshrl.u32 %v10084, 16
      %v10195 = vrot.slane %v10193, 6
      %v10196 = vshll.u32 %v10084, 16
      %v10198 = vrot.slane %v10196, 7
      %v10199 = vor.u32 %v10195, %v10198
      %v10200 = vsel %vm1246, %v10190, %v10199
      %v10202 = vshrl.u32 %v10085, 16
      %v10204 = vrot.slane %v10202, 6
      %v10205 = vshll.u32 %v10085, 16
      %v10207 = vrot.slane %v10205, 7
      %v10208 = vor.u32 %v10204, %v10207
      %v10209 = vsel %vm1246, %v10199, %v10208
      %v10211 = vshrl.u32 %v10086, 16
      %v10213 = vrot.slane %v10211, 6
      %v10214 = vshll.u32 %v10086, 16
      %v10216 = vrot.slane %v10214, 7
      %v10217 = vor.u32 %v10213, %v10216
      %v10218 = vsel %vm1246, %v10208, %v10217
      %v10220 = vshrl.u32 %v10087, 16
      %v10222 = vrot.slane %v10220, 6
      %v10223 = vshll.u32 %v10087, 16
      %v10225 = vrot.slane %v10223, 7
      %v10226 = vor.u32 %v10222, %v10225
      %v10227 = vsel %vm1246, %v10217, %v10226
      %v10229 = vshrl.u32 %v10088, 16
      %v10231 = vrot.slane %v10229, 6
      %v10232 = vshll.u32 %v10088, 16
      %v10234 = vrot.slane %v10232, 7
      %v10235 = vor.u32 %v10231, %v10234
      %v10236 = vsel %vm1246, %v10226, %v10235
      %v10238 = vshrl.u32 %v10089, 16
      %v10240 = vrot.slane %v10238, 6
      %v10241 = vshll.u32 %v10089, 16
      %v10243 = vrot.slane %v10241, 7
      %v10244 = vor.u32 %v10240, %v10243
      %v10245 = vsel %vm1246, %v10235, %v10244
      %v10247 = vshrl.u32 %v10090, 16
      %v10249 = vrot.slane %v10247, 6
      %v10250 = vshll.u32 %v10090, 16
      %v10252 = vrot.slane %v10250, 7
      %v10253 = vor.u32 %v10249, %v10252
      %v10254 = vsel %vm1246, %v10244, %v10253
      %v10256 = vshrl.u32 %v10091, 16
      %v10258 = vrot.slane %v10256, 6
      %v10259 = vshll.u32 %v10091, 16
      %v10261 = vrot.slane %v10259, 7
      %v10262 = vor.u32 %v10258, %v10261
      %v10263 = vsel %vm1246, %v10253, %v10262
      %v10265 = vshrl.u32 %v10092, 16
      %v10267 = vrot.slane %v10265, 6
      %v10268 = vshll.u32 %v10092, 16
      %v10270 = vrot.slane %v10268, 7
      %v10271 = vor.u32 %v10267, %v10270
      %v10272 = vsel %vm1246, %v10262, %v10271
      %v10274 = vshrl.u32 %v10093, 16
      %v10276 = vrot.slane %v10274, 6
      %v10277 = vshll.u32 %v10093, 16
      %v10279 = vrot.slane %v10277, 7
      %v10280 = vor.u32 %v10276, %v10279
      %v10281 = vsel %vm1246, %v10271, %v10280
      %v10284 = vsel %vm4442, 0, %v10101
      %v10285 = vsel %vm1149, %v10281, 0
      %v10287 = vshll.u32 %v10284, 16
      %v10289 = vrot.slane %v10287, 1
      %v10290 = vsel %vm1155, %v4446, %v10289
      %v10291 = vshrl.u32 %v10284, 16
      %v10293 = vor.u32 %v10291, %v10289
      %v10295 = vshll.u32 %v10110, 16
      %v10297 = vrot.slane %v10295, 1
      %v10298 = vsel %vm1155, %v10293, %v10297
      %v10299 = vshrl.u32 %v10110, 16
      %v10301 = vor.u32 %v10299, %v10297
      %v10303 = vshll.u32 %v10119, 16
      %v10305 = vrot.slane %v10303, 1
      %v10306 = vsel %vm1155, %v10301, %v10305
      %v10307 = vshrl.u32 %v10119, 16
      %v10309 = vor.u32 %v10307, %v10305
      %v10311 = vshll.u32 %v10128, 16
      %v10313 = vrot.slane %v10311, 1
      %v10314 = vsel %vm1155, %v10309, %v10313
      %v10315 = vshrl.u32 %v10128, 16
      %v10317 = vor.u32 %v10315, %v10313
      %v10319 = vshll.u32 %v10137, 16
      %v10321 = vrot.slane %v10319, 1
      %v10322 = vsel %vm1155, %v10317, %v10321
      %v10323 = vshrl.u32 %v10137, 16
      %v10325 = vor.u32 %v10323, %v10321
      %v10327 = vshll.u32 %v10146, 16
      %v10329 = vrot.slane %v10327, 1
      %v10330 = vsel %vm1155, %v10325, %v10329
      %v10331 = vshrl.u32 %v10146, 16
      %v10333 = vor.u32 %v10331, %v10329
      %v10335 = vshll.u32 %v10155, 16
      %v10337 = vrot.slane %v10335, 1
      %v10338 = vsel %vm1155, %v10333, %v10337
      %v10339 = vshrl.u32 %v10155, 16
      %v10341 = vor.u32 %v10339, %v10337
      %v10343 = vshll.u32 %v10164, 16
      %v10345 = vrot.slane %v10343, 1
      %v10346 = vsel %vm1155, %v10341, %v10345
      %v10347 = vshrl.u32 %v10164, 16
      %v10349 = vor.u32 %v10347, %v10345
      %v10351 = vshll.u32 %v10173, 16
      %v10353 = vrot.slane %v10351, 1
      %v10354 = vsel %vm1155, %v10349, %v10353
      %v10355 = vshrl.u32 %v10173, 16
      %v10357 = vor.u32 %v10355, %v10353
      %v10359 = vshll.u32 %v10182, 16
      %v10361 = vrot.slane %v10359, 1
      %v10362 = vsel %vm1155, %v10357, %v10361
      %v10363 = vshrl.u32 %v10182, 16
      %v10365 = vor.u32 %v10363, %v10361
      %v10367 = vshll.u32 %v10191, 16
      %v10369 = vrot.slane %v10367, 1
      %v10370 = vsel %vm1155, %v10365, %v10369
      %v10371 = vshrl.u32 %v10191, 16
      %v10373 = vor.u32 %v10371, %v10369
      %v10375 = vshll.u32 %v10200, 16
      %v10377 = vrot.slane %v10375, 1
      %v10378 = vsel %vm1155, %v10373, %v10377
      %v10379 = vshrl.u32 %v10200, 16
      %v10381 = vor.u32 %v10379, %v10377
      %v10383 = vshll.u32 %v10209, 16
      %v10385 = vrot.slane %v10383, 1
      %v10386 = vsel %vm1155, %v10381, %v10385
      %v10387 = vshrl.u32 %v10209, 16
      %v10389 = vor.u32 %v10387, %v10385
      %v10391 = vshll.u32 %v10218, 16
      %v10393 = vrot.slane %v10391, 1
      %v10394 = vsel %vm1155, %v10389, %v10393
      %v10395 = vshrl.u32 %v10218, 16
      %v10397 = vor.u32 %v10395, %v10393
      %v10399 = vshll.u32 %v10227, 16
      %v10401 = vrot.slane %v10399, 1
      %v10402 = vsel %vm1155, %v10397, %v10401
      %v10403 = vshrl.u32 %v10227, 16
      %v10405 = vor.u32 %v10403, %v10401
      %v10407 = vshll.u32 %v10236, 16
      %v10409 = vrot.slane %v10407, 1
      %v10410 = vsel %vm1155, %v10405, %v10409
      %v10411 = vshrl.u32 %v10236, 16
      %v10413 = vor.u32 %v10411, %v10409
      %v10415 = vshll.u32 %v10245, 16
      %v10417 = vrot.slane %v10415, 1
      %v10418 = vsel %vm1155, %v10413, %v10417
      %v10419 = vshrl.u32 %v10245, 16
      %v10421 = vor.u32 %v10419, %v10417
      %v10423 = vshll.u32 %v10254, 16
      %v10425 = vrot.slane %v10423, 1
      %v10426 = vsel %vm1155, %v10421, %v10425
      %v10427 = vshrl.u32 %v10254, 16
      %v10429 = vor.u32 %v10427, %v10425
      %v10431 = vshll.u32 %v10263, 16
      %v10433 = vrot.slane %v10431, 1
      %v10434 = vsel %vm1155, %v10429, %v10433
      %v10435 = vshrl.u32 %v10263, 16
      %v10437 = vor.u32 %v10435, %v10433
      %v10439 = vshll.u32 %v10272, 16
      %v10441 = vrot.slane %v10439, 1
      %v10442 = vsel %vm1155, %v10437, %v10441
      %v10443 = vshrl.u32 %v10272, 16
      %v10445 = vor.u32 %v10443, %v10441
      %10446 = vrot.lane.b32.xlu0 %v10290, 32
      %v10447 = vpop.permute.xlu0 %10446
      %10448 = vrot.lane.b32.xlu0 %v10298, 32
      %v10449 = vpop.permute.xlu0 %10448
      %10450 = vrot.lane.b32.xlu0 %v10306, 32
      %v10451 = vpop.permute.xlu0 %10450
      %10452 = vrot.lane.b32.xlu0 %v10314, 32
      %v10453 = vpop.permute.xlu0 %10452
      %10454 = vrot.lane.b32.xlu0 %v10322, 32
      %v10455 = vpop.permute.xlu0 %10454
      %10456 = vrot.lane.b32.xlu0 %v10330, 32
      %v10457 = vpop.permute.xlu0 %10456
      %10458 = vrot.lane.b32.xlu0 %v10338, 32
      %v10459 = vpop.permute.xlu0 %10458
      %10460 = vrot.lane.b32.xlu0 %v10346, 32
      %v10461 = vpop.permute.xlu0 %10460
      %10462 = vrot.lane.b32.xlu0 %v10354, 32
      %v10463 = vpop.permute.xlu0 %10462
      %10464 = vrot.lane.b32.xlu0 %v10362, 32
      %v10465 = vpop.permute.xlu0 %10464
      %10466 = vrot.lane.b32.xlu0 %v10370, 32
      %v10467 = vpop.permute.xlu0 %10466
      %10468 = vrot.lane.b32.xlu0 %v10378, 32
      %v10469 = vpop.permute.xlu0 %10468
      %10470 = vrot.lane.b32.xlu0 %v10386, 32
      %v10471 = vpop.permute.xlu0 %10470
      %10472 = vrot.lane.b32.xlu0 %v10394, 32
      %v10473 = vpop.permute.xlu0 %10472
      %10474 = vrot.lane.b32.xlu0 %v10402, 32
      %v10475 = vpop.permute.xlu0 %10474
      %10476 = vrot.lane.b32.xlu0 %v10410, 32
      %v10477 = vpop.permute.xlu0 %10476
      %10478 = vrot.lane.b32.xlu0 %v10418, 32
      %v10479 = vpop.permute.xlu0 %10478
      %10480 = vrot.lane.b32.xlu0 %v10426, 32
      %v10481 = vpop.permute.xlu0 %10480
      %10482 = vrot.lane.b32.xlu0 %v10434, 32
      %v10483 = vpop.permute.xlu0 %10482
      %10484 = vrot.lane.b32.xlu0 %v10442, 32
      %v10485 = vpop.permute.xlu0 %10484
      %10486 = vrot.lane.b32.xlu0 %v10445, 32
      %v10487 = vpop.permute.xlu0 %10486
      %v10489 = vrot.slane %v10284, 1
      %v10490 = vsel %vm1187, %v4650, %v10489
      %v10491 = vrot.slane %v10110, 1
      %v10492 = vsel %vm1187, %v10489, %v10491
      %v10493 = vrot.slane %v10119, 1
      %v10494 = vsel %vm1187, %v10491, %v10493
      %v10495 = vrot.slane %v10128, 1
      %v10496 = vsel %vm1187, %v10493, %v10495
      %v10497 = vrot.slane %v10137, 1
      %v10498 = vsel %vm1187, %v10495, %v10497
      %v10499 = vrot.slane %v10146, 1
      %v10500 = vsel %vm1187, %v10497, %v10499
      %v10501 = vrot.slane %v10155, 1
      %v10502 = vsel %vm1187, %v10499, %v10501
      %v10503 = vrot.slane %v10164, 1
      %v10504 = vsel %vm1187, %v10501, %v10503
      %v10505 = vrot.slane %v10173, 1
      %v10506 = vsel %vm1187, %v10503, %v10505
      %v10507 = vrot.slane %v10182, 1
      %v10508 = vsel %vm1187, %v10505, %v10507
      %v10509 = vrot.slane %v10191, 1
      %v10510 = vsel %vm1187, %v10507, %v10509
      %v10511 = vrot.slane %v10200, 1
      %v10512 = vsel %vm1187, %v10509, %v10511
      %v10513 = vrot.slane %v10209, 1
      %v10514 = vsel %vm1187, %v10511, %v10513
      %v10515 = vrot.slane %v10218, 1
      %v10516 = vsel %vm1187, %v10513, %v10515
      %v10517 = vrot.slane %v10227, 1
      %v10518 = vsel %vm1187, %v10515, %v10517
      %v10519 = vrot.slane %v10236, 1
      %v10520 = vsel %vm1187, %v10517, %v10519
      %v10521 = vrot.slane %v10245, 1
      %v10522 = vsel %vm1187, %v10519, %v10521
      %v10523 = vrot.slane %v10254, 1
      %v10524 = vsel %vm1187, %v10521, %v10523
      %v10525 = vrot.slane %v10263, 1
      %v10526 = vsel %vm1187, %v10523, %v10525
      %v10527 = vrot.slane %v10272, 1
      %v10528 = vsel %vm1187, %v10525, %v10527
      %10529 = vrot.lane.b32.xlu0 %v10490, 64
      %v10530 = vpop.permute.xlu0 %10529
      %10531 = vrot.lane.b32.xlu0 %v10492, 64
      %v10532 = vpop.permute.xlu0 %10531
      %10533 = vrot.lane.b32.xlu0 %v10494, 64
      %v10534 = vpop.permute.xlu0 %10533
      %10535 = vrot.lane.b32.xlu0 %v10496, 64
      %v10536 = vpop.permute.xlu0 %10535
      %10537 = vrot.lane.b32.xlu0 %v10498, 64
      %v10538 = vpop.permute.xlu0 %10537
      %10539 = vrot.lane.b32.xlu0 %v10500, 64
      %v10540 = vpop.permute.xlu0 %10539
      %10541 = vrot.lane.b32.xlu0 %v10502, 64
      %v10542 = vpop.permute.xlu0 %10541
      %10543 = vrot.lane.b32.xlu0 %v10504, 64
      %v10544 = vpop.permute.xlu0 %10543
      %10545 = vrot.lane.b32.xlu0 %v10506, 64
      %v10546 = vpop.permute.xlu0 %10545
      %10547 = vrot.lane.b32.xlu0 %v10508, 64
      %v10548 = vpop.permute.xlu0 %10547
      %10549 = vrot.lane.b32.xlu0 %v10510, 64
      %v10550 = vpop.permute.xlu0 %10549
      %10551 = vrot.lane.b32.xlu0 %v10512, 64
      %v10552 = vpop.permute.xlu0 %10551
      %10553 = vrot.lane.b32.xlu0 %v10514, 64
      %v10554 = vpop.permute.xlu0 %10553
      %10555 = vrot.lane.b32.xlu0 %v10516, 64
      %v10556 = vpop.permute.xlu0 %10555
      %10557 = vrot.lane.b32.xlu0 %v10518, 64
      %v10558 = vpop.permute.xlu0 %10557
      %10559 = vrot.lane.b32.xlu0 %v10520, 64
      %v10560 = vpop.permute.xlu0 %10559
      %10561 = vrot.lane.b32.xlu0 %v10522, 64
      %v10562 = vpop.permute.xlu0 %10561
      %10563 = vrot.lane.b32.xlu0 %v10524, 64
      %v10564 = vpop.permute.xlu0 %10563
      %10565 = vrot.lane.b32.xlu0 %v10526, 64
      %v10566 = vpop.permute.xlu0 %10565
      %10567 = vrot.lane.b32.xlu0 %v10528, 64
      %v10568 = vpop.permute.xlu0 %10567
      %10569 = vrot.lane.b32.xlu0 %v10527, 64
      %v10570 = vpop.permute.xlu0 %10569
      %v10572 = vrot.slane %v10285, 1
      %v10573 = vsel %vm1187, %v10527, %v10572
      %10574 = vrot.lane.b32.xlu0 %v10492, 96
      %v10575 = vpop.permute.xlu0 %10574
      %10576 = vrot.lane.b32.xlu0 %v10494, 96
      %v10577 = vpop.permute.xlu0 %10576
      %10578 = vrot.lane.b32.xlu0 %v10496, 96
      %v10579 = vpop.permute.xlu0 %10578
      %10580 = vrot.lane.b32.xlu0 %v10498, 96
      %v10581 = vpop.permute.xlu0 %10580
      %10582 = vrot.lane.b32.xlu0 %v10500, 96
      %v10583 = vpop.permute.xlu0 %10582
      %10584 = vrot.lane.b32.xlu0 %v10502, 96
      %v10585 = vpop.permute.xlu0 %10584
      %10586 = vrot.lane.b32.xlu0 %v10504, 96
      %v10587 = vpop.permute.xlu0 %10586
      %10588 = vrot.lane.b32.xlu0 %v10506, 96
      %v10589 = vpop.permute.xlu0 %10588
      %10590 = vrot.lane.b32.xlu0 %v10508, 96
      %v10591 = vpop.permute.xlu0 %10590
      %10592 = vrot.lane.b32.xlu0 %v10510, 96
      %v10593 = vpop.permute.xlu0 %10592
      %10594 = vrot.lane.b32.xlu0 %v10512, 96
      %v10595 = vpop.permute.xlu0 %10594
      %10596 = vrot.lane.b32.xlu0 %v10514, 96
      %v10597 = vpop.permute.xlu0 %10596
      %10598 = vrot.lane.b32.xlu0 %v10516, 96
      %v10599 = vpop.permute.xlu0 %10598
      %10600 = vrot.lane.b32.xlu0 %v10518, 96
      %v10601 = vpop.permute.xlu0 %10600
      %10602 = vrot.lane.b32.xlu0 %v10520, 96
      %v10603 = vpop.permute.xlu0 %10602
      %10604 = vrot.lane.b32.xlu0 %v10522, 96
      %v10605 = vpop.permute.xlu0 %10604
      %10606 = vrot.lane.b32.xlu0 %v10524, 96
      %v10607 = vpop.permute.xlu0 %10606
      %10608 = vrot.lane.b32.xlu0 %v10526, 96
      %v10609 = vpop.permute.xlu0 %10608
      %10610 = vrot.lane.b32.xlu0 %v10528, 96
      %v10611 = vpop.permute.xlu0 %10610
      %10612 = vrot.lane.b32.xlu0 %v10573, 96
      %v10613 = vpop.permute.xlu0 %10612
      %10614 = vrot.lane.b32.xlu0 %v10572, 96
      %v10615 = vpop.permute.xlu0 %10614
      %v10616 = vrot.slane %v10291, 1
      %v10617 = vrot.slane %v10287, 2
      %v10618 = vor.u32 %v10616, %v10617
      %v10619 = vrot.slane %v10299, 1
      %v10620 = vrot.slane %v10295, 2
      %v10621 = vor.u32 %v10619, %v10620
      %v10622 = vsel %vm4778, %v10618, %v10621
      %v10623 = vrot.slane %v10307, 1
      %v10624 = vrot.slane %v10303, 2
      %v10625 = vor.u32 %v10623, %v10624
      %v10626 = vsel %vm4778, %v10621, %v10625
      %v10627 = vrot.slane %v10315, 1
      %v10628 = vrot.slane %v10311, 2
      %v10629 = vor.u32 %v10627, %v10628
      %v10630 = vsel %vm4778, %v10625, %v10629
      %v10631 = vrot.slane %v10323, 1
      %v10632 = vrot.slane %v10319, 2
      %v10633 = vor.u32 %v10631, %v10632
      %v10634 = vsel %vm4778, %v10629, %v10633
      %v10635 = vrot.slane %v10331, 1
      %v10636 = vrot.slane %v10327, 2
      %v10637 = vor.u32 %v10635, %v10636
      %v10638 = vsel %vm4778, %v10633, %v10637
      %v10639 = vrot.slane %v10339, 1
      %v10640 = vrot.slane %v10335, 2
      %v10641 = vor.u32 %v10639, %v10640
      %v10642 = vsel %vm4778, %v10637, %v10641
      %v10643 = vrot.slane %v10347, 1
      %v10644 = vrot.slane %v10343, 2
      %v10645 = vor.u32 %v10643, %v10644
      %v10646 = vsel %vm4778, %v10641, %v10645
      %v10647 = vrot.slane %v10355, 1
      %v10648 = vrot.slane %v10351, 2
      %v10649 = vor.u32 %v10647, %v10648
      %v10650 = vsel %vm4778, %v10645, %v10649
      %v10651 = vrot.slane %v10363, 1
      %v10652 = vrot.slane %v10359, 2
      %v10653 = vor.u32 %v10651, %v10652
      %v10654 = vsel %vm4778, %v10649, %v10653
      %v10655 = vrot.slane %v10371, 1
      %v10656 = vrot.slane %v10367, 2
      %v10657 = vor.u32 %v10655, %v10656
      %v10658 = vsel %vm4778, %v10653, %v10657
      %v10659 = vrot.slane %v10379, 1
      %v10660 = vrot.slane %v10375, 2
      %v10661 = vor.u32 %v10659, %v10660
      %v10662 = vsel %vm4778, %v10657, %v10661
      %v10663 = vrot.slane %v10387, 1
      %v10664 = vrot.slane %v10383, 2
      %v10665 = vor.u32 %v10663, %v10664
      %v10666 = vsel %vm4778, %v10661, %v10665
      %v10667 = vrot.slane %v10395, 1
      %v10668 = vrot.slane %v10391, 2
      %v10669 = vor.u32 %v10667, %v10668
      %v10670 = vsel %vm4778, %v10665, %v10669
      %v10671 = vrot.slane %v10403, 1
      %v10672 = vrot.slane %v10399, 2
      %v10673 = vor.u32 %v10671, %v10672
      %v10674 = vsel %vm4778, %v10669, %v10673
      %v10675 = vrot.slane %v10411, 1
      %v10676 = vrot.slane %v10407, 2
      %v10677 = vor.u32 %v10675, %v10676
      %v10678 = vsel %vm4778, %v10673, %v10677
      %v10679 = vrot.slane %v10419, 1
      %v10680 = vrot.slane %v10415, 2
      %v10681 = vor.u32 %v10679, %v10680
      %v10682 = vsel %vm4778, %v10677, %v10681
      %v10683 = vrot.slane %v10427, 1
      %v10684 = vrot.slane %v10423, 2
      %v10685 = vor.u32 %v10683, %v10684
      %v10686 = vsel %vm4778, %v10681, %v10685
      %v10687 = vrot.slane %v10435, 1
      %v10688 = vrot.slane %v10431, 2
      %v10689 = vor.u32 %v10687, %v10688
      %v10690 = vsel %vm4778, %v10685, %v10689
      %v10691 = vrot.slane %v10443, 1
      %v10692 = vrot.slane %v10439, 2
      %v10693 = vor.u32 %v10691, %v10692
      %v10694 = vsel %vm4778, %v10689, %v10693
      %v10696 = vshrl.u32 %v10285, 16
      %v10698 = vrot.slane %v10696, 1
      %v10699 = vshll.u32 %v10285, 16
      %v10701 = vrot.slane %v10699, 2
      %v10702 = vor.u32 %v10698, %v10701
      %v10703 = vsel %vm4778, %v10693, %v10702
      %v10704 = vrot.slane %v10284, 2
      %v10705 = vrot.slane %v10110, 2
      %v10706 = vsel %vm1151, %v10704, %v10705
      %v10707 = vrot.slane %v10119, 2
      %v10708 = vsel %vm1151, %v10705, %v10707
      %v10709 = vrot.slane %v10128, 2
      %v10710 = vsel %vm1151, %v10707, %v10709
      %v10711 = vrot.slane %v10137, 2
      %v10712 = vsel %vm1151, %v10709, %v10711
      %v10713 = vrot.slane %v10146, 2
      %v10714 = vsel %vm1151, %v10711, %v10713
      %v10715 = vrot.slane %v10155, 2
      %v10716 = vsel %vm1151, %v10713, %v10715
      %v10717 = vrot.slane %v10164, 2
      %v10718 = vsel %vm1151, %v10715, %v10717
      %v10719 = vrot.slane %v10173, 2
      %v10720 = vsel %vm1151, %v10717, %v10719
      %v10721 = vrot.slane %v10182, 2
      %v10722 = vsel %vm1151, %v10719, %v10721
      %v10723 = vrot.slane %v10191, 2
      %v10724 = vsel %vm1151, %v10721, %v10723
      %v10725 = vrot.slane %v10200, 2
      %v10726 = vsel %vm1151, %v10723, %v10725
      %v10727 = vrot.slane %v10209, 2
      %v10728 = vsel %vm1151, %v10725, %v10727
      %v10729 = vrot.slane %v10218, 2
      %v10730 = vsel %vm1151, %v10727, %v10729
      %v10731 = vrot.slane %v10227, 2
      %v10732 = vsel %vm1151, %v10729, %v10731
      %v10733 = vrot.slane %v10236, 2
      %v10734 = vsel %vm1151, %v10731, %v10733
      %v10735 = vrot.slane %v10245, 2
      %v10736 = vsel %vm1151, %v10733, %v10735
      %v10737 = vrot.slane %v10254, 2
      %v10738 = vsel %vm1151, %v10735, %v10737
      %v10739 = vrot.slane %v10263, 2
      %v10740 = vsel %vm1151, %v10737, %v10739
      %v10741 = vrot.slane %v10272, 2
      %v10742 = vsel %vm1151, %v10739, %v10741
      %v10743 = vrot.slane %v10285, 2
      %v10744 = vsel %vm1151, %v10741, %v10743
      %10745 = vrot.lane.b32.xlu0 %v10706, 32
      %v10746 = vpop.permute.xlu0 %10745
      %10747 = vrot.lane.b32.xlu0 %v10708, 32
      %v10748 = vpop.permute.xlu0 %10747
      %10749 = vrot.lane.b32.xlu0 %v10710, 32
      %v10750 = vpop.permute.xlu0 %10749
      %10751 = vrot.lane.b32.xlu0 %v10712, 32
      %v10752 = vpop.permute.xlu0 %10751
      %10753 = vrot.lane.b32.xlu0 %v10714, 32
      %v10754 = vpop.permute.xlu0 %10753
      %10755 = vrot.lane.b32.xlu0 %v10716, 32
      %v10756 = vpop.permute.xlu0 %10755
      %10757 = vrot.lane.b32.xlu0 %v10718, 32
      %v10758 = vpop.permute.xlu0 %10757
      %10759 = vrot.lane.b32.xlu0 %v10720, 32
      %v10760 = vpop.permute.xlu0 %10759
      %10761 = vrot.lane.b32.xlu0 %v10722, 32
      %v10762 = vpop.permute.xlu0 %10761
      %10763 = vrot.lane.b32.xlu0 %v10724, 32
      %v10764 = vpop.permute.xlu0 %10763
      %10765 = vrot.lane.b32.xlu0 %v10726, 32
      %v10766 = vpop.permute.xlu0 %10765
      %10767 = vrot.lane.b32.xlu0 %v10728, 32
      %v10768 = vpop.permute.xlu0 %10767
      %10769 = vrot.lane.b32.xlu0 %v10730, 32
      %v10770 = vpop.permute.xlu0 %10769
      %10771 = vrot.lane.b32.xlu0 %v10732, 32
      %v10772 = vpop.permute.xlu0 %10771
      %10773 = vrot.lane.b32.xlu0 %v10734, 32
      %v10774 = vpop.permute.xlu0 %10773
      %10775 = vrot.lane.b32.xlu0 %v10736, 32
      %v10776 = vpop.permute.xlu0 %10775
      %10777 = vrot.lane.b32.xlu0 %v10738, 32
      %v10778 = vpop.permute.xlu0 %10777
      %10779 = vrot.lane.b32.xlu0 %v10740, 32
      %v10780 = vpop.permute.xlu0 %10779
      %10781 = vrot.lane.b32.xlu0 %v10742, 32
      %v10782 = vpop.permute.xlu0 %10781
      %10783 = vrot.lane.b32.xlu0 %v10744, 32
      %v10784 = vpop.permute.xlu0 %10783
      %10785 = vrot.lane.b32.xlu0 %v10743, 32
      %v10786 = vpop.permute.xlu0 %10785
      %v10787 = vsel %vm1151, %v10743, %v2098
      %10788 = vrot.lane.b32.xlu0 %v10708, 64
      %v10789 = vpop.permute.xlu0 %10788
      %10790 = vrot.lane.b32.xlu0 %v10710, 64
      %v10791 = vpop.permute.xlu0 %10790
      %10792 = vrot.lane.b32.xlu0 %v10712, 64
      %v10793 = vpop.permute.xlu0 %10792
      %10794 = vrot.lane.b32.xlu0 %v10714, 64
      %v10795 = vpop.permute.xlu0 %10794
      %10796 = vrot.lane.b32.xlu0 %v10716, 64
      %v10797 = vpop.permute.xlu0 %10796
      %10798 = vrot.lane.b32.xlu0 %v10718, 64
      %v10799 = vpop.permute.xlu0 %10798
      %10800 = vrot.lane.b32.xlu0 %v10720, 64
      %v10801 = vpop.permute.xlu0 %10800
      %10802 = vrot.lane.b32.xlu0 %v10722, 64
      %v10803 = vpop.permute.xlu0 %10802
      %10804 = vrot.lane.b32.xlu0 %v10724, 64
      %v10805 = vpop.permute.xlu0 %10804
      %10806 = vrot.lane.b32.xlu0 %v10726, 64
      %v10807 = vpop.permute.xlu0 %10806
      %10808 = vrot.lane.b32.xlu0 %v10728, 64
      %v10809 = vpop.permute.xlu0 %10808
      %10810 = vrot.lane.b32.xlu0 %v10730, 64
      %v10811 = vpop.permute.xlu0 %10810
      %10812 = vrot.lane.b32.xlu0 %v10732, 64
      %v10813 = vpop.permute.xlu0 %10812
      %10814 = vrot.lane.b32.xlu0 %v10734, 64
      %v10815 = vpop.permute.xlu0 %10814
      %10816 = vrot.lane.b32.xlu0 %v10736, 64
      %v10817 = vpop.permute.xlu0 %10816
      %10818 = vrot.lane.b32.xlu0 %v10738, 64
      %v10819 = vpop.permute.xlu0 %10818
      %10820 = vrot.lane.b32.xlu0 %v10740, 64
      %v10821 = vpop.permute.xlu0 %10820
      %10822 = vrot.lane.b32.xlu0 %v10742, 64
      %v10823 = vpop.permute.xlu0 %10822
      %10824 = vrot.lane.b32.xlu0 %v10744, 64
      %v10825 = vpop.permute.xlu0 %10824
      %10826 = vrot.lane.b32.xlu0 %v10787, 64
      %v10827 = vpop.permute.xlu0 %10826
      %v10828 = vrot.slane %v10299, 2
      %v10829 = vrot.slane %v10295, 3
      %v10830 = vor.u32 %v10828, %v10829
      %v10831 = vrot.slane %v10307, 2
      %v10832 = vrot.slane %v10303, 3
      %v10833 = vor.u32 %v10831, %v10832
      %v10834 = vsel %vm1152, %v10830, %v10833
      %v10835 = vrot.slane %v10315, 2
      %v10836 = vrot.slane %v10311, 3
      %v10837 = vor.u32 %v10835, %v10836
      %v10838 = vsel %vm1152, %v10833, %v10837
      %v10839 = vrot.slane %v10323, 2
      %v10840 = vrot.slane %v10319, 3
      %v10841 = vor.u32 %v10839, %v10840
      %v10842 = vsel %vm1152, %v10837, %v10841
      %v10843 = vrot.slane %v10331, 2
      %v10844 = vrot.slane %v10327, 3
      %v10845 = vor.u32 %v10843, %v10844
      %v10846 = vsel %vm1152, %v10841, %v10845
      %v10847 = vrot.slane %v10339, 2
      %v10848 = vrot.slane %v10335, 3
      %v10849 = vor.u32 %v10847, %v10848
      %v10850 = vsel %vm1152, %v10845, %v10849
      %v10851 = vrot.slane %v10347, 2
      %v10852 = vrot.slane %v10343, 3
      %v10853 = vor.u32 %v10851, %v10852
      %v10854 = vsel %vm1152, %v10849, %v10853
      %v10855 = vrot.slane %v10355, 2
      %v10856 = vrot.slane %v10351, 3
      %v10857 = vor.u32 %v10855, %v10856
      %v10858 = vsel %vm1152, %v10853, %v10857
      %v10859 = vrot.slane %v10363, 2
      %v10860 = vrot.slane %v10359, 3
      %v10861 = vor.u32 %v10859, %v10860
      %v10862 = vsel %vm1152, %v10857, %v10861
      %v10863 = vrot.slane %v10371, 2
      %v10864 = vrot.slane %v10367, 3
      %v10865 = vor.u32 %v10863, %v10864
      %v10866 = vsel %vm1152, %v10861, %v10865
      %v10867 = vrot.slane %v10379, 2
      %v10868 = vrot.slane %v10375, 3
      %v10869 = vor.u32 %v10867, %v10868
      %v10870 = vsel %vm1152, %v10865, %v10869
      %v10871 = vrot.slane %v10387, 2
      %v10872 = vrot.slane %v10383, 3
      %v10873 = vor.u32 %v10871, %v10872
      %v10874 = vsel %vm1152, %v10869, %v10873
      %v10875 = vrot.slane %v10395, 2
      %v10876 = vrot.slane %v10391, 3
      %v10877 = vor.u32 %v10875, %v10876
      %v10878 = vsel %vm1152, %v10873, %v10877
      %v10879 = vrot.slane %v10403, 2
      %v10880 = vrot.slane %v10399, 3
      %v10881 = vor.u32 %v10879, %v10880
      %v10882 = vsel %vm1152, %v10877, %v10881
      %v10883 = vrot.slane %v10411, 2
      %v10884 = vrot.slane %v10407, 3
      %v10885 = vor.u32 %v10883, %v10884
      %v10886 = vsel %vm1152, %v10881, %v10885
      %v10887 = vrot.slane %v10419, 2
      %v10888 = vrot.slane %v10415, 3
      %v10889 = vor.u32 %v10887, %v10888
      %v10890 = vsel %vm1152, %v10885, %v10889
      %v10891 = vrot.slane %v10427, 2
      %v10892 = vrot.slane %v10423, 3
      %v10893 = vor.u32 %v10891, %v10892
      %v10894 = vsel %vm1152, %v10889, %v10893
      %v10895 = vrot.slane %v10435, 2
      %v10896 = vrot.slane %v10431, 3
      %v10897 = vor.u32 %v10895, %v10896
      %v10898 = vsel %vm1152, %v10893, %v10897
      %v10899 = vrot.slane %v10443, 2
      %v10900 = vrot.slane %v10439, 3
      %v10901 = vor.u32 %v10899, %v10900
      %v10902 = vsel %vm1152, %v10897, %v10901
      %v10903 = vrot.slane %v10696, 2
      %v10904 = vrot.slane %v10699, 3
      %v10905 = vor.u32 %v10903, %v10904
      %v10906 = vsel %vm1152, %v10901, %v10905
      %v10907 = vsel %vm1152, %v10905, %v2141
      %10908 = vrot.lane.b32.xlu0 %v10834, 96
      %v10909 = vpop.permute.xlu0 %10908
      %10910 = vrot.lane.b32.xlu0 %v10838, 96
      %v10911 = vpop.permute.xlu0 %10910
      %10912 = vrot.lane.b32.xlu0 %v10842, 96
      %v10913 = vpop.permute.xlu0 %10912
      %10914 = vrot.lane.b32.xlu0 %v10846, 96
      %v10915 = vpop.permute.xlu0 %10914
      %10916 = vrot.lane.b32.xlu0 %v10850, 96
      %v10917 = vpop.permute.xlu0 %10916
      %10918 = vrot.lane.b32.xlu0 %v10854, 96
      %v10919 = vpop.permute.xlu0 %10918
      %10920 = vrot.lane.b32.xlu0 %v10858, 96
      %v10921 = vpop.permute.xlu0 %10920
      %10922 = vrot.lane.b32.xlu0 %v10862, 96
      %v10923 = vpop.permute.xlu0 %10922
      %10924 = vrot.lane.b32.xlu0 %v10866, 96
      %v10925 = vpop.permute.xlu0 %10924
      %10926 = vrot.lane.b32.xlu0 %v10870, 96
      %v10927 = vpop.permute.xlu0 %10926
      %10928 = vrot.lane.b32.xlu0 %v10874, 96
      %v10929 = vpop.permute.xlu0 %10928
      %10930 = vrot.lane.b32.xlu0 %v10878, 96
      %v10931 = vpop.permute.xlu0 %10930
      %10932 = vrot.lane.b32.xlu0 %v10882, 96
      %v10933 = vpop.permute.xlu0 %10932
      %10934 = vrot.lane.b32.xlu0 %v10886, 96
      %v10935 = vpop.permute.xlu0 %10934
      %10936 = vrot.lane.b32.xlu0 %v10890, 96
      %v10937 = vpop.permute.xlu0 %10936
      %10938 = vrot.lane.b32.xlu0 %v10894, 96
      %v10939 = vpop.permute.xlu0 %10938
      %10940 = vrot.lane.b32.xlu0 %v10898, 96
      %v10941 = vpop.permute.xlu0 %10940
      %10942 = vrot.lane.b32.xlu0 %v10902, 96
      %v10943 = vpop.permute.xlu0 %10942
      %10944 = vrot.lane.b32.xlu0 %v10906, 96
      %v10945 = vpop.permute.xlu0 %10944
      %10946 = vrot.lane.b32.xlu0 %v10907, 96
      %v10947 = vpop.permute.xlu0 %10946
      %v10948 = vrot.slane %v10110, 3
      %v10949 = vrot.slane %v10119, 3
      %v10950 = vsel %vm1199, %v10948, %v10949
      %v10951 = vrot.slane %v10128, 3
      %v10952 = vsel %vm1199, %v10949, %v10951
      %v10953 = vrot.slane %v10137, 3
      %v10954 = vsel %vm1199, %v10951, %v10953
      %v10955 = vrot.slane %v10146, 3
      %v10956 = vsel %vm1199, %v10953, %v10955
      %v10957 = vrot.slane %v10155, 3
      %v10958 = vsel %vm1199, %v10955, %v10957
      %v10959 = vrot.slane %v10164, 3
      %v10960 = vsel %vm1199, %v10957, %v10959
      %v10961 = vrot.slane %v10173, 3
      %v10962 = vsel %vm1199, %v10959, %v10961
      %v10963 = vrot.slane %v10182, 3
      %v10964 = vsel %vm1199, %v10961, %v10963
      %v10965 = vrot.slane %v10191, 3
      %v10966 = vsel %vm1199, %v10963, %v10965
      %v10967 = vrot.slane %v10200, 3
      %v10968 = vsel %vm1199, %v10965, %v10967
      %v10969 = vrot.slane %v10209, 3
      %v10970 = vsel %vm1199, %v10967, %v10969
      %v10971 = vrot.slane %v10218, 3
      %v10972 = vsel %vm1199, %v10969, %v10971
      %v10973 = vrot.slane %v10227, 3
      %v10974 = vsel %vm1199, %v10971, %v10973
      %v10975 = vrot.slane %v10236, 3
      %v10976 = vsel %vm1199, %v10973, %v10975
      %v10977 = vrot.slane %v10245, 3
      %v10978 = vsel %vm1199, %v10975, %v10977
      %v10979 = vrot.slane %v10254, 3
      %v10980 = vsel %vm1199, %v10977, %v10979
      %v10981 = vrot.slane %v10263, 3
      %v10982 = vsel %vm1199, %v10979, %v10981
      %v10983 = vrot.slane %v10272, 3
      %v10984 = vsel %vm1199, %v10981, %v10983
      %v10985 = vrot.slane %v10285, 3
      %v10986 = vsel %vm1199, %v10983, %v10985
      %v10987 = vsel %vm1199, %v10985, %v2168
      %v10989 = vsel %vm768, 0, %v10447
      %v10991 = vsel %vm768, %v10284, %v10449
      %v10993 = vsel %vm768, %v10110, %v10451
      %v10995 = vsel %vm768, %v10119, %v10453
      %v10997 = vsel %vm768, %v10128, %v10455
      %v10999 = vsel %vm768, %v10137, %v10457
      %v11001 = vsel %vm768, %v10146, %v10459
      %v11003 = vsel %vm768, %v10155, %v10461
      %v11005 = vsel %vm768, %v10164, %v10463
      %v11007 = vsel %vm768, %v10173, %v10465
      %v11009 = vsel %vm768, %v10182, %v10467
      %v11011 = vsel %vm768, %v10191, %v10469
      %v11013 = vsel %vm768, %v10200, %v10471
      %v11015 = vsel %vm768, %v10209, %v10473
      %v11017 = vsel %vm768, %v10218, %v10475
      %v11019 = vsel %vm768, %v10227, %v10477
      %v11021 = vsel %vm768, %v10236, %v10479
      %v11023 = vsel %vm768, %v10245, %v10481
      %v11025 = vsel %vm768, %v10254, %v10483
      %v11027 = vsel %vm768, %v10263, %v10485
      %v11029 = vsel %vm768, %v10272, %v10487
      %v11031 = vsel %vm774, %v10989, %v10530
      %v11033 = vsel %vm774, %v10991, %v10532
      %v11035 = vsel %vm774, %v10993, %v10534
      %v11037 = vsel %vm774, %v10995, %v10536
      %v11039 = vsel %vm774, %v10997, %v10538
      %v11041 = vsel %vm774, %v10999, %v10540
      %v11043 = vsel %vm774, %v11001, %v10542
      %v11045 = vsel %vm774, %v11003, %v10544
      %v11047 = vsel %vm774, %v11005, %v10546
      %v11049 = vsel %vm774, %v11007, %v10548
      %v11051 = vsel %vm774, %v11009, %v10550
      %v11053 = vsel %vm774, %v11011, %v10552
      %v11055 = vsel %vm774, %v11013, %v10554
      %v11057 = vsel %vm774, %v11015, %v10556
      %v11059 = vsel %vm774, %v11017, %v10558
      %v11061 = vsel %vm774, %v11019, %v10560
      %v11063 = vsel %vm774, %v11021, %v10562
      %v11065 = vsel %vm774, %v11023, %v10564
      %v11067 = vsel %vm774, %v11025, %v10566
      %v11069 = vsel %vm774, %v11027, %v10568
      %v11071 = vsel %vm774, %v11029, %v10570
      %v11073 = vsel %vm780, %v11031, %v10575
      %v11076 = vsel %vm780, %v11033, %v10577
      %v11079 = vsel %vm780, %v11035, %v10579
      %v11082 = vsel %vm780, %v11037, %v10581
      %v11085 = vsel %vm780, %v11039, %v10583
      %v11088 = vsel %vm780, %v11041, %v10585
      %v11091 = vsel %vm780, %v11043, %v10587
      %v11094 = vsel %vm780, %v11045, %v10589
      %v11097 = vsel %vm780, %v11047, %v10591
      %v11100 = vsel %vm780, %v11049, %v10593
      %v11103 = vsel %vm780, %v11051, %v10595
      %v11106 = vsel %vm780, %v11053, %v10597
      %v11109 = vsel %vm780, %v11055, %v10599
      %v11112 = vsel %vm780, %v11057, %v10601
      %v11115 = vsel %vm780, %v11059, %v10603
      %v11118 = vsel %vm780, %v11061, %v10605
      %v11121 = vsel %vm780, %v11063, %v10607
      %v11124 = vsel %vm780, %v11065, %v10609
      %v11127 = vsel %vm780, %v11067, %v10611
      %v11130 = vsel %vm780, %v11069, %v10613
      %v11133 = vsel %vm780, %v11071, %v10615
      %v11137 = vsel %vm768, %v10622, %v10746
      %v11140 = vsel %vm768, %v10626, %v10748
      %v11143 = vsel %vm768, %v10630, %v10750
      %v11146 = vsel %vm768, %v10634, %v10752
      %v11149 = vsel %vm768, %v10638, %v10754
      %v11152 = vsel %vm768, %v10642, %v10756
      %v11155 = vsel %vm768, %v10646, %v10758
      %v11158 = vsel %vm768, %v10650, %v10760
      %v11161 = vsel %vm768, %v10654, %v10762
      %v11164 = vsel %vm768, %v10658, %v10764
      %v11167 = vsel %vm768, %v10662, %v10766
      %v11170 = vsel %vm768, %v10666, %v10768
      %v11173 = vsel %vm768, %v10670, %v10770
      %v11176 = vsel %vm768, %v10674, %v10772
      %v11179 = vsel %vm768, %v10678, %v10774
      %v11182 = vsel %vm768, %v10682, %v10776
      %v11185 = vsel %vm768, %v10686, %v10778
      %v11188 = vsel %vm768, %v10690, %v10780
      %v11191 = vsel %vm768, %v10694, %v10782
      %v11194 = vsel %vm768, %v10703, %v10784
      %v11197 = vsel %vm768, %v10702, %v10786
      %v11199 = vsel %vm774, %v11137, %v10789
      %v11201 = vsel %vm774, %v11140, %v10791
      %v11203 = vsel %vm774, %v11143, %v10793
      %v11205 = vsel %vm774, %v11146, %v10795
      %v11207 = vsel %vm774, %v11149, %v10797
      %v11209 = vsel %vm774, %v11152, %v10799
      %v11211 = vsel %vm774, %v11155, %v10801
      %v11213 = vsel %vm774, %v11158, %v10803
      %v11215 = vsel %vm774, %v11161, %v10805
      %v11217 = vsel %vm774, %v11164, %v10807
      %v11219 = vsel %vm774, %v11167, %v10809
      %v11221 = vsel %vm774, %v11170, %v10811
      %v11223 = vsel %vm774, %v11173, %v10813
      %v11225 = vsel %vm774, %v11176, %v10815
      %v11227 = vsel %vm774, %v11179, %v10817
      %v11229 = vsel %vm774, %v11182, %v10819
      %v11231 = vsel %vm774, %v11185, %v10821
      %v11233 = vsel %vm774, %v11188, %v10823
      %v11235 = vsel %vm774, %v11191, %v10825
      %v11237 = vsel %vm774, %v11194, %v10827
      %v11238 = vsel %vm774, %v11197, %v2113
      %v11240 = vsel %vm780, %v11199, %v10909
      %v11243 = vsel %vm780, %v11201, %v10911
      %v11246 = vsel %vm780, %v11203, %v10913
      %v11249 = vsel %vm780, %v11205, %v10915
      %v11252 = vsel %vm780, %v11207, %v10917
      %v11255 = vsel %vm780, %v11209, %v10919
      %v11258 = vsel %vm780, %v11211, %v10921
      %v11261 = vsel %vm780, %v11213, %v10923
      %v11264 = vsel %vm780, %v11215, %v10925
      %v11267 = vsel %vm780, %v11217, %v10927
      %v11270 = vsel %vm780, %v11219, %v10929
      %v11273 = vsel %vm780, %v11221, %v10931
      %v11276 = vsel %vm780, %v11223, %v10933
      %v11279 = vsel %vm780, %v11225, %v10935
      %v11282 = vsel %vm780, %v11227, %v10937
      %v11285 = vsel %vm780, %v11229, %v10939
      %v11288 = vsel %vm780, %v11231, %v10941
      %v11291 = vsel %vm780, %v11233, %v10943
      %v11294 = vsel %vm780, %v11235, %v10945
      %v11297 = vsel %vm780, %v11237, %v10947
      %v11299 = vsel %vm780, %v11238, %v2156
      %v11301 = vld [vmem:[%s21] sm:$0xf]
      %v11302 = vld [vmem:[%s21 + $0x4] sm:$0xf]
      %v11303 = vld [vmem:[%s21 + $0x8] sm:$0xf]
      %v11304 = vld [vmem:[%s21 + $0xc] sm:$0xf]
      %v11305 = vld [vmem:[%s21 + $0x10] sm:$0xf]
      %v11306 = vld [vmem:[%s21 + $0x14] sm:$0xf]
      %v11307 = vld [vmem:[%s21 + $0x18] sm:$0xf]
      %v11308 = vld [vmem:[%s21 + $0x1c] sm:$0xf]
      %v11309 = vld [vmem:[%s21 + $0x20] sm:$0xf]
      %v11310 = vld [vmem:[%s21 + $0x24] sm:$0xf]
      %v11311 = vld [vmem:[%s21 + $0x28] sm:$0xf]
      %v11312 = vld [vmem:[%s21 + $0x2c] sm:$0xf]
      %v11313 = vld [vmem:[%s21 + $0x30] sm:$0xf]
      %v11314 = vld [vmem:[%s21 + $0x34] sm:$0xf]
      %v11315 = vld [vmem:[%s21 + $0x38] sm:$0xf]
      %v11316 = vld [vmem:[%s21 + $0x3c] sm:$0xf]
      %v11317 = vld [vmem:[%s21 + $0x40] sm:$0xf]
      %v11318 = vld [vmem:[%s21 + $0x44] sm:$0xf]
      %v11319 = vld [vmem:[%s21 + $0x48] sm:$0xf]
      %v11320 = vld [vmem:[%s21 + $0x4c] sm:$0xf]
      %v11321 = vld [vmem:[%s21 + $0x50] sm:$0xf]
      %v11322 = vld [vmem:[%s21 + $0x54] sm:$0xf]
      %v11323 = vld [vmem:[%s21 + $0x58] sm:$0xf]
      %v11324 = vld [vmem:[%s21 + $0x5c] sm:$0xf]
      %v11325 = vld [vmem:[%s21 + $0x60] sm:$0xf]
      %v11326 = vld [vmem:[%s21 + $0x64] sm:$0xf]
      %v11327 = vld [vmem:[%s21 + $0x68] sm:$0xf]
      %v11328 = vld [vmem:[%s21 + $0x6c] sm:$0xf]
      %v11329 = vld [vmem:[%s21 + $0x70] sm:$0xf]
      %v11330 = vld [vmem:[%s21 + $0x74] sm:$0xf]
      %v11331 = vld [vmem:[%s21 + $0x78] sm:$0xf]
      %v11332 = vld [vmem:[%s21 + $0x7c] sm:$0xf]
      %v11333 = vld [vmem:[%s21 + $0x80] sm:$0xf]
      %v11334 = vld [vmem:[%s21 + $0x84] sm:$0xf]
      %v11335 = vld [vmem:[%s21 + $0x88] sm:$0xf]
      %v11336 = vld [vmem:[%s21 + $0x8c] sm:$0xf]
      %v11337 = vld [vmem:[%s22] sm:$0x1]
      %v11339 = vlaneseq
      %v11340 = vshrl.u32 %v11339, 7
      %v11341 = vsub.s32 0, %v11340
      %v11342 = vrot.slane %v11337, %v11341
      %v11380 = vunpack.c.l.b16 %v11301
      %v11381 = vunpack.c.l.b16 %v11302
      %v11382 = vunpack.c.l.b16 %v11303
      %v11383 = vunpack.c.l.b16 %v11304
      %v11384 = vunpack.c.l.b16 %v11305
      %v11385 = vunpack.c.l.b16 %v11306
      %v11386 = vunpack.c.l.b16 %v11307
      %v11387 = vunpack.c.l.b16 %v11308
      %v11388 = vunpack.c.l.b16 %v11309
      %v11389 = vunpack.c.l.b16 %v11310
      %v11390 = vunpack.c.l.b16 %v11311
      %v11391 = vunpack.c.l.b16 %v11312
      %v11392 = vunpack.c.l.b16 %v11313
      %v11393 = vunpack.c.l.b16 %v11314
      %v11394 = vunpack.c.l.b16 %v11315
      %v11395 = vunpack.c.l.b16 %v11316
      %v11396 = vunpack.c.l.b16 %v11317
      %v11397 = vunpack.c.l.b16 %v11318
      %v11398 = vunpack.c.l.b16 %v11319
      %v11399 = vunpack.c.l.b16 %v11320
      %v11400 = vunpack.c.l.b16 %v11321
      %v11401 = vunpack.c.l.b16 %v11322
      %v11402 = vunpack.c.l.b16 %v11323
      %v11403 = vunpack.c.l.b16 %v11324
      %v11404 = vunpack.c.l.b16 %v11325
      %v11405 = vunpack.c.l.b16 %v11326
      %v11406 = vunpack.c.l.b16 %v11327
      %v11407 = vunpack.c.l.b16 %v11328
      %v11408 = vunpack.c.l.b16 %v11329
      %v11409 = vunpack.c.l.b16 %v11330
      %v11410 = vunpack.c.l.b16 %v11331
      %v11411 = vunpack.c.l.b16 %v11332
      %v11412 = vunpack.c.l.b16 %v11333
      %v11413 = vunpack.c.l.b16 %v11334
      %v11414 = vunpack.c.l.b16 %v11335
      %v11415 = vunpack.c.l.b16 %v11336
      %v11416 = vpack.c.b16 %v11381, %v11380
      %v11417 = vpack.c.b16 %v11383, %v11382
      %v11418 = vpack.c.b16 %v11385, %v11384
      %v11419 = vpack.c.b16 %v11387, %v11386
      %v11420 = vpack.c.b16 %v11389, %v11388
      %v11421 = vpack.c.b16 %v11391, %v11390
      %v11422 = vpack.c.b16 %v11393, %v11392
      %v11423 = vpack.c.b16 %v11395, %v11394
      %v11424 = vpack.c.b16 %v11397, %v11396
      %v11425 = vpack.c.b16 %v11399, %v11398
      %v11426 = vpack.c.b16 %v11401, %v11400
      %v11427 = vpack.c.b16 %v11403, %v11402
      %v11428 = vpack.c.b16 %v11405, %v11404
      %v11429 = vpack.c.b16 %v11407, %v11406
      %v11430 = vpack.c.b16 %v11409, %v11408
      %v11431 = vpack.c.b16 %v11411, %v11410
      %v11432 = vpack.c.b16 %v11413, %v11412
      %v11433 = vpack.c.b16 %v11415, %v11414
      %v11453 = vsel %vm768, %v10950, 0
      %v11456 = vsel %vm768, %v10952, 0
      %v11459 = vsel %vm768, %v10954, 0
      %v11462 = vsel %vm768, %v10956, 0
      %v11465 = vsel %vm768, %v10958, 0
      %v11468 = vsel %vm768, %v10960, 0
      %v11471 = vsel %vm768, %v10962, 0
      %v11474 = vsel %vm768, %v10964, 0
      %v11477 = vsel %vm768, %v10966, 0
      %v11480 = vsel %vm768, %v10968, 0
      %v11483 = vsel %vm768, %v10970, 0
      %v11486 = vsel %vm768, %v10972, 0
      %v11489 = vsel %vm768, %v10974, 0
      %v11492 = vsel %vm768, %v10976, 0
      %v11495 = vsel %vm768, %v10978, 0
      %v11498 = vsel %vm768, %v10980, 0
      %v11501 = vsel %vm768, %v10982, 0
      %v11504 = vsel %vm768, %v10984, 0
      %v11507 = vsel %vm768, %v10986, 0
      %v11510 = vsel %vm768, %v10987, 0
      %11512 = vmatprep.subr.bf16.mxu0 0
      %11513 = vmatpush1.bf16.msra.mxu0 %v11423
      %11514 = vmatprep.subr.bf16.mxu0 0
      %11515 = vmatpush1.bf16.msra.mxu0 %v11422
      %11516 = vmatprep.subr.bf16.mxu0 0
      %11517 = vmatpush1.bf16.msra.mxu0 %v11421
      %11518 = vmatprep.subr.bf16.mxu0 0
      %11519 = vmatpush1.bf16.msra.mxu0 %v11420
      %11520 = vmatprep.subr.bf16.mxu0 0
      %11521 = vmatpush1.bf16.msra.mxu0 %v11419
      %11522 = vmatprep.subr.bf16.mxu0 0
      %11523 = vmatpush1.bf16.msra.mxu0 %v11418
      %11524 = vmatprep.subr.bf16.mxu0 0
      %11525 = vmatpush1.bf16.msra.mxu0 %v11417
      %11526 = vmatprep.subr.bf16.mxu0 0
      %11527 = vmatpush1.bf16.msra.mxu0 %v11416
      %11528 = vmatprep.subr.bf16.mxu0 0
      %11529 = vmatpush2.bf16.msra.mxu0 %v11431
      %11530 = vmatprep.subr.bf16.mxu0 0
      %11531 = vmatpush2.bf16.msra.mxu0 %v11430
      %11532 = vmatprep.subr.bf16.mxu0 0
      %11533 = vmatpush2.bf16.msra.mxu0 %v11429
      %11534 = vmatprep.subr.bf16.mxu0 0
      %11535 = vmatpush2.bf16.msra.mxu0 %v11428
      %11536 = vmatprep.subr.bf16.mxu0 0
      %11537 = vmatpush2.bf16.msra.mxu0 %v11427
      %11538 = vmatprep.subr.bf16.mxu0 0
      %11539 = vmatpush2.bf16.msra.mxu0 %v11426
      %11540 = vmatprep.subr.bf16.mxu0 0
      %11541 = vmatpush2.bf16.msra.mxu0 %v11425
      %11542 = vmatprep.subr.bf16.mxu0 0
      %11543 = vmatpush2.bf16.msra.mxu0 %v11424
      %11544 = vmatprep.mubr.bf16.mxu0 %v11240
      %11545 = vmatmul.mubr.bf16.gmra.mxu0 %v11073
      %v11546 = vpop.f32.mrf.mxu0
      %v11547 = vpop.f32.mrf.mxu0
      %v11548 = vpop.f32.mrf.mxu0
      %v11549 = vpop.f32.mrf.mxu0
      %11550 = vmatprep.mubr.bf16.mxu0 %v11243
      %11551 = vmatmul.mubr.bf16.gmra.mxu0 %v11076
      %v11552 = vpop.f32.mrf.mxu0
      %v11553 = vadd.f32 %v11342, %v11552
      %v11554 = vpop.f32.mrf.mxu0
      %v11555 = vpop.f32.mrf.mxu0
      %v11556 = vadd.f32 %v11342, %v11555
      %v11557 = vpop.f32.mrf.mxu0
      %11558 = vmatprep.mubr.bf16.mxu0 %v11246
      %11559 = vmatmul.mubr.bf16.gmra.mxu0 %v11079
      %v11560 = vpop.f32.mrf.mxu0
      %v11561 = vadd.f32 %v11342, %v11560
      %v11562 = vpop.f32.mrf.mxu0
      %v11563 = vpop.f32.mrf.mxu0
      %v11564 = vadd.f32 %v11342, %v11563
      %v11565 = vpop.f32.mrf.mxu0
      %11566 = vmatprep.mubr.bf16.mxu0 %v11249
      %11567 = vmatmul.mubr.bf16.gmra.mxu0 %v11082
      %v11568 = vpop.f32.mrf.mxu0
      %v11569 = vadd.f32 %v11342, %v11568
      %v11570 = vpop.f32.mrf.mxu0
      %v11571 = vpop.f32.mrf.mxu0
      %v11572 = vadd.f32 %v11342, %v11571
      %v11573 = vpop.f32.mrf.mxu0
      %11574 = vmatprep.mubr.bf16.mxu0 %v11252
      %11575 = vmatmul.mubr.bf16.gmra.mxu0 %v11085
      %v11576 = vpop.f32.mrf.mxu0
      %v11577 = vadd.f32 %v11342, %v11576
      %v11578 = vpop.f32.mrf.mxu0
      %v11579 = vpop.f32.mrf.mxu0
      %v11580 = vadd.f32 %v11342, %v11579
      %v11581 = vpop.f32.mrf.mxu0
      %11582 = vmatprep.mubr.bf16.mxu0 %v11255
      %11583 = vmatmul.mubr.bf16.gmra.mxu0 %v11088
      %v11584 = vpop.f32.mrf.mxu0
      %v11585 = vadd.f32 %v11342, %v11584
      %v11586 = vpop.f32.mrf.mxu0
      %v11587 = vpop.f32.mrf.mxu0
      %v11588 = vadd.f32 %v11342, %v11587
      %v11589 = vpop.f32.mrf.mxu0
      %11590 = vmatprep.mubr.bf16.mxu0 %v11258
      %11591 = vmatmul.mubr.bf16.gmra.mxu0 %v11091
      %v11592 = vpop.f32.mrf.mxu0
      %v11593 = vadd.f32 %v11342, %v11592
      %v11594 = vpop.f32.mrf.mxu0
      %v11595 = vpop.f32.mrf.mxu0
      %v11596 = vadd.f32 %v11342, %v11595
      %v11597 = vpop.f32.mrf.mxu0
      %11598 = vmatprep.mubr.bf16.mxu0 %v11261
      %11599 = vmatmul.mubr.bf16.gmra.mxu0 %v11094
      %v11600 = vpop.f32.mrf.mxu0
      %v11601 = vadd.f32 %v11342, %v11600
      %v11602 = vpop.f32.mrf.mxu0
      %v11603 = vpop.f32.mrf.mxu0
      %v11604 = vadd.f32 %v11342, %v11603
      %v11605 = vpop.f32.mrf.mxu0
      %11606 = vmatprep.mubr.bf16.mxu0 %v11264
      %11607 = vmatmul.mubr.bf16.gmra.mxu0 %v11097
      %v11608 = vpop.f32.mrf.mxu0
      %v11609 = vadd.f32 %v11342, %v11608
      %v11610 = vpop.f32.mrf.mxu0
      %v11611 = vpop.f32.mrf.mxu0
      %v11612 = vadd.f32 %v11342, %v11611
      %v11613 = vpop.f32.mrf.mxu0
      %11614 = vmatprep.mubr.bf16.mxu0 %v11267
      %11615 = vmatmul.mubr.bf16.gmra.mxu0 %v11100
      %v11616 = vpop.f32.mrf.mxu0
      %v11617 = vadd.f32 %v11342, %v11616
      %v11618 = vpop.f32.mrf.mxu0
      %v11619 = vpop.f32.mrf.mxu0
      %v11620 = vadd.f32 %v11342, %v11619
      %v11621 = vpop.f32.mrf.mxu0
      %11622 = vmatprep.mubr.bf16.mxu0 %v11270
      %11623 = vmatmul.mubr.bf16.gmra.mxu0 %v11103
      %v11624 = vpop.f32.mrf.mxu0
      %v11625 = vadd.f32 %v11342, %v11624
      %v11626 = vpop.f32.mrf.mxu0
      %v11627 = vpop.f32.mrf.mxu0
      %v11628 = vadd.f32 %v11342, %v11627
      %v11629 = vpop.f32.mrf.mxu0
      %11630 = vmatprep.mubr.bf16.mxu0 %v11273
      %11631 = vmatmul.mubr.bf16.gmra.mxu0 %v11106
      %v11632 = vpop.f32.mrf.mxu0
      %v11633 = vadd.f32 %v11342, %v11632
      %v11634 = vpop.f32.mrf.mxu0
      %v11635 = vpop.f32.mrf.mxu0
      %v11636 = vadd.f32 %v11342, %v11635
      %v11637 = vpop.f32.mrf.mxu0
      %11638 = vmatprep.mubr.bf16.mxu0 %v11276
      %11639 = vmatmul.mubr.bf16.gmra.mxu0 %v11109
      %v11640 = vpop.f32.mrf.mxu0
      %v11641 = vadd.f32 %v11342, %v11640
      %v11642 = vpop.f32.mrf.mxu0
      %v11643 = vpop.f32.mrf.mxu0
      %v11644 = vadd.f32 %v11342, %v11643
      %v11645 = vpop.f32.mrf.mxu0
      %11646 = vmatprep.mubr.bf16.mxu0 %v11279
      %11647 = vmatmul.mubr.bf16.gmra.mxu0 %v11112
      %v11648 = vpop.f32.mrf.mxu0
      %v11649 = vadd.f32 %v11342, %v11648
      %v11650 = vpop.f32.mrf.mxu0
      %v11651 = vpop.f32.mrf.mxu0
      %v11652 = vadd.f32 %v11342, %v11651
      %v11653 = vpop.f32.mrf.mxu0
      %11654 = vmatprep.mubr.bf16.mxu0 %v11282
      %11655 = vmatmul.mubr.bf16.gmra.mxu0 %v11115
      %v11656 = vpop.f32.mrf.mxu0
      %v11657 = vadd.f32 %v11342, %v11656
      %v11658 = vpop.f32.mrf.mxu0
      %v11659 = vpop.f32.mrf.mxu0
      %v11660 = vadd.f32 %v11342, %v11659
      %v11661 = vpop.f32.mrf.mxu0
      %11662 = vmatprep.mubr.bf16.mxu0 %v11285
      %11663 = vmatmul.mubr.bf16.gmra.mxu0 %v11118
      %v11664 = vpop.f32.mrf.mxu0
      %v11665 = vadd.f32 %v11342, %v11664
      %v11666 = vpop.f32.mrf.mxu0
      %v11667 = vpop.f32.mrf.mxu0
      %v11668 = vadd.f32 %v11342, %v11667
      %v11669 = vpop.f32.mrf.mxu0
      %11670 = vmatprep.mubr.bf16.mxu0 %v11288
      %11671 = vmatmul.mubr.bf16.gmra.mxu0 %v11121
      %v11672 = vpop.f32.mrf.mxu0
      %v11673 = vadd.f32 %v11342, %v11672
      %v11674 = vpop.f32.mrf.mxu0
      %v11675 = vpop.f32.mrf.mxu0
      %v11676 = vadd.f32 %v11342, %v11675
      %v11677 = vpop.f32.mrf.mxu0
      %11678 = vmatprep.mubr.bf16.mxu0 %v11291
      %11679 = vmatmul.mubr.bf16.gmra.mxu0 %v11124
      %v11680 = vpop.f32.mrf.mxu0
      %v11681 = vadd.f32 %v11342, %v11680
      %v11682 = vpop.f32.mrf.mxu0
      %v11683 = vpop.f32.mrf.mxu0
      %v11684 = vadd.f32 %v11342, %v11683
      %v11685 = vpop.f32.mrf.mxu0
      %11686 = vmatprep.mubr.bf16.mxu0 %v11294
      %11687 = vmatmul.mubr.bf16.gmra.mxu0 %v11127
      %v11688 = vpop.f32.mrf.mxu0
      %v11689 = vadd.f32 %v11342, %v11688
      %v11690 = vpop.f32.mrf.mxu0
      %v11691 = vpop.f32.mrf.mxu0
      %v11692 = vadd.f32 %v11342, %v11691
      %v11693 = vpop.f32.mrf.mxu0
      %11694 = vmatprep.mubr.bf16.mxu0 %v11297
      %11695 = vmatmul.mubr.bf16.gmra.mxu0 %v11130
      %v11696 = vpop.f32.mrf.mxu0
      %v11697 = vadd.f32 %v11342, %v11696
      %v11698 = vpop.f32.mrf.mxu0
      %v11699 = vpop.f32.mrf.mxu0
      %v11700 = vpop.f32.mrf.mxu0
      %11701 = vmatprep.mubr.bf16.mxu0 %v11299
      %11702 = vmatmul.mubr.bf16.gmra.mxu0 %v11133
      %v11703 = vpop.f32.mrf.mxu0
      %v11704 = vpop.f32.mrf.mxu0
      %v11705 = vpop.f32.mrf.mxu0
      %v11706 = vpop.f32.mrf.mxu0
      %11707 = vdwg.mxu0
      %11708 = vmatprep.subr.bf16.mxu0 0
      %11709 = vmatpush1.bf16.msra.mxu0 0
      %11710 = vmatprep.subr.bf16.mxu0 0
      %11711 = vmatpush1.bf16.msra.mxu0 0
      %11712 = vmatprep.subr.bf16.mxu0 0
      %11713 = vmatpush1.bf16.msra.mxu0 0
      %11714 = vmatprep.subr.bf16.mxu0 0
      %11715 = vmatpush1.bf16.msra.mxu0 0
      %11716 = vmatprep.subr.bf16.mxu0 0
      %11717 = vmatpush1.bf16.msra.mxu0 0
      %11718 = vmatprep.subr.bf16.mxu0 0
      %11719 = vmatpush1.bf16.msra.mxu0 0
      %11720 = vmatprep.subr.bf16.mxu0 0
      %11721 = vmatpush1.bf16.msra.mxu0 %v11433
      %11722 = vmatprep.subr.bf16.mxu0 0
      %11723 = vmatpush1.bf16.msra.mxu0 %v11432
      %11724 = vmatprep.subr.bf16.mxu0 0
      %11725 = vmatpush2.bf16.msra.mxu0 0
      %11726 = vmatprep.subr.bf16.mxu0 0
      %11727 = vmatpush2.bf16.msra.mxu0 0
      %11728 = vmatprep.subr.bf16.mxu0 0
      %11729 = vmatpush2.bf16.msra.mxu0 0
      %11730 = vmatprep.subr.bf16.mxu0 0
      %11731 = vmatpush2.bf16.msra.mxu0 0
      %11732 = vmatprep.subr.bf16.mxu0 0
      %11733 = vmatpush2.bf16.msra.mxu0 0
      %11734 = vmatprep.subr.bf16.mxu0 0
      %11735 = vmatpush2.bf16.msra.mxu0 0
      %11736 = vmatprep.subr.bf16.mxu0 0
      %11737 = vmatpush2.bf16.msra.mxu0 0
      %11738 = vmatprep.subr.bf16.mxu0 0
      %11739 = vmatpush2.bf16.msra.mxu0 0
      %11740 = vmatprep.mubr.bf16.mxu0 0
      %11741 = vmatmul.mubr.bf16.gmra.mxu0 %v11453
      %v11742 = vpop.f32.mrf.mxu0
      %v11743 = vpop.f32.mrf.mxu0
      %v11744 = vpop.f32.mrf.mxu0
      %v11745 = vpop.f32.mrf.mxu0
      %11746 = vmatprep.mubr.bf16.mxu0 0
      %11747 = vmatmul.mubr.bf16.gmra.mxu0 %v11456
      %v11748 = vpop.f32.mrf.mxu0
      %v11749 = vadd.f32 %v11553, %v11748
      %v11750 = vpop.f32.mrf.mxu0
      %v11751 = vpop.f32.mrf.mxu0
      %v11752 = vadd.f32 %v11556, %v11751
      %v11753 = vpop.f32.mrf.mxu0
      %11754 = vmatprep.mubr.bf16.mxu0 0
      %11755 = vmatmul.mubr.bf16.gmra.mxu0 %v11459
      %v11756 = vpop.f32.mrf.mxu0
      %v11757 = vadd.f32 %v11561, %v11756
      %v11758 = vpop.f32.mrf.mxu0
      %v11759 = vpop.f32.mrf.mxu0
      %v11760 = vadd.f32 %v11564, %v11759
      %v11761 = vpop.f32.mrf.mxu0
      %11762 = vmatprep.mubr.bf16.mxu0 0
      %11763 = vmatmul.mubr.bf16.gmra.mxu0 %v11462
      %v11764 = vpop.f32.mrf.mxu0
      %v11765 = vadd.f32 %v11569, %v11764
      %v11766 = vpop.f32.mrf.mxu0
      %v11767 = vpop.f32.mrf.mxu0
      %v11768 = vadd.f32 %v11572, %v11767
      %v11769 = vpop.f32.mrf.mxu0
      %11770 = vmatprep.mubr.bf16.mxu0 0
      %11771 = vmatmul.mubr.bf16.gmra.mxu0 %v11465
      %v11772 = vpop.f32.mrf.mxu0
      %v11773 = vadd.f32 %v11577, %v11772
      %v11774 = vpop.f32.mrf.mxu0
      %v11775 = vpop.f32.mrf.mxu0
      %v11776 = vadd.f32 %v11580, %v11775
      %v11777 = vpop.f32.mrf.mxu0
      %11778 = vmatprep.mubr.bf16.mxu0 0
      %11779 = vmatmul.mubr.bf16.gmra.mxu0 %v11468
      %v11780 = vpop.f32.mrf.mxu0
      %v11781 = vadd.f32 %v11585, %v11780
      %v11782 = vpop.f32.mrf.mxu0
      %v11783 = vpop.f32.mrf.mxu0
      %v11784 = vadd.f32 %v11588, %v11783
      %v11785 = vpop.f32.mrf.mxu0
      %11786 = vmatprep.mubr.bf16.mxu0 0
      %11787 = vmatmul.mubr.bf16.gmra.mxu0 %v11471
      %v11788 = vpop.f32.mrf.mxu0
      %v11789 = vadd.f32 %v11593, %v11788
      %v11790 = vpop.f32.mrf.mxu0
      %v11791 = vpop.f32.mrf.mxu0
      %v11792 = vadd.f32 %v11596, %v11791
      %v11793 = vpop.f32.mrf.mxu0
      %11794 = vmatprep.mubr.bf16.mxu0 0
      %11795 = vmatmul.mubr.bf16.gmra.mxu0 %v11474
      %v11796 = vpop.f32.mrf.mxu0
      %v11797 = vadd.f32 %v11601, %v11796
      %v11798 = vpop.f32.mrf.mxu0
      %v11799 = vpop.f32.mrf.mxu0
      %v11800 = vadd.f32 %v11604, %v11799
      %v11801 = vpop.f32.mrf.mxu0
      %11802 = vmatprep.mubr.bf16.mxu0 0
      %11803 = vmatmul.mubr.bf16.gmra.mxu0 %v11477
      %v11804 = vpop.f32.mrf.mxu0
      %v11805 = vadd.f32 %v11609, %v11804
      %v11806 = vpop.f32.mrf.mxu0
      %v11807 = vpop.f32.mrf.mxu0
      %v11808 = vadd.f32 %v11612, %v11807
      %v11809 = vpop.f32.mrf.mxu0
      %11810 = vmatprep.mubr.bf16.mxu0 0
      %11811 = vmatmul.mubr.bf16.gmra.mxu0 %v11480
      %v11812 = vpop.f32.mrf.mxu0
      %v11813 = vadd.f32 %v11617, %v11812
      %v11814 = vpop.f32.mrf.mxu0
      %v11815 = vpop.f32.mrf.mxu0
      %v11816 = vadd.f32 %v11620, %v11815
      %v11817 = vpop.f32.mrf.mxu0
      %11818 = vmatprep.mubr.bf16.mxu0 0
      %11819 = vmatmul.mubr.bf16.gmra.mxu0 %v11483
      %v11820 = vpop.f32.mrf.mxu0
      %v11821 = vadd.f32 %v11625, %v11820
      %v11822 = vpop.f32.mrf.mxu0
      %v11823 = vpop.f32.mrf.mxu0
      %v11824 = vadd.f32 %v11628, %v11823
      %v11825 = vpop.f32.mrf.mxu0
      %11826 = vmatprep.mubr.bf16.mxu0 0
      %11827 = vmatmul.mubr.bf16.gmra.mxu0 %v11486
      %v11828 = vpop.f32.mrf.mxu0
      %v11829 = vadd.f32 %v11633, %v11828
      %v11830 = vpop.f32.mrf.mxu0
      %v11831 = vpop.f32.mrf.mxu0
      %v11832 = vadd.f32 %v11636, %v11831
      %v11833 = vpop.f32.mrf.mxu0
      %11834 = vmatprep.mubr.bf16.mxu0 0
      %11835 = vmatmul.mubr.bf16.gmra.mxu0 %v11489
      %v11836 = vpop.f32.mrf.mxu0
      %v11837 = vadd.f32 %v11641, %v11836
      %v11838 = vpop.f32.mrf.mxu0
      %v11839 = vpop.f32.mrf.mxu0
      %v11840 = vadd.f32 %v11644, %v11839
      %v11841 = vpop.f32.mrf.mxu0
      %11842 = vmatprep.mubr.bf16.mxu0 0
      %11843 = vmatmul.mubr.bf16.gmra.mxu0 %v11492
      %v11844 = vpop.f32.mrf.mxu0
      %v11845 = vadd.f32 %v11649, %v11844
      %v11846 = vpop.f32.mrf.mxu0
      %v11847 = vpop.f32.mrf.mxu0
      %v11848 = vadd.f32 %v11652, %v11847
      %v11849 = vpop.f32.mrf.mxu0
      %11850 = vmatprep.mubr.bf16.mxu0 0
      %11851 = vmatmul.mubr.bf16.gmra.mxu0 %v11495
      %v11852 = vpop.f32.mrf.mxu0
      %v11853 = vadd.f32 %v11657, %v11852
      %v11854 = vpop.f32.mrf.mxu0
      %v11855 = vpop.f32.mrf.mxu0
      %v11856 = vadd.f32 %v11660, %v11855
      %v11857 = vpop.f32.mrf.mxu0
      %11858 = vmatprep.mubr.bf16.mxu0 0
      %11859 = vmatmul.mubr.bf16.gmra.mxu0 %v11498
      %v11860 = vpop.f32.mrf.mxu0
      %v11861 = vadd.f32 %v11665, %v11860
      %v11862 = vpop.f32.mrf.mxu0
      %v11863 = vpop.f32.mrf.mxu0
      %v11864 = vadd.f32 %v11668, %v11863
      %v11865 = vpop.f32.mrf.mxu0
      %11866 = vmatprep.mubr.bf16.mxu0 0
      %11867 = vmatmul.mubr.bf16.gmra.mxu0 %v11501
      %v11868 = vpop.f32.mrf.mxu0
      %v11869 = vadd.f32 %v11673, %v11868
      %v11870 = vpop.f32.mrf.mxu0
      %v11871 = vpop.f32.mrf.mxu0
      %v11872 = vadd.f32 %v11676, %v11871
      %v11873 = vpop.f32.mrf.mxu0
      %11874 = vmatprep.mubr.bf16.mxu0 0
      %11875 = vmatmul.mubr.bf16.gmra.mxu0 %v11504
      %v11876 = vpop.f32.mrf.mxu0
      %v11877 = vadd.f32 %v11681, %v11876
      %v11878 = vpop.f32.mrf.mxu0
      %v11879 = vpop.f32.mrf.mxu0
      %v11880 = vadd.f32 %v11684, %v11879
      %v11881 = vpop.f32.mrf.mxu0
      %11882 = vmatprep.mubr.bf16.mxu0 0
      %11883 = vmatmul.mubr.bf16.gmra.mxu0 %v11507
      %v11884 = vpop.f32.mrf.mxu0
      %v11885 = vadd.f32 %v11689, %v11884
      %v11886 = vpop.f32.mrf.mxu0
      %v11887 = vpop.f32.mrf.mxu0
      %v11888 = vadd.f32 %v11692, %v11887
      %v11889 = vpop.f32.mrf.mxu0
      %11890 = vmatprep.mubr.bf16.mxu0 0
      %11891 = vmatmul.mubr.bf16.gmra.mxu0 %v11510
      %v11892 = vpop.f32.mrf.mxu0
      %v11893 = vadd.f32 %v11697, %v11892
      %v11894 = vpop.f32.mrf.mxu0
      %v11895 = vpop.f32.mrf.mxu0
      %v11896 = vpop.f32.mrf.mxu0
      %11897 = vmatprep.mubr.bf16.mxu0 0
      %11898 = vmatmul.mubr.bf16.gmra.mxu0 %v2445
      %v11899 = vpop.f32.mrf.mxu0
      %v11900 = vpop.f32.mrf.mxu0
      %v11901 = vpop.f32.mrf.mxu0
      %v11902 = vpop.f32.mrf.mxu0
      %11903 = vdwg.mxu0
      %s11904 = sld [smem:[#allocation2]]
      %v11905 = vstv %s11904
      %v11906 = vmul.f32 %v11905, %v11749
      %v11907 = vmul.f32 %v11905, %v11752
      %v11908 = vmul.f32 %v11905, %v11757
      %v11909 = vmul.f32 %v11905, %v11760
      %v11910 = vmul.f32 %v11905, %v11765
      %v11911 = vmul.f32 %v11905, %v11768
      %v11912 = vmul.f32 %v11905, %v11773
      %v11913 = vmul.f32 %v11905, %v11776
      %v11914 = vmul.f32 %v11905, %v11781
      %v11915 = vmul.f32 %v11905, %v11784
      %v11916 = vmul.f32 %v11905, %v11789
      %v11917 = vmul.f32 %v11905, %v11792
      %v11918 = vmul.f32 %v11905, %v11797
      %v11919 = vmul.f32 %v11905, %v11800
      %v11920 = vmul.f32 %v11905, %v11805
      %v11921 = vmul.f32 %v11905, %v11808
      %v11922 = vmul.f32 %v11905, %v11813
      %v11923 = vmul.f32 %v11905, %v11816
      %v11924 = vmul.f32 %v11905, %v11821
      %v11925 = vmul.f32 %v11905, %v11824
      %v11926 = vmul.f32 %v11905, %v11829
      %v11927 = vmul.f32 %v11905, %v11832
      %v11928 = vmul.f32 %v11905, %v11837
      %v11929 = vmul.f32 %v11905, %v11840
      %v11930 = vmul.f32 %v11905, %v11845
      %v11931 = vmul.f32 %v11905, %v11848
      %v11932 = vmul.f32 %v11905, %v11853
      %v11933 = vmul.f32 %v11905, %v11856
      %v11934 = vmul.f32 %v11905, %v11861
      %v11935 = vmul.f32 %v11905, %v11864
      %v11936 = vmul.f32 %v11905, %v11869
      %v11937 = vmul.f32 %v11905, %v11872
      %v11938 = vmul.f32 %v11905, %v11877
      %v11939 = vmul.f32 %v11905, %v11880
      %v11940 = vmul.f32 %v11905, %v11885
      %v11941 = vmul.f32 %v11905, %v11888
      %v11942 = vmul.f32 %v11905, %v11893
      %s11943 = ssub.f32 1.0, %s11904
      %v11944 = vstv %s11943
      %v11945 = vmul.f32 %v11944, %v9918
      %v11946 = vmul.f32 %v11944, %v9921
      %v11947 = vmul.f32 %v11944, %v9926
      %v11948 = vmul.f32 %v11944, %v9929
      %v11949 = vmul.f32 %v11944, %v9934
      %v11950 = vmul.f32 %v11944, %v9937
      %v11951 = vmul.f32 %v11944, %v9942
      %v11952 = vmul.f32 %v11944, %v9945
      %v11953 = vmul.f32 %v11944, %v9950
      %v11954 = vmul.f32 %v11944, %v9953
      %v11955 = vmul.f32 %v11944, %v9958
      %v11956 = vmul.f32 %v11944, %v9961
      %v11957 = vmul.f32 %v11944, %v9966
      %v11958 = vmul.f32 %v11944, %v9969
      %v11959 = vmul.f32 %v11944, %v9974
      %v11960 = vmul.f32 %v11944, %v9977
      %v11961 = vmul.f32 %v11944, %v9982
      %v11962 = vmul.f32 %v11944, %v9985
      %v11963 = vmul.f32 %v11944, %v9990
      %v11964 = vmul.f32 %v11944, %v9993
      %v11965 = vmul.f32 %v11944, %v9998
      %v11966 = vmul.f32 %v11944, %v10001
      %v11967 = vmul.f32 %v11944, %v10006
      %v11968 = vmul.f32 %v11944, %v10009
      %v11969 = vmul.f32 %v11944, %v10014
      %v11970 = vmul.f32 %v11944, %v10017
      %v11971 = vmul.f32 %v11944, %v10022
      %v11972 = vmul.f32 %v11944, %v10025
      %v11973 = vmul.f32 %v11944, %v10030
      %v11974 = vmul.f32 %v11944, %v10033
      %v11975 = vmul.f32 %v11944, %v10038
      %v11976 = vmul.f32 %v11944, %v10041
      %v11977 = vmul.f32 %v11944, %v10046
      %v11978 = vmul.f32 %v11944, %v10049
      %v11979 = vmul.f32 %v11944, %v10054
      %v11980 = vmul.f32 %v11944, %v10057
      %v11981 = vmul.f32 %v11944, %v10062
      %v11982 = vadd.f32 %v11906, %v11945
      %v11983 = vadd.f32 %v11907, %v11946
      %v11984 = vadd.f32 %v11908, %v11947
      %v11985 = vadd.f32 %v11909, %v11948
      %v11986 = vadd.f32 %v11910, %v11949
      %v11987 = vadd.f32 %v11911, %v11950
      %v11988 = vadd.f32 %v11912, %v11951
      %v11989 = vadd.f32 %v11913, %v11952
      %v11990 = vadd.f32 %v11914, %v11953
      %v11991 = vadd.f32 %v11915, %v11954
      %v11992 = vadd.f32 %v11916, %v11955
      %v11993 = vadd.f32 %v11917, %v11956
      %v11994 = vadd.f32 %v11918, %v11957
      %v11995 = vadd.f32 %v11919, %v11958
      %v11996 = vadd.f32 %v11920, %v11959
      %v11997 = vadd.f32 %v11921, %v11960
      %v11998 = vadd.f32 %v11922, %v11961
      %v11999 = vadd.f32 %v11923, %v11962
      %v12000 = vadd.f32 %v11924, %v11963
      %v12001 = vadd.f32 %v11925, %v11964
      %v12002 = vadd.f32 %v11926, %v11965
      %v12003 = vadd.f32 %v11927, %v11966
      %v12004 = vadd.f32 %v11928, %v11967
      %v12005 = vadd.f32 %v11929, %v11968
      %v12006 = vadd.f32 %v11930, %v11969
      %v12007 = vadd.f32 %v11931, %v11970
      %v12008 = vadd.f32 %v11932, %v11971
      %v12009 = vadd.f32 %v11933, %v11972
      %v12010 = vadd.f32 %v11934, %v11973
      %v12011 = vadd.f32 %v11935, %v11974
      %v12012 = vadd.f32 %v11936, %v11975
      %v12013 = vadd.f32 %v11937, %v11976
      %v12014 = vadd.f32 %v11938, %v11977
      %v12015 = vadd.f32 %v11939, %v11978
      %v12016 = vadd.f32 %v11940, %v11979
      %v12017 = vadd.f32 %v11941, %v11980
      %v12018 = vadd.f32 %v11942, %v11981
      %v12019 = vtanh.pop %v11982
      %v12020 = vtanh.pop %v11983
      %v12021 = vtanh.pop %v11984
      %v12022 = vtanh.pop %v11985
      %v12023 = vtanh.pop %v11986
      %v12024 = vtanh.pop %v11987
      %v12025 = vtanh.pop %v11988
      %v12026 = vtanh.pop %v11989
      %v12027 = vtanh.pop %v11990
      %v12028 = vtanh.pop %v11991
      %v12029 = vtanh.pop %v11992
      %v12030 = vtanh.pop %v11993
      %v12031 = vtanh.pop %v11994
      %v12032 = vtanh.pop %v11995
      %v12033 = vtanh.pop %v11996
      %v12034 = vtanh.pop %v11997
      %v12035 = vtanh.pop %v11998
      %v12036 = vtanh.pop %v11999
      %v12037 = vtanh.pop %v12000
      %v12038 = vtanh.pop %v12001
      %v12039 = vtanh.pop %v12002
      %v12040 = vtanh.pop %v12003
      %v12041 = vtanh.pop %v12004
      %v12042 = vtanh.pop %v12005
      %v12043 = vtanh.pop %v12006
      %v12044 = vtanh.pop %v12007
      %v12045 = vtanh.pop %v12008
      %v12046 = vtanh.pop %v12009
      %v12047 = vtanh.pop %v12010
      %v12048 = vtanh.pop %v12011
      %v12049 = vtanh.pop %v12012
      %v12050 = vtanh.pop %v12013
      %v12051 = vtanh.pop %v12014
      %v12052 = vtanh.pop %v12015
      %v12053 = vtanh.pop %v12016
      %v12054 = vtanh.pop %v12017
      %v12055 = vtanh.pop %v12018
      %vm12059 = vcmask 1044480
      %v12060 = vrot.slane %v12019, 3
      %v12061 = vrot.slane %v12020, 3
      %v12062 = vsel %vm12059, %v12060, %v12061
      %v12063 = vrot.slane %v12021, 3
      %v12064 = vsel %vm12059, %v12061, %v12063
      %vm12069 = vcmask 1042432
      %v12070 = vrot.slane %v12021, 5
      %v12071 = vrot.slane %v12022, 5
      %v12072 = vsel %vm12069, %v12070, %v12071
      %v12073 = vrot.slane %v12023, 5
      %v12074 = vsel %vm12069, %v12071, %v12073
      %vm12079 = vcmask 1040384
      %v12080 = vrot.slane %v12023, 7
      %v12081 = vrot.slane %v12024, 7
      %v12082 = vsel %vm12079, %v12080, %v12081
      %v12083 = vrot.slane %v12025, 7
      %v12084 = vsel %vm12079, %v12081, %v12083
      %vm12090 = vcmask 1046528
      %v12091 = vrot.slane %v12026, 1
      %v12092 = vrot.slane %v12027, 1
      %v12093 = vsel %vm12090, %v12091, %v12092
      %v12094 = vrot.slane %v12028, 1
      %v12095 = vsel %vm12090, %v12092, %v12094
      %v12100 = vrot.slane %v12028, 3
      %v12101 = vrot.slane %v12029, 3
      %v12102 = vsel %vm12059, %v12100, %v12101
      %v12103 = vrot.slane %v12030, 3
      %v12104 = vsel %vm12059, %v12101, %v12103
      %v12109 = vrot.slane %v12030, 5
      %v12110 = vrot.slane %v12031, 5
      %v12111 = vsel %vm12069, %v12109, %v12110
      %v12112 = vrot.slane %v12032, 5
      %v12113 = vsel %vm12069, %v12110, %v12112
      %v12118 = vrot.slane %v12032, 7
      %v12119 = vrot.slane %v12033, 7
      %v12120 = vsel %vm12079, %v12118, %v12119
      %v12121 = vrot.slane %v12034, 7
      %v12122 = vsel %vm12079, %v12119, %v12121
      %v12128 = vrot.slane %v12035, 1
      %v12129 = vrot.slane %v12036, 1
      %v12130 = vsel %vm12090, %v12128, %v12129
      %v12131 = vrot.slane %v12037, 1
      %v12132 = vsel %vm12090, %v12129, %v12131
      %v12137 = vrot.slane %v12037, 3
      %v12138 = vrot.slane %v12038, 3
      %v12139 = vsel %vm12059, %v12137, %v12138
      %v12140 = vrot.slane %v12039, 3
      %v12141 = vsel %vm12059, %v12138, %v12140
      %v12146 = vrot.slane %v12039, 5
      %v12147 = vrot.slane %v12040, 5
      %v12148 = vsel %vm12069, %v12146, %v12147
      %v12149 = vrot.slane %v12041, 5
      %v12150 = vsel %vm12069, %v12147, %v12149
      %v12155 = vrot.slane %v12041, 7
      %v12156 = vrot.slane %v12042, 7
      %v12157 = vsel %vm12079, %v12155, %v12156
      %v12158 = vrot.slane %v12043, 7
      %v12159 = vsel %vm12079, %v12156, %v12158
      %v12165 = vrot.slane %v12044, 1
      %v12166 = vrot.slane %v12045, 1
      %v12167 = vsel %vm12090, %v12165, %v12166
      %v12168 = vrot.slane %v12046, 1
      %v12169 = vsel %vm12090, %v12166, %v12168
      %v12174 = vrot.slane %v12046, 3
      %v12175 = vrot.slane %v12047, 3
      %v12176 = vsel %vm12059, %v12174, %v12175
      %v12177 = vrot.slane %v12048, 3
      %v12178 = vsel %vm12059, %v12175, %v12177
      %v12183 = vrot.slane %v12048, 5
      %v12184 = vrot.slane %v12049, 5
      %v12185 = vsel %vm12069, %v12183, %v12184
      %v12186 = vrot.slane %v12050, 5
      %v12187 = vsel %vm12069, %v12184, %v12186
      %v12192 = vrot.slane %v12050, 7
      %v12193 = vrot.slane %v12051, 7
      %v12194 = vsel %vm12079, %v12192, %v12193
      %v12195 = vrot.slane %v12052, 7
      %v12196 = vsel %vm12079, %v12193, %v12195
      %v12202 = vrot.slane %v12053, 1
      %v12203 = vrot.slane %v12054, 1
      %v12204 = vsel %vm12090, %v12202, %v12203
      %v12205 = vrot.slane %v12055, 1
      %v12206 = vsel %vm12090, %v12203, %v12205
      %vm12209 = vcmask 23552
      %12210 = vst.msk [vmem:[%s732] sm:$0xff] %vm12209, %v12062
      %12211 = vst.msk [vmem:[%s732 + $0x8] sm:$0xff] %vm12209, %v12064
      %12212 = vst.msk [vmem:[%s732 + $0x10] sm:$0xff] %vm12209, %v12072
      %12213 = vst.msk [vmem:[%s732 + $0x18] sm:$0xff] %vm12209, %v12074
      %12214 = vst.msk [vmem:[%s732 + $0x20] sm:$0xff] %vm12209, %v12082
      %12215 = vst.msk [vmem:[%s732 + $0x28] sm:$0xff] %vm12209, %v12084
      %12216 = vst.msk [vmem:[%s732 + $0x30] sm:$0xff] %vm12209, %v12093
      %12217 = vst.msk [vmem:[%s732 + $0x38] sm:$0xff] %vm12209, %v12095
      %12218 = vst.msk [vmem:[%s732 + $0x40] sm:$0xff] %vm12209, %v12102
      %12219 = vst.msk [vmem:[%s732 + $0x48] sm:$0xff] %vm12209, %v12104
      %12220 = vst.msk [vmem:[%s732 + $0x50] sm:$0xff] %vm12209, %v12111
      %12221 = vst.msk [vmem:[%s732 + $0x58] sm:$0xff] %vm12209, %v12113
      %12222 = vst.msk [vmem:[%s732 + $0x60] sm:$0xff] %vm12209, %v12120
      %12223 = vst.msk [vmem:[%s732 + $0x68] sm:$0xff] %vm12209, %v12122
      %12224 = vst.msk [vmem:[%s732 + $0x70] sm:$0xff] %vm12209, %v12130
      %12225 = vst.msk [vmem:[%s732 + $0x78] sm:$0xff] %vm12209, %v12132
      %12226 = vst.msk [vmem:[%s732 + $0x80] sm:$0xff] %vm12209, %v12139
      %12227 = vst.msk [vmem:[%s732 + $0x88] sm:$0xff] %vm12209, %v12141
      %12228 = vst.msk [vmem:[%s732 + $0x90] sm:$0xff] %vm12209, %v12148
      %12229 = vst.msk [vmem:[%s732 + $0x98] sm:$0xff] %vm12209, %v12150
      %12230 = vst.msk [vmem:[%s732 + $0xa0] sm:$0xff] %vm12209, %v12157
      %12231 = vst.msk [vmem:[%s732 + $0xa8] sm:$0xff] %vm12209, %v12159
      %12232 = vst.msk [vmem:[%s732 + $0xb0] sm:$0xff] %vm12209, %v12167
      %12233 = vst.msk [vmem:[%s732 + $0xb8] sm:$0xff] %vm12209, %v12169
      %12234 = vst.msk [vmem:[%s732 + $0xc0] sm:$0xff] %vm12209, %v12176
      %12235 = vst.msk [vmem:[%s732 + $0xc8] sm:$0xff] %vm12209, %v12178
      %12236 = vst.msk [vmem:[%s732 + $0xd0] sm:$0xff] %vm12209, %v12185
      %12237 = vst.msk [vmem:[%s732 + $0xd8] sm:$0xff] %vm12209, %v12187
      %12238 = vst.msk [vmem:[%s732 + $0xe0] sm:$0xff] %vm12209, %v12194
      %12239 = vst.msk [vmem:[%s732 + $0xe8] sm:$0xff] %vm12209, %v12196
      %12240 = vst.msk [vmem:[%s732 + $0xf0] sm:$0xff] %vm12209, %v12204
      %12241 = vst.msk [vmem:[%s732 + $0xf8] sm:$0xff] %vm12209, %v12206
      %p12242 = scmp.lt.s32.totalorder %s36, 1
      %s12243 = scalar_select %p12242, %s36, 1
      %s12244 = smul.addr %s12243, 32
      %s12245 = smul.addr %s12244, 8
      %s12246 = scalar_lea.vmem %s24, %s12245
      // Predicated region
      $region117: #{tpu_custom_call.1} parent=115 // pred_check
        %p12247 = pneg %p563
      $region118: #{tpu_custom_call.1} parent=115 // pred_check_branch
        %12249 = sbr.rel (%p12247) target = $region120
      $region119: #{tpu_custom_call.1} parent=115 // pred_region
        _
      $region120: #{tpu_custom_call.1} parent=115 // pred_fallthru
        _
    $region116: #{tpu_custom_call.1} parent=5 // pred_fallthru
      _
    %p12250 = scmp.le.s32.totalorder 2, %s31
    // Predicated region
    $region121: #{tpu_custom_call.1} parent=5 // pred_check
      %p12251 = pneg %p12250
    $region122: #{tpu_custom_call.1} parent=5 // pred_check_branch
      %12253 = sbr.rel (%p12251) target = $region124
    $region123: #{tpu_custom_call.1} parent=5 // pred_region
      %s12254 = ssub.s32 %s31, 2
      // Predicated region
      $region125: #{tpu_custom_call.1} parent=123 // pred_check
        %p12255 = pneg %p569
      $region126: #{tpu_custom_call.1} parent=123 // pred_check_branch
        %12257 = sbr.rel (%p12255) target = $region128
      $region127: #{tpu_custom_call.1} parent=123 // pred_region
        %p12258 = scmp.lt.s32.totalorder %s37, 1
        %s12259 = scalar_select %p12258, %s37, 1
        %s12260 = smul.addr %s12259, 32
        %s12261 = smul.addr %s12260, 8
        %s12262 = scalar_lea.vmem %s24, %s12261
      $region128: #{tpu_custom_call.1} parent=123 // pred_fallthru
        _
    $region124: #{tpu_custom_call.1} parent=5 // pred_fallthru
      _
  $region6: #{tpu_custom_call.1} parent=0 // loop_footer
    %s35 = sadd.s32 1, %s31
  $region7: #{tpu_custom_call.1} parent=0 // loop_footer_branch
    %30 = sbr.rel target = $region3
  $region8: #{tpu_custom_call.1} parent=0 // loop_exit
    _

</llo_original>
